<compile_context>
chip_gen: v6e
topology: v6e:2x2x1
jax: 0.10.0
libtpu: 0.0.40
codegen_flags: <defaults>
</compile_context>

<pallas_src>
import numpy as np
import jax
import jax.numpy as jnp
from jax import lax
from jax.experimental import pallas as pl
from jax.experimental.pallas import tpu as pltpu

BN_EPS = 1e-5  # PyTorch BatchNorm1d default eps


def _make_kernel(num_layers, t_trunc, rows):
    """Ref order: x2d, (w_ih_T, w_hh_T, bias) * num_layers, bn_scalars(SMEM),
                  (w_fused, b_fused), (w_T, b) * 4, out, ih0_scratch."""
    num_head = 5  # fused(fc+mlp0) + mlp1..mlp4

    def kernel(*refs):
        idx = 0
        x_ref = refs[idx]; idx += 1
        rnn_refs = []
        for _ in range(num_layers):
            rnn_refs.append((refs[idx], refs[idx + 1], refs[idx + 2]))
            idx += 3
        bn_ref = refs[idx]; idx += 1            # SMEM (2,): [bn_scale, bn_shift]
        head_refs = []
        for _ in range(num_head):
            head_refs.append((refs[idx], refs[idx + 1]))
            idx += 2
        out_ref = refs[idx]; idx += 1
        ih0_ref = refs[idx]                     # (t_trunc*rows, H) hoisted layer-0 ih term

        H = rnn_refs[0][1].shape[0]             # w_hh_T is (H, H)

        # ---- hoisted layer-0 input-to-hidden: one batched matmul over all time steps ----
        w_ih0_ref, _, b0_ref = rnn_refs[0]
        ih0_ref[...] = (
            jnp.dot(x_ref[...], w_ih0_ref[...], preferred_element_type=jnp.float32)
            + b0_ref[...])

        # Load recurrent / inter-layer weights once; they stay resident in vregs (~4 vregs each).
        w_hh = [rnn_refs[l][1][...] for l in range(num_layers)]
        w_ih = [None] + [rnn_refs[l][0][...] for l in range(1, num_layers)]
        bias = [None] + [rnn_refs[l][2][...] for l in range(1, num_layers)]

        # ---- wavefront-interleaved multi-layer tanh RNN (eval-mode forward) ----
        # At super-step s, layer l computes time t = s - l using carries from super-step s-1,
        # so per-super-step layer updates are mutually independent (overlap on MXU/EUP).
        # Exposed chain: t_trunc + num_layers - 1 steps instead of num_layers * t_trunc.
        # TODO(synk): nn.RNN inter-layer dropout (p=0.2) is train-mode-only; no-op in eval.
        h = [jnp.zeros((rows, H), jnp.float32) for _ in range(num_layers)]
        for s in range(t_trunc + num_layers - 1):          # fully unrolled, static slices
            new_h = list(h)
            for l in range(num_layers):                    # program order = MXU push order
                t = s - l
                if 0 <= t < t_trunc:
                    if l == 0:
                        pre = ih0_ref[t * rows:(t + 1) * rows, :]   # sublane-aligned vld
                    else:
                        pre = (jnp.dot(h[l - 1], w_ih[l],
                                       preferred_element_type=jnp.float32) + bias[l])
                    new_h[l] = jnp.tanh(
                        pre + jnp.dot(h[l], w_hh[l], preferred_element_type=jnp.float32))
            h = new_h
        h_final = h[-1]                                    # last layer's state at time t_sel

        # ---- head: ReLU -> BN(eval, folded) -> sigmoid -> fused(fc+mlp0)+ReLU -> 4x Linear+ReLU
        s_act = jnp.maximum(h_final, 0.0)
        s_act = s_act * bn_ref[0] + bn_ref[1]              # BN folded to scalar scale/shift
        s_act = jax.nn.sigmoid(s_act)
        for w_ref, b_ref in head_refs:
            s_act = jnp.maximum(
                jnp.dot(s_act, w_ref[...], preferred_element_type=jnp.float32) + b_ref[...],
                0.0)
        out_ref[...] = s_act

    return kernel


def estimator_1d_forward(x, params):
    """x: (B, T, input_size) float32, matching PyTorch batch_first=True input."""
    B, T, I = x.shape
    rnn_params = params["rnn"]                     # list of (w_ih_T, w_hh_T, bias(1,H))
    num_layers = len(rnn_params)
    H = rnn_params[0][0].shape[1]
    t_sel = H - 1                                  # output[:, output.shape[2] - 1]
    assert t_sel < T, "selected time index (hidden_size-1) must be < sequence length"
    t_trunc = t_sel + 1                            # causal RNN: steps past t_sel are dead work
    out_size = params["mlp"][-1][0].shape[1]

    rows = max(8, ((B + 7) // 8) * 8)              # pad batch rows to full sublanes

    # Fold eval-mode BatchNorm (channel = t_sel) into a scalar scale/shift.
    gamma, beta, r_mean, r_var = params["bn"]
    bn_scale = gamma[t_sel] * lax.rsqrt(r_var[t_sel] + BN_EPS)
    bn_shift = beta[t_sel] - r_mean[t_sel] * bn_scale
    bn_scalars = jnp.stack([bn_scale, bn_shift]).astype(jnp.float32)      # (2,) -> SMEM

    # Fuse fc into the first MLP layer (both affine, no activation between them).
    hp = lax.Precision.HIGHEST
    fc_w_T, fc_b = params["fc"]
    w0_T, b0 = params["mlp"][0]
    w_fused = jnp.dot(fc_w_T, w0_T, precision=hp)                          # (H, 4)
    b_fused = jnp.dot(fc_b, w0_T, precision=hp) + b0                       # (1, 4)

    # Time-major, truncated, batch padded to `rows`, flattened to 2-D (t_trunc*rows, I).
    x_tm = jnp.transpose(x[:, :t_trunc], (1, 0, 2)).astype(jnp.float32)    # (t_trunc, B, I)
    x_tm = jnp.pad(x_tm, ((0, 0), (0, rows - B), (0, 0)))
    x_2d = x_tm.reshape(t_trunc * rows, I)

    inputs = [x_2d]
    for w_ih_T, w_hh_T, b in rnn_params:
        inputs += [w_ih_T, w_hh_T, b]
    inputs += [bn_scalars, w_fused, b_fused]
    for w_T, b in params["mlp"][1:]:
        inputs += [w_T, b]

    vmem = pl.BlockSpec(memory_space=pltpu.MemorySpace.VMEM)
    smem = pl.BlockSpec(memory_space=pltpu.MemorySpace.SMEM)
    in_specs = [vmem] * len(inputs)
    in_specs[1 + 3 * num_layers] = smem            # bn_scalars goes to SMEM

    kernel = _make_kernel(num_layers, t_trunc, rows)

    # Advisory cost estimate (kernel is latency-bound; this just helps XLA schedule the call).
    flops = 2 * t_trunc * rows * I * H                                   # hoisted layer-0 ih
    flops += 2 * t_trunc * rows * H * H                                  # layer-0 recurrence
    flops += (num_layers - 1) * 4 * t_trunc * rows * H * H               # upper layers (ih+hh)
    flops += 2 * rows * (H * 4 + 4 * 16 + 16 * 32 + 32 * 16 + 16 * out_size)
    transc = (num_layers * t_trunc + 1) * rows * H
    bytes_acc = sum(int(np.prod(a.shape)) * 4 for a in inputs) + rows * out_size * 4

    out = pl.pallas_call(
        kernel,
        out_shape=jax.ShapeDtypeStruct((rows, out_size), jnp.float32),
        in_specs=in_specs,
        out_specs=vmem,
        scratch_shapes=[
            pltpu.VMEM((t_trunc * rows, H), jnp.float32),   # hoisted layer-0 ih term
        ],
        cost_estimate=pl.CostEstimate(flops=int(flops), transcendentals=int(transc),
                                      bytes_accessed=int(bytes_acc)),
    )(*inputs)
    return out[:B]                                  # drop sublane-padding rows


def reference_forward(x, params):
    """Pure-JAX reference mirroring the PyTorch eval-mode forward (full sequence length)."""
    hp = lax.Precision.HIGHEST
    B, T, _ = x.shape
    prev = jnp.transpose(x, (1, 0, 2))             # (T, B, in)
    for w_ih_T, w_hh_T, b in params["rnn"]:
        H = w_ih_T.shape[1]
        h = jnp.zeros((B, H), jnp.float32)
        outs = []
        for t in range(T):
            h = jnp.tanh(jnp.dot(prev[t], w_ih_T, precision=hp)
                         + jnp.dot(h, w_hh_T, precision=hp) + b)
            outs.append(h)
        prev = jnp.stack(outs, axis=0)             # (T, B, H)
    out = jnp.transpose(prev, (1, 0, 2))           # (B, T, H) like PyTorch batch_first output
    out = jnp.maximum(out, 0.0)
    gamma, beta, r_mean, r_var = params["bn"]
    out = ((out - r_mean[None, :, None])
           * (gamma[None, :, None] * lax.rsqrt(r_var[None, :, None] + BN_EPS))
           + beta[None, :, None])
    out = jax.nn.sigmoid(out)
    s = out[:, out.shape[2] - 1]                   # (B, H)
    fc_w_T, fc_b = params["fc"]
    s = jnp.dot(s, fc_w_T, precision=hp) + fc_b
    for w_T, b in params["mlp"]:
        s = jnp.maximum(jnp.dot(s, w_T, precision=hp) + b, 0.0)
    return s


if __name__ == "__main__":
    input_size, output_size, hidden_size, num_layers = 8, 4, 32, 2
    batch = 2
    # BatchNorm1d(num_layers*hidden_size) is applied to (B, T, H) with T as the channel
    # dim, so the sequence length must equal num_layers * hidden_size.
    seq_len = num_layers * hidden_size

    key = jax.random.PRNGKey(0)
    kit = iter(jax.random.split(key, 32))

    def uinit(shape, bound):
        return jax.random.uniform(next(kit), shape, jnp.float32, -bound, bound)

    params = {}

    k_rnn = 1.0 / np.sqrt(hidden_size)
    rnn = []
    for l in range(num_layers):
        in_sz = input_size if l == 0 else hidden_size
        w_ih = uinit((hidden_size, in_sz), k_rnn)          # PyTorch weight_ih_l{l}
        w_hh = uinit((hidden_size, hidden_size), k_rnn)    # PyTorch weight_hh_l{l}
        b_ih = uinit((hidden_size,), k_rnn)
        b_hh = uinit((hidden_size,), k_rnn)
        rnn.append((w_ih.T, w_hh.T, (b_ih + b_hh)[None, :]))
    params["rnn"] = rnn

    C = num_layers * hidden_size
    gamma = jax.random.uniform(next(kit), (C,), jnp.float32, 0.5, 1.5)
    beta = jax.random.uniform(next(kit), (C,), jnp.float32, -0.5, 0.5)
    r_mean = jax.random.uniform(next(kit), (C,), jnp.float32, -0.5, 0.5)
    r_var = jax.random.uniform(next(kit), (C,), jnp.float32, 0.5, 1.5)
    params["bn"] = (gamma, beta, r_mean, r_var)

    k_fc = 1.0 / np.sqrt(hidden_size)
    fc_w = uinit((hidden_size, hidden_size), k_fc)
    fc_b = uinit((hidden_size,), k_fc)
    params["fc"] = (fc_w.T, fc_b[None, :])

    mlp = []
    for in_sz, out_sz in zip([hidden_size, 4, 16, 32, 16], [4, 16, 32, 16, output_size]):
        kb = 1.0 / np.sqrt(in_sz)
        w = uinit((out_sz, in_sz), kb)
        b = uinit((out_sz,), kb)
        mlp.append((w.T, b[None, :]))
    params["mlp"] = mlp
    # NOTE: self.fc_output is defined in __init__ but never used in forward(); omitted.

    x = jax.random.normal(next(kit), (batch, seq_len, input_size), jnp.float32)

    out = jax.block_until_ready(estimator_1d_forward(x, params))
    ref = jax.block_until_ready(reference_forward(x, params))
    np.testing.assert_allclose(np.asarray(out), np.asarray(ref), rtol=5e-3, atol=5e-3)
    print("KERNEL_OK")
</pallas_src>

<mosaic_0001>
module attributes {stable_mosaic.version = 11 : i64} {
  func.func @kernel(%arg0: memref<256x8xf32, #tpu.memory_space<vmem>>, %arg1: memref<8x32xf32, #tpu.memory_space<vmem>>, %arg2: memref<32x32xf32, #tpu.memory_space<vmem>>, %arg3: memref<1x32xf32, #tpu.memory_space<vmem>>, %arg4: memref<32x32xf32, #tpu.memory_space<vmem>>, %arg5: memref<32x32xf32, #tpu.memory_space<vmem>>, %arg6: memref<1x32xf32, #tpu.memory_space<vmem>>, %arg7: memref<2xf32, #tpu.memory_space<smem>>, %arg8: memref<32x4xf32, #tpu.memory_space<vmem>>, %arg9: memref<1x4xf32, #tpu.memory_space<vmem>>, %arg10: memref<4x16xf32, #tpu.memory_space<vmem>>, %arg11: memref<1x16xf32, #tpu.memory_space<vmem>>, %arg12: memref<16x32xf32, #tpu.memory_space<vmem>>, %arg13: memref<1x32xf32, #tpu.memory_space<vmem>>, %arg14: memref<32x16xf32, #tpu.memory_space<vmem>>, %arg15: memref<1x16xf32, #tpu.memory_space<vmem>>, %arg16: memref<16x4xf32, #tpu.memory_space<vmem>>, %arg17: memref<1x4xf32, #tpu.memory_space<vmem>>, %arg18: memref<8x4xf32, #tpu.memory_space<vmem>>, %arg19: memref<256x32xf32, #tpu.memory_space<vmem>>) attributes {dimension_semantics = [], scalar_prefetch = 0 : i64, scratch_operands = 1 : i64, tpu.core_type = #tpu.core_type<tc>} {
    %c0 = arith.constant 0 : index
    %c0_0 = arith.constant 0 : index
    %0 = vector.load %arg0[%c0, %c0_0] : memref<256x8xf32, #tpu.memory_space<vmem>>, vector<256x8xf32>
    %c0_1 = arith.constant 0 : index
    %c0_2 = arith.constant 0 : index
    %1 = vector.load %arg1[%c0_1, %c0_2] : memref<8x32xf32, #tpu.memory_space<vmem>>, vector<8x32xf32>
    %cst = arith.constant dense<0.000000e+00> : vector<256x32xf32>
    %2 = tpu.matmul %0, %1, %cst {dimension_numbers = #tpu.dot_dimension_numbers<[1], [0], [0], [1], [0, 0, 1, 1], [], []>} : vector<256x8xf32>, vector<8x32xf32>, vector<256x32xf32> -> vector<256x32xf32>
    %c0_3 = arith.constant 0 : index
    %c0_4 = arith.constant 0 : index
    %3 = vector.load %arg3[%c0_3, %c0_4] : memref<1x32xf32, #tpu.memory_space<vmem>>, vector<1x32xf32>
    %4 = vector.broadcast %3 : vector<1x32xf32> to vector<256x32xf32>
    %5 = arith.addf %2, %4 : vector<256x32xf32>
    %c0_5 = arith.constant 0 : index
    %c0_6 = arith.constant 0 : index
    %6 = vector.load %arg19[%c0_5, %c0_6] : memref<256x32xf32, #tpu.memory_space<vmem>>, vector<256x32xf32>
    tpu.vector_store %arg19[%c0_5, %c0_6], %5 {strides = array<i32>} : memref<256x32xf32, #tpu.memory_space<vmem>>, vector<256x32xf32>,
    %c0_7 = arith.constant 0 : index
    %c0_8 = arith.constant 0 : index
    %7 = vector.load %arg2[%c0_7, %c0_8] : memref<32x32xf32, #tpu.memory_space<vmem>>, vector<32x32xf32>
    %c0_9 = arith.constant 0 : index
    %c0_10 = arith.constant 0 : index
    %8 = vector.load %arg5[%c0_9, %c0_10] : memref<32x32xf32, #tpu.memory_space<vmem>>, vector<32x32xf32>
    %c0_11 = arith.constant 0 : index
    %c0_12 = arith.constant 0 : index
    %9 = vector.load %arg4[%c0_11, %c0_12] : memref<32x32xf32, #tpu.memory_space<vmem>>, vector<32x32xf32>
    %c0_13 = arith.constant 0 : index
    %c0_14 = arith.constant 0 : index
    %10 = vector.load %arg6[%c0_13, %c0_14] : memref<1x32xf32, #tpu.memory_space<vmem>>, vector<1x32xf32>
    %cst_15 = arith.constant 0.000000e+00 : f32
    %11 = vector.broadcast %cst_15 : f32 to vector<8x32xf32>
    %cst_16 = arith.constant 0.000000e+00 : f32
    %12 = vector.broadcast %cst_16 : f32 to vector<8x32xf32>
    %c0_17 = arith.constant 0 : index
    %c0_18 = arith.constant 0 : index
    %13 = vector.load %arg19[%c0_17, %c0_18] : memref<256x32xf32, #tpu.memory_space<vmem>>, vector<8x32xf32>
    %cst_19 = arith.constant dense<0.000000e+00> : vector<8x32xf32>
    %14 = tpu.matmul %11, %7, %cst_19 {dimension_numbers = #tpu.dot_dimension_numbers<[1], [0], [0], [1], [0, 0, 1, 1], [], []>} : vector<8x32xf32>, vector<32x32xf32>, vector<8x32xf32> -> vector<8x32xf32>
    %15 = arith.addf %13, %14 : vector<8x32xf32>
    %16 = math.tanh %15 : vector<8x32xf32>
    %c8 = arith.constant 8 : index
    %c0_20 = arith.constant 0 : index
    %17 = vector.load %arg19[%c8, %c0_20] : memref<256x32xf32, #tpu.memory_space<vmem>>, vector<8x32xf32>
    %cst_21 = arith.constant dense<0.000000e+00> : vector<8x32xf32>
    %18 = tpu.matmul %16, %7, %cst_21 {dimension_numbers = #tpu.dot_dimension_numbers<[1], [0], [0], [1], [0, 0, 1, 1], [], []>} : vector<8x32xf32>, vector<32x32xf32>, vector<8x32xf32> -> vector<8x32xf32>
    %19 = arith.addf %17, %18 : vector<8x32xf32>
    %20 = math.tanh %19 : vector<8x32xf32>
    %cst_22 = arith.constant dense<0.000000e+00> : vector<8x32xf32>
    %21 = tpu.matmul %16, %9, %cst_22 {dimension_numbers = #tpu.dot_dimension_numbers<[1], [0], [0], [1], [0, 0, 1, 1], [], []>} : vector<8x32xf32>, vector<32x32xf32>, vector<8x32xf32> -> vector<8x32xf32>
    %22 = vector.broadcast %10 : vector<1x32xf32> to vector<8x32xf32>
    %23 = arith.addf %21, %22 : vector<8x32xf32>
    %cst_23 = arith.constant dense<0.000000e+00> : vector<8x32xf32>
    %24 = tpu.matmul %12, %8, %cst_23 {dimension_numbers = #tpu.dot_dimension_numbers<[1], [0], [0], [1], [0, 0, 1, 1], [], []>} : vector<8x32xf32>, vector<32x32xf32>, vector<8x32xf32> -> vector<8x32xf32>
    %25 = arith.addf %23, %24 : vector<8x32xf32>
    %26 = math.tanh %25 : vector<8x32xf32>
    %c16 = arith.constant 16 : index
    %c0_24 = arith.constant 0 : index
    %27 = vector.load %arg19[%c16, %c0_24] : memref<256x32xf32, #tpu.memory_space<vmem>>, vector<8x32xf32>
    %cst_25 = arith.constant dense<0.000000e+00> : vector<8x32xf32>
    %28 = tpu.matmul %20, %7, %cst_25 {dimension_numbers = #tpu.dot_dimension_numbers<[1], [0], [0], [1], [0, 0, 1, 1], [], []>} : vector<8x32xf32>, vector<32x32xf32>, vector<8x32xf32> -> vector<8x32xf32>
    %29 = arith.addf %27, %28 : vector<8x32xf32>
    %30 = math.tanh %29 : vector<8x32xf32>
    %cst_26 = arith.constant dense<0.000000e+00> : vector<8x32xf32>
    %31 = tpu.matmul %20, %9, %cst_26 {dimension_numbers = #tpu.dot_dimension_numbers<[1], [0], [0], [1], [0, 0, 1, 1], [], []>} : vector<8x32xf32>, vector<32x32xf32>, vector<8x32xf32> -> vector<8x32xf32>
    %32 = vector.broadcast %10 : vector<1x32xf32> to vector<8x32xf32>
    %33 = arith.addf %31, %32 : vector<8x32xf32>
    %cst_27 = arith.constant dense<0.000000e+00> : vector<8x32xf32>
    %34 = tpu.matmul %26, %8, %cst_27 {dimension_numbers = #tpu.dot_dimension_numbers<[1], [0], [0], [1], [0, 0, 1, 1], [], []>} : vector<8x32xf32>, vector<32x32xf32>, vector<8x32xf32> -> vector<8x32xf32>
    %35 = arith.addf %33, %34 : vector<8x32xf32>
    %36 = math.tanh %35 : vector<8x32xf32>
    %c24 = arith.constant 24 : index
    %c0_28 = arith.constant 0 : index
    %37 = vector.load %arg19[%c24, %c0_28] : memref<256x32xf32, #tpu.memory_space<vmem>>, vector<8x32xf32>
    %cst_29 = arith.constant dense<0.000000e+00> : vector<8x32xf32>
    %38 = tpu.matmul %30, %7, %cst_29 {dimension_numbers = #tpu.dot_dimension_numbers<[1], [0], [0], [1], [0, 0, 1, 1], [], []>} : vector<8x32xf32>, vector<32x32xf32>, vector<8x32xf32> -> vector<8x32xf32>
    %39 = arith.addf %37, %38 : vector<8x32xf32>
    %40 = math.tanh %39 : vector<8x32xf32>
    %cst_30 = arith.constant dense<0.000000e+00> : vector<8x32xf32>
    %41 = tpu.matmul %30, %9, %cst_30 {dimension_numbers = #tpu.dot_dimension_numbers<[1], [0], [0], [1], [0, 0, 1, 1], [], []>} : vector<8x32xf32>, vector<32x32xf32>, vector<8x32xf32> -> vector<8x32xf32>
    %42 = vector.broadcast %10 : vector<1x32xf32> to vector<8x32xf32>
    %43 = arith.addf %41, %42 : vector<8x32xf32>
    %cst_31 = arith.constant dense<0.000000e+00> : vector<8x32xf32>
    %44 = tpu.matmul %36, %8, %cst_31 {dimension_numbers = #tpu.dot_dimension_numbers<[1], [0], [0], [1], [0, 0, 1, 1], [], []>} : vector<8x32xf32>, vector<32x32xf32>, vector<8x32xf32> -> vector<8x32xf32>
    %45 = arith.addf %43, %44 : vector<8x32xf32>
    %46 = math.tanh %45 : vector<8x32xf32>
    %c32 = arith.constant 32 : index
    %c0_32 = arith.constant 0 : index
    %47 = vector.load %arg19[%c32, %c0_32] : memref<256x32xf32, #tpu.memory_space<vmem>>, vector<8x32xf32>
    %cst_33 = arith.constant dense<0.000000e+00> : vector<8x32xf32>
    %48 = tpu.matmul %40, %7, %cst_33 {dimension_numbers = #tpu.dot_dimension_numbers<[1], [0], [0], [1], [0, 0, 1, 1], [], []>} : vector<8x32xf32>, vector<32x32xf32>, vector<8x32xf32> -> vector<8x32xf32>
    %49 = arith.addf %47, %48 : vector<8x32xf32>
    %50 = math.tanh %49 : vector<8x32xf32>
    %cst_34 = arith.constant dense<0.000000e+00> : vector<8x32xf32>
    %51 = tpu.matmul %40, %9, %cst_34 {dimension_numbers = #tpu.dot_dimension_numbers<[1], [0], [0], [1], [0, 0, 1, 1], [], []>} : vector<8x32xf32>, vector<32x32xf32>, vector<8x32xf32> -> vector<8x32xf32>
    %52 = vector.broadcast %10 : vector<1x32xf32> to vector<8x32xf32>
    %53 = arith.addf %51, %52 : vector<8x32xf32>
    %cst_35 = arith.constant dense<0.000000e+00> : vector<8x32xf32>
    %54 = tpu.matmul %46, %8, %cst_35 {dimension_numbers = #tpu.dot_dimension_numbers<[1], [0], [0], [1], [0, 0, 1, 1], [], []>} : vector<8x32xf32>, vector<32x32xf32>, vector<8x32xf32> -> vector<8x32xf32>
    %55 = arith.addf %53, %54 : vector<8x32xf32>
    %56 = math.tanh %55 : vector<8x32xf32>
    %c40 = arith.constant 40 : index
    %c0_36 = arith.constant 0 : index
    %57 = vector.load %arg19[%c40, %c0_36] : memref<256x32xf32, #tpu.memory_space<vmem>>, vector<8x32xf32>
    %cst_37 = arith.constant dense<0.000000e+00> : vector<8x32xf32>
    %58 = tpu.matmul %50, %7, %cst_37 {dimension_numbers = #tpu.dot_dimension_numbers<[1], [0], [0], [1], [0, 0, 1, 1], [], []>} : vector<8x32xf32>, vector<32x32xf32>, vector<8x32xf32> -> vector<8x32xf32>
    %59 = arith.addf %57, %58 : vector<8x32xf32>
    %60 = math.tanh %59 : vector<8x32xf32>
    %cst_38 = arith.constant dense<0.000000e+00> : vector<8x32xf32>
    %61 = tpu.matmul %50, %9, %cst_38 {dimension_numbers = #tpu.dot_dimension_numbers<[1], [0], [0], [1], [0, 0, 1, 1], [], []>} : vector<8x32xf32>, vector<32x32xf32>, vector<8x32xf32> -> vector<8x32xf32>
    %62 = vector.broadcast %10 : vector<1x32xf32> to vector<8x32xf32>
    %63 = arith.addf %61, %62 : vector<8x32xf32>
    %cst_39 = arith.constant dense<0.000000e+00> : vector<8x32xf32>
    %64 = tpu.matmul %56, %8, %cst_39 {dimension_numbers = #tpu.dot_dimension_numbers<[1], [0], [0], [1], [0, 0, 1, 1], [], []>} : vector<8x32xf32>, vector<32x32xf32>, vector<8x32xf32> -> vector<8x32xf32>
    %65 = arith.addf %63, %64 : vector<8x32xf32>
    %66 = math.tanh %65 : vector<8x32xf32>
    %c48 = arith.constant 48 : index
    %c0_40 = arith.constant 0 : index
    %67 = vector.load %arg19[%c48, %c0_40] : memref<256x32xf32, #tpu.memory_space<vmem>>, vector<8x32xf32>
    %cst_41 = arith.constant dense<0.000000e+00> : vector<8x32xf32>
    %68 = tpu.matmul %60, %7, %cst_41 {dimension_numbers = #tpu.dot_dimension_numbers<[1], [0], [0], [1], [0, 0, 1, 1], [], []>} : vector<8x32xf32>, vector<32x32xf32>, vector<8x32xf32> -> vector<8x32xf32>
    %69 = arith.addf %67, %68 : vector<8x32xf32>
    %70 = math.tanh %69 : vector<8x32xf32>
    %cst_42 = arith.constant dense<0.000000e+00> : vector<8x32xf32>
    %71 = tpu.matmul %60, %9, %cst_42 {dimension_numbers = #tpu.dot_dimension_numbers<[1], [0], [0], [1], [0, 0, 1, 1], [], []>} : vector<8x32xf32>, vector<32x32xf32>, vector<8x32xf32> -> vector<8x32xf32>
    %72 = vector.broadcast %10 : vector<1x32xf32> to vector<8x32xf32>
    %73 = arith.addf %71, %72 : vector<8x32xf32>
    %cst_43 = arith.constant dense<0.000000e+00> : vector<8x32xf32>
    %74 = tpu.matmul %66, %8, %cst_43 {dimension_numbers = #tpu.dot_dimension_numbers<[1], [0], [0], [1], [0, 0, 1, 1], [], []>} : vector<8x32xf32>, vector<32x32xf32>, vector<8x32xf32> -> vector<8x32xf32>
    %75 = arith.addf %73, %74 : vector<8x32xf32>
    %76 = math.tanh %75 : vector<8x32xf32>
    %c56 = arith.constant 56 : index
    %c0_44 = arith.constant 0 : index
    %77 = vector.load %arg19[%c56, %c0_44] : memref<256x32xf32, #tpu.memory_space<vmem>>, vector<8x32xf32>
    %cst_45 = arith.constant dense<0.000000e+00> : vector<8x32xf32>
    %78 = tpu.matmul %70, %7, %cst_45 {dimension_numbers = #tpu.dot_dimension_numbers<[1], [0], [0], [1], [0, 0, 1, 1], [], []>} : vector<8x32xf32>, vector<32x32xf32>, vector<8x32xf32> -> vector<8x32xf32>
    %79 = arith.addf %77, %78 : vector<8x32xf32>
    %80 = math.tanh %79 : vector<8x32xf32>
    %cst_46 = arith.constant dense<0.000000e+00> : vector<8x32xf32>
    %81 = tpu.matmul %70, %9, %cst_46 {dimension_numbers = #tpu.dot_dimension_numbers<[1], [0], [0], [1], [0, 0, 1, 1], [], []>} : vector<8x32xf32>, vector<32x32xf32>, vector<8x32xf32> -> vector<8x32xf32>
    %82 = vector.broadcast %10 : vector<1x32xf32> to vector<8x32xf32>
    %83 = arith.addf %81, %82 : vector<8x32xf32>
    %cst_47 = arith.constant dense<0.000000e+00> : vector<8x32xf32>
    %84 = tpu.matmul %76, %8, %cst_47 {dimension_numbers = #tpu.dot_dimension_numbers<[1], [0], [0], [1], [0, 0, 1, 1], [], []>} : vector<8x32xf32>, vector<32x32xf32>, vector<8x32xf32> -> vector<8x32xf32>
    %85 = arith.addf %83, %84 : vector<8x32xf32>
    %86 = math.tanh %85 : vector<8x32xf32>
    %c64 = arith.constant 64 : index
    %c0_48 = arith.constant 0 : index
    %87 = vector.load %arg19[%c64, %c0_48] : memref<256x32xf32, #tpu.memory_space<vmem>>, vector<8x32xf32>
    %cst_49 = arith.constant dense<0.000000e+00> : vector<8x32xf32>
    %88 = tpu.matmul %80, %7, %cst_49 {dimension_numbers = #tpu.dot_dimension_numbers<[1], [0], [0], [1], [0, 0, 1, 1], [], []>} : vector<8x32xf32>, vector<32x32xf32>, vector<8x32xf32> -> vector<8x32xf32>
    %89 = arith.addf %87, %88 : vector<8x32xf32>
    %90 = math.tanh %89 : vector<8x32xf32>
    %cst_50 = arith.constant dense<0.000000e+00> : vector<8x32xf32>
    %91 = tpu.matmul %80, %9, %cst_50 {dimension_numbers = #tpu.dot_dimension_numbers<[1], [0], [0], [1], [0, 0, 1, 1], [], []>} : vector<8x32xf32>, vector<32x32xf32>, vector<8x32xf32> -> vector<8x32xf32>
    %92 = vector.broadcast %10 : vector<1x32xf32> to vector<8x32xf32>
    %93 = arith.addf %91, %92 : vector<8x32xf32>
    %cst_51 = arith.constant dense<0.000000e+00> : vector<8x32xf32>
    %94 = tpu.matmul %86, %8, %cst_51 {dimension_numbers = #tpu.dot_dimension_numbers<[1], [0], [0], [1], [0, 0, 1, 1], [], []>} : vector<8x32xf32>, vector<32x32xf32>, vector<8x32xf32> -> vector<8x32xf32>
    %95 = arith.addf %93, %94 : vector<8x32xf32>
    %96 = math.tanh %95 : vector<8x32xf32>
    %c72 = arith.constant 72 : index
    %c0_52 = arith.constant 0 : index
    %97 = vector.load %arg19[%c72, %c0_52] : memref<256x32xf32, #tpu.memory_space<vmem>>, vector<8x32xf32>
    %cst_53 = arith.constant dense<0.000000e+00> : vector<8x32xf32>
    %98 = tpu.matmul %90, %7, %cst_53 {dimension_numbers = #tpu.dot_dimension_numbers<[1], [0], [0], [1], [0, 0, 1, 1], [], []>} : vector<8x32xf32>, vector<32x32xf32>, vector<8x32xf32> -> vector<8x32xf32>
    %99 = arith.addf %97, %98 : vector<8x32xf32>
    %100 = math.tanh %99 : vector<8x32xf32>
    %cst_54 = arith.constant dense<0.000000e+00> : vector<8x32xf32>
    %101 = tpu.matmul %90, %9, %cst_54 {dimension_numbers = #tpu.dot_dimension_numbers<[1], [0], [0], [1], [0, 0, 1, 1], [], []>} : vector<8x32xf32>, vector<32x32xf32>, vector<8x32xf32> -> vector<8x32xf32>
    %102 = vector.broadcast %10 : vector<1x32xf32> to vector<8x32xf32>
    %103 = arith.addf %101, %102 : vector<8x32xf32>
    %cst_55 = arith.constant dense<0.000000e+00> : vector<8x32xf32>
    %104 = tpu.matmul %96, %8, %cst_55 {dimension_numbers = #tpu.dot_dimension_numbers<[1], [0], [0], [1], [0, 0, 1, 1], [], []>} : vector<8x32xf32>, vector<32x32xf32>, vector<8x32xf32> -> vector<8x32xf32>
    %105 = arith.addf %103, %104 : vector<8x32xf32>
    %106 = math.tanh %105 : vector<8x32xf32>
    %c80 = arith.constant 80 : index
    %c0_56 = arith.constant 0 : index
    %107 = vector.load %arg19[%c80, %c0_56] : memref<256x32xf32, #tpu.memory_space<vmem>>, vector<8x32xf32>
    %cst_57 = arith.constant dense<0.000000e+00> : vector<8x32xf32>
    %108 = tpu.matmul %100, %7, %cst_57 {dimension_numbers = #tpu.dot_dimension_numbers<[1], [0], [0], [1], [0, 0, 1, 1], [], []>} : vector<8x32xf32>, vector<32x32xf32>, vector<8x32xf32> -> vector<8x32xf32>
    %109 = arith.addf %107, %108 : vector<8x32xf32>
    %110 = math.tanh %109 : vector<8x32xf32>
    %cst_58 = arith.constant dense<0.000000e+00> : vector<8x32xf32>
    %111 = tpu.matmul %100, %9, %cst_58 {dimension_numbers = #tpu.dot_dimension_numbers<[1], [0], [0], [1], [0, 0, 1, 1], [], []>} : vector<8x32xf32>, vector<32x32xf32>, vector<8x32xf32> -> vector<8x32xf32>
    %112 = vector.broadcast %10 : vector<1x32xf32> to vector<8x32xf32>
    %113 = arith.addf %111, %112 : vector<8x32xf32>
    %cst_59 = arith.constant dense<0.000000e+00> : vector<8x32xf32>
    %114 = tpu.matmul %106, %8, %cst_59 {dimension_numbers = #tpu.dot_dimension_numbers<[1], [0], [0], [1], [0, 0, 1, 1], [], []>} : vector<8x32xf32>, vector<32x32xf32>, vector<8x32xf32> -> vector<8x32xf32>
    %115 = arith.addf %113, %114 : vector<8x32xf32>
    %116 = math.tanh %115 : vector<8x32xf32>
    %c88 = arith.constant 88 : index
    %c0_60 = arith.constant 0 : index
    %117 = vector.load %arg19[%c88, %c0_60] : memref<256x32xf32, #tpu.memory_space<vmem>>, vector<8x32xf32>
    %cst_61 = arith.constant dense<0.000000e+00> : vector<8x32xf32>
    %118 = tpu.matmul %110, %7, %cst_61 {dimension_numbers = #tpu.dot_dimension_numbers<[1], [0], [0], [1], [0, 0, 1, 1], [], []>} : vector<8x32xf32>, vector<32x32xf32>, vector<8x32xf32> -> vector<8x32xf32>
    %119 = arith.addf %117, %118 : vector<8x32xf32>
    %120 = math.tanh %119 : vector<8x32xf32>
    %cst_62 = arith.constant dense<0.000000e+00> : vector<8x32xf32>
    %121 = tpu.matmul %110, %9, %cst_62 {dimension_numbers = #tpu.dot_dimension_numbers<[1], [0], [0], [1], [0, 0, 1, 1], [], []>} : vector<8x32xf32>, vector<32x32xf32>, vector<8x32xf32> -> vector<8x32xf32>
    %122 = vector.broadcast %10 : vector<1x32xf32> to vector<8x32xf32>
    %123 = arith.addf %121, %122 : vector<8x32xf32>
    %cst_63 = arith.constant dense<0.000000e+00> : vector<8x32xf32>
    %124 = tpu.matmul %116, %8, %cst_63 {dimension_numbers = #tpu.dot_dimension_numbers<[1], [0], [0], [1], [0, 0, 1, 1], [], []>} : vector<8x32xf32>, vector<32x32xf32>, vector<8x32xf32> -> vector<8x32xf32>
    %125 = arith.addf %123, %124 : vector<8x32xf32>
    %126 = math.tanh %125 : vector<8x32xf32>
    %c96 = arith.constant 96 : index
    %c0_64 = arith.constant 0 : index
    %127 = vector.load %arg19[%c96, %c0_64] : memref<256x32xf32, #tpu.memory_space<vmem>>, vector<8x32xf32>
    %cst_65 = arith.constant dense<0.000000e+00> : vector<8x32xf32>
    %128 = tpu.matmul %120, %7, %cst_65 {dimension_numbers = #tpu.dot_dimension_numbers<[1], [0], [0], [1], [0, 0, 1, 1], [], []>} : vector<8x32xf32>, vector<32x32xf32>, vector<8x32xf32> -> vector<8x32xf32>
    %129 = arith.addf %127, %128 : vector<8x32xf32>
    %130 = math.tanh %129 : vector<8x32xf32>
    %cst_66 = arith.constant dense<0.000000e+00> : vector<8x32xf32>
    %131 = tpu.matmul %120, %9, %cst_66 {dimension_numbers = #tpu.dot_dimension_numbers<[1], [0], [0], [1], [0, 0, 1, 1], [], []>} : vector<8x32xf32>, vector<32x32xf32>, vector<8x32xf32> -> vector<8x32xf32>
    %132 = vector.broadcast %10 : vector<1x32xf32> to vector<8x32xf32>
    %133 = arith.addf %131, %132 : vector<8x32xf32>
    %cst_67 = arith.constant dense<0.000000e+00> : vector<8x32xf32>
    %134 = tpu.matmul %126, %8, %cst_67 {dimension_numbers = #tpu.dot_dimension_numbers<[1], [0], [0], [1], [0, 0, 1, 1], [], []>} : vector<8x32xf32>, vector<32x32xf32>, vector<8x32xf32> -> vector<8x32xf32>
    %135 = arith.addf %133, %134 : vector<8x32xf32>
    %136 = math.tanh %135 : vector<8x32xf32>
    %c104 = arith.constant 104 : index
    %c0_68 = arith.constant 0 : index
    %137 = vector.load %arg19[%c104, %c0_68] : memref<256x32xf32, #tpu.memory_space<vmem>>, vector<8x32xf32>
    %cst_69 = arith.constant dense<0.000000e+00> : vector<8x32xf32>
    %138 = tpu.matmul %130, %7, %cst_69 {dimension_numbers = #tpu.dot_dimension_numbers<[1], [0], [0], [1], [0, 0, 1, 1], [], []>} : vector<8x32xf32>, vector<32x32xf32>, vector<8x32xf32> -> vector<8x32xf32>
    %139 = arith.addf %137, %138 : vector<8x32xf32>
    %140 = math.tanh %139 : vector<8x32xf32>
    %cst_70 = arith.constant dense<0.000000e+00> : vector<8x32xf32>
    %141 = tpu.matmul %130, %9, %cst_70 {dimension_numbers = #tpu.dot_dimension_numbers<[1], [0], [0], [1], [0, 0, 1, 1], [], []>} : vector<8x32xf32>, vector<32x32xf32>, vector<8x32xf32> -> vector<8x32xf32>
    %142 = vector.broadcast %10 : vector<1x32xf32> to vector<8x32xf32>
    %143 = arith.addf %141, %142 : vector<8x32xf32>
    %cst_71 = arith.constant dense<0.000000e+00> : vector<8x32xf32>
    %144 = tpu.matmul %136, %8, %cst_71 {dimension_numbers = #tpu.dot_dimension_numbers<[1], [0], [0], [1], [0, 0, 1, 1], [], []>} : vector<8x32xf32>, vector<32x32xf32>, vector<8x32xf32> -> vector<8x32xf32>
    %145 = arith.addf %143, %144 : vector<8x32xf32>
    %146 = math.tanh %145 : vector<8x32xf32>
    %c112 = arith.constant 112 : index
    %c0_72 = arith.constant 0 : index
    %147 = vector.load %arg19[%c112, %c0_72] : memref<256x32xf32, #tpu.memory_space<vmem>>, vector<8x32xf32>
    %cst_73 = arith.constant dense<0.000000e+00> : vector<8x32xf32>
    %148 = tpu.matmul %140, %7, %cst_73 {dimension_numbers = #tpu.dot_dimension_numbers<[1], [0], [0], [1], [0, 0, 1, 1], [], []>} : vector<8x32xf32>, vector<32x32xf32>, vector<8x32xf32> -> vector<8x32xf32>
    %149 = arith.addf %147, %148 : vector<8x32xf32>
    %150 = math.tanh %149 : vector<8x32xf32>
    %cst_74 = arith.constant dense<0.000000e+00> : vector<8x32xf32>
    %151 = tpu.matmul %140, %9, %cst_74 {dimension_numbers = #tpu.dot_dimension_numbers<[1], [0], [0], [1], [0, 0, 1, 1], [], []>} : vector<8x32xf32>, vector<32x32xf32>, vector<8x32xf32> -> vector<8x32xf32>
    %152 = vector.broadcast %10 : vector<1x32xf32> to vector<8x32xf32>
    %153 = arith.addf %151, %152 : vector<8x32xf32>
    %cst_75 = arith.constant dense<0.000000e+00> : vector<8x32xf32>
    %154 = tpu.matmul %146, %8, %cst_75 {dimension_numbers = #tpu.dot_dimension_numbers<[1], [0], [0], [1], [0, 0, 1, 1], [], []>} : vector<8x32xf32>, vector<32x32xf32>, vector<8x32xf32> -> vector<8x32xf32>
    %155 = arith.addf %153, %154 : vector<8x32xf32>
    %156 = math.tanh %155 : vector<8x32xf32>
    %c120 = arith.constant 120 : index
    %c0_76 = arith.constant 0 : index
    %157 = vector.load %arg19[%c120, %c0_76] : memref<256x32xf32, #tpu.memory_space<vmem>>, vector<8x32xf32>
    %cst_77 = arith.constant dense<0.000000e+00> : vector<8x32xf32>
    %158 = tpu.matmul %150, %7, %cst_77 {dimension_numbers = #tpu.dot_dimension_numbers<[1], [0], [0], [1], [0, 0, 1, 1], [], []>} : vector<8x32xf32>, vector<32x32xf32>, vector<8x32xf32> -> vector<8x32xf32>
    %159 = arith.addf %157, %158 : vector<8x32xf32>
    %160 = math.tanh %159 : vector<8x32xf32>
    %cst_78 = arith.constant dense<0.000000e+00> : vector<8x32xf32>
    %161 = tpu.matmul %150, %9, %cst_78 {dimension_numbers = #tpu.dot_dimension_numbers<[1], [0], [0], [1], [0, 0, 1, 1], [], []>} : vector<8x32xf32>, vector<32x32xf32>, vector<8x32xf32> -> vector<8x32xf32>
    %162 = vector.broadcast %10 : vector<1x32xf32> to vector<8x32xf32>
    %163 = arith.addf %161, %162 : vector<8x32xf32>
    %cst_79 = arith.constant dense<0.000000e+00> : vector<8x32xf32>
    %164 = tpu.matmul %156, %8, %cst_79 {dimension_numbers = #tpu.dot_dimension_numbers<[1], [0], [0], [1], [0, 0, 1, 1], [], []>} : vector<8x32xf32>, vector<32x32xf32>, vector<8x32xf32> -> vector<8x32xf32>
    %165 = arith.addf %163, %164 : vector<8x32xf32>
    %166 = math.tanh %165 : vector<8x32xf32>
    %c128 = arith.constant 128 : index
    %c0_80 = arith.constant 0 : index
    %167 = vector.load %arg19[%c128, %c0_80] : memref<256x32xf32, #tpu.memory_space<vmem>>, vector<8x32xf32>
    %cst_81 = arith.constant dense<0.000000e+00> : vector<8x32xf32>
    %168 = tpu.matmul %160, %7, %cst_81 {dimension_numbers = #tpu.dot_dimension_numbers<[1], [0], [0], [1], [0, 0, 1, 1], [], []>} : vector<8x32xf32>, vector<32x32xf32>, vector<8x32xf32> -> vector<8x32xf32>
    %169 = arith.addf %167, %168 : vector<8x32xf32>
    %170 = math.tanh %169 : vector<8x32xf32>
    %cst_82 = arith.constant dense<0.000000e+00> : vector<8x32xf32>
    %171 = tpu.matmul %160, %9, %cst_82 {dimension_numbers = #tpu.dot_dimension_numbers<[1], [0], [0], [1], [0, 0, 1, 1], [], []>} : vector<8x32xf32>, vector<32x32xf32>, vector<8x32xf32> -> vector<8x32xf32>
    %172 = vector.broadcast %10 : vector<1x32xf32> to vector<8x32xf32>
    %173 = arith.addf %171, %172 : vector<8x32xf32>
    %cst_83 = arith.constant dense<0.000000e+00> : vector<8x32xf32>
    %174 = tpu.matmul %166, %8, %cst_83 {dimension_numbers = #tpu.dot_dimension_numbers<[1], [0], [0], [1], [0, 0, 1, 1], [], []>} : vector<8x32xf32>, vector<32x32xf32>, vector<8x32xf32> -> vector<8x32xf32>
    %175 = arith.addf %173, %174 : vector<8x32xf32>
    %176 = math.tanh %175 : vector<8x32xf32>
    %c136 = arith.constant 136 : index
    %c0_84 = arith.constant 0 : index
    %177 = vector.load %arg19[%c136, %c0_84] : memref<256x32xf32, #tpu.memory_space<vmem>>, vector<8x32xf32>
    %cst_85 = arith.constant dense<0.000000e+00> : vector<8x32xf32>
    %178 = tpu.matmul %170, %7, %cst_85 {dimension_numbers = #tpu.dot_dimension_numbers<[1], [0], [0], [1], [0, 0, 1, 1], [], []>} : vector<8x32xf32>, vector<32x32xf32>, vector<8x32xf32> -> vector<8x32xf32>
    %179 = arith.addf %177, %178 : vector<8x32xf32>
    %180 = math.tanh %179 : vector<8x32xf32>
    %cst_86 = arith.constant dense<0.000000e+00> : vector<8x32xf32>
    %181 = tpu.matmul %170, %9, %cst_86 {dimension_numbers = #tpu.dot_dimension_numbers<[1], [0], [0], [1], [0, 0, 1, 1], [], []>} : vector<8x32xf32>, vector<32x32xf32>, vector<8x32xf32> -> vector<8x32xf32>
    %182 = vector.broadcast %10 : vector<1x32xf32> to vector<8x32xf32>
    %183 = arith.addf %181, %182 : vector<8x32xf32>
    %cst_87 = arith.constant dense<0.000000e+00> : vector<8x32xf32>
    %184 = tpu.matmul %176, %8, %cst_87 {dimension_numbers = #tpu.dot_dimension_numbers<[1], [0], [0], [1], [0, 0, 1, 1], [], []>} : vector<8x32xf32>, vector<32x32xf32>, vector<8x32xf32> -> vector<8x32xf32>
    %185 = arith.addf %183, %184 : vector<8x32xf32>
    %186 = math.tanh %185 : vector<8x32xf32>
    %c144 = arith.constant 144 : index
    %c0_88 = arith.constant 0 : index
    %187 = vector.load %arg19[%c144, %c0_88] : memref<256x32xf32, #tpu.memory_space<vmem>>, vector<8x32xf32>
    %cst_89 = arith.constant dense<0.000000e+00> : vector<8x32xf32>
    %188 = tpu.matmul %180, %7, %cst_89 {dimension_numbers = #tpu.dot_dimension_numbers<[1], [0], [0], [1], [0, 0, 1, 1], [], []>} : vector<8x32xf32>, vector<32x32xf32>, vector<8x32xf32> -> vector<8x32xf32>
    %189 = arith.addf %187, %188 : vector<8x32xf32>
    %190 = math.tanh %189 : vector<8x32xf32>
    %cst_90 = arith.constant dense<0.000000e+00> : vector<8x32xf32>
    %191 = tpu.matmul %180, %9, %cst_90 {dimension_numbers = #tpu.dot_dimension_numbers<[1], [0], [0], [1], [0, 0, 1, 1], [], []>} : vector<8x32xf32>, vector<32x32xf32>, vector<8x32xf32> -> vector<8x32xf32>
    %192 = vector.broadcast %10 : vector<1x32xf32> to vector<8x32xf32>
    %193 = arith.addf %191, %192 : vector<8x32xf32>
    %cst_91 = arith.constant dense<0.000000e+00> : vector<8x32xf32>
    %194 = tpu.matmul %186, %8, %cst_91 {dimension_numbers = #tpu.dot_dimension_numbers<[1], [0], [0], [1], [0, 0, 1, 1], [], []>} : vector<8x32xf32>, vector<32x32xf32>, vector<8x32xf32> -> vector<8x32xf32>
    %195 = arith.addf %193, %194 : vector<8x32xf32>
    %196 = math.tanh %195 : vector<8x32xf32>
    %c152 = arith.constant 152 : index
    %c0_92 = arith.constant 0 : index
    %197 = vector.load %arg19[%c152, %c0_92] : memref<256x32xf32, #tpu.memory_space<vmem>>, vector<8x32xf32>
    %cst_93 = arith.constant dense<0.000000e+00> : vector<8x32xf32>
    %198 = tpu.matmul %190, %7, %cst_93 {dimension_numbers = #tpu.dot_dimension_numbers<[1], [0], [0], [1], [0, 0, 1, 1], [], []>} : vector<8x32xf32>, vector<32x32xf32>, vector<8x32xf32> -> vector<8x32xf32>
    %199 = arith.addf %197, %198 : vector<8x32xf32>
    %200 = math.tanh %199 : vector<8x32xf32>
    %cst_94 = arith.constant dense<0.000000e+00> : vector<8x32xf32>
    %201 = tpu.matmul %190, %9, %cst_94 {dimension_numbers = #tpu.dot_dimension_numbers<[1], [0], [0], [1], [0, 0, 1, 1], [], []>} : vector<8x32xf32>, vector<32x32xf32>, vector<8x32xf32> -> vector<8x32xf32>
    %202 = vector.broadcast %10 : vector<1x32xf32> to vector<8x32xf32>
    %203 = arith.addf %201, %202 : vector<8x32xf32>
    %cst_95 = arith.constant dense<0.000000e+00> : vector<8x32xf32>
    %204 = tpu.matmul %196, %8, %cst_95 {dimension_numbers = #tpu.dot_dimension_numbers<[1], [0], [0], [1], [0, 0, 1, 1], [], []>} : vector<8x32xf32>, vector<32x32xf32>, vector<8x32xf32> -> vector<8x32xf32>
    %205 = arith.addf %203, %204 : vector<8x32xf32>
    %206 = math.tanh %205 : vector<8x32xf32>
    %c160 = arith.constant 160 : index
    %c0_96 = arith.constant 0 : index
    %207 = vector.load %arg19[%c160, %c0_96] : memref<256x32xf32, #tpu.memory_space<vmem>>, vector<8x32xf32>
    %cst_97 = arith.constant dense<0.000000e+00> : vector<8x32xf32>
    %208 = tpu.matmul %200, %7, %cst_97 {dimension_numbers = #tpu.dot_dimension_numbers<[1], [0], [0], [1], [0, 0, 1, 1], [], []>} : vector<8x32xf32>, vector<32x32xf32>, vector<8x32xf32> -> vector<8x32xf32>
    %209 = arith.addf %207, %208 : vector<8x32xf32>
    %210 = math.tanh %209 : vector<8x32xf32>
    %cst_98 = arith.constant dense<0.000000e+00> : vector<8x32xf32>
    %211 = tpu.matmul %200, %9, %cst_98 {dimension_numbers = #tpu.dot_dimension_numbers<[1], [0], [0], [1], [0, 0, 1, 1], [], []>} : vector<8x32xf32>, vector<32x32xf32>, vector<8x32xf32> -> vector<8x32xf32>
    %212 = vector.broadcast %10 : vector<1x32xf32> to vector<8x32xf32>
    %213 = arith.addf %211, %212 : vector<8x32xf32>
    %cst_99 = arith.constant dense<0.000000e+00> : vector<8x32xf32>
    %214 = tpu.matmul %206, %8, %cst_99 {dimension_numbers = #tpu.dot_dimension_numbers<[1], [0], [0], [1], [0, 0, 1, 1], [], []>} : vector<8x32xf32>, vector<32x32xf32>, vector<8x32xf32> -> vector<8x32xf32>
    %215 = arith.addf %213, %214 : vector<8x32xf32>
    %216 = math.tanh %215 : vector<8x32xf32>
    %c168 = arith.constant 168 : index
    %c0_100 = arith.constant 0 : index
    %217 = vector.load %arg19[%c168, %c0_100] : memref<256x32xf32, #tpu.memory_space<vmem>>, vector<8x32xf32>
    %cst_101 = arith.constant dense<0.000000e+00> : vector<8x32xf32>
    %218 = tpu.matmul %210, %7, %cst_101 {dimension_numbers = #tpu.dot_dimension_numbers<[1], [0], [0], [1], [0, 0, 1, 1], [], []>} : vector<8x32xf32>, vector<32x32xf32>, vector<8x32xf32> -> vector<8x32xf32>
    %219 = arith.addf %217, %218 : vector<8x32xf32>
    %220 = math.tanh %219 : vector<8x32xf32>
    %cst_102 = arith.constant dense<0.000000e+00> : vector<8x32xf32>
    %221 = tpu.matmul %210, %9, %cst_102 {dimension_numbers = #tpu.dot_dimension_numbers<[1], [0], [0], [1], [0, 0, 1, 1], [], []>} : vector<8x32xf32>, vector<32x32xf32>, vector<8x32xf32> -> vector<8x32xf32>
    %222 = vector.broadcast %10 : vector<1x32xf32> to vector<8x32xf32>
    %223 = arith.addf %221, %222 : vector<8x32xf32>
    %cst_103 = arith.constant dense<0.000000e+00> : vector<8x32xf32>
    %224 = tpu.matmul %216, %8, %cst_103 {dimension_numbers = #tpu.dot_dimension_numbers<[1], [0], [0], [1], [0, 0, 1, 1], [], []>} : vector<8x32xf32>, vector<32x32xf32>, vector<8x32xf32> -> vector<8x32xf32>
    %225 = arith.addf %223, %224 : vector<8x32xf32>
    %226 = math.tanh %225 : vector<8x32xf32>
    %c176 = arith.constant 176 : index
    %c0_104 = arith.constant 0 : index
    %227 = vector.load %arg19[%c176, %c0_104] : memref<256x32xf32, #tpu.memory_space<vmem>>, vector<8x32xf32>
    %cst_105 = arith.constant dense<0.000000e+00> : vector<8x32xf32>
    %228 = tpu.matmul %220, %7, %cst_105 {dimension_numbers = #tpu.dot_dimension_numbers<[1], [0], [0], [1], [0, 0, 1, 1], [], []>} : vector<8x32xf32>, vector<32x32xf32>, vector<8x32xf32> -> vector<8x32xf32>
    %229 = arith.addf %227, %228 : vector<8x32xf32>
    %230 = math.tanh %229 : vector<8x32xf32>
    %cst_106 = arith.constant dense<0.000000e+00> : vector<8x32xf32>
    %231 = tpu.matmul %220, %9, %cst_106 {dimension_numbers = #tpu.dot_dimension_numbers<[1], [0], [0], [1], [0, 0, 1, 1], [], []>} : vector<8x32xf32>, vector<32x32xf32>, vector<8x32xf32> -> vector<8x32xf32>
    %232 = vector.broadcast %10 : vector<1x32xf32> to vector<8x32xf32>
    %233 = arith.addf %231, %232 : vector<8x32xf32>
    %cst_107 = arith.constant dense<0.000000e+00> : vector<8x32xf32>
    %234 = tpu.matmul %226, %8, %cst_107 {dimension_numbers = #tpu.dot_dimension_numbers<[1], [0], [0], [1], [0, 0, 1, 1], [], []>} : vector<8x32xf32>, vector<32x32xf32>, vector<8x32xf32> -> vector<8x32xf32>
    %235 = arith.addf %233, %234 : vector<8x32xf32>
    %236 = math.tanh %235 : vector<8x32xf32>
    %c184 = arith.constant 184 : index
    %c0_108 = arith.constant 0 : index
    %237 = vector.load %arg19[%c184, %c0_108] : memref<256x32xf32, #tpu.memory_space<vmem>>, vector<8x32xf32>
    %cst_109 = arith.constant dense<0.000000e+00> : vector<8x32xf32>
    %238 = tpu.matmul %230, %7, %cst_109 {dimension_numbers = #tpu.dot_dimension_numbers<[1], [0], [0], [1], [0, 0, 1, 1], [], []>} : vector<8x32xf32>, vector<32x32xf32>, vector<8x32xf32> -> vector<8x32xf32>
    %239 = arith.addf %237, %238 : vector<8x32xf32>
    %240 = math.tanh %239 : vector<8x32xf32>
    %cst_110 = arith.constant dense<0.000000e+00> : vector<8x32xf32>
    %241 = tpu.matmul %230, %9, %cst_110 {dimension_numbers = #tpu.dot_dimension_numbers<[1], [0], [0], [1], [0, 0, 1, 1], [], []>} : vector<8x32xf32>, vector<32x32xf32>, vector<8x32xf32> -> vector<8x32xf32>
    %242 = vector.broadcast %10 : vector<1x32xf32> to vector<8x32xf32>
    %243 = arith.addf %241, %242 : vector<8x32xf32>
    %cst_111 = arith.constant dense<0.000000e+00> : vector<8x32xf32>
    %244 = tpu.matmul %236, %8, %cst_111 {dimension_numbers = #tpu.dot_dimension_numbers<[1], [0], [0], [1], [0, 0, 1, 1], [], []>} : vector<8x32xf32>, vector<32x32xf32>, vector<8x32xf32> -> vector<8x32xf32>
    %245 = arith.addf %243, %244 : vector<8x32xf32>
    %246 = math.tanh %245 : vector<8x32xf32>
    %c192 = arith.constant 192 : index
    %c0_112 = arith.constant 0 : index
    %247 = vector.load %arg19[%c192, %c0_112] : memref<256x32xf32, #tpu.memory_space<vmem>>, vector<8x32xf32>
    %cst_113 = arith.constant dense<0.000000e+00> : vector<8x32xf32>
    %248 = tpu.matmul %240, %7, %cst_113 {dimension_numbers = #tpu.dot_dimension_numbers<[1], [0], [0], [1], [0, 0, 1, 1], [], []>} : vector<8x32xf32>, vector<32x32xf32>, vector<8x32xf32> -> vector<8x32xf32>
    %249 = arith.addf %247, %248 : vector<8x32xf32>
    %250 = math.tanh %249 : vector<8x32xf32>
    %cst_114 = arith.constant dense<0.000000e+00> : vector<8x32xf32>
    %251 = tpu.matmul %240, %9, %cst_114 {dimension_numbers = #tpu.dot_dimension_numbers<[1], [0], [0], [1], [0, 0, 1, 1], [], []>} : vector<8x32xf32>, vector<32x32xf32>, vector<8x32xf32> -> vector<8x32xf32>
    %252 = vector.broadcast %10 : vector<1x32xf32> to vector<8x32xf32>
    %253 = arith.addf %251, %252 : vector<8x32xf32>
    %cst_115 = arith.constant dense<0.000000e+00> : vector<8x32xf32>
    %254 = tpu.matmul %246, %8, %cst_115 {dimension_numbers = #tpu.dot_dimension_numbers<[1], [0], [0], [1], [0, 0, 1, 1], [], []>} : vector<8x32xf32>, vector<32x32xf32>, vector<8x32xf32> -> vector<8x32xf32>
    %255 = arith.addf %253, %254 : vector<8x32xf32>
    %256 = math.tanh %255 : vector<8x32xf32>
    %c200 = arith.constant 200 : index
    %c0_116 = arith.constant 0 : index
    %257 = vector.load %arg19[%c200, %c0_116] : memref<256x32xf32, #tpu.memory_space<vmem>>, vector<8x32xf32>
    %cst_117 = arith.constant dense<0.000000e+00> : vector<8x32xf32>
    %258 = tpu.matmul %250, %7, %cst_117 {dimension_numbers = #tpu.dot_dimension_numbers<[1], [0], [0], [1], [0, 0, 1, 1], [], []>} : vector<8x32xf32>, vector<32x32xf32>, vector<8x32xf32> -> vector<8x32xf32>
    %259 = arith.addf %257, %258 : vector<8x32xf32>
    %260 = math.tanh %259 : vector<8x32xf32>
    %cst_118 = arith.constant dense<0.000000e+00> : vector<8x32xf32>
    %261 = tpu.matmul %250, %9, %cst_118 {dimension_numbers = #tpu.dot_dimension_numbers<[1], [0], [0], [1], [0, 0, 1, 1], [], []>} : vector<8x32xf32>, vector<32x32xf32>, vector<8x32xf32> -> vector<8x32xf32>
    %262 = vector.broadcast %10 : vector<1x32xf32> to vector<8x32xf32>
    %263 = arith.addf %261, %262 : vector<8x32xf32>
    %cst_119 = arith.constant dense<0.000000e+00> : vector<8x32xf32>
    %264 = tpu.matmul %256, %8, %cst_119 {dimension_numbers = #tpu.dot_dimension_numbers<[1], [0], [0], [1], [0, 0, 1, 1], [], []>} : vector<8x32xf32>, vector<32x32xf32>, vector<8x32xf32> -> vector<8x32xf32>
    %265 = arith.addf %263, %264 : vector<8x32xf32>
    %266 = math.tanh %265 : vector<8x32xf32>
    %c208 = arith.constant 208 : index
    %c0_120 = arith.constant 0 : index
    %267 = vector.load %arg19[%c208, %c0_120] : memref<256x32xf32, #tpu.memory_space<vmem>>, vector<8x32xf32>
    %cst_121 = arith.constant dense<0.000000e+00> : vector<8x32xf32>
    %268 = tpu.matmul %260, %7, %cst_121 {dimension_numbers = #tpu.dot_dimension_numbers<[1], [0], [0], [1], [0, 0, 1, 1], [], []>} : vector<8x32xf32>, vector<32x32xf32>, vector<8x32xf32> -> vector<8x32xf32>
    %269 = arith.addf %267, %268 : vector<8x32xf32>
    %270 = math.tanh %269 : vector<8x32xf32>
    %cst_122 = arith.constant dense<0.000000e+00> : vector<8x32xf32>
    %271 = tpu.matmul %260, %9, %cst_122 {dimension_numbers = #tpu.dot_dimension_numbers<[1], [0], [0], [1], [0, 0, 1, 1], [], []>} : vector<8x32xf32>, vector<32x32xf32>, vector<8x32xf32> -> vector<8x32xf32>
    %272 = vector.broadcast %10 : vector<1x32xf32> to vector<8x32xf32>
    %273 = arith.addf %271, %272 : vector<8x32xf32>
    %cst_123 = arith.constant dense<0.000000e+00> : vector<8x32xf32>
    %274 = tpu.matmul %266, %8, %cst_123 {dimension_numbers = #tpu.dot_dimension_numbers<[1], [0], [0], [1], [0, 0, 1, 1], [], []>} : vector<8x32xf32>, vector<32x32xf32>, vector<8x32xf32> -> vector<8x32xf32>
    %275 = arith.addf %273, %274 : vector<8x32xf32>
    %276 = math.tanh %275 : vector<8x32xf32>
    %c216 = arith.constant 216 : index
    %c0_124 = arith.constant 0 : index
    %277 = vector.load %arg19[%c216, %c0_124] : memref<256x32xf32, #tpu.memory_space<vmem>>, vector<8x32xf32>
    %cst_125 = arith.constant dense<0.000000e+00> : vector<8x32xf32>
    %278 = tpu.matmul %270, %7, %cst_125 {dimension_numbers = #tpu.dot_dimension_numbers<[1], [0], [0], [1], [0, 0, 1, 1], [], []>} : vector<8x32xf32>, vector<32x32xf32>, vector<8x32xf32> -> vector<8x32xf32>
    %279 = arith.addf %277, %278 : vector<8x32xf32>
    %280 = math.tanh %279 : vector<8x32xf32>
    %cst_126 = arith.constant dense<0.000000e+00> : vector<8x32xf32>
    %281 = tpu.matmul %270, %9, %cst_126 {dimension_numbers = #tpu.dot_dimension_numbers<[1], [0], [0], [1], [0, 0, 1, 1], [], []>} : vector<8x32xf32>, vector<32x32xf32>, vector<8x32xf32> -> vector<8x32xf32>
    %282 = vector.broadcast %10 : vector<1x32xf32> to vector<8x32xf32>
    %283 = arith.addf %281, %282 : vector<8x32xf32>
    %cst_127 = arith.constant dense<0.000000e+00> : vector<8x32xf32>
    %284 = tpu.matmul %276, %8, %cst_127 {dimension_numbers = #tpu.dot_dimension_numbers<[1], [0], [0], [1], [0, 0, 1, 1], [], []>} : vector<8x32xf32>, vector<32x32xf32>, vector<8x32xf32> -> vector<8x32xf32>
    %285 = arith.addf %283, %284 : vector<8x32xf32>
    %286 = math.tanh %285 : vector<8x32xf32>
    %c224 = arith.constant 224 : index
    %c0_128 = arith.constant 0 : index
    %287 = vector.load %arg19[%c224, %c0_128] : memref<256x32xf32, #tpu.memory_space<vmem>>, vector<8x32xf32>
    %cst_129 = arith.constant dense<0.000000e+00> : vector<8x32xf32>
    %288 = tpu.matmul %280, %7, %cst_129 {dimension_numbers = #tpu.dot_dimension_numbers<[1], [0], [0], [1], [0, 0, 1, 1], [], []>} : vector<8x32xf32>, vector<32x32xf32>, vector<8x32xf32> -> vector<8x32xf32>
    %289 = arith.addf %287, %288 : vector<8x32xf32>
    %290 = math.tanh %289 : vector<8x32xf32>
    %cst_130 = arith.constant dense<0.000000e+00> : vector<8x32xf32>
    %291 = tpu.matmul %280, %9, %cst_130 {dimension_numbers = #tpu.dot_dimension_numbers<[1], [0], [0], [1], [0, 0, 1, 1], [], []>} : vector<8x32xf32>, vector<32x32xf32>, vector<8x32xf32> -> vector<8x32xf32>
    %292 = vector.broadcast %10 : vector<1x32xf32> to vector<8x32xf32>
    %293 = arith.addf %291, %292 : vector<8x32xf32>
    %cst_131 = arith.constant dense<0.000000e+00> : vector<8x32xf32>
    %294 = tpu.matmul %286, %8, %cst_131 {dimension_numbers = #tpu.dot_dimension_numbers<[1], [0], [0], [1], [0, 0, 1, 1], [], []>} : vector<8x32xf32>, vector<32x32xf32>, vector<8x32xf32> -> vector<8x32xf32>
    %295 = arith.addf %293, %294 : vector<8x32xf32>
    %296 = math.tanh %295 : vector<8x32xf32>
    %c232 = arith.constant 232 : index
    %c0_132 = arith.constant 0 : index
    %297 = vector.load %arg19[%c232, %c0_132] : memref<256x32xf32, #tpu.memory_space<vmem>>, vector<8x32xf32>
    %cst_133 = arith.constant dense<0.000000e+00> : vector<8x32xf32>
    %298 = tpu.matmul %290, %7, %cst_133 {dimension_numbers = #tpu.dot_dimension_numbers<[1], [0], [0], [1], [0, 0, 1, 1], [], []>} : vector<8x32xf32>, vector<32x32xf32>, vector<8x32xf32> -> vector<8x32xf32>
    %299 = arith.addf %297, %298 : vector<8x32xf32>
    %300 = math.tanh %299 : vector<8x32xf32>
    %cst_134 = arith.constant dense<0.000000e+00> : vector<8x32xf32>
    %301 = tpu.matmul %290, %9, %cst_134 {dimension_numbers = #tpu.dot_dimension_numbers<[1], [0], [0], [1], [0, 0, 1, 1], [], []>} : vector<8x32xf32>, vector<32x32xf32>, vector<8x32xf32> -> vector<8x32xf32>
    %302 = vector.broadcast %10 : vector<1x32xf32> to vector<8x32xf32>
    %303 = arith.addf %301, %302 : vector<8x32xf32>
    %cst_135 = arith.constant dense<0.000000e+00> : vector<8x32xf32>
    %304 = tpu.matmul %296, %8, %cst_135 {dimension_numbers = #tpu.dot_dimension_numbers<[1], [0], [0], [1], [0, 0, 1, 1], [], []>} : vector<8x32xf32>, vector<32x32xf32>, vector<8x32xf32> -> vector<8x32xf32>
    %305 = arith.addf %303, %304 : vector<8x32xf32>
    %306 = math.tanh %305 : vector<8x32xf32>
    %c240 = arith.constant 240 : index
    %c0_136 = arith.constant 0 : index
    %307 = vector.load %arg19[%c240, %c0_136] : memref<256x32xf32, #tpu.memory_space<vmem>>, vector<8x32xf32>
    %cst_137 = arith.constant dense<0.000000e+00> : vector<8x32xf32>
    %308 = tpu.matmul %300, %7, %cst_137 {dimension_numbers = #tpu.dot_dimension_numbers<[1], [0], [0], [1], [0, 0, 1, 1], [], []>} : vector<8x32xf32>, vector<32x32xf32>, vector<8x32xf32> -> vector<8x32xf32>
    %309 = arith.addf %307, %308 : vector<8x32xf32>
    %310 = math.tanh %309 : vector<8x32xf32>
    %cst_138 = arith.constant dense<0.000000e+00> : vector<8x32xf32>
    %311 = tpu.matmul %300, %9, %cst_138 {dimension_numbers = #tpu.dot_dimension_numbers<[1], [0], [0], [1], [0, 0, 1, 1], [], []>} : vector<8x32xf32>, vector<32x32xf32>, vector<8x32xf32> -> vector<8x32xf32>
    %312 = vector.broadcast %10 : vector<1x32xf32> to vector<8x32xf32>
    %313 = arith.addf %311, %312 : vector<8x32xf32>
    %cst_139 = arith.constant dense<0.000000e+00> : vector<8x32xf32>
    %314 = tpu.matmul %306, %8, %cst_139 {dimension_numbers = #tpu.dot_dimension_numbers<[1], [0], [0], [1], [0, 0, 1, 1], [], []>} : vector<8x32xf32>, vector<32x32xf32>, vector<8x32xf32> -> vector<8x32xf32>
    %315 = arith.addf %313, %314 : vector<8x32xf32>
    %316 = math.tanh %315 : vector<8x32xf32>
    %c248 = arith.constant 248 : index
    %c0_140 = arith.constant 0 : index
    %317 = vector.load %arg19[%c248, %c0_140] : memref<256x32xf32, #tpu.memory_space<vmem>>, vector<8x32xf32>
    %cst_141 = arith.constant dense<0.000000e+00> : vector<8x32xf32>
    %318 = tpu.matmul %310, %7, %cst_141 {dimension_numbers = #tpu.dot_dimension_numbers<[1], [0], [0], [1], [0, 0, 1, 1], [], []>} : vector<8x32xf32>, vector<32x32xf32>, vector<8x32xf32> -> vector<8x32xf32>
    %319 = arith.addf %317, %318 : vector<8x32xf32>
    %320 = math.tanh %319 : vector<8x32xf32>
    %cst_142 = arith.constant dense<0.000000e+00> : vector<8x32xf32>
    %321 = tpu.matmul %310, %9, %cst_142 {dimension_numbers = #tpu.dot_dimension_numbers<[1], [0], [0], [1], [0, 0, 1, 1], [], []>} : vector<8x32xf32>, vector<32x32xf32>, vector<8x32xf32> -> vector<8x32xf32>
    %322 = vector.broadcast %10 : vector<1x32xf32> to vector<8x32xf32>
    %323 = arith.addf %321, %322 : vector<8x32xf32>
    %cst_143 = arith.constant dense<0.000000e+00> : vector<8x32xf32>
    %324 = tpu.matmul %316, %8, %cst_143 {dimension_numbers = #tpu.dot_dimension_numbers<[1], [0], [0], [1], [0, 0, 1, 1], [], []>} : vector<8x32xf32>, vector<32x32xf32>, vector<8x32xf32> -> vector<8x32xf32>
    %325 = arith.addf %323, %324 : vector<8x32xf32>
    %326 = math.tanh %325 : vector<8x32xf32>
    %cst_144 = arith.constant dense<0.000000e+00> : vector<8x32xf32>
    %327 = tpu.matmul %320, %9, %cst_144 {dimension_numbers = #tpu.dot_dimension_numbers<[1], [0], [0], [1], [0, 0, 1, 1], [], []>} : vector<8x32xf32>, vector<32x32xf32>, vector<8x32xf32> -> vector<8x32xf32>
    %328 = vector.broadcast %10 : vector<1x32xf32> to vector<8x32xf32>
    %329 = arith.addf %327, %328 : vector<8x32xf32>
    %cst_145 = arith.constant dense<0.000000e+00> : vector<8x32xf32>
    %330 = tpu.matmul %326, %8, %cst_145 {dimension_numbers = #tpu.dot_dimension_numbers<[1], [0], [0], [1], [0, 0, 1, 1], [], []>} : vector<8x32xf32>, vector<32x32xf32>, vector<8x32xf32> -> vector<8x32xf32>
    %331 = arith.addf %329, %330 : vector<8x32xf32>
    %332 = math.tanh %331 : vector<8x32xf32>
    %cst_146 = arith.constant 0.000000e+00 : f32
    %333 = vector.broadcast %cst_146 : f32 to vector<8x32xf32>
    %334 = arith.maximumf %332, %333 : vector<8x32xf32>
    %c0_147 = arith.constant 0 : index
    %335 = memref.load %arg7[%c0_147] : memref<2xf32, #tpu.memory_space<smem>>
    %336 = vector.broadcast %335 : f32 to vector<8x32xf32>
    %337 = arith.mulf %334, %336 : vector<8x32xf32>
    %c1 = arith.constant 1 : index
    %338 = memref.load %arg7[%c1] : memref<2xf32, #tpu.memory_space<smem>>
    %339 = vector.broadcast %338 : f32 to vector<8x32xf32>
    %340 = arith.addf %337, %339 : vector<8x32xf32>
    %341 = arith.negf %340 : vector<8x32xf32>
    %342 = math.exp %341 : vector<8x32xf32>
    %cst_148 = arith.constant 1.000000e+00 : f32
    %343 = vector.broadcast %cst_148 : f32 to vector<8x32xf32>
    %344 = arith.addf %343, %342 : vector<8x32xf32>
    %345 = arith.divf %343, %344 : vector<8x32xf32>
    %c0_149 = arith.constant 0 : index
    %c0_150 = arith.constant 0 : index
    %346 = vector.load %arg8[%c0_149, %c0_150] : memref<32x4xf32, #tpu.memory_space<vmem>>, vector<32x4xf32>
    %cst_151 = arith.constant dense<0.000000e+00> : vector<8x4xf32>
    %347 = tpu.matmul %345, %346, %cst_151 {dimension_numbers = #tpu.dot_dimension_numbers<[1], [0], [0], [1], [0, 0, 1, 1], [], []>} : vector<8x32xf32>, vector<32x4xf32>, vector<8x4xf32> -> vector<8x4xf32>
    %c0_152 = arith.constant 0 : index
    %c0_153 = arith.constant 0 : index
    %348 = vector.load %arg9[%c0_152, %c0_153] : memref<1x4xf32, #tpu.memory_space<vmem>>, vector<1x4xf32>
    %349 = vector.broadcast %348 : vector<1x4xf32> to vector<8x4xf32>
    %350 = arith.addf %347, %349 : vector<8x4xf32>
    %cst_154 = arith.constant 0.000000e+00 : f32
    %351 = vector.broadcast %cst_154 : f32 to vector<8x4xf32>
    %352 = arith.maximumf %350, %351 : vector<8x4xf32>
    %c0_155 = arith.constant 0 : index
    %c0_156 = arith.constant 0 : index
    %353 = vector.load %arg10[%c0_155, %c0_156] : memref<4x16xf32, #tpu.memory_space<vmem>>, vector<4x16xf32>
    %cst_157 = arith.constant dense<0.000000e+00> : vector<8x16xf32>
    %354 = tpu.matmul %352, %353, %cst_157 {dimension_numbers = #tpu.dot_dimension_numbers<[1], [0], [0], [1], [0, 0, 1, 1], [], []>} : vector<8x4xf32>, vector<4x16xf32>, vector<8x16xf32> -> vector<8x16xf32>
    %c0_158 = arith.constant 0 : index
    %c0_159 = arith.constant 0 : index
    %355 = vector.load %arg11[%c0_158, %c0_159] : memref<1x16xf32, #tpu.memory_space<vmem>>, vector<1x16xf32>
    %356 = vector.broadcast %355 : vector<1x16xf32> to vector<8x16xf32>
    %357 = arith.addf %354, %356 : vector<8x16xf32>
    %cst_160 = arith.constant 0.000000e+00 : f32
    %358 = vector.broadcast %cst_160 : f32 to vector<8x16xf32>
    %359 = arith.maximumf %357, %358 : vector<8x16xf32>
    %c0_161 = arith.constant 0 : index
    %c0_162 = arith.constant 0 : index
    %360 = vector.load %arg12[%c0_161, %c0_162] : memref<16x32xf32, #tpu.memory_space<vmem>>, vector<16x32xf32>
    %cst_163 = arith.constant dense<0.000000e+00> : vector<8x32xf32>
    %361 = tpu.matmul %359, %360, %cst_163 {dimension_numbers = #tpu.dot_dimension_numbers<[1], [0], [0], [1], [0, 0, 1, 1], [], []>} : vector<8x16xf32>, vector<16x32xf32>, vector<8x32xf32> -> vector<8x32xf32>
    %c0_164 = arith.constant 0 : index
    %c0_165 = arith.constant 0 : index
    %362 = vector.load %arg13[%c0_164, %c0_165] : memref<1x32xf32, #tpu.memory_space<vmem>>, vector<1x32xf32>
    %363 = vector.broadcast %362 : vector<1x32xf32> to vector<8x32xf32>
    %364 = arith.addf %361, %363 : vector<8x32xf32>
    %cst_166 = arith.constant 0.000000e+00 : f32
    %365 = vector.broadcast %cst_166 : f32 to vector<8x32xf32>
    %366 = arith.maximumf %364, %365 : vector<8x32xf32>
    %c0_167 = arith.constant 0 : index
    %c0_168 = arith.constant 0 : index
    %367 = vector.load %arg14[%c0_167, %c0_168] : memref<32x16xf32, #tpu.memory_space<vmem>>, vector<32x16xf32>
    %cst_169 = arith.constant dense<0.000000e+00> : vector<8x16xf32>
    %368 = tpu.matmul %366, %367, %cst_169 {dimension_numbers = #tpu.dot_dimension_numbers<[1], [0], [0], [1], [0, 0, 1, 1], [], []>} : vector<8x32xf32>, vector<32x16xf32>, vector<8x16xf32> -> vector<8x16xf32>
    %c0_170 = arith.constant 0 : index
    %c0_171 = arith.constant 0 : index
    %369 = vector.load %arg15[%c0_170, %c0_171] : memref<1x16xf32, #tpu.memory_space<vmem>>, vector<1x16xf32>
    %370 = vector.broadcast %369 : vector<1x16xf32> to vector<8x16xf32>
    %371 = arith.addf %368, %370 : vector<8x16xf32>
    %cst_172 = arith.constant 0.000000e+00 : f32
    %372 = vector.broadcast %cst_172 : f32 to vector<8x16xf32>
    %373 = arith.maximumf %371, %372 : vector<8x16xf32>
    %c0_173 = arith.constant 0 : index
    %c0_174 = arith.constant 0 : index
    %374 = vector.load %arg16[%c0_173, %c0_174] : memref<16x4xf32, #tpu.memory_space<vmem>>, vector<16x4xf32>
    %cst_175 = arith.constant dense<0.000000e+00> : vector<8x4xf32>
    %375 = tpu.matmul %373, %374, %cst_175 {dimension_numbers = #tpu.dot_dimension_numbers<[1], [0], [0], [1], [0, 0, 1, 1], [], []>} : vector<8x16xf32>, vector<16x4xf32>, vector<8x4xf32> -> vector<8x4xf32>
    %c0_176 = arith.constant 0 : index
    %c0_177 = arith.constant 0 : index
    %376 = vector.load %arg17[%c0_176, %c0_177] : memref<1x4xf32, #tpu.memory_space<vmem>>, vector<1x4xf32>
    %377 = vector.broadcast %376 : vector<1x4xf32> to vector<8x4xf32>
    %378 = arith.addf %375, %377 : vector<8x4xf32>
    %cst_178 = arith.constant 0.000000e+00 : f32
    %379 = vector.broadcast %cst_178 : f32 to vector<8x4xf32>
    %380 = arith.maximumf %378, %379 : vector<8x4xf32>
    %c0_179 = arith.constant 0 : index
    %c0_180 = arith.constant 0 : index
    %381 = vector.load %arg18[%c0_179, %c0_180] : memref<8x4xf32, #tpu.memory_space<vmem>>, vector<8x4xf32>
    tpu.vector_store %arg18[%c0_179, %c0_180], %380 {strides = array<i32>} : memref<8x4xf32, #tpu.memory_space<vmem>>, vector<8x4xf32>,
    return
  }
}

</mosaic_0001>

<llo_original>
// kernel: tpu_custom_call.1
$region0: #{tpu_custom_call.1}
  #allocation0 [shape = 'u32[]', space=smem, size = 0x4, offset = 0x4, fixed_abs, tag = 'smem constant byte address 0x4 - core index']
  #allocation1 [shape = 'u32[144,128]{1,0:T(1,128)}', space=vmem, size = 0x12000, scoped, tag = 'internal scratch']
  #allocation2 [shape = 'f32[256,32]{1,0:T(8,128)}', space=vmem, size = 0x20000, scoped, tag = 'scratch operand']
  %s0 = inlined_call_operand.vmem [shape: f32[256,8], index: 0, kind: input, shape index: {}]
  %s1 = inlined_call_operand.vmem [shape: f32[8,32], index: 1, kind: input, shape index: {}]
  %s2 = inlined_call_operand.vmem [shape: f32[32,32], index: 2, kind: input, shape index: {}]
  %s3 = inlined_call_operand.vmem [shape: f32[1,32], index: 3, kind: input, shape index: {}]
  %s4 = inlined_call_operand.vmem [shape: f32[32,32], index: 4, kind: input, shape index: {}]
  %s5 = inlined_call_operand.vmem [shape: f32[32,32], index: 5, kind: input, shape index: {}]
  %s6 = inlined_call_operand.vmem [shape: f32[1,32], index: 6, kind: input, shape index: {}]
  %s7 = inlined_call_operand.vmem [shape: f32[2], index: 7, kind: input, shape index: {}]
  %s8 = inlined_call_operand.vmem [shape: f32[32,4], index: 8, kind: input, shape index: {}]
  %s9 = inlined_call_operand.vmem [shape: f32[1,4], index: 9, kind: input, shape index: {}]
  %s10 = inlined_call_operand.vmem [shape: f32[4,16], index: 10, kind: input, shape index: {}]
  %s11 = inlined_call_operand.vmem [shape: f32[1,16], index: 11, kind: input, shape index: {}]
  %s12 = inlined_call_operand.vmem [shape: f32[16,32], index: 12, kind: input, shape index: {}]
  %s13 = inlined_call_operand.vmem [shape: f32[1,32], index: 13, kind: input, shape index: {}]
  %s14 = inlined_call_operand.vmem [shape: f32[32,16], index: 14, kind: input, shape index: {}]
  %s15 = inlined_call_operand.vmem [shape: f32[1,16], index: 15, kind: input, shape index: {}]
  %s16 = inlined_call_operand.vmem [shape: f32[16,4], index: 16, kind: input, shape index: {}]
  %s17 = inlined_call_operand.vmem [shape: f32[1,4], index: 17, kind: input, shape index: {}]
  %s18 = inlined_call_operand.vmem [shape: f32[8,4], index: 18, kind: output, shape index: {}]
  %s19 = sld [smem:[#allocation0]]
  $region86: #{tpu_custom_call.1} parent=0
    _
  %s21 = ssub.s32 1, %s19
  %s22 = scalar_select 0, %s21, %s19
  $region1: #{tpu_custom_call.1} parent=0
    #allocation3 [shape = 'u8[512]{0}', space=smem, size = 0x200, scoped, tag = 'input window, operand 7, single buffered']
    #allocation4 [shape = 's32[1]{0}', space=sflag, size = 0x4, scoped, tag = 'scoped memory for tpu_custom_call.1']
    %23 = vsyncpa [#allocation4], 0
    // Predicated region
    $region2: #{tpu_custom_call.1} parent=1 // pred_check
      _
    $region3: #{tpu_custom_call.1} parent=1 // pred_check_branch
      %25 = sbr.rel (0) target = $region5
    $region4: #{tpu_custom_call.1} parent=1 // pred_region
      _
    $region5: #{tpu_custom_call.1} parent=1 // pred_fallthru
      _
    // Predicated region
    $region6: #{tpu_custom_call.1} parent=1 // pred_check
      _
    $region7: #{tpu_custom_call.1} parent=1 // pred_check_branch
      %27 = sbr.rel (0) target = $region9
    $region8: #{tpu_custom_call.1} parent=1 // pred_region
      _
    $region9: #{tpu_custom_call.1} parent=1 // pred_fallthru
      _
    // Predicated region
    $region10: #{tpu_custom_call.1} parent=1 // pred_check
      _
    $region11: #{tpu_custom_call.1} parent=1 // pred_check_branch
      %29 = sbr.rel (0) target = $region13
    $region12: #{tpu_custom_call.1} parent=1 // pred_region
      _
    $region13: #{tpu_custom_call.1} parent=1 // pred_fallthru
      _
    // Predicated region
    $region14: #{tpu_custom_call.1} parent=1 // pred_check
      _
    $region15: #{tpu_custom_call.1} parent=1 // pred_check_branch
      %31 = sbr.rel (0) target = $region17
    $region16: #{tpu_custom_call.1} parent=1 // pred_region
      _
    $region17: #{tpu_custom_call.1} parent=1 // pred_fallthru
      _
    // Predicated region
    $region18: #{tpu_custom_call.1} parent=1 // pred_check
      _
    $region19: #{tpu_custom_call.1} parent=1 // pred_check_branch
      %33 = sbr.rel (0) target = $region21
    $region20: #{tpu_custom_call.1} parent=1 // pred_region
      _
    $region21: #{tpu_custom_call.1} parent=1 // pred_fallthru
      _
    // Predicated region
    $region22: #{tpu_custom_call.1} parent=1 // pred_check
      _
    $region23: #{tpu_custom_call.1} parent=1 // pred_check_branch
      %35 = sbr.rel (0) target = $region25
    $region24: #{tpu_custom_call.1} parent=1 // pred_region
      _
    $region25: #{tpu_custom_call.1} parent=1 // pred_fallthru
      _
    // Predicated region
    $region26: #{tpu_custom_call.1} parent=1 // pred_check
      _
    $region27: #{tpu_custom_call.1} parent=1 // pred_check_branch
      %37 = sbr.rel (0) target = $region29
    $region28: #{tpu_custom_call.1} parent=1 // pred_region
      _
    $region29: #{tpu_custom_call.1} parent=1 // pred_fallthru
      _
    // Predicated region
    $region30: #{tpu_custom_call.1} parent=1 // pred_check
      _
    $region31: #{tpu_custom_call.1} parent=1 // pred_check_branch
      %39 = sbr.rel (0) target = $region33
    $region32: #{tpu_custom_call.1} parent=1 // pred_region
      %s41 = ssub.s32 16, 16
      %42 = vsyncadd [#allocation4], %s41
      %s44 = sshll.u32 %s7, 4
      %s45 = int_to_ptr.vmem [resolvable:$true] %s44
      %47 = dma.vmem_to_smem %s45, 16, [#allocation3], [#allocation4]
    $region33: #{tpu_custom_call.1} parent=1 // pred_fallthru
      _
    // Predicated region
    $region34: #{tpu_custom_call.1} parent=1 // pred_check
      _
    $region35: #{tpu_custom_call.1} parent=1 // pred_check_branch
      %49 = sbr.rel (0) target = $region37
    $region36: #{tpu_custom_call.1} parent=1 // pred_region
      _
    $region37: #{tpu_custom_call.1} parent=1 // pred_fallthru
      _
    // Predicated region
    $region38: #{tpu_custom_call.1} parent=1 // pred_check
      _
    $region39: #{tpu_custom_call.1} parent=1 // pred_check_branch
      %51 = sbr.rel (0) target = $region41
    $region40: #{tpu_custom_call.1} parent=1 // pred_region
      _
    $region41: #{tpu_custom_call.1} parent=1 // pred_fallthru
      _
    // Predicated region
    $region42: #{tpu_custom_call.1} parent=1 // pred_check
      _
    $region43: #{tpu_custom_call.1} parent=1 // pred_check_branch
      %53 = sbr.rel (0) target = $region45
    $region44: #{tpu_custom_call.1} parent=1 // pred_region
      _
    $region45: #{tpu_custom_call.1} parent=1 // pred_fallthru
      _
    // Predicated region
    $region46: #{tpu_custom_call.1} parent=1 // pred_check
      _
    $region47: #{tpu_custom_call.1} parent=1 // pred_check_branch
      %55 = sbr.rel (0) target = $region49
    $region48: #{tpu_custom_call.1} parent=1 // pred_region
      _
    $region49: #{tpu_custom_call.1} parent=1 // pred_fallthru
      _
    // Predicated region
    $region50: #{tpu_custom_call.1} parent=1 // pred_check
      _
    $region51: #{tpu_custom_call.1} parent=1 // pred_check_branch
      %57 = sbr.rel (0) target = $region53
    $region52: #{tpu_custom_call.1} parent=1 // pred_region
      _
    $region53: #{tpu_custom_call.1} parent=1 // pred_fallthru
      _
    // Predicated region
    $region54: #{tpu_custom_call.1} parent=1 // pred_check
      _
    $region55: #{tpu_custom_call.1} parent=1 // pred_check_branch
      %59 = sbr.rel (0) target = $region57
    $region56: #{tpu_custom_call.1} parent=1 // pred_region
      _
    $region57: #{tpu_custom_call.1} parent=1 // pred_fallthru
      _
    // Predicated region
    $region58: #{tpu_custom_call.1} parent=1 // pred_check
      _
    $region59: #{tpu_custom_call.1} parent=1 // pred_check_branch
      %61 = sbr.rel (0) target = $region61
    $region60: #{tpu_custom_call.1} parent=1 // pred_region
      _
    $region61: #{tpu_custom_call.1} parent=1 // pred_fallthru
      _
    // Predicated region
    $region62: #{tpu_custom_call.1} parent=1 // pred_check
      _
    $region63: #{tpu_custom_call.1} parent=1 // pred_check_branch
      %63 = sbr.rel (0) target = $region65
    $region64: #{tpu_custom_call.1} parent=1 // pred_region
      _
    $region65: #{tpu_custom_call.1} parent=1 // pred_fallthru
      _
    // Predicated region
    $region66: #{tpu_custom_call.1} parent=1 // pred_check
      _
    $region67: #{tpu_custom_call.1} parent=1 // pred_check_branch
      %65 = sbr.rel (0) target = $region69
    $region68: #{tpu_custom_call.1} parent=1 // pred_region
      _
    $region69: #{tpu_custom_call.1} parent=1 // pred_fallthru
      _
    // Predicated region
    $region70: #{tpu_custom_call.1} parent=1 // pred_check
      _
    $region71: #{tpu_custom_call.1} parent=1 // pred_check_branch
      %67 = sbr.rel (0) target = $region73
    $region72: #{tpu_custom_call.1} parent=1 // pred_region
      _
    $region73: #{tpu_custom_call.1} parent=1 // pred_fallthru
      _
    // Predicated region
    $region74: #{tpu_custom_call.1} parent=1 // pred_check
      _
    $region75: #{tpu_custom_call.1} parent=1 // pred_check_branch
      %69 = sbr.rel (0) target = $region77
    $region76: #{tpu_custom_call.1} parent=1 // pred_region
      %70 = dma.done [#allocation4], 16
    $region77: #{tpu_custom_call.1} parent=1 // pred_fallthru
      _
    %71 = sfence
    %v72 = vld [vmem:[%s0] sm:$0xff]
    %v73 = vld [vmem:[%s0 + $0x8] sm:$0xff]
    %v74 = vld [vmem:[%s0 + $0x10] sm:$0xff]
    %v75 = vld [vmem:[%s0 + $0x18] sm:$0xff]
    %v76 = vld [vmem:[%s0 + $0x20] sm:$0xff]
    %v77 = vld [vmem:[%s0 + $0x28] sm:$0xff]
    %v78 = vld [vmem:[%s0 + $0x30] sm:$0xff]
    %v79 = vld [vmem:[%s0 + $0x38] sm:$0xff]
    %v80 = vld [vmem:[%s0 + $0x40] sm:$0xff]
    %v81 = vld [vmem:[%s0 + $0x48] sm:$0xff]
    %v82 = vld [vmem:[%s0 + $0x50] sm:$0xff]
    %v83 = vld [vmem:[%s0 + $0x58] sm:$0xff]
    %v84 = vld [vmem:[%s0 + $0x60] sm:$0xff]
    %v85 = vld [vmem:[%s0 + $0x68] sm:$0xff]
    %v86 = vld [vmem:[%s0 + $0x70] sm:$0xff]
    %v87 = vld [vmem:[%s0 + $0x78] sm:$0xff]
    %v88 = vld [vmem:[%s0 + $0x80] sm:$0xff]
    %v89 = vld [vmem:[%s0 + $0x88] sm:$0xff]
    %v90 = vld [vmem:[%s0 + $0x90] sm:$0xff]
    %v91 = vld [vmem:[%s0 + $0x98] sm:$0xff]
    %v92 = vld [vmem:[%s0 + $0xa0] sm:$0xff]
    %v93 = vld [vmem:[%s0 + $0xa8] sm:$0xff]
    %v94 = vld [vmem:[%s0 + $0xb0] sm:$0xff]
    %v95 = vld [vmem:[%s0 + $0xb8] sm:$0xff]
    %v96 = vld [vmem:[%s0 + $0xc0] sm:$0xff]
    %v97 = vld [vmem:[%s0 + $0xc8] sm:$0xff]
    %v98 = vld [vmem:[%s0 + $0xd0] sm:$0xff]
    %v99 = vld [vmem:[%s0 + $0xd8] sm:$0xff]
    %v100 = vld [vmem:[%s0 + $0xe0] sm:$0xff]
    %v101 = vld [vmem:[%s0 + $0xe8] sm:$0xff]
    %v102 = vld [vmem:[%s0 + $0xf0] sm:$0xff]
    %v103 = vld [vmem:[%s0 + $0xf8] sm:$0xff]
    %v104 = vld [vmem:[%s1] sm:$0xff]
    %v105 = vld [vmem:[%s3] sm:$0x1]
    %v107 = vlaneseq
    %v108 = vshrl.u32 %v107, 7
    %v109 = vsub.s32 0, %v108
    %v110 = vrot.slane %v105, %v109
    %vm112 = vcmask 64512
    %v114 = vsel %vm112, %v72, 0
    %v117 = vsel %vm112, %v73, 0
    %v120 = vsel %vm112, %v74, 0
    %v123 = vsel %vm112, %v75, 0
    %v126 = vsel %vm112, %v76, 0
    %v129 = vsel %vm112, %v77, 0
    %v132 = vsel %vm112, %v78, 0
    %v135 = vsel %vm112, %v79, 0
    %v138 = vsel %vm112, %v80, 0
    %v141 = vsel %vm112, %v81, 0
    %v144 = vsel %vm112, %v82, 0
    %v147 = vsel %vm112, %v83, 0
    %v150 = vsel %vm112, %v84, 0
    %v153 = vsel %vm112, %v85, 0
    %v156 = vsel %vm112, %v86, 0
    %v159 = vsel %vm112, %v87, 0
    %v162 = vsel %vm112, %v88, 0
    %v165 = vsel %vm112, %v89, 0
    %v168 = vsel %vm112, %v90, 0
    %v171 = vsel %vm112, %v91, 0
    %v174 = vsel %vm112, %v92, 0
    %v177 = vsel %vm112, %v93, 0
    %v180 = vsel %vm112, %v94, 0
    %v183 = vsel %vm112, %v95, 0
    %v186 = vsel %vm112, %v96, 0
    %v189 = vsel %vm112, %v97, 0
    %v192 = vsel %vm112, %v98, 0
    %v195 = vsel %vm112, %v99, 0
    %v198 = vsel %vm112, %v100, 0
    %v201 = vsel %vm112, %v101, 0
    %v204 = vsel %vm112, %v102, 0
    %v207 = vsel %vm112, %v103, 0
    %209 = vmatprep.subr.mxu0 0.0
    %210 = vmatpush1.msra.mxu0 0.0
    %211 = vmatprep.subr.mxu0 0.0
    %212 = vmatpush1.msra.mxu0 0.0
    %213 = vmatprep.subr.mxu0 0.0
    %214 = vmatpush1.msra.mxu0 0.0
    %215 = vmatprep.subr.mxu0 0.0
    %216 = vmatpush1.msra.mxu0 0.0
    %217 = vmatprep.subr.mxu0 0.0
    %218 = vmatpush1.msra.mxu0 0.0
    %219 = vmatprep.subr.mxu0 0.0
    %220 = vmatpush1.msra.mxu0 0.0
    %221 = vmatprep.subr.mxu0 0.0
    %222 = vmatpush1.msra.mxu0 0.0
    %223 = vmatprep.subr.mxu0 0.0
    %224 = vmatpush1.msra.mxu0 0.0
    %225 = vmatprep.subr.mxu0 0.0
    %226 = vmatpush1.msra.mxu0 0.0
    %227 = vmatprep.subr.mxu0 0.0
    %228 = vmatpush1.msra.mxu0 0.0
    %229 = vmatprep.subr.mxu0 0.0
    %230 = vmatpush1.msra.mxu0 0.0
    %231 = vmatprep.subr.mxu0 0.0
    %232 = vmatpush1.msra.mxu0 0.0
    %233 = vmatprep.subr.mxu0 0.0
    %234 = vmatpush1.msra.mxu0 0.0
    %235 = vmatprep.subr.mxu0 0.0
    %236 = vmatpush1.msra.mxu0 0.0
    %237 = vmatprep.subr.mxu0 0.0
    %238 = vmatpush1.msra.mxu0 0.0
    %239 = vmatprep.subr.mxu0 0.0
    %240 = vmatpush1.msra.mxu0 %v104
    %241 = vmatprep.subr.mxu0 0.0
    %242 = vmatpush2.msra.mxu0 0.0
    %243 = vmatprep.subr.mxu0 0.0
    %244 = vmatpush2.msra.mxu0 0.0
    %245 = vmatprep.subr.mxu0 0.0
    %246 = vmatpush2.msra.mxu0 0.0
    %247 = vmatprep.subr.mxu0 0.0
    %248 = vmatpush2.msra.mxu0 0.0
    %249 = vmatprep.subr.mxu0 0.0
    %250 = vmatpush2.msra.mxu0 0.0
    %251 = vmatprep.subr.mxu0 0.0
    %252 = vmatpush2.msra.mxu0 0.0
    %253 = vmatprep.subr.mxu0 0.0
    %254 = vmatpush2.msra.mxu0 0.0
    %255 = vmatprep.subr.mxu0 0.0
    %256 = vmatpush2.msra.mxu0 0.0
    %257 = vmatprep.subr.mxu0 0.0
    %258 = vmatpush2.msra.mxu0 0.0
    %259 = vmatprep.subr.mxu0 0.0
    %260 = vmatpush2.msra.mxu0 0.0
    %261 = vmatprep.subr.mxu0 0.0
    %262 = vmatpush2.msra.mxu0 0.0
    %263 = vmatprep.subr.mxu0 0.0
    %264 = vmatpush2.msra.mxu0 0.0
    %265 = vmatprep.subr.mxu0 0.0
    %266 = vmatpush2.msra.mxu0 0.0
    %267 = vmatprep.subr.mxu0 0.0
    %268 = vmatpush2.msra.mxu0 0.0
    %269 = vmatprep.subr.mxu0 0.0
    %270 = vmatpush2.msra.mxu0 0.0
    %271 = vmatprep.subr.mxu0 0.0
    %272 = vmatpush2.msra.mxu0 0.0
    %273 = vmatprep.mubr.f32.mxu0 0.0
    %274 = vmatmul.mubr.f32.gmra.mxu0 %v114
    %v275 = vpop.f32.mrf.mxu0
    %v276 = vadd.f32 %v110, %v275
    %v277 = vpop.f32.mrf.mxu0
    %278 = vmatprep.mubr.f32.mxu0 0.0
    %279 = vmatmul.mubr.f32.gmra.mxu0 %v117
    %v280 = vpop.f32.mrf.mxu0
    %v281 = vadd.f32 %v110, %v280
    %v282 = vpop.f32.mrf.mxu0
    %283 = vmatprep.mubr.f32.mxu0 0.0
    %284 = vmatmul.mubr.f32.gmra.mxu0 %v120
    %v285 = vpop.f32.mrf.mxu0
    %v286 = vadd.f32 %v110, %v285
    %v287 = vpop.f32.mrf.mxu0
    %288 = vmatprep.mubr.f32.mxu0 0.0
    %289 = vmatmul.mubr.f32.gmra.mxu0 %v123
    %v290 = vpop.f32.mrf.mxu0
    %v291 = vadd.f32 %v110, %v290
    %v292 = vpop.f32.mrf.mxu0
    %293 = vmatprep.mubr.f32.mxu0 0.0
    %294 = vmatmul.mubr.f32.gmra.mxu0 %v126
    %v295 = vpop.f32.mrf.mxu0
    %v296 = vadd.f32 %v110, %v295
    %v297 = vpop.f32.mrf.mxu0
    %298 = vmatprep.mubr.f32.mxu0 0.0
    %299 = vmatmul.mubr.f32.gmra.mxu0 %v129
    %v300 = vpop.f32.mrf.mxu0
    %v301 = vadd.f32 %v110, %v300
    %v302 = vpop.f32.mrf.mxu0
    %303 = vmatprep.mubr.f32.mxu0 0.0
    %304 = vmatmul.mubr.f32.gmra.mxu0 %v132
    %v305 = vpop.f32.mrf.mxu0
    %v306 = vadd.f32 %v110, %v305
    %v307 = vpop.f32.mrf.mxu0
    %308 = vmatprep.mubr.f32.mxu0 0.0
    %309 = vmatmul.mubr.f32.gmra.mxu0 %v135
    %v310 = vpop.f32.mrf.mxu0
    %v311 = vadd.f32 %v110, %v310
    %v312 = vpop.f32.mrf.mxu0
    %313 = vmatprep.mubr.f32.mxu0 0.0
    %314 = vmatmul.mubr.f32.gmra.mxu0 %v138
    %v315 = vpop.f32.mrf.mxu0
    %v316 = vadd.f32 %v110, %v315
    %v317 = vpop.f32.mrf.mxu0
    %318 = vmatprep.mubr.f32.mxu0 0.0
    %319 = vmatmul.mubr.f32.gmra.mxu0 %v141
    %v320 = vpop.f32.mrf.mxu0
    %v321 = vadd.f32 %v110, %v320
    %v322 = vpop.f32.mrf.mxu0
    %323 = vmatprep.mubr.f32.mxu0 0.0
    %324 = vmatmul.mubr.f32.gmra.mxu0 %v144
    %v325 = vpop.f32.mrf.mxu0
    %v326 = vadd.f32 %v110, %v325
    %v327 = vpop.f32.mrf.mxu0
    %328 = vmatprep.mubr.f32.mxu0 0.0
    %329 = vmatmul.mubr.f32.gmra.mxu0 %v147
    %v330 = vpop.f32.mrf.mxu0
    %v331 = vadd.f32 %v110, %v330
    %v332 = vpop.f32.mrf.mxu0
    %333 = vmatprep.mubr.f32.mxu0 0.0
    %334 = vmatmul.mubr.f32.gmra.mxu0 %v150
    %v335 = vpop.f32.mrf.mxu0
    %v336 = vadd.f32 %v110, %v335
    %v337 = vpop.f32.mrf.mxu0
    %338 = vmatprep.mubr.f32.mxu0 0.0
    %339 = vmatmul.mubr.f32.gmra.mxu0 %v153
    %v340 = vpop.f32.mrf.mxu0
    %v341 = vadd.f32 %v110, %v340
    %v342 = vpop.f32.mrf.mxu0
    %343 = vmatprep.mubr.f32.mxu0 0.0
    %344 = vmatmul.mubr.f32.gmra.mxu0 %v156
    %v345 = vpop.f32.mrf.mxu0
    %v346 = vadd.f32 %v110, %v345
    %v347 = vpop.f32.mrf.mxu0
    %348 = vmatprep.mubr.f32.mxu0 0.0
    %349 = vmatmul.mubr.f32.gmra.mxu0 %v159
    %v350 = vpop.f32.mrf.mxu0
    %v351 = vadd.f32 %v110, %v350
    %v352 = vpop.f32.mrf.mxu0
    %353 = vmatprep.mubr.f32.mxu0 0.0
    %354 = vmatmul.mubr.f32.gmra.mxu0 %v162
    %v355 = vpop.f32.mrf.mxu0
    %v356 = vadd.f32 %v110, %v355
    %v357 = vpop.f32.mrf.mxu0
    %358 = vmatprep.mubr.f32.mxu0 0.0
    %359 = vmatmul.mubr.f32.gmra.mxu0 %v165
    %v360 = vpop.f32.mrf.mxu0
    %v361 = vadd.f32 %v110, %v360
    %v362 = vpop.f32.mrf.mxu0
    %363 = vmatprep.mubr.f32.mxu0 0.0
    %364 = vmatmul.mubr.f32.gmra.mxu0 %v168
    %v365 = vpop.f32.mrf.mxu0
    %v366 = vadd.f32 %v110, %v365
    %v367 = vpop.f32.mrf.mxu0
    %368 = vmatprep.mubr.f32.mxu0 0.0
    %369 = vmatmul.mubr.f32.gmra.mxu0 %v171
    %v370 = vpop.f32.mrf.mxu0
    %v371 = vadd.f32 %v110, %v370
    %v372 = vpop.f32.mrf.mxu0
    %373 = vmatprep.mubr.f32.mxu0 0.0
    %374 = vmatmul.mubr.f32.gmra.mxu0 %v174
    %v375 = vpop.f32.mrf.mxu0
    %v376 = vadd.f32 %v110, %v375
    %v377 = vpop.f32.mrf.mxu0
    %378 = vmatprep.mubr.f32.mxu0 0.0
    %379 = vmatmul.mubr.f32.gmra.mxu0 %v177
    %v380 = vpop.f32.mrf.mxu0
    %v381 = vadd.f32 %v110, %v380
    %v382 = vpop.f32.mrf.mxu0
    %383 = vmatprep.mubr.f32.mxu0 0.0
    %384 = vmatmul.mubr.f32.gmra.mxu0 %v180
    %v385 = vpop.f32.mrf.mxu0
    %v386 = vadd.f32 %v110, %v385
    %v387 = vpop.f32.mrf.mxu0
    %388 = vmatprep.mubr.f32.mxu0 0.0
    %389 = vmatmul.mubr.f32.gmra.mxu0 %v183
    %v390 = vpop.f32.mrf.mxu0
    %v391 = vadd.f32 %v110, %v390
    %v392 = vpop.f32.mrf.mxu0
    %393 = vmatprep.mubr.f32.mxu0 0.0
    %394 = vmatmul.mubr.f32.gmra.mxu0 %v186
    %v395 = vpop.f32.mrf.mxu0
    %v396 = vadd.f32 %v110, %v395
    %v397 = vpop.f32.mrf.mxu0
    %398 = vmatprep.mubr.f32.mxu0 0.0
    %399 = vmatmul.mubr.f32.gmra.mxu0 %v189
    %v400 = vpop.f32.mrf.mxu0
    %v401 = vadd.f32 %v110, %v400
    %v402 = vpop.f32.mrf.mxu0
    %403 = vmatprep.mubr.f32.mxu0 0.0
    %404 = vmatmul.mubr.f32.gmra.mxu0 %v192
    %v405 = vpop.f32.mrf.mxu0
    %v406 = vadd.f32 %v110, %v405
    %v407 = vpop.f32.mrf.mxu0
    %408 = vmatprep.mubr.f32.mxu0 0.0
    %409 = vmatmul.mubr.f32.gmra.mxu0 %v195
    %v410 = vpop.f32.mrf.mxu0
    %v411 = vadd.f32 %v110, %v410
    %v412 = vpop.f32.mrf.mxu0
    %413 = vmatprep.mubr.f32.mxu0 0.0
    %414 = vmatmul.mubr.f32.gmra.mxu0 %v198
    %v415 = vpop.f32.mrf.mxu0
    %v416 = vadd.f32 %v110, %v415
    %v417 = vpop.f32.mrf.mxu0
    %418 = vmatprep.mubr.f32.mxu0 0.0
    %419 = vmatmul.mubr.f32.gmra.mxu0 %v201
    %v420 = vpop.f32.mrf.mxu0
    %v421 = vadd.f32 %v110, %v420
    %v422 = vpop.f32.mrf.mxu0
    %423 = vmatprep.mubr.f32.mxu0 0.0
    %424 = vmatmul.mubr.f32.gmra.mxu0 %v204
    %v425 = vpop.f32.mrf.mxu0
    %v426 = vadd.f32 %v110, %v425
    %v427 = vpop.f32.mrf.mxu0
    %428 = vmatprep.mubr.f32.mxu0 0.0
    %429 = vmatmul.mubr.f32.gmra.mxu0 %v207
    %v430 = vpop.f32.mrf.mxu0
    %v431 = vadd.f32 %v110, %v430
    %v432 = vpop.f32.mrf.mxu0
    %433 = vdwg.mxu0
    %vm434 = vcmask 261120
    %435 = vst.msk [vmem:[#allocation2] sm:$0xff] %vm434, %v276
    %436 = vst.msk [vmem:[#allocation2 + $0x8] sm:$0xff] %vm434, %v281
    %437 = vst.msk [vmem:[#allocation2 + $0x10] sm:$0xff] %vm434, %v286
    %438 = vst.msk [vmem:[#allocation2 + $0x18] sm:$0xff] %vm434, %v291
    %439 = vst.msk [vmem:[#allocation2 + $0x20] sm:$0xff] %vm434, %v296
    %440 = vst.msk [vmem:[#allocation2 + $0x28] sm:$0xff] %vm434, %v301
    %441 = vst.msk [vmem:[#allocation2 + $0x30] sm:$0xff] %vm434, %v306
    %442 = vst.msk [vmem:[#allocation2 + $0x38] sm:$0xff] %vm434, %v311
    %443 = vst.msk [vmem:[#allocation2 + $0x40] sm:$0xff] %vm434, %v316
    %444 = vst.msk [vmem:[#allocation2 + $0x48] sm:$0xff] %vm434, %v321
    %445 = vst.msk [vmem:[#allocation2 + $0x50] sm:$0xff] %vm434, %v326
    %446 = vst.msk [vmem:[#allocation2 + $0x58] sm:$0xff] %vm434, %v331
    %447 = vst.msk [vmem:[#allocation2 + $0x60] sm:$0xff] %vm434, %v336
    %448 = vst.msk [vmem:[#allocation2 + $0x68] sm:$0xff] %vm434, %v341
    %449 = vst.msk [vmem:[#allocation2 + $0x70] sm:$0xff] %vm434, %v346
    %450 = vst.msk [vmem:[#allocation2 + $0x78] sm:$0xff] %vm434, %v351
    %451 = vst.msk [vmem:[#allocation2 + $0x80] sm:$0xff] %vm434, %v356
    %452 = vst.msk [vmem:[#allocation2 + $0x88] sm:$0xff] %vm434, %v361
    %453 = vst.msk [vmem:[#allocation2 + $0x90] sm:$0xff] %vm434, %v366
    %454 = vst.msk [vmem:[#allocation2 + $0x98] sm:$0xff] %vm434, %v371
    %455 = vst.msk [vmem:[#allocation2 + $0xa0] sm:$0xff] %vm434, %v376
    %456 = vst.msk [vmem:[#allocation2 + $0xa8] sm:$0xff] %vm434, %v381
    %457 = vst.msk [vmem:[#allocation2 + $0xb0] sm:$0xff] %vm434, %v386
    %458 = vst.msk [vmem:[#allocation2 + $0xb8] sm:$0xff] %vm434, %v391
    %459 = vst.msk [vmem:[#allocation2 + $0xc0] sm:$0xff] %vm434, %v396
    %460 = vst.msk [vmem:[#allocation2 + $0xc8] sm:$0xff] %vm434, %v401
    %461 = vst.msk [vmem:[#allocation2 + $0xd0] sm:$0xff] %vm434, %v406
    %462 = vst.msk [vmem:[#allocation2 + $0xd8] sm:$0xff] %vm434, %v411
    %463 = vst.msk [vmem:[#allocation2 + $0xe0] sm:$0xff] %vm434, %v416
    %464 = vst.msk [vmem:[#allocation2 + $0xe8] sm:$0xff] %vm434, %v421
    %465 = vst.msk [vmem:[#allocation2 + $0xf0] sm:$0xff] %vm434, %v426
    %466 = vst.msk [vmem:[#allocation2 + $0xf8] sm:$0xff] %vm434, %v431
    %v467 = vld [vmem:[%s2] sm:$0xff]
    %v468 = vld [vmem:[%s2 + $0x8] sm:$0xff]
    %v469 = vld [vmem:[%s2 + $0x10] sm:$0xff]
    %v470 = vld [vmem:[%s2 + $0x18] sm:$0xff]
    %v471 = vld [vmem:[%s5] sm:$0xff]
    %v472 = vld [vmem:[%s5 + $0x8] sm:$0xff]
    %v473 = vld [vmem:[%s5 + $0x10] sm:$0xff]
    %v474 = vld [vmem:[%s5 + $0x18] sm:$0xff]
    %v475 = vld [vmem:[%s4] sm:$0xff]
    %v476 = vld [vmem:[%s4 + $0x8] sm:$0xff]
    %v477 = vld [vmem:[%s4 + $0x10] sm:$0xff]
    %v478 = vld [vmem:[%s4 + $0x18] sm:$0xff]
    %v479 = vld [vmem:[%s6] sm:$0x1]
    %v480 = vld [vmem:[#allocation2] sm:$0xff]
    %v482 = vsel %vm434, 0.0, 0
    %484 = vmatprep.subr.mxu0 0.0
    %485 = vmatpush1.msra.mxu0 0.0
    %486 = vmatprep.subr.mxu0 0.0
    %487 = vmatpush1.msra.mxu0 0.0
    %488 = vmatprep.subr.mxu0 0.0
    %489 = vmatpush1.msra.mxu0 0.0
    %490 = vmatprep.subr.mxu0 0.0
    %491 = vmatpush1.msra.mxu0 0.0
    %492 = vmatprep.subr.mxu0 0.0
    %493 = vmatpush1.msra.mxu0 0.0
    %494 = vmatprep.subr.mxu0 0.0
    %495 = vmatpush1.msra.mxu0 0.0
    %496 = vmatprep.subr.mxu0 0.0
    %497 = vmatpush1.msra.mxu0 0.0
    %498 = vmatprep.subr.mxu0 0.0
    %499 = vmatpush1.msra.mxu0 0.0
    %500 = vmatprep.subr.mxu0 0.0
    %501 = vmatpush1.msra.mxu0 0.0
    %502 = vmatprep.subr.mxu0 0.0
    %503 = vmatpush1.msra.mxu0 0.0
    %504 = vmatprep.subr.mxu0 0.0
    %505 = vmatpush1.msra.mxu0 0.0
    %506 = vmatprep.subr.mxu0 0.0
    %507 = vmatpush1.msra.mxu0 0.0
    %508 = vmatprep.subr.mxu0 0.0
    %509 = vmatpush1.msra.mxu0 %v470
    %510 = vmatprep.subr.mxu0 0.0
    %511 = vmatpush1.msra.mxu0 %v469
    %512 = vmatprep.subr.mxu0 0.0
    %513 = vmatpush1.msra.mxu0 %v468
    %514 = vmatprep.subr.mxu0 0.0
    %515 = vmatpush1.msra.mxu0 %v467
    %516 = vmatprep.subr.mxu0 0.0
    %517 = vmatpush2.msra.mxu0 0.0
    %518 = vmatprep.subr.mxu0 0.0
    %519 = vmatpush2.msra.mxu0 0.0
    %520 = vmatprep.subr.mxu0 0.0
    %521 = vmatpush2.msra.mxu0 0.0
    %522 = vmatprep.subr.mxu0 0.0
    %523 = vmatpush2.msra.mxu0 0.0
    %524 = vmatprep.subr.mxu0 0.0
    %525 = vmatpush2.msra.mxu0 0.0
    %526 = vmatprep.subr.mxu0 0.0
    %527 = vmatpush2.msra.mxu0 0.0
    %528 = vmatprep.subr.mxu0 0.0
    %529 = vmatpush2.msra.mxu0 0.0
    %530 = vmatprep.subr.mxu0 0.0
    %531 = vmatpush2.msra.mxu0 0.0
    %532 = vmatprep.subr.mxu0 0.0
    %533 = vmatpush2.msra.mxu0 0.0
    %534 = vmatprep.subr.mxu0 0.0
    %535 = vmatpush2.msra.mxu0 0.0
    %536 = vmatprep.subr.mxu0 0.0
    %537 = vmatpush2.msra.mxu0 0.0
    %538 = vmatprep.subr.mxu0 0.0
    %539 = vmatpush2.msra.mxu0 0.0
    %540 = vmatprep.subr.mxu0 0.0
    %541 = vmatpush2.msra.mxu0 0.0
    %542 = vmatprep.subr.mxu0 0.0
    %543 = vmatpush2.msra.mxu0 0.0
    %544 = vmatprep.subr.mxu0 0.0
    %545 = vmatpush2.msra.mxu0 0.0
    %546 = vmatprep.subr.mxu0 0.0
    %547 = vmatpush2.msra.mxu0 0.0
    %548 = vmatprep.mubr.f32.mxu0 0.0
    %549 = vmatmul.mubr.f32.gmra.mxu0 %v482
    %v550 = vpop.f32.mrf.mxu0
    %v551 = vadd.f32 0.0, %v550
    %v552 = vpop.f32.mrf.mxu0
    %553 = vdwg.mxu0
    %v554 = vadd.f32 %v480, %v551
    %v555 = vtanh.pop %v554
    %v556 = vld [vmem:[#allocation2 + $0x8] sm:$0xff]
    %v558 = vsel %vm434, %v555, 0
    %560 = vmatprep.subr.mxu0 0.0
    %561 = vmatpush1.msra.mxu0 0.0
    %562 = vmatprep.subr.mxu0 0.0
    %563 = vmatpush1.msra.mxu0 0.0
    %564 = vmatprep.subr.mxu0 0.0
    %565 = vmatpush1.msra.mxu0 0.0
    %566 = vmatprep.subr.mxu0 0.0
    %567 = vmatpush1.msra.mxu0 0.0
    %568 = vmatprep.subr.mxu0 0.0
    %569 = vmatpush1.msra.mxu0 0.0
    %570 = vmatprep.subr.mxu0 0.0
    %571 = vmatpush1.msra.mxu0 0.0
    %572 = vmatprep.subr.mxu0 0.0
    %573 = vmatpush1.msra.mxu0 0.0
    %574 = vmatprep.subr.mxu0 0.0
    %575 = vmatpush1.msra.mxu0 0.0
    %576 = vmatprep.subr.mxu0 0.0
    %577 = vmatpush1.msra.mxu0 0.0
    %578 = vmatprep.subr.mxu0 0.0
    %579 = vmatpush1.msra.mxu0 0.0
    %580 = vmatprep.subr.mxu0 0.0
    %581 = vmatpush1.msra.mxu0 0.0
    %582 = vmatprep.subr.mxu0 0.0
    %583 = vmatpush1.msra.mxu0 0.0
    %584 = vmatprep.subr.mxu0 0.0
    %585 = vmatpush1.msra.mxu0 %v470
    %586 = vmatprep.subr.mxu0 0.0
    %587 = vmatpush1.msra.mxu0 %v469
    %588 = vmatprep.subr.mxu0 0.0
    %589 = vmatpush1.msra.mxu0 %v468
    %590 = vmatprep.subr.mxu0 0.0
    %591 = vmatpush1.msra.mxu0 %v467
    %592 = vmatprep.subr.mxu0 0.0
    %593 = vmatpush2.msra.mxu0 0.0
    %594 = vmatprep.subr.mxu0 0.0
    %595 = vmatpush2.msra.mxu0 0.0
    %596 = vmatprep.subr.mxu0 0.0
    %597 = vmatpush2.msra.mxu0 0.0
    %598 = vmatprep.subr.mxu0 0.0
    %599 = vmatpush2.msra.mxu0 0.0
    %600 = vmatprep.subr.mxu0 0.0
    %601 = vmatpush2.msra.mxu0 0.0
    %602 = vmatprep.subr.mxu0 0.0
    %603 = vmatpush2.msra.mxu0 0.0
    %604 = vmatprep.subr.mxu0 0.0
    %605 = vmatpush2.msra.mxu0 0.0
    %606 = vmatprep.subr.mxu0 0.0
    %607 = vmatpush2.msra.mxu0 0.0
    %608 = vmatprep.subr.mxu0 0.0
    %609 = vmatpush2.msra.mxu0 0.0
    %610 = vmatprep.subr.mxu0 0.0
    %611 = vmatpush2.msra.mxu0 0.0
    %612 = vmatprep.subr.mxu0 0.0
    %613 = vmatpush2.msra.mxu0 0.0
    %614 = vmatprep.subr.mxu0 0.0
    %615 = vmatpush2.msra.mxu0 0.0
    %616 = vmatprep.subr.mxu0 0.0
    %617 = vmatpush2.msra.mxu0 0.0
    %618 = vmatprep.subr.mxu0 0.0
    %619 = vmatpush2.msra.mxu0 0.0
    %620 = vmatprep.subr.mxu0 0.0
    %621 = vmatpush2.msra.mxu0 0.0
    %622 = vmatprep.subr.mxu0 0.0
    %623 = vmatpush2.msra.mxu0 0.0
    %624 = vmatprep.mubr.f32.mxu0 0.0
    %625 = vmatmul.mubr.f32.gmra.mxu0 %v558
    %v626 = vpop.f32.mrf.mxu0
    %v627 = vadd.f32 0.0, %v626
    %v628 = vpop.f32.mrf.mxu0
    %629 = vdwg.mxu0
    %v630 = vadd.f32 %v556, %v627
    %v631 = vtanh.pop %v630
    %v633 = vlaneseq
    %v634 = vshrl.u32 %v633, 7
    %v635 = vsub.s32 0, %v634
    %v636 = vrot.slane %v479, %v635
    %638 = vmatprep.subr.mxu0 0.0
    %639 = vmatpush1.msra.mxu0 0.0
    %640 = vmatprep.subr.mxu0 0.0
    %641 = vmatpush1.msra.mxu0 0.0
    %642 = vmatprep.subr.mxu0 0.0
    %643 = vmatpush1.msra.mxu0 0.0
    %644 = vmatprep.subr.mxu0 0.0
    %645 = vmatpush1.msra.mxu0 0.0
    %646 = vmatprep.subr.mxu0 0.0
    %647 = vmatpush1.msra.mxu0 0.0
    %648 = vmatprep.subr.mxu0 0.0
    %649 = vmatpush1.msra.mxu0 0.0
    %650 = vmatprep.subr.mxu0 0.0
    %651 = vmatpush1.msra.mxu0 0.0
    %652 = vmatprep.subr.mxu0 0.0
    %653 = vmatpush1.msra.mxu0 0.0
    %654 = vmatprep.subr.mxu0 0.0
    %655 = vmatpush1.msra.mxu0 0.0
    %656 = vmatprep.subr.mxu0 0.0
    %657 = vmatpush1.msra.mxu0 0.0
    %658 = vmatprep.subr.mxu0 0.0
    %659 = vmatpush1.msra.mxu0 0.0
    %660 = vmatprep.subr.mxu0 0.0
    %661 = vmatpush1.msra.mxu0 0.0
    %662 = vmatprep.subr.mxu0 0.0
    %663 = vmatpush1.msra.mxu0 %v478
    %664 = vmatprep.subr.mxu0 0.0
    %665 = vmatpush1.msra.mxu0 %v477
    %666 = vmatprep.subr.mxu0 0.0
    %667 = vmatpush1.msra.mxu0 %v476
    %668 = vmatprep.subr.mxu0 0.0
    %669 = vmatpush1.msra.mxu0 %v475
    %670 = vmatprep.subr.mxu0 0.0
    %671 = vmatpush2.msra.mxu0 0.0
    %672 = vmatprep.subr.mxu0 0.0
    %673 = vmatpush2.msra.mxu0 0.0
    %674 = vmatprep.subr.mxu0 0.0
    %675 = vmatpush2.msra.mxu0 0.0
    %676 = vmatprep.subr.mxu0 0.0
    %677 = vmatpush2.msra.mxu0 0.0
    %678 = vmatprep.subr.mxu0 0.0
    %679 = vmatpush2.msra.mxu0 0.0
    %680 = vmatprep.subr.mxu0 0.0
    %681 = vmatpush2.msra.mxu0 0.0
    %682 = vmatprep.subr.mxu0 0.0
    %683 = vmatpush2.msra.mxu0 0.0
    %684 = vmatprep.subr.mxu0 0.0
    %685 = vmatpush2.msra.mxu0 0.0
    %686 = vmatprep.subr.mxu0 0.0
    %687 = vmatpush2.msra.mxu0 0.0
    %688 = vmatprep.subr.mxu0 0.0
    %689 = vmatpush2.msra.mxu0 0.0
    %690 = vmatprep.subr.mxu0 0.0
    %691 = vmatpush2.msra.mxu0 0.0
    %692 = vmatprep.subr.mxu0 0.0
    %693 = vmatpush2.msra.mxu0 0.0
    %694 = vmatprep.subr.mxu0 0.0
    %695 = vmatpush2.msra.mxu0 0.0
    %696 = vmatprep.subr.mxu0 0.0
    %697 = vmatpush2.msra.mxu0 0.0
    %698 = vmatprep.subr.mxu0 0.0
    %699 = vmatpush2.msra.mxu0 0.0
    %700 = vmatprep.subr.mxu0 0.0
    %701 = vmatpush2.msra.mxu0 0.0
    %702 = vmatprep.mubr.f32.mxu0 0.0
    %703 = vmatmul.mubr.f32.gmra.mxu0 %v558
    %v704 = vpop.f32.mrf.mxu0
    %v705 = vadd.f32 %v636, %v704
    %v706 = vpop.f32.mrf.mxu0
    %707 = vdwg.mxu0
    %708 = vmatprep.subr.mxu0 0.0
    %709 = vmatpush1.msra.mxu0 0.0
    %710 = vmatprep.subr.mxu0 0.0
    %711 = vmatpush1.msra.mxu0 0.0
    %712 = vmatprep.subr.mxu0 0.0
    %713 = vmatpush1.msra.mxu0 0.0
    %714 = vmatprep.subr.mxu0 0.0
    %715 = vmatpush1.msra.mxu0 0.0
    %716 = vmatprep.subr.mxu0 0.0
    %717 = vmatpush1.msra.mxu0 0.0
    %718 = vmatprep.subr.mxu0 0.0
    %719 = vmatpush1.msra.mxu0 0.0
    %720 = vmatprep.subr.mxu0 0.0
    %721 = vmatpush1.msra.mxu0 0.0
    %722 = vmatprep.subr.mxu0 0.0
    %723 = vmatpush1.msra.mxu0 0.0
    %724 = vmatprep.subr.mxu0 0.0
    %725 = vmatpush1.msra.mxu0 0.0
    %726 = vmatprep.subr.mxu0 0.0
    %727 = vmatpush1.msra.mxu0 0.0
    %728 = vmatprep.subr.mxu0 0.0
    %729 = vmatpush1.msra.mxu0 0.0
    %730 = vmatprep.subr.mxu0 0.0
    %731 = vmatpush1.msra.mxu0 0.0
    %732 = vmatprep.subr.mxu0 0.0
    %733 = vmatpush1.msra.mxu0 %v474
    %734 = vmatprep.subr.mxu0 0.0
    %735 = vmatpush1.msra.mxu0 %v473
    %736 = vmatprep.subr.mxu0 0.0
    %737 = vmatpush1.msra.mxu0 %v472
    %738 = vmatprep.subr.mxu0 0.0
    %739 = vmatpush1.msra.mxu0 %v471
    %740 = vmatprep.subr.mxu0 0.0
    %741 = vmatpush2.msra.mxu0 0.0
    %742 = vmatprep.subr.mxu0 0.0
    %743 = vmatpush2.msra.mxu0 0.0
    %744 = vmatprep.subr.mxu0 0.0
    %745 = vmatpush2.msra.mxu0 0.0
    %746 = vmatprep.subr.mxu0 0.0
    %747 = vmatpush2.msra.mxu0 0.0
    %748 = vmatprep.subr.mxu0 0.0
    %749 = vmatpush2.msra.mxu0 0.0
    %750 = vmatprep.subr.mxu0 0.0
    %751 = vmatpush2.msra.mxu0 0.0
    %752 = vmatprep.subr.mxu0 0.0
    %753 = vmatpush2.msra.mxu0 0.0
    %754 = vmatprep.subr.mxu0 0.0
    %755 = vmatpush2.msra.mxu0 0.0
    %756 = vmatprep.subr.mxu0 0.0
    %757 = vmatpush2.msra.mxu0 0.0
    %758 = vmatprep.subr.mxu0 0.0
    %759 = vmatpush2.msra.mxu0 0.0
    %760 = vmatprep.subr.mxu0 0.0
    %761 = vmatpush2.msra.mxu0 0.0
    %762 = vmatprep.subr.mxu0 0.0
    %763 = vmatpush2.msra.mxu0 0.0
    %764 = vmatprep.subr.mxu0 0.0
    %765 = vmatpush2.msra.mxu0 0.0
    %766 = vmatprep.subr.mxu0 0.0
    %767 = vmatpush2.msra.mxu0 0.0
    %768 = vmatprep.subr.mxu0 0.0
    %769 = vmatpush2.msra.mxu0 0.0
    %770 = vmatprep.subr.mxu0 0.0
    %771 = vmatpush2.msra.mxu0 0.0
    %772 = vmatprep.mubr.f32.mxu0 0.0
    %773 = vmatmul.mubr.f32.gmra.mxu0 %v482
    %v774 = vpop.f32.mrf.mxu0
    %v775 = vadd.f32 0.0, %v774
    %v776 = vpop.f32.mrf.mxu0
    %777 = vdwg.mxu0
    %v778 = vadd.f32 %v705, %v775
    %v779 = vtanh.pop %v778
    %v780 = vld [vmem:[#allocation2 + $0x10] sm:$0xff]
    %v782 = vsel %vm434, %v631, 0
    %784 = vmatprep.subr.mxu0 0.0
    %785 = vmatpush1.msra.mxu0 0.0
    %786 = vmatprep.subr.mxu0 0.0
    %787 = vmatpush1.msra.mxu0 0.0
    %788 = vmatprep.subr.mxu0 0.0
    %789 = vmatpush1.msra.mxu0 0.0
    %790 = vmatprep.subr.mxu0 0.0
    %791 = vmatpush1.msra.mxu0 0.0
    %792 = vmatprep.subr.mxu0 0.0
    %793 = vmatpush1.msra.mxu0 0.0
    %794 = vmatprep.subr.mxu0 0.0
    %795 = vmatpush1.msra.mxu0 0.0
    %796 = vmatprep.subr.mxu0 0.0
    %797 = vmatpush1.msra.mxu0 0.0
    %798 = vmatprep.subr.mxu0 0.0
    %799 = vmatpush1.msra.mxu0 0.0
    %800 = vmatprep.subr.mxu0 0.0
    %801 = vmatpush1.msra.mxu0 0.0
    %802 = vmatprep.subr.mxu0 0.0
    %803 = vmatpush1.msra.mxu0 0.0
    %804 = vmatprep.subr.mxu0 0.0
    %805 = vmatpush1.msra.mxu0 0.0
    %806 = vmatprep.subr.mxu0 0.0
    %807 = vmatpush1.msra.mxu0 0.0
    %808 = vmatprep.subr.mxu0 0.0
    %809 = vmatpush1.msra.mxu0 %v470
    %810 = vmatprep.subr.mxu0 0.0
    %811 = vmatpush1.msra.mxu0 %v469
    %812 = vmatprep.subr.mxu0 0.0
    %813 = vmatpush1.msra.mxu0 %v468
    %814 = vmatprep.subr.mxu0 0.0
    %815 = vmatpush1.msra.mxu0 %v467
    %816 = vmatprep.subr.mxu0 0.0
    %817 = vmatpush2.msra.mxu0 0.0
    %818 = vmatprep.subr.mxu0 0.0
    %819 = vmatpush2.msra.mxu0 0.0
    %820 = vmatprep.subr.mxu0 0.0
    %821 = vmatpush2.msra.mxu0 0.0
    %822 = vmatprep.subr.mxu0 0.0
    %823 = vmatpush2.msra.mxu0 0.0
    %824 = vmatprep.subr.mxu0 0.0
    %825 = vmatpush2.msra.mxu0 0.0
    %826 = vmatprep.subr.mxu0 0.0
    %827 = vmatpush2.msra.mxu0 0.0
    %828 = vmatprep.subr.mxu0 0.0
    %829 = vmatpush2.msra.mxu0 0.0
    %830 = vmatprep.subr.mxu0 0.0
    %831 = vmatpush2.msra.mxu0 0.0
    %832 = vmatprep.subr.mxu0 0.0
    %833 = vmatpush2.msra.mxu0 0.0
    %834 = vmatprep.subr.mxu0 0.0
    %835 = vmatpush2.msra.mxu0 0.0
    %836 = vmatprep.subr.mxu0 0.0
    %837 = vmatpush2.msra.mxu0 0.0
    %838 = vmatprep.subr.mxu0 0.0
    %839 = vmatpush2.msra.mxu0 0.0
    %840 = vmatprep.subr.mxu0 0.0
    %841 = vmatpush2.msra.mxu0 0.0
    %842 = vmatprep.subr.mxu0 0.0
    %843 = vmatpush2.msra.mxu0 0.0
    %844 = vmatprep.subr.mxu0 0.0
    %845 = vmatpush2.msra.mxu0 0.0
    %846 = vmatprep.subr.mxu0 0.0
    %847 = vmatpush2.msra.mxu0 0.0
    %848 = vmatprep.mubr.f32.mxu0 0.0
    %849 = vmatmul.mubr.f32.gmra.mxu0 %v782
    %v850 = vpop.f32.mrf.mxu0
    %v851 = vadd.f32 0.0, %v850
    %v852 = vpop.f32.mrf.mxu0
    %853 = vdwg.mxu0
    %v854 = vadd.f32 %v780, %v851
    %v855 = vtanh.pop %v854
    %856 = vmatprep.subr.mxu0 0.0
    %857 = vmatpush1.msra.mxu0 0.0
    %858 = vmatprep.subr.mxu0 0.0
    %859 = vmatpush1.msra.mxu0 0.0
    %860 = vmatprep.subr.mxu0 0.0
    %861 = vmatpush1.msra.mxu0 0.0
    %862 = vmatprep.subr.mxu0 0.0
    %863 = vmatpush1.msra.mxu0 0.0
    %864 = vmatprep.subr.mxu0 0.0
    %865 = vmatpush1.msra.mxu0 0.0
    %866 = vmatprep.subr.mxu0 0.0
    %867 = vmatpush1.msra.mxu0 0.0
    %868 = vmatprep.subr.mxu0 0.0
    %869 = vmatpush1.msra.mxu0 0.0
    %870 = vmatprep.subr.mxu0 0.0
    %871 = vmatpush1.msra.mxu0 0.0
    %872 = vmatprep.subr.mxu0 0.0
    %873 = vmatpush1.msra.mxu0 0.0
    %874 = vmatprep.subr.mxu0 0.0
    %875 = vmatpush1.msra.mxu0 0.0
    %876 = vmatprep.subr.mxu0 0.0
    %877 = vmatpush1.msra.mxu0 0.0
    %878 = vmatprep.subr.mxu0 0.0
    %879 = vmatpush1.msra.mxu0 0.0
    %880 = vmatprep.subr.mxu0 0.0
    %881 = vmatpush1.msra.mxu0 %v478
    %882 = vmatprep.subr.mxu0 0.0
    %883 = vmatpush1.msra.mxu0 %v477
    %884 = vmatprep.subr.mxu0 0.0
    %885 = vmatpush1.msra.mxu0 %v476
    %886 = vmatprep.subr.mxu0 0.0
    %887 = vmatpush1.msra.mxu0 %v475
    %888 = vmatprep.subr.mxu0 0.0
    %889 = vmatpush2.msra.mxu0 0.0
    %890 = vmatprep.subr.mxu0 0.0
    %891 = vmatpush2.msra.mxu0 0.0
    %892 = vmatprep.subr.mxu0 0.0
    %893 = vmatpush2.msra.mxu0 0.0
    %894 = vmatprep.subr.mxu0 0.0
    %895 = vmatpush2.msra.mxu0 0.0
    %896 = vmatprep.subr.mxu0 0.0
    %897 = vmatpush2.msra.mxu0 0.0
    %898 = vmatprep.subr.mxu0 0.0
    %899 = vmatpush2.msra.mxu0 0.0
    %900 = vmatprep.subr.mxu0 0.0
    %901 = vmatpush2.msra.mxu0 0.0
    %902 = vmatprep.subr.mxu0 0.0
    %903 = vmatpush2.msra.mxu0 0.0
    %904 = vmatprep.subr.mxu0 0.0
    %905 = vmatpush2.msra.mxu0 0.0
    %906 = vmatprep.subr.mxu0 0.0
    %907 = vmatpush2.msra.mxu0 0.0
    %908 = vmatprep.subr.mxu0 0.0
    %909 = vmatpush2.msra.mxu0 0.0
    %910 = vmatprep.subr.mxu0 0.0
    %911 = vmatpush2.msra.mxu0 0.0
    %912 = vmatprep.subr.mxu0 0.0
    %913 = vmatpush2.msra.mxu0 0.0
    %914 = vmatprep.subr.mxu0 0.0
    %915 = vmatpush2.msra.mxu0 0.0
    %916 = vmatprep.subr.mxu0 0.0
    %917 = vmatpush2.msra.mxu0 0.0
    %918 = vmatprep.subr.mxu0 0.0
    %919 = vmatpush2.msra.mxu0 0.0
    %920 = vmatprep.mubr.f32.mxu0 0.0
    %921 = vmatmul.mubr.f32.gmra.mxu0 %v782
    %v922 = vpop.f32.mrf.mxu0
    %v923 = vadd.f32 %v636, %v922
    %v924 = vpop.f32.mrf.mxu0
    %925 = vdwg.mxu0
    %v927 = vsel %vm434, %v779, 0
    %929 = vmatprep.subr.mxu0 0.0
    %930 = vmatpush1.msra.mxu0 0.0
    %931 = vmatprep.subr.mxu0 0.0
    %932 = vmatpush1.msra.mxu0 0.0
    %933 = vmatprep.subr.mxu0 0.0
    %934 = vmatpush1.msra.mxu0 0.0
    %935 = vmatprep.subr.mxu0 0.0
    %936 = vmatpush1.msra.mxu0 0.0
    %937 = vmatprep.subr.mxu0 0.0
    %938 = vmatpush1.msra.mxu0 0.0
    %939 = vmatprep.subr.mxu0 0.0
    %940 = vmatpush1.msra.mxu0 0.0
    %941 = vmatprep.subr.mxu0 0.0
    %942 = vmatpush1.msra.mxu0 0.0
    %943 = vmatprep.subr.mxu0 0.0
    %944 = vmatpush1.msra.mxu0 0.0
    %945 = vmatprep.subr.mxu0 0.0
    %946 = vmatpush1.msra.mxu0 0.0
    %947 = vmatprep.subr.mxu0 0.0
    %948 = vmatpush1.msra.mxu0 0.0
    %949 = vmatprep.subr.mxu0 0.0
    %950 = vmatpush1.msra.mxu0 0.0
    %951 = vmatprep.subr.mxu0 0.0
    %952 = vmatpush1.msra.mxu0 0.0
    %953 = vmatprep.subr.mxu0 0.0
    %954 = vmatpush1.msra.mxu0 %v474
    %955 = vmatprep.subr.mxu0 0.0
    %956 = vmatpush1.msra.mxu0 %v473
    %957 = vmatprep.subr.mxu0 0.0
    %958 = vmatpush1.msra.mxu0 %v472
    %959 = vmatprep.subr.mxu0 0.0
    %960 = vmatpush1.msra.mxu0 %v471
    %961 = vmatprep.subr.mxu0 0.0
    %962 = vmatpush2.msra.mxu0 0.0
    %963 = vmatprep.subr.mxu0 0.0
    %964 = vmatpush2.msra.mxu0 0.0
    %965 = vmatprep.subr.mxu0 0.0
    %966 = vmatpush2.msra.mxu0 0.0
    %967 = vmatprep.subr.mxu0 0.0
    %968 = vmatpush2.msra.mxu0 0.0
    %969 = vmatprep.subr.mxu0 0.0
    %970 = vmatpush2.msra.mxu0 0.0
    %971 = vmatprep.subr.mxu0 0.0
    %972 = vmatpush2.msra.mxu0 0.0
    %973 = vmatprep.subr.mxu0 0.0
    %974 = vmatpush2.msra.mxu0 0.0
    %975 = vmatprep.subr.mxu0 0.0
    %976 = vmatpush2.msra.mxu0 0.0
    %977 = vmatprep.subr.mxu0 0.0
    %978 = vmatpush2.msra.mxu0 0.0
    %979 = vmatprep.subr.mxu0 0.0
    %980 = vmatpush2.msra.mxu0 0.0
    %981 = vmatprep.subr.mxu0 0.0
    %982 = vmatpush2.msra.mxu0 0.0
    %983 = vmatprep.subr.mxu0 0.0
    %984 = vmatpush2.msra.mxu0 0.0
    %985 = vmatprep.subr.mxu0 0.0
    %986 = vmatpush2.msra.mxu0 0.0
    %987 = vmatprep.subr.mxu0 0.0
    %988 = vmatpush2.msra.mxu0 0.0
    %989 = vmatprep.subr.mxu0 0.0
    %990 = vmatpush2.msra.mxu0 0.0
    %991 = vmatprep.subr.mxu0 0.0
    %992 = vmatpush2.msra.mxu0 0.0
    %993 = vmatprep.mubr.f32.mxu0 0.0
    %994 = vmatmul.mubr.f32.gmra.mxu0 %v927
    %v995 = vpop.f32.mrf.mxu0
    %v996 = vadd.f32 0.0, %v995
    %v997 = vpop.f32.mrf.mxu0
    %998 = vdwg.mxu0
    %v999 = vadd.f32 %v923, %v996
    %v1000 = vtanh.pop %v999
    %v1001 = vld [vmem:[#allocation2 + $0x18] sm:$0xff]
    %v1003 = vsel %vm434, %v855, 0
    %1005 = vmatprep.subr.mxu0 0.0
    %1006 = vmatpush1.msra.mxu0 0.0
    %1007 = vmatprep.subr.mxu0 0.0
    %1008 = vmatpush1.msra.mxu0 0.0
    %1009 = vmatprep.subr.mxu0 0.0
    %1010 = vmatpush1.msra.mxu0 0.0
    %1011 = vmatprep.subr.mxu0 0.0
    %1012 = vmatpush1.msra.mxu0 0.0
    %1013 = vmatprep.subr.mxu0 0.0
    %1014 = vmatpush1.msra.mxu0 0.0
    %1015 = vmatprep.subr.mxu0 0.0
    %1016 = vmatpush1.msra.mxu0 0.0
    %1017 = vmatprep.subr.mxu0 0.0
    %1018 = vmatpush1.msra.mxu0 0.0
    %1019 = vmatprep.subr.mxu0 0.0
    %1020 = vmatpush1.msra.mxu0 0.0
    %1021 = vmatprep.subr.mxu0 0.0
    %1022 = vmatpush1.msra.mxu0 0.0
    %1023 = vmatprep.subr.mxu0 0.0
    %1024 = vmatpush1.msra.mxu0 0.0
    %1025 = vmatprep.subr.mxu0 0.0
    %1026 = vmatpush1.msra.mxu0 0.0
    %1027 = vmatprep.subr.mxu0 0.0
    %1028 = vmatpush1.msra.mxu0 0.0
    %1029 = vmatprep.subr.mxu0 0.0
    %1030 = vmatpush1.msra.mxu0 %v470
    %1031 = vmatprep.subr.mxu0 0.0
    %1032 = vmatpush1.msra.mxu0 %v469
    %1033 = vmatprep.subr.mxu0 0.0
    %1034 = vmatpush1.msra.mxu0 %v468
    %1035 = vmatprep.subr.mxu0 0.0
    %1036 = vmatpush1.msra.mxu0 %v467
    %1037 = vmatprep.subr.mxu0 0.0
    %1038 = vmatpush2.msra.mxu0 0.0
    %1039 = vmatprep.subr.mxu0 0.0
    %1040 = vmatpush2.msra.mxu0 0.0
    %1041 = vmatprep.subr.mxu0 0.0
    %1042 = vmatpush2.msra.mxu0 0.0
    %1043 = vmatprep.subr.mxu0 0.0
    %1044 = vmatpush2.msra.mxu0 0.0
    %1045 = vmatprep.subr.mxu0 0.0
    %1046 = vmatpush2.msra.mxu0 0.0
    %1047 = vmatprep.subr.mxu0 0.0
    %1048 = vmatpush2.msra.mxu0 0.0
    %1049 = vmatprep.subr.mxu0 0.0
    %1050 = vmatpush2.msra.mxu0 0.0
    %1051 = vmatprep.subr.mxu0 0.0
    %1052 = vmatpush2.msra.mxu0 0.0
    %1053 = vmatprep.subr.mxu0 0.0
    %1054 = vmatpush2.msra.mxu0 0.0
    %1055 = vmatprep.subr.mxu0 0.0
    %1056 = vmatpush2.msra.mxu0 0.0
    %1057 = vmatprep.subr.mxu0 0.0
    %1058 = vmatpush2.msra.mxu0 0.0
    %1059 = vmatprep.subr.mxu0 0.0
    %1060 = vmatpush2.msra.mxu0 0.0
    %1061 = vmatprep.subr.mxu0 0.0
    %1062 = vmatpush2.msra.mxu0 0.0
    %1063 = vmatprep.subr.mxu0 0.0
    %1064 = vmatpush2.msra.mxu0 0.0
    %1065 = vmatprep.subr.mxu0 0.0
    %1066 = vmatpush2.msra.mxu0 0.0
    %1067 = vmatprep.subr.mxu0 0.0
    %1068 = vmatpush2.msra.mxu0 0.0
    %1069 = vmatprep.mubr.f32.mxu0 0.0
    %1070 = vmatmul.mubr.f32.gmra.mxu0 %v1003
    %v1071 = vpop.f32.mrf.mxu0
    %v1072 = vadd.f32 0.0, %v1071
    %v1073 = vpop.f32.mrf.mxu0
    %1074 = vdwg.mxu0
    %v1075 = vadd.f32 %v1001, %v1072
    %v1076 = vtanh.pop %v1075
    %1077 = vmatprep.subr.mxu0 0.0
    %1078 = vmatpush1.msra.mxu0 0.0
    %1079 = vmatprep.subr.mxu0 0.0
    %1080 = vmatpush1.msra.mxu0 0.0
    %1081 = vmatprep.subr.mxu0 0.0
    %1082 = vmatpush1.msra.mxu0 0.0
    %1083 = vmatprep.subr.mxu0 0.0
    %1084 = vmatpush1.msra.mxu0 0.0
    %1085 = vmatprep.subr.mxu0 0.0
    %1086 = vmatpush1.msra.mxu0 0.0
    %1087 = vmatprep.subr.mxu0 0.0
    %1088 = vmatpush1.msra.mxu0 0.0
    %1089 = vmatprep.subr.mxu0 0.0
    %1090 = vmatpush1.msra.mxu0 0.0
    %1091 = vmatprep.subr.mxu0 0.0
    %1092 = vmatpush1.msra.mxu0 0.0
    %1093 = vmatprep.subr.mxu0 0.0
    %1094 = vmatpush1.msra.mxu0 0.0
    %1095 = vmatprep.subr.mxu0 0.0
    %1096 = vmatpush1.msra.mxu0 0.0
    %1097 = vmatprep.subr.mxu0 0.0
    %1098 = vmatpush1.msra.mxu0 0.0
    %1099 = vmatprep.subr.mxu0 0.0
    %1100 = vmatpush1.msra.mxu0 0.0
    %1101 = vmatprep.subr.mxu0 0.0
    %1102 = vmatpush1.msra.mxu0 %v478
    %1103 = vmatprep.subr.mxu0 0.0
    %1104 = vmatpush1.msra.mxu0 %v477
    %1105 = vmatprep.subr.mxu0 0.0
    %1106 = vmatpush1.msra.mxu0 %v476
    %1107 = vmatprep.subr.mxu0 0.0
    %1108 = vmatpush1.msra.mxu0 %v475
    %1109 = vmatprep.subr.mxu0 0.0
    %1110 = vmatpush2.msra.mxu0 0.0
    %1111 = vmatprep.subr.mxu0 0.0
    %1112 = vmatpush2.msra.mxu0 0.0
    %1113 = vmatprep.subr.mxu0 0.0
    %1114 = vmatpush2.msra.mxu0 0.0
    %1115 = vmatprep.subr.mxu0 0.0
    %1116 = vmatpush2.msra.mxu0 0.0
    %1117 = vmatprep.subr.mxu0 0.0
    %1118 = vmatpush2.msra.mxu0 0.0
    %1119 = vmatprep.subr.mxu0 0.0
    %1120 = vmatpush2.msra.mxu0 0.0
    %1121 = vmatprep.subr.mxu0 0.0
    %1122 = vmatpush2.msra.mxu0 0.0
    %1123 = vmatprep.subr.mxu0 0.0
    %1124 = vmatpush2.msra.mxu0 0.0
    %1125 = vmatprep.subr.mxu0 0.0
    %1126 = vmatpush2.msra.mxu0 0.0
    %1127 = vmatprep.subr.mxu0 0.0
    %1128 = vmatpush2.msra.mxu0 0.0
    %1129 = vmatprep.subr.mxu0 0.0
    %1130 = vmatpush2.msra.mxu0 0.0
    %1131 = vmatprep.subr.mxu0 0.0
    %1132 = vmatpush2.msra.mxu0 0.0
    %1133 = vmatprep.subr.mxu0 0.0
    %1134 = vmatpush2.msra.mxu0 0.0
    %1135 = vmatprep.subr.mxu0 0.0
    %1136 = vmatpush2.msra.mxu0 0.0
    %1137 = vmatprep.subr.mxu0 0.0
    %1138 = vmatpush2.msra.mxu0 0.0
    %1139 = vmatprep.subr.mxu0 0.0
    %1140 = vmatpush2.msra.mxu0 0.0
    %1141 = vmatprep.mubr.f32.mxu0 0.0
    %1142 = vmatmul.mubr.f32.gmra.mxu0 %v1003
    %v1143 = vpop.f32.mrf.mxu0
    %v1144 = vadd.f32 %v636, %v1143
    %v1145 = vpop.f32.mrf.mxu0
    %1146 = vdwg.mxu0
    %v1148 = vsel %vm434, %v1000, 0
    %1150 = vmatprep.subr.mxu0 0.0
    %1151 = vmatpush1.msra.mxu0 0.0
    %1152 = vmatprep.subr.mxu0 0.0
    %1153 = vmatpush1.msra.mxu0 0.0
    %1154 = vmatprep.subr.mxu0 0.0
    %1155 = vmatpush1.msra.mxu0 0.0
    %1156 = vmatprep.subr.mxu0 0.0
    %1157 = vmatpush1.msra.mxu0 0.0
    %1158 = vmatprep.subr.mxu0 0.0
    %1159 = vmatpush1.msra.mxu0 0.0
    %1160 = vmatprep.subr.mxu0 0.0
    %1161 = vmatpush1.msra.mxu0 0.0
    %1162 = vmatprep.subr.mxu0 0.0
    %1163 = vmatpush1.msra.mxu0 0.0
    %1164 = vmatprep.subr.mxu0 0.0
    %1165 = vmatpush1.msra.mxu0 0.0
    %1166 = vmatprep.subr.mxu0 0.0
    %1167 = vmatpush1.msra.mxu0 0.0
    %1168 = vmatprep.subr.mxu0 0.0
    %1169 = vmatpush1.msra.mxu0 0.0
    %1170 = vmatprep.subr.mxu0 0.0
    %1171 = vmatpush1.msra.mxu0 0.0
    %1172 = vmatprep.subr.mxu0 0.0
    %1173 = vmatpush1.msra.mxu0 0.0
    %1174 = vmatprep.subr.mxu0 0.0
    %1175 = vmatpush1.msra.mxu0 %v474
    %1176 = vmatprep.subr.mxu0 0.0
    %1177 = vmatpush1.msra.mxu0 %v473
    %1178 = vmatprep.subr.mxu0 0.0
    %1179 = vmatpush1.msra.mxu0 %v472
    %1180 = vmatprep.subr.mxu0 0.0
    %1181 = vmatpush1.msra.mxu0 %v471
    %1182 = vmatprep.subr.mxu0 0.0
    %1183 = vmatpush2.msra.mxu0 0.0
    %1184 = vmatprep.subr.mxu0 0.0
    %1185 = vmatpush2.msra.mxu0 0.0
    %1186 = vmatprep.subr.mxu0 0.0
    %1187 = vmatpush2.msra.mxu0 0.0
    %1188 = vmatprep.subr.mxu0 0.0
    %1189 = vmatpush2.msra.mxu0 0.0
    %1190 = vmatprep.subr.mxu0 0.0
    %1191 = vmatpush2.msra.mxu0 0.0
    %1192 = vmatprep.subr.mxu0 0.0
    %1193 = vmatpush2.msra.mxu0 0.0
    %1194 = vmatprep.subr.mxu0 0.0
    %1195 = vmatpush2.msra.mxu0 0.0
    %1196 = vmatprep.subr.mxu0 0.0
    %1197 = vmatpush2.msra.mxu0 0.0
    %1198 = vmatprep.subr.mxu0 0.0
    %1199 = vmatpush2.msra.mxu0 0.0
    %1200 = vmatprep.subr.mxu0 0.0
    %1201 = vmatpush2.msra.mxu0 0.0
    %1202 = vmatprep.subr.mxu0 0.0
    %1203 = vmatpush2.msra.mxu0 0.0
    %1204 = vmatprep.subr.mxu0 0.0
    %1205 = vmatpush2.msra.mxu0 0.0
    %1206 = vmatprep.subr.mxu0 0.0
    %1207 = vmatpush2.msra.mxu0 0.0
    %1208 = vmatprep.subr.mxu0 0.0
    %1209 = vmatpush2.msra.mxu0 0.0
    %1210 = vmatprep.subr.mxu0 0.0
    %1211 = vmatpush2.msra.mxu0 0.0
    %1212 = vmatprep.subr.mxu0 0.0
    %1213 = vmatpush2.msra.mxu0 0.0
    %1214 = vmatprep.mubr.f32.mxu0 0.0
    %1215 = vmatmul.mubr.f32.gmra.mxu0 %v1148
    %v1216 = vpop.f32.mrf.mxu0
    %v1217 = vadd.f32 0.0, %v1216
    %v1218 = vpop.f32.mrf.mxu0
    %1219 = vdwg.mxu0
    %v1220 = vadd.f32 %v1144, %v1217
    %v1221 = vtanh.pop %v1220
    %v1222 = vld [vmem:[#allocation2 + $0x20] sm:$0xff]
    %v1224 = vsel %vm434, %v1076, 0
    %1226 = vmatprep.subr.mxu0 0.0
    %1227 = vmatpush1.msra.mxu0 0.0
    %1228 = vmatprep.subr.mxu0 0.0
    %1229 = vmatpush1.msra.mxu0 0.0
    %1230 = vmatprep.subr.mxu0 0.0
    %1231 = vmatpush1.msra.mxu0 0.0
    %1232 = vmatprep.subr.mxu0 0.0
    %1233 = vmatpush1.msra.mxu0 0.0
    %1234 = vmatprep.subr.mxu0 0.0
    %1235 = vmatpush1.msra.mxu0 0.0
    %1236 = vmatprep.subr.mxu0 0.0
    %1237 = vmatpush1.msra.mxu0 0.0
    %1238 = vmatprep.subr.mxu0 0.0
    %1239 = vmatpush1.msra.mxu0 0.0
    %1240 = vmatprep.subr.mxu0 0.0
    %1241 = vmatpush1.msra.mxu0 0.0
    %1242 = vmatprep.subr.mxu0 0.0
    %1243 = vmatpush1.msra.mxu0 0.0
    %1244 = vmatprep.subr.mxu0 0.0
    %1245 = vmatpush1.msra.mxu0 0.0
    %1246 = vmatprep.subr.mxu0 0.0
    %1247 = vmatpush1.msra.mxu0 0.0
    %1248 = vmatprep.subr.mxu0 0.0
    %1249 = vmatpush1.msra.mxu0 0.0
    %1250 = vmatprep.subr.mxu0 0.0
    %1251 = vmatpush1.msra.mxu0 %v470
    %1252 = vmatprep.subr.mxu0 0.0
    %1253 = vmatpush1.msra.mxu0 %v469
    %1254 = vmatprep.subr.mxu0 0.0
    %1255 = vmatpush1.msra.mxu0 %v468
    %1256 = vmatprep.subr.mxu0 0.0
    %1257 = vmatpush1.msra.mxu0 %v467
    %1258 = vmatprep.subr.mxu0 0.0
    %1259 = vmatpush2.msra.mxu0 0.0
    %1260 = vmatprep.subr.mxu0 0.0
    %1261 = vmatpush2.msra.mxu0 0.0
    %1262 = vmatprep.subr.mxu0 0.0
    %1263 = vmatpush2.msra.mxu0 0.0
    %1264 = vmatprep.subr.mxu0 0.0
    %1265 = vmatpush2.msra.mxu0 0.0
    %1266 = vmatprep.subr.mxu0 0.0
    %1267 = vmatpush2.msra.mxu0 0.0
    %1268 = vmatprep.subr.mxu0 0.0
    %1269 = vmatpush2.msra.mxu0 0.0
    %1270 = vmatprep.subr.mxu0 0.0
    %1271 = vmatpush2.msra.mxu0 0.0
    %1272 = vmatprep.subr.mxu0 0.0
    %1273 = vmatpush2.msra.mxu0 0.0
    %1274 = vmatprep.subr.mxu0 0.0
    %1275 = vmatpush2.msra.mxu0 0.0
    %1276 = vmatprep.subr.mxu0 0.0
    %1277 = vmatpush2.msra.mxu0 0.0
    %1278 = vmatprep.subr.mxu0 0.0
    %1279 = vmatpush2.msra.mxu0 0.0
    %1280 = vmatprep.subr.mxu0 0.0
    %1281 = vmatpush2.msra.mxu0 0.0
    %1282 = vmatprep.subr.mxu0 0.0
    %1283 = vmatpush2.msra.mxu0 0.0
    %1284 = vmatprep.subr.mxu0 0.0
    %1285 = vmatpush2.msra.mxu0 0.0
    %1286 = vmatprep.subr.mxu0 0.0
    %1287 = vmatpush2.msra.mxu0 0.0
    %1288 = vmatprep.subr.mxu0 0.0
    %1289 = vmatpush2.msra.mxu0 0.0
    %1290 = vmatprep.mubr.f32.mxu0 0.0
    %1291 = vmatmul.mubr.f32.gmra.mxu0 %v1224
    %v1292 = vpop.f32.mrf.mxu0
    %v1293 = vadd.f32 0.0, %v1292
    %v1294 = vpop.f32.mrf.mxu0
    %1295 = vdwg.mxu0
    %v1296 = vadd.f32 %v1222, %v1293
    %v1297 = vtanh.pop %v1296
    %1298 = vmatprep.subr.mxu0 0.0
    %1299 = vmatpush1.msra.mxu0 0.0
    %1300 = vmatprep.subr.mxu0 0.0
    %1301 = vmatpush1.msra.mxu0 0.0
    %1302 = vmatprep.subr.mxu0 0.0
    %1303 = vmatpush1.msra.mxu0 0.0
    %1304 = vmatprep.subr.mxu0 0.0
    %1305 = vmatpush1.msra.mxu0 0.0
    %1306 = vmatprep.subr.mxu0 0.0
    %1307 = vmatpush1.msra.mxu0 0.0
    %1308 = vmatprep.subr.mxu0 0.0
    %1309 = vmatpush1.msra.mxu0 0.0
    %1310 = vmatprep.subr.mxu0 0.0
    %1311 = vmatpush1.msra.mxu0 0.0
    %1312 = vmatprep.subr.mxu0 0.0
    %1313 = vmatpush1.msra.mxu0 0.0
    %1314 = vmatprep.subr.mxu0 0.0
    %1315 = vmatpush1.msra.mxu0 0.0
    %1316 = vmatprep.subr.mxu0 0.0
    %1317 = vmatpush1.msra.mxu0 0.0
    %1318 = vmatprep.subr.mxu0 0.0
    %1319 = vmatpush1.msra.mxu0 0.0
    %1320 = vmatprep.subr.mxu0 0.0
    %1321 = vmatpush1.msra.mxu0 0.0
    %1322 = vmatprep.subr.mxu0 0.0
    %1323 = vmatpush1.msra.mxu0 %v478
    %1324 = vmatprep.subr.mxu0 0.0
    %1325 = vmatpush1.msra.mxu0 %v477
    %1326 = vmatprep.subr.mxu0 0.0
    %1327 = vmatpush1.msra.mxu0 %v476
    %1328 = vmatprep.subr.mxu0 0.0
    %1329 = vmatpush1.msra.mxu0 %v475
    %1330 = vmatprep.subr.mxu0 0.0
    %1331 = vmatpush2.msra.mxu0 0.0
    %1332 = vmatprep.subr.mxu0 0.0
    %1333 = vmatpush2.msra.mxu0 0.0
    %1334 = vmatprep.subr.mxu0 0.0
    %1335 = vmatpush2.msra.mxu0 0.0
    %1336 = vmatprep.subr.mxu0 0.0
    %1337 = vmatpush2.msra.mxu0 0.0
    %1338 = vmatprep.subr.mxu0 0.0
    %1339 = vmatpush2.msra.mxu0 0.0
    %1340 = vmatprep.subr.mxu0 0.0
    %1341 = vmatpush2.msra.mxu0 0.0
    %1342 = vmatprep.subr.mxu0 0.0
    %1343 = vmatpush2.msra.mxu0 0.0
    %1344 = vmatprep.subr.mxu0 0.0
    %1345 = vmatpush2.msra.mxu0 0.0
    %1346 = vmatprep.subr.mxu0 0.0
    %1347 = vmatpush2.msra.mxu0 0.0
    %1348 = vmatprep.subr.mxu0 0.0
    %1349 = vmatpush2.msra.mxu0 0.0
    %1350 = vmatprep.subr.mxu0 0.0
    %1351 = vmatpush2.msra.mxu0 0.0
    %1352 = vmatprep.subr.mxu0 0.0
    %1353 = vmatpush2.msra.mxu0 0.0
    %1354 = vmatprep.subr.mxu0 0.0
    %1355 = vmatpush2.msra.mxu0 0.0
    %1356 = vmatprep.subr.mxu0 0.0
    %1357 = vmatpush2.msra.mxu0 0.0
    %1358 = vmatprep.subr.mxu0 0.0
    %1359 = vmatpush2.msra.mxu0 0.0
    %1360 = vmatprep.subr.mxu0 0.0
    %1361 = vmatpush2.msra.mxu0 0.0
    %1362 = vmatprep.mubr.f32.mxu0 0.0
    %1363 = vmatmul.mubr.f32.gmra.mxu0 %v1224
    %v1364 = vpop.f32.mrf.mxu0
    %v1365 = vadd.f32 %v636, %v1364
    %v1366 = vpop.f32.mrf.mxu0
    %1367 = vdwg.mxu0
    %v1369 = vsel %vm434, %v1221, 0
    %1371 = vmatprep.subr.mxu0 0.0
    %1372 = vmatpush1.msra.mxu0 0.0
    %1373 = vmatprep.subr.mxu0 0.0
    %1374 = vmatpush1.msra.mxu0 0.0
    %1375 = vmatprep.subr.mxu0 0.0
    %1376 = vmatpush1.msra.mxu0 0.0
    %1377 = vmatprep.subr.mxu0 0.0
    %1378 = vmatpush1.msra.mxu0 0.0
    %1379 = vmatprep.subr.mxu0 0.0
    %1380 = vmatpush1.msra.mxu0 0.0
    %1381 = vmatprep.subr.mxu0 0.0
    %1382 = vmatpush1.msra.mxu0 0.0
    %1383 = vmatprep.subr.mxu0 0.0
    %1384 = vmatpush1.msra.mxu0 0.0
    %1385 = vmatprep.subr.mxu0 0.0
    %1386 = vmatpush1.msra.mxu0 0.0
    %1387 = vmatprep.subr.mxu0 0.0
    %1388 = vmatpush1.msra.mxu0 0.0
    %1389 = vmatprep.subr.mxu0 0.0
    %1390 = vmatpush1.msra.mxu0 0.0
    %1391 = vmatprep.subr.mxu0 0.0
    %1392 = vmatpush1.msra.mxu0 0.0
    %1393 = vmatprep.subr.mxu0 0.0
    %1394 = vmatpush1.msra.mxu0 0.0
    %1395 = vmatprep.subr.mxu0 0.0
    %1396 = vmatpush1.msra.mxu0 %v474
    %1397 = vmatprep.subr.mxu0 0.0
    %1398 = vmatpush1.msra.mxu0 %v473
    %1399 = vmatprep.subr.mxu0 0.0
    %1400 = vmatpush1.msra.mxu0 %v472
    %1401 = vmatprep.subr.mxu0 0.0
    %1402 = vmatpush1.msra.mxu0 %v471
    %1403 = vmatprep.subr.mxu0 0.0
    %1404 = vmatpush2.msra.mxu0 0.0
    %1405 = vmatprep.subr.mxu0 0.0
    %1406 = vmatpush2.msra.mxu0 0.0
    %1407 = vmatprep.subr.mxu0 0.0
    %1408 = vmatpush2.msra.mxu0 0.0
    %1409 = vmatprep.subr.mxu0 0.0
    %1410 = vmatpush2.msra.mxu0 0.0
    %1411 = vmatprep.subr.mxu0 0.0
    %1412 = vmatpush2.msra.mxu0 0.0
    %1413 = vmatprep.subr.mxu0 0.0
    %1414 = vmatpush2.msra.mxu0 0.0
    %1415 = vmatprep.subr.mxu0 0.0
    %1416 = vmatpush2.msra.mxu0 0.0
    %1417 = vmatprep.subr.mxu0 0.0
    %1418 = vmatpush2.msra.mxu0 0.0
    %1419 = vmatprep.subr.mxu0 0.0
    %1420 = vmatpush2.msra.mxu0 0.0
    %1421 = vmatprep.subr.mxu0 0.0
    %1422 = vmatpush2.msra.mxu0 0.0
    %1423 = vmatprep.subr.mxu0 0.0
    %1424 = vmatpush2.msra.mxu0 0.0
    %1425 = vmatprep.subr.mxu0 0.0
    %1426 = vmatpush2.msra.mxu0 0.0
    %1427 = vmatprep.subr.mxu0 0.0
    %1428 = vmatpush2.msra.mxu0 0.0
    %1429 = vmatprep.subr.mxu0 0.0
    %1430 = vmatpush2.msra.mxu0 0.0
    %1431 = vmatprep.subr.mxu0 0.0
    %1432 = vmatpush2.msra.mxu0 0.0
    %1433 = vmatprep.subr.mxu0 0.0
    %1434 = vmatpush2.msra.mxu0 0.0
    %1435 = vmatprep.mubr.f32.mxu0 0.0
    %1436 = vmatmul.mubr.f32.gmra.mxu0 %v1369
    %v1437 = vpop.f32.mrf.mxu0
    %v1438 = vadd.f32 0.0, %v1437
    %v1439 = vpop.f32.mrf.mxu0
    %1440 = vdwg.mxu0
    %v1441 = vadd.f32 %v1365, %v1438
    %v1442 = vtanh.pop %v1441
    %v1443 = vld [vmem:[#allocation2 + $0x28] sm:$0xff]
    %v1445 = vsel %vm434, %v1297, 0
    %1447 = vmatprep.subr.mxu0 0.0
    %1448 = vmatpush1.msra.mxu0 0.0
    %1449 = vmatprep.subr.mxu0 0.0
    %1450 = vmatpush1.msra.mxu0 0.0
    %1451 = vmatprep.subr.mxu0 0.0
    %1452 = vmatpush1.msra.mxu0 0.0
    %1453 = vmatprep.subr.mxu0 0.0
    %1454 = vmatpush1.msra.mxu0 0.0
    %1455 = vmatprep.subr.mxu0 0.0
    %1456 = vmatpush1.msra.mxu0 0.0
    %1457 = vmatprep.subr.mxu0 0.0
    %1458 = vmatpush1.msra.mxu0 0.0
    %1459 = vmatprep.subr.mxu0 0.0
    %1460 = vmatpush1.msra.mxu0 0.0
    %1461 = vmatprep.subr.mxu0 0.0
    %1462 = vmatpush1.msra.mxu0 0.0
    %1463 = vmatprep.subr.mxu0 0.0
    %1464 = vmatpush1.msra.mxu0 0.0
    %1465 = vmatprep.subr.mxu0 0.0
    %1466 = vmatpush1.msra.mxu0 0.0
    %1467 = vmatprep.subr.mxu0 0.0
    %1468 = vmatpush1.msra.mxu0 0.0
    %1469 = vmatprep.subr.mxu0 0.0
    %1470 = vmatpush1.msra.mxu0 0.0
    %1471 = vmatprep.subr.mxu0 0.0
    %1472 = vmatpush1.msra.mxu0 %v470
    %1473 = vmatprep.subr.mxu0 0.0
    %1474 = vmatpush1.msra.mxu0 %v469
    %1475 = vmatprep.subr.mxu0 0.0
    %1476 = vmatpush1.msra.mxu0 %v468
    %1477 = vmatprep.subr.mxu0 0.0
    %1478 = vmatpush1.msra.mxu0 %v467
    %1479 = vmatprep.subr.mxu0 0.0
    %1480 = vmatpush2.msra.mxu0 0.0
    %1481 = vmatprep.subr.mxu0 0.0
    %1482 = vmatpush2.msra.mxu0 0.0
    %1483 = vmatprep.subr.mxu0 0.0
    %1484 = vmatpush2.msra.mxu0 0.0
    %1485 = vmatprep.subr.mxu0 0.0
    %1486 = vmatpush2.msra.mxu0 0.0
    %1487 = vmatprep.subr.mxu0 0.0
    %1488 = vmatpush2.msra.mxu0 0.0
    %1489 = vmatprep.subr.mxu0 0.0
    %1490 = vmatpush2.msra.mxu0 0.0
    %1491 = vmatprep.subr.mxu0 0.0
    %1492 = vmatpush2.msra.mxu0 0.0
    %1493 = vmatprep.subr.mxu0 0.0
    %1494 = vmatpush2.msra.mxu0 0.0
    %1495 = vmatprep.subr.mxu0 0.0
    %1496 = vmatpush2.msra.mxu0 0.0
    %1497 = vmatprep.subr.mxu0 0.0
    %1498 = vmatpush2.msra.mxu0 0.0
    %1499 = vmatprep.subr.mxu0 0.0
    %1500 = vmatpush2.msra.mxu0 0.0
    %1501 = vmatprep.subr.mxu0 0.0
    %1502 = vmatpush2.msra.mxu0 0.0
    %1503 = vmatprep.subr.mxu0 0.0
    %1504 = vmatpush2.msra.mxu0 0.0
    %1505 = vmatprep.subr.mxu0 0.0
    %1506 = vmatpush2.msra.mxu0 0.0
    %1507 = vmatprep.subr.mxu0 0.0
    %1508 = vmatpush2.msra.mxu0 0.0
    %1509 = vmatprep.subr.mxu0 0.0
    %1510 = vmatpush2.msra.mxu0 0.0
    %1511 = vmatprep.mubr.f32.mxu0 0.0
    %1512 = vmatmul.mubr.f32.gmra.mxu0 %v1445
    %v1513 = vpop.f32.mrf.mxu0
    %v1514 = vadd.f32 0.0, %v1513
    %v1515 = vpop.f32.mrf.mxu0
    %1516 = vdwg.mxu0
    %v1517 = vadd.f32 %v1443, %v1514
    %v1518 = vtanh.pop %v1517
    %1519 = vmatprep.subr.mxu0 0.0
    %1520 = vmatpush1.msra.mxu0 0.0
    %1521 = vmatprep.subr.mxu0 0.0
    %1522 = vmatpush1.msra.mxu0 0.0
    %1523 = vmatprep.subr.mxu0 0.0
    %1524 = vmatpush1.msra.mxu0 0.0
    %1525 = vmatprep.subr.mxu0 0.0
    %1526 = vmatpush1.msra.mxu0 0.0
    %1527 = vmatprep.subr.mxu0 0.0
    %1528 = vmatpush1.msra.mxu0 0.0
    %1529 = vmatprep.subr.mxu0 0.0
    %1530 = vmatpush1.msra.mxu0 0.0
    %1531 = vmatprep.subr.mxu0 0.0
    %1532 = vmatpush1.msra.mxu0 0.0
    %1533 = vmatprep.subr.mxu0 0.0
    %1534 = vmatpush1.msra.mxu0 0.0
    %1535 = vmatprep.subr.mxu0 0.0
    %1536 = vmatpush1.msra.mxu0 0.0
    %1537 = vmatprep.subr.mxu0 0.0
    %1538 = vmatpush1.msra.mxu0 0.0
    %1539 = vmatprep.subr.mxu0 0.0
    %1540 = vmatpush1.msra.mxu0 0.0
    %1541 = vmatprep.subr.mxu0 0.0
    %1542 = vmatpush1.msra.mxu0 0.0
    %1543 = vmatprep.subr.mxu0 0.0
    %1544 = vmatpush1.msra.mxu0 %v478
    %1545 = vmatprep.subr.mxu0 0.0
    %1546 = vmatpush1.msra.mxu0 %v477
    %1547 = vmatprep.subr.mxu0 0.0
    %1548 = vmatpush1.msra.mxu0 %v476
    %1549 = vmatprep.subr.mxu0 0.0
    %1550 = vmatpush1.msra.mxu0 %v475
    %1551 = vmatprep.subr.mxu0 0.0
    %1552 = vmatpush2.msra.mxu0 0.0
    %1553 = vmatprep.subr.mxu0 0.0
    %1554 = vmatpush2.msra.mxu0 0.0
    %1555 = vmatprep.subr.mxu0 0.0
    %1556 = vmatpush2.msra.mxu0 0.0
    %1557 = vmatprep.subr.mxu0 0.0
    %1558 = vmatpush2.msra.mxu0 0.0
    %1559 = vmatprep.subr.mxu0 0.0
    %1560 = vmatpush2.msra.mxu0 0.0
    %1561 = vmatprep.subr.mxu0 0.0
    %1562 = vmatpush2.msra.mxu0 0.0
    %1563 = vmatprep.subr.mxu0 0.0
    %1564 = vmatpush2.msra.mxu0 0.0
    %1565 = vmatprep.subr.mxu0 0.0
    %1566 = vmatpush2.msra.mxu0 0.0
    %1567 = vmatprep.subr.mxu0 0.0
    %1568 = vmatpush2.msra.mxu0 0.0
    %1569 = vmatprep.subr.mxu0 0.0
    %1570 = vmatpush2.msra.mxu0 0.0
    %1571 = vmatprep.subr.mxu0 0.0
    %1572 = vmatpush2.msra.mxu0 0.0
    %1573 = vmatprep.subr.mxu0 0.0
    %1574 = vmatpush2.msra.mxu0 0.0
    %1575 = vmatprep.subr.mxu0 0.0
    %1576 = vmatpush2.msra.mxu0 0.0
    %1577 = vmatprep.subr.mxu0 0.0
    %1578 = vmatpush2.msra.mxu0 0.0
    %1579 = vmatprep.subr.mxu0 0.0
    %1580 = vmatpush2.msra.mxu0 0.0
    %1581 = vmatprep.subr.mxu0 0.0
    %1582 = vmatpush2.msra.mxu0 0.0
    %1583 = vmatprep.mubr.f32.mxu0 0.0
    %1584 = vmatmul.mubr.f32.gmra.mxu0 %v1445
    %v1585 = vpop.f32.mrf.mxu0
    %v1586 = vadd.f32 %v636, %v1585
    %v1587 = vpop.f32.mrf.mxu0
    %1588 = vdwg.mxu0
    %v1590 = vsel %vm434, %v1442, 0
    %1592 = vmatprep.subr.mxu0 0.0
    %1593 = vmatpush1.msra.mxu0 0.0
    %1594 = vmatprep.subr.mxu0 0.0
    %1595 = vmatpush1.msra.mxu0 0.0
    %1596 = vmatprep.subr.mxu0 0.0
    %1597 = vmatpush1.msra.mxu0 0.0
    %1598 = vmatprep.subr.mxu0 0.0
    %1599 = vmatpush1.msra.mxu0 0.0
    %1600 = vmatprep.subr.mxu0 0.0
    %1601 = vmatpush1.msra.mxu0 0.0
    %1602 = vmatprep.subr.mxu0 0.0
    %1603 = vmatpush1.msra.mxu0 0.0
    %1604 = vmatprep.subr.mxu0 0.0
    %1605 = vmatpush1.msra.mxu0 0.0
    %1606 = vmatprep.subr.mxu0 0.0
    %1607 = vmatpush1.msra.mxu0 0.0
    %1608 = vmatprep.subr.mxu0 0.0
    %1609 = vmatpush1.msra.mxu0 0.0
    %1610 = vmatprep.subr.mxu0 0.0
    %1611 = vmatpush1.msra.mxu0 0.0
    %1612 = vmatprep.subr.mxu0 0.0
    %1613 = vmatpush1.msra.mxu0 0.0
    %1614 = vmatprep.subr.mxu0 0.0
    %1615 = vmatpush1.msra.mxu0 0.0
    %1616 = vmatprep.subr.mxu0 0.0
    %1617 = vmatpush1.msra.mxu0 %v474
    %1618 = vmatprep.subr.mxu0 0.0
    %1619 = vmatpush1.msra.mxu0 %v473
    %1620 = vmatprep.subr.mxu0 0.0
    %1621 = vmatpush1.msra.mxu0 %v472
    %1622 = vmatprep.subr.mxu0 0.0
    %1623 = vmatpush1.msra.mxu0 %v471
    %1624 = vmatprep.subr.mxu0 0.0
    %1625 = vmatpush2.msra.mxu0 0.0
    %1626 = vmatprep.subr.mxu0 0.0
    %1627 = vmatpush2.msra.mxu0 0.0
    %1628 = vmatprep.subr.mxu0 0.0
    %1629 = vmatpush2.msra.mxu0 0.0
    %1630 = vmatprep.subr.mxu0 0.0
    %1631 = vmatpush2.msra.mxu0 0.0
    %1632 = vmatprep.subr.mxu0 0.0
    %1633 = vmatpush2.msra.mxu0 0.0
    %1634 = vmatprep.subr.mxu0 0.0
    %1635 = vmatpush2.msra.mxu0 0.0
    %1636 = vmatprep.subr.mxu0 0.0
    %1637 = vmatpush2.msra.mxu0 0.0
    %1638 = vmatprep.subr.mxu0 0.0
    %1639 = vmatpush2.msra.mxu0 0.0
    %1640 = vmatprep.subr.mxu0 0.0
    %1641 = vmatpush2.msra.mxu0 0.0
    %1642 = vmatprep.subr.mxu0 0.0
    %1643 = vmatpush2.msra.mxu0 0.0
    %1644 = vmatprep.subr.mxu0 0.0
    %1645 = vmatpush2.msra.mxu0 0.0
    %1646 = vmatprep.subr.mxu0 0.0
    %1647 = vmatpush2.msra.mxu0 0.0
    %1648 = vmatprep.subr.mxu0 0.0
    %1649 = vmatpush2.msra.mxu0 0.0
    %1650 = vmatprep.subr.mxu0 0.0
    %1651 = vmatpush2.msra.mxu0 0.0
    %1652 = vmatprep.subr.mxu0 0.0
    %1653 = vmatpush2.msra.mxu0 0.0
    %1654 = vmatprep.subr.mxu0 0.0
    %1655 = vmatpush2.msra.mxu0 0.0
    %1656 = vmatprep.mubr.f32.mxu0 0.0
    %1657 = vmatmul.mubr.f32.gmra.mxu0 %v1590
    %v1658 = vpop.f32.mrf.mxu0
    %v1659 = vadd.f32 0.0, %v1658
    %v1660 = vpop.f32.mrf.mxu0
    %1661 = vdwg.mxu0
    %v1662 = vadd.f32 %v1586, %v1659
    %v1663 = vtanh.pop %v1662
    %v1664 = vld [vmem:[#allocation2 + $0x30] sm:$0xff]
    %v1666 = vsel %vm434, %v1518, 0
    %1668 = vmatprep.subr.mxu0 0.0
    %1669 = vmatpush1.msra.mxu0 0.0
    %1670 = vmatprep.subr.mxu0 0.0
    %1671 = vmatpush1.msra.mxu0 0.0
    %1672 = vmatprep.subr.mxu0 0.0
    %1673 = vmatpush1.msra.mxu0 0.0
    %1674 = vmatprep.subr.mxu0 0.0
    %1675 = vmatpush1.msra.mxu0 0.0
    %1676 = vmatprep.subr.mxu0 0.0
    %1677 = vmatpush1.msra.mxu0 0.0
    %1678 = vmatprep.subr.mxu0 0.0
    %1679 = vmatpush1.msra.mxu0 0.0
    %1680 = vmatprep.subr.mxu0 0.0
    %1681 = vmatpush1.msra.mxu0 0.0
    %1682 = vmatprep.subr.mxu0 0.0
    %1683 = vmatpush1.msra.mxu0 0.0
    %1684 = vmatprep.subr.mxu0 0.0
    %1685 = vmatpush1.msra.mxu0 0.0
    %1686 = vmatprep.subr.mxu0 0.0
    %1687 = vmatpush1.msra.mxu0 0.0
    %1688 = vmatprep.subr.mxu0 0.0
    %1689 = vmatpush1.msra.mxu0 0.0
    %1690 = vmatprep.subr.mxu0 0.0
    %1691 = vmatpush1.msra.mxu0 0.0
    %1692 = vmatprep.subr.mxu0 0.0
    %1693 = vmatpush1.msra.mxu0 %v470
    %1694 = vmatprep.subr.mxu0 0.0
    %1695 = vmatpush1.msra.mxu0 %v469
    %1696 = vmatprep.subr.mxu0 0.0
    %1697 = vmatpush1.msra.mxu0 %v468
    %1698 = vmatprep.subr.mxu0 0.0
    %1699 = vmatpush1.msra.mxu0 %v467
    %1700 = vmatprep.subr.mxu0 0.0
    %1701 = vmatpush2.msra.mxu0 0.0
    %1702 = vmatprep.subr.mxu0 0.0
    %1703 = vmatpush2.msra.mxu0 0.0
    %1704 = vmatprep.subr.mxu0 0.0
    %1705 = vmatpush2.msra.mxu0 0.0
    %1706 = vmatprep.subr.mxu0 0.0
    %1707 = vmatpush2.msra.mxu0 0.0
    %1708 = vmatprep.subr.mxu0 0.0
    %1709 = vmatpush2.msra.mxu0 0.0
    %1710 = vmatprep.subr.mxu0 0.0
    %1711 = vmatpush2.msra.mxu0 0.0
    %1712 = vmatprep.subr.mxu0 0.0
    %1713 = vmatpush2.msra.mxu0 0.0
    %1714 = vmatprep.subr.mxu0 0.0
    %1715 = vmatpush2.msra.mxu0 0.0
    %1716 = vmatprep.subr.mxu0 0.0
    %1717 = vmatpush2.msra.mxu0 0.0
    %1718 = vmatprep.subr.mxu0 0.0
    %1719 = vmatpush2.msra.mxu0 0.0
    %1720 = vmatprep.subr.mxu0 0.0
    %1721 = vmatpush2.msra.mxu0 0.0
    %1722 = vmatprep.subr.mxu0 0.0
    %1723 = vmatpush2.msra.mxu0 0.0
    %1724 = vmatprep.subr.mxu0 0.0
    %1725 = vmatpush2.msra.mxu0 0.0
    %1726 = vmatprep.subr.mxu0 0.0
    %1727 = vmatpush2.msra.mxu0 0.0
    %1728 = vmatprep.subr.mxu0 0.0
    %1729 = vmatpush2.msra.mxu0 0.0
    %1730 = vmatprep.subr.mxu0 0.0
    %1731 = vmatpush2.msra.mxu0 0.0
    %1732 = vmatprep.mubr.f32.mxu0 0.0
    %1733 = vmatmul.mubr.f32.gmra.mxu0 %v1666
    %v1734 = vpop.f32.mrf.mxu0
    %v1735 = vadd.f32 0.0, %v1734
    %v1736 = vpop.f32.mrf.mxu0
    %1737 = vdwg.mxu0
    %v1738 = vadd.f32 %v1664, %v1735
    %v1739 = vtanh.pop %v1738
    %1740 = vmatprep.subr.mxu0 0.0
    %1741 = vmatpush1.msra.mxu0 0.0
    %1742 = vmatprep.subr.mxu0 0.0
    %1743 = vmatpush1.msra.mxu0 0.0
    %1744 = vmatprep.subr.mxu0 0.0
    %1745 = vmatpush1.msra.mxu0 0.0
    %1746 = vmatprep.subr.mxu0 0.0
    %1747 = vmatpush1.msra.mxu0 0.0
    %1748 = vmatprep.subr.mxu0 0.0
    %1749 = vmatpush1.msra.mxu0 0.0
    %1750 = vmatprep.subr.mxu0 0.0
    %1751 = vmatpush1.msra.mxu0 0.0
    %1752 = vmatprep.subr.mxu0 0.0
    %1753 = vmatpush1.msra.mxu0 0.0
    %1754 = vmatprep.subr.mxu0 0.0
    %1755 = vmatpush1.msra.mxu0 0.0
    %1756 = vmatprep.subr.mxu0 0.0
    %1757 = vmatpush1.msra.mxu0 0.0
    %1758 = vmatprep.subr.mxu0 0.0
    %1759 = vmatpush1.msra.mxu0 0.0
    %1760 = vmatprep.subr.mxu0 0.0
    %1761 = vmatpush1.msra.mxu0 0.0
    %1762 = vmatprep.subr.mxu0 0.0
    %1763 = vmatpush1.msra.mxu0 0.0
    %1764 = vmatprep.subr.mxu0 0.0
    %1765 = vmatpush1.msra.mxu0 %v478
    %1766 = vmatprep.subr.mxu0 0.0
    %1767 = vmatpush1.msra.mxu0 %v477
    %1768 = vmatprep.subr.mxu0 0.0
    %1769 = vmatpush1.msra.mxu0 %v476
    %1770 = vmatprep.subr.mxu0 0.0
    %1771 = vmatpush1.msra.mxu0 %v475
    %1772 = vmatprep.subr.mxu0 0.0
    %1773 = vmatpush2.msra.mxu0 0.0
    %1774 = vmatprep.subr.mxu0 0.0
    %1775 = vmatpush2.msra.mxu0 0.0
    %1776 = vmatprep.subr.mxu0 0.0
    %1777 = vmatpush2.msra.mxu0 0.0
    %1778 = vmatprep.subr.mxu0 0.0
    %1779 = vmatpush2.msra.mxu0 0.0
    %1780 = vmatprep.subr.mxu0 0.0
    %1781 = vmatpush2.msra.mxu0 0.0
    %1782 = vmatprep.subr.mxu0 0.0
    %1783 = vmatpush2.msra.mxu0 0.0
    %1784 = vmatprep.subr.mxu0 0.0
    %1785 = vmatpush2.msra.mxu0 0.0
    %1786 = vmatprep.subr.mxu0 0.0
    %1787 = vmatpush2.msra.mxu0 0.0
    %1788 = vmatprep.subr.mxu0 0.0
    %1789 = vmatpush2.msra.mxu0 0.0
    %1790 = vmatprep.subr.mxu0 0.0
    %1791 = vmatpush2.msra.mxu0 0.0
    %1792 = vmatprep.subr.mxu0 0.0
    %1793 = vmatpush2.msra.mxu0 0.0
    %1794 = vmatprep.subr.mxu0 0.0
    %1795 = vmatpush2.msra.mxu0 0.0
    %1796 = vmatprep.subr.mxu0 0.0
    %1797 = vmatpush2.msra.mxu0 0.0
    %1798 = vmatprep.subr.mxu0 0.0
    %1799 = vmatpush2.msra.mxu0 0.0
    %1800 = vmatprep.subr.mxu0 0.0
    %1801 = vmatpush2.msra.mxu0 0.0
    %1802 = vmatprep.subr.mxu0 0.0
    %1803 = vmatpush2.msra.mxu0 0.0
    %1804 = vmatprep.mubr.f32.mxu0 0.0
    %1805 = vmatmul.mubr.f32.gmra.mxu0 %v1666
    %v1806 = vpop.f32.mrf.mxu0
    %v1807 = vadd.f32 %v636, %v1806
    %v1808 = vpop.f32.mrf.mxu0
    %1809 = vdwg.mxu0
    %v1811 = vsel %vm434, %v1663, 0
    %1813 = vmatprep.subr.mxu0 0.0
    %1814 = vmatpush1.msra.mxu0 0.0
    %1815 = vmatprep.subr.mxu0 0.0
    %1816 = vmatpush1.msra.mxu0 0.0
    %1817 = vmatprep.subr.mxu0 0.0
    %1818 = vmatpush1.msra.mxu0 0.0
    %1819 = vmatprep.subr.mxu0 0.0
    %1820 = vmatpush1.msra.mxu0 0.0
    %1821 = vmatprep.subr.mxu0 0.0
    %1822 = vmatpush1.msra.mxu0 0.0
    %1823 = vmatprep.subr.mxu0 0.0
    %1824 = vmatpush1.msra.mxu0 0.0
    %1825 = vmatprep.subr.mxu0 0.0
    %1826 = vmatpush1.msra.mxu0 0.0
    %1827 = vmatprep.subr.mxu0 0.0
    %1828 = vmatpush1.msra.mxu0 0.0
    %1829 = vmatprep.subr.mxu0 0.0
    %1830 = vmatpush1.msra.mxu0 0.0
    %1831 = vmatprep.subr.mxu0 0.0
    %1832 = vmatpush1.msra.mxu0 0.0
    %1833 = vmatprep.subr.mxu0 0.0
    %1834 = vmatpush1.msra.mxu0 0.0
    %1835 = vmatprep.subr.mxu0 0.0
    %1836 = vmatpush1.msra.mxu0 0.0
    %1837 = vmatprep.subr.mxu0 0.0
    %1838 = vmatpush1.msra.mxu0 %v474
    %1839 = vmatprep.subr.mxu0 0.0
    %1840 = vmatpush1.msra.mxu0 %v473
    %1841 = vmatprep.subr.mxu0 0.0
    %1842 = vmatpush1.msra.mxu0 %v472
    %1843 = vmatprep.subr.mxu0 0.0
    %1844 = vmatpush1.msra.mxu0 %v471
    %1845 = vmatprep.subr.mxu0 0.0
    %1846 = vmatpush2.msra.mxu0 0.0
    %1847 = vmatprep.subr.mxu0 0.0
    %1848 = vmatpush2.msra.mxu0 0.0
    %1849 = vmatprep.subr.mxu0 0.0
    %1850 = vmatpush2.msra.mxu0 0.0
    %1851 = vmatprep.subr.mxu0 0.0
    %1852 = vmatpush2.msra.mxu0 0.0
    %1853 = vmatprep.subr.mxu0 0.0
    %1854 = vmatpush2.msra.mxu0 0.0
    %1855 = vmatprep.subr.mxu0 0.0
    %1856 = vmatpush2.msra.mxu0 0.0
    %1857 = vmatprep.subr.mxu0 0.0
    %1858 = vmatpush2.msra.mxu0 0.0
    %1859 = vmatprep.subr.mxu0 0.0
    %1860 = vmatpush2.msra.mxu0 0.0
    %1861 = vmatprep.subr.mxu0 0.0
    %1862 = vmatpush2.msra.mxu0 0.0
    %1863 = vmatprep.subr.mxu0 0.0
    %1864 = vmatpush2.msra.mxu0 0.0
    %1865 = vmatprep.subr.mxu0 0.0
    %1866 = vmatpush2.msra.mxu0 0.0
    %1867 = vmatprep.subr.mxu0 0.0
    %1868 = vmatpush2.msra.mxu0 0.0
    %1869 = vmatprep.subr.mxu0 0.0
    %1870 = vmatpush2.msra.mxu0 0.0
    %1871 = vmatprep.subr.mxu0 0.0
    %1872 = vmatpush2.msra.mxu0 0.0
    %1873 = vmatprep.subr.mxu0 0.0
    %1874 = vmatpush2.msra.mxu0 0.0
    %1875 = vmatprep.subr.mxu0 0.0
    %1876 = vmatpush2.msra.mxu0 0.0
    %1877 = vmatprep.mubr.f32.mxu0 0.0
    %1878 = vmatmul.mubr.f32.gmra.mxu0 %v1811
    %v1879 = vpop.f32.mrf.mxu0
    %v1880 = vadd.f32 0.0, %v1879
    %v1881 = vpop.f32.mrf.mxu0
    %1882 = vdwg.mxu0
    %v1883 = vadd.f32 %v1807, %v1880
    %v1884 = vtanh.pop %v1883
    %v1885 = vld [vmem:[#allocation2 + $0x38] sm:$0xff]
    %v1887 = vsel %vm434, %v1739, 0
    %1889 = vmatprep.subr.mxu0 0.0
    %1890 = vmatpush1.msra.mxu0 0.0
    %1891 = vmatprep.subr.mxu0 0.0
    %1892 = vmatpush1.msra.mxu0 0.0
    %1893 = vmatprep.subr.mxu0 0.0
    %1894 = vmatpush1.msra.mxu0 0.0
    %1895 = vmatprep.subr.mxu0 0.0
    %1896 = vmatpush1.msra.mxu0 0.0
    %1897 = vmatprep.subr.mxu0 0.0
    %1898 = vmatpush1.msra.mxu0 0.0
    %1899 = vmatprep.subr.mxu0 0.0
    %1900 = vmatpush1.msra.mxu0 0.0
    %1901 = vmatprep.subr.mxu0 0.0
    %1902 = vmatpush1.msra.mxu0 0.0
    %1903 = vmatprep.subr.mxu0 0.0
    %1904 = vmatpush1.msra.mxu0 0.0
    %1905 = vmatprep.subr.mxu0 0.0
    %1906 = vmatpush1.msra.mxu0 0.0
    %1907 = vmatprep.subr.mxu0 0.0
    %1908 = vmatpush1.msra.mxu0 0.0
    %1909 = vmatprep.subr.mxu0 0.0
    %1910 = vmatpush1.msra.mxu0 0.0
    %1911 = vmatprep.subr.mxu0 0.0
    %1912 = vmatpush1.msra.mxu0 0.0
    %1913 = vmatprep.subr.mxu0 0.0
    %1914 = vmatpush1.msra.mxu0 %v470
    %1915 = vmatprep.subr.mxu0 0.0
    %1916 = vmatpush1.msra.mxu0 %v469
    %1917 = vmatprep.subr.mxu0 0.0
    %1918 = vmatpush1.msra.mxu0 %v468
    %1919 = vmatprep.subr.mxu0 0.0
    %1920 = vmatpush1.msra.mxu0 %v467
    %1921 = vmatprep.subr.mxu0 0.0
    %1922 = vmatpush2.msra.mxu0 0.0
    %1923 = vmatprep.subr.mxu0 0.0
    %1924 = vmatpush2.msra.mxu0 0.0
    %1925 = vmatprep.subr.mxu0 0.0
    %1926 = vmatpush2.msra.mxu0 0.0
    %1927 = vmatprep.subr.mxu0 0.0
    %1928 = vmatpush2.msra.mxu0 0.0
    %1929 = vmatprep.subr.mxu0 0.0
    %1930 = vmatpush2.msra.mxu0 0.0
    %1931 = vmatprep.subr.mxu0 0.0
    %1932 = vmatpush2.msra.mxu0 0.0
    %1933 = vmatprep.subr.mxu0 0.0
    %1934 = vmatpush2.msra.mxu0 0.0
    %1935 = vmatprep.subr.mxu0 0.0
    %1936 = vmatpush2.msra.mxu0 0.0
    %1937 = vmatprep.subr.mxu0 0.0
    %1938 = vmatpush2.msra.mxu0 0.0
    %1939 = vmatprep.subr.mxu0 0.0
    %1940 = vmatpush2.msra.mxu0 0.0
    %1941 = vmatprep.subr.mxu0 0.0
    %1942 = vmatpush2.msra.mxu0 0.0
    %1943 = vmatprep.subr.mxu0 0.0
    %1944 = vmatpush2.msra.mxu0 0.0
    %1945 = vmatprep.subr.mxu0 0.0
    %1946 = vmatpush2.msra.mxu0 0.0
    %1947 = vmatprep.subr.mxu0 0.0
    %1948 = vmatpush2.msra.mxu0 0.0
    %1949 = vmatprep.subr.mxu0 0.0
    %1950 = vmatpush2.msra.mxu0 0.0
    %1951 = vmatprep.subr.mxu0 0.0
    %1952 = vmatpush2.msra.mxu0 0.0
    %1953 = vmatprep.mubr.f32.mxu0 0.0
    %1954 = vmatmul.mubr.f32.gmra.mxu0 %v1887
    %v1955 = vpop.f32.mrf.mxu0
    %v1956 = vadd.f32 0.0, %v1955
    %v1957 = vpop.f32.mrf.mxu0
    %1958 = vdwg.mxu0
    %v1959 = vadd.f32 %v1885, %v1956
    %v1960 = vtanh.pop %v1959
    %1961 = vmatprep.subr.mxu0 0.0
    %1962 = vmatpush1.msra.mxu0 0.0
    %1963 = vmatprep.subr.mxu0 0.0
    %1964 = vmatpush1.msra.mxu0 0.0
    %1965 = vmatprep.subr.mxu0 0.0
    %1966 = vmatpush1.msra.mxu0 0.0
    %1967 = vmatprep.subr.mxu0 0.0
    %1968 = vmatpush1.msra.mxu0 0.0
    %1969 = vmatprep.subr.mxu0 0.0
    %1970 = vmatpush1.msra.mxu0 0.0
    %1971 = vmatprep.subr.mxu0 0.0
    %1972 = vmatpush1.msra.mxu0 0.0
    %1973 = vmatprep.subr.mxu0 0.0
    %1974 = vmatpush1.msra.mxu0 0.0
    %1975 = vmatprep.subr.mxu0 0.0
    %1976 = vmatpush1.msra.mxu0 0.0
    %1977 = vmatprep.subr.mxu0 0.0
    %1978 = vmatpush1.msra.mxu0 0.0
    %1979 = vmatprep.subr.mxu0 0.0
    %1980 = vmatpush1.msra.mxu0 0.0
    %1981 = vmatprep.subr.mxu0 0.0
    %1982 = vmatpush1.msra.mxu0 0.0
    %1983 = vmatprep.subr.mxu0 0.0
    %1984 = vmatpush1.msra.mxu0 0.0
    %1985 = vmatprep.subr.mxu0 0.0
    %1986 = vmatpush1.msra.mxu0 %v478
    %1987 = vmatprep.subr.mxu0 0.0
    %1988 = vmatpush1.msra.mxu0 %v477
    %1989 = vmatprep.subr.mxu0 0.0
    %1990 = vmatpush1.msra.mxu0 %v476
    %1991 = vmatprep.subr.mxu0 0.0
    %1992 = vmatpush1.msra.mxu0 %v475
    %1993 = vmatprep.subr.mxu0 0.0
    %1994 = vmatpush2.msra.mxu0 0.0
    %1995 = vmatprep.subr.mxu0 0.0
    %1996 = vmatpush2.msra.mxu0 0.0
    %1997 = vmatprep.subr.mxu0 0.0
    %1998 = vmatpush2.msra.mxu0 0.0
    %1999 = vmatprep.subr.mxu0 0.0
    %2000 = vmatpush2.msra.mxu0 0.0
    %2001 = vmatprep.subr.mxu0 0.0
    %2002 = vmatpush2.msra.mxu0 0.0
    %2003 = vmatprep.subr.mxu0 0.0
    %2004 = vmatpush2.msra.mxu0 0.0
    %2005 = vmatprep.subr.mxu0 0.0
    %2006 = vmatpush2.msra.mxu0 0.0
    %2007 = vmatprep.subr.mxu0 0.0
    %2008 = vmatpush2.msra.mxu0 0.0
    %2009 = vmatprep.subr.mxu0 0.0
    %2010 = vmatpush2.msra.mxu0 0.0
    %2011 = vmatprep.subr.mxu0 0.0
    %2012 = vmatpush2.msra.mxu0 0.0
    %2013 = vmatprep.subr.mxu0 0.0
    %2014 = vmatpush2.msra.mxu0 0.0
    %2015 = vmatprep.subr.mxu0 0.0
    %2016 = vmatpush2.msra.mxu0 0.0
    %2017 = vmatprep.subr.mxu0 0.0
    %2018 = vmatpush2.msra.mxu0 0.0
    %2019 = vmatprep.subr.mxu0 0.0
    %2020 = vmatpush2.msra.mxu0 0.0
    %2021 = vmatprep.subr.mxu0 0.0
    %2022 = vmatpush2.msra.mxu0 0.0
    %2023 = vmatprep.subr.mxu0 0.0
    %2024 = vmatpush2.msra.mxu0 0.0
    %2025 = vmatprep.mubr.f32.mxu0 0.0
    %2026 = vmatmul.mubr.f32.gmra.mxu0 %v1887
    %v2027 = vpop.f32.mrf.mxu0
    %v2028 = vadd.f32 %v636, %v2027
    %v2029 = vpop.f32.mrf.mxu0
    %2030 = vdwg.mxu0
    %v2032 = vsel %vm434, %v1884, 0
    %2034 = vmatprep.subr.mxu0 0.0
    %2035 = vmatpush1.msra.mxu0 0.0
    %2036 = vmatprep.subr.mxu0 0.0
    %2037 = vmatpush1.msra.mxu0 0.0
    %2038 = vmatprep.subr.mxu0 0.0
    %2039 = vmatpush1.msra.mxu0 0.0
    %2040 = vmatprep.subr.mxu0 0.0
    %2041 = vmatpush1.msra.mxu0 0.0
    %2042 = vmatprep.subr.mxu0 0.0
    %2043 = vmatpush1.msra.mxu0 0.0
    %2044 = vmatprep.subr.mxu0 0.0
    %2045 = vmatpush1.msra.mxu0 0.0
    %2046 = vmatprep.subr.mxu0 0.0
    %2047 = vmatpush1.msra.mxu0 0.0
    %2048 = vmatprep.subr.mxu0 0.0
    %2049 = vmatpush1.msra.mxu0 0.0
    %2050 = vmatprep.subr.mxu0 0.0
    %2051 = vmatpush1.msra.mxu0 0.0
    %2052 = vmatprep.subr.mxu0 0.0
    %2053 = vmatpush1.msra.mxu0 0.0
    %2054 = vmatprep.subr.mxu0 0.0
    %2055 = vmatpush1.msra.mxu0 0.0
    %2056 = vmatprep.subr.mxu0 0.0
    %2057 = vmatpush1.msra.mxu0 0.0
    %2058 = vmatprep.subr.mxu0 0.0
    %2059 = vmatpush1.msra.mxu0 %v474
    %2060 = vmatprep.subr.mxu0 0.0
    %2061 = vmatpush1.msra.mxu0 %v473
    %2062 = vmatprep.subr.mxu0 0.0
    %2063 = vmatpush1.msra.mxu0 %v472
    %2064 = vmatprep.subr.mxu0 0.0
    %2065 = vmatpush1.msra.mxu0 %v471
    %2066 = vmatprep.subr.mxu0 0.0
    %2067 = vmatpush2.msra.mxu0 0.0
    %2068 = vmatprep.subr.mxu0 0.0
    %2069 = vmatpush2.msra.mxu0 0.0
    %2070 = vmatprep.subr.mxu0 0.0
    %2071 = vmatpush2.msra.mxu0 0.0
    %2072 = vmatprep.subr.mxu0 0.0
    %2073 = vmatpush2.msra.mxu0 0.0
    %2074 = vmatprep.subr.mxu0 0.0
    %2075 = vmatpush2.msra.mxu0 0.0
    %2076 = vmatprep.subr.mxu0 0.0
    %2077 = vmatpush2.msra.mxu0 0.0
    %2078 = vmatprep.subr.mxu0 0.0
    %2079 = vmatpush2.msra.mxu0 0.0
    %2080 = vmatprep.subr.mxu0 0.0
    %2081 = vmatpush2.msra.mxu0 0.0
    %2082 = vmatprep.subr.mxu0 0.0
    %2083 = vmatpush2.msra.mxu0 0.0
    %2084 = vmatprep.subr.mxu0 0.0
    %2085 = vmatpush2.msra.mxu0 0.0
    %2086 = vmatprep.subr.mxu0 0.0
    %2087 = vmatpush2.msra.mxu0 0.0
    %2088 = vmatprep.subr.mxu0 0.0
    %2089 = vmatpush2.msra.mxu0 0.0
    %2090 = vmatprep.subr.mxu0 0.0
    %2091 = vmatpush2.msra.mxu0 0.0
    %2092 = vmatprep.subr.mxu0 0.0
    %2093 = vmatpush2.msra.mxu0 0.0
    %2094 = vmatprep.subr.mxu0 0.0
    %2095 = vmatpush2.msra.mxu0 0.0
    %2096 = vmatprep.subr.mxu0 0.0
    %2097 = vmatpush2.msra.mxu0 0.0
    %2098 = vmatprep.mubr.f32.mxu0 0.0
    %2099 = vmatmul.mubr.f32.gmra.mxu0 %v2032
    %v2100 = vpop.f32.mrf.mxu0
    %v2101 = vadd.f32 0.0, %v2100
    %v2102 = vpop.f32.mrf.mxu0
    %2103 = vdwg.mxu0
    %v2104 = vadd.f32 %v2028, %v2101
    %v2105 = vtanh.pop %v2104
    %v2106 = vld [vmem:[#allocation2 + $0x40] sm:$0xff]
    %v2108 = vsel %vm434, %v1960, 0
    %2110 = vmatprep.subr.mxu0 0.0
    %2111 = vmatpush1.msra.mxu0 0.0
    %2112 = vmatprep.subr.mxu0 0.0
    %2113 = vmatpush1.msra.mxu0 0.0
    %2114 = vmatprep.subr.mxu0 0.0
    %2115 = vmatpush1.msra.mxu0 0.0
    %2116 = vmatprep.subr.mxu0 0.0
    %2117 = vmatpush1.msra.mxu0 0.0
    %2118 = vmatprep.subr.mxu0 0.0
    %2119 = vmatpush1.msra.mxu0 0.0
    %2120 = vmatprep.subr.mxu0 0.0
    %2121 = vmatpush1.msra.mxu0 0.0
    %2122 = vmatprep.subr.mxu0 0.0
    %2123 = vmatpush1.msra.mxu0 0.0
    %2124 = vmatprep.subr.mxu0 0.0
    %2125 = vmatpush1.msra.mxu0 0.0
    %2126 = vmatprep.subr.mxu0 0.0
    %2127 = vmatpush1.msra.mxu0 0.0
    %2128 = vmatprep.subr.mxu0 0.0
    %2129 = vmatpush1.msra.mxu0 0.0
    %2130 = vmatprep.subr.mxu0 0.0
    %2131 = vmatpush1.msra.mxu0 0.0
    %2132 = vmatprep.subr.mxu0 0.0
    %2133 = vmatpush1.msra.mxu0 0.0
    %2134 = vmatprep.subr.mxu0 0.0
    %2135 = vmatpush1.msra.mxu0 %v470
    %2136 = vmatprep.subr.mxu0 0.0
    %2137 = vmatpush1.msra.mxu0 %v469
    %2138 = vmatprep.subr.mxu0 0.0
    %2139 = vmatpush1.msra.mxu0 %v468
    %2140 = vmatprep.subr.mxu0 0.0
    %2141 = vmatpush1.msra.mxu0 %v467
    %2142 = vmatprep.subr.mxu0 0.0
    %2143 = vmatpush2.msra.mxu0 0.0
    %2144 = vmatprep.subr.mxu0 0.0
    %2145 = vmatpush2.msra.mxu0 0.0
    %2146 = vmatprep.subr.mxu0 0.0
    %2147 = vmatpush2.msra.mxu0 0.0
    %2148 = vmatprep.subr.mxu0 0.0
    %2149 = vmatpush2.msra.mxu0 0.0
    %2150 = vmatprep.subr.mxu0 0.0
    %2151 = vmatpush2.msra.mxu0 0.0
    %2152 = vmatprep.subr.mxu0 0.0
    %2153 = vmatpush2.msra.mxu0 0.0
    %2154 = vmatprep.subr.mxu0 0.0
    %2155 = vmatpush2.msra.mxu0 0.0
    %2156 = vmatprep.subr.mxu0 0.0
    %2157 = vmatpush2.msra.mxu0 0.0
    %2158 = vmatprep.subr.mxu0 0.0
    %2159 = vmatpush2.msra.mxu0 0.0
    %2160 = vmatprep.subr.mxu0 0.0
    %2161 = vmatpush2.msra.mxu0 0.0
    %2162 = vmatprep.subr.mxu0 0.0
    %2163 = vmatpush2.msra.mxu0 0.0
    %2164 = vmatprep.subr.mxu0 0.0
    %2165 = vmatpush2.msra.mxu0 0.0
    %2166 = vmatprep.subr.mxu0 0.0
    %2167 = vmatpush2.msra.mxu0 0.0
    %2168 = vmatprep.subr.mxu0 0.0
    %2169 = vmatpush2.msra.mxu0 0.0
    %2170 = vmatprep.subr.mxu0 0.0
    %2171 = vmatpush2.msra.mxu0 0.0
    %2172 = vmatprep.subr.mxu0 0.0
    %2173 = vmatpush2.msra.mxu0 0.0
    %2174 = vmatprep.mubr.f32.mxu0 0.0
    %2175 = vmatmul.mubr.f32.gmra.mxu0 %v2108
    %v2176 = vpop.f32.mrf.mxu0
    %v2177 = vadd.f32 0.0, %v2176
    %v2178 = vpop.f32.mrf.mxu0
    %2179 = vdwg.mxu0
    %v2180 = vadd.f32 %v2106, %v2177
    %v2181 = vtanh.pop %v2180
    %2182 = vmatprep.subr.mxu0 0.0
    %2183 = vmatpush1.msra.mxu0 0.0
    %2184 = vmatprep.subr.mxu0 0.0
    %2185 = vmatpush1.msra.mxu0 0.0
    %2186 = vmatprep.subr.mxu0 0.0
    %2187 = vmatpush1.msra.mxu0 0.0
    %2188 = vmatprep.subr.mxu0 0.0
    %2189 = vmatpush1.msra.mxu0 0.0
    %2190 = vmatprep.subr.mxu0 0.0
    %2191 = vmatpush1.msra.mxu0 0.0
    %2192 = vmatprep.subr.mxu0 0.0
    %2193 = vmatpush1.msra.mxu0 0.0
    %2194 = vmatprep.subr.mxu0 0.0
    %2195 = vmatpush1.msra.mxu0 0.0
    %2196 = vmatprep.subr.mxu0 0.0
    %2197 = vmatpush1.msra.mxu0 0.0
    %2198 = vmatprep.subr.mxu0 0.0
    %2199 = vmatpush1.msra.mxu0 0.0
    %2200 = vmatprep.subr.mxu0 0.0
    %2201 = vmatpush1.msra.mxu0 0.0
    %2202 = vmatprep.subr.mxu0 0.0
    %2203 = vmatpush1.msra.mxu0 0.0
    %2204 = vmatprep.subr.mxu0 0.0
    %2205 = vmatpush1.msra.mxu0 0.0
    %2206 = vmatprep.subr.mxu0 0.0
    %2207 = vmatpush1.msra.mxu0 %v478
    %2208 = vmatprep.subr.mxu0 0.0
    %2209 = vmatpush1.msra.mxu0 %v477
    %2210 = vmatprep.subr.mxu0 0.0
    %2211 = vmatpush1.msra.mxu0 %v476
    %2212 = vmatprep.subr.mxu0 0.0
    %2213 = vmatpush1.msra.mxu0 %v475
    %2214 = vmatprep.subr.mxu0 0.0
    %2215 = vmatpush2.msra.mxu0 0.0
    %2216 = vmatprep.subr.mxu0 0.0
    %2217 = vmatpush2.msra.mxu0 0.0
    %2218 = vmatprep.subr.mxu0 0.0
    %2219 = vmatpush2.msra.mxu0 0.0
    %2220 = vmatprep.subr.mxu0 0.0
    %2221 = vmatpush2.msra.mxu0 0.0
    %2222 = vmatprep.subr.mxu0 0.0
    %2223 = vmatpush2.msra.mxu0 0.0
    %2224 = vmatprep.subr.mxu0 0.0
    %2225 = vmatpush2.msra.mxu0 0.0
    %2226 = vmatprep.subr.mxu0 0.0
    %2227 = vmatpush2.msra.mxu0 0.0
    %2228 = vmatprep.subr.mxu0 0.0
    %2229 = vmatpush2.msra.mxu0 0.0
    %2230 = vmatprep.subr.mxu0 0.0
    %2231 = vmatpush2.msra.mxu0 0.0
    %2232 = vmatprep.subr.mxu0 0.0
    %2233 = vmatpush2.msra.mxu0 0.0
    %2234 = vmatprep.subr.mxu0 0.0
    %2235 = vmatpush2.msra.mxu0 0.0
    %2236 = vmatprep.subr.mxu0 0.0
    %2237 = vmatpush2.msra.mxu0 0.0
    %2238 = vmatprep.subr.mxu0 0.0
    %2239 = vmatpush2.msra.mxu0 0.0
    %2240 = vmatprep.subr.mxu0 0.0
    %2241 = vmatpush2.msra.mxu0 0.0
    %2242 = vmatprep.subr.mxu0 0.0
    %2243 = vmatpush2.msra.mxu0 0.0
    %2244 = vmatprep.subr.mxu0 0.0
    %2245 = vmatpush2.msra.mxu0 0.0
    %2246 = vmatprep.mubr.f32.mxu0 0.0
    %2247 = vmatmul.mubr.f32.gmra.mxu0 %v2108
    %v2248 = vpop.f32.mrf.mxu0
    %v2249 = vadd.f32 %v636, %v2248
    %v2250 = vpop.f32.mrf.mxu0
    %2251 = vdwg.mxu0
    %v2253 = vsel %vm434, %v2105, 0
    %2255 = vmatprep.subr.mxu0 0.0
    %2256 = vmatpush1.msra.mxu0 0.0
    %2257 = vmatprep.subr.mxu0 0.0
    %2258 = vmatpush1.msra.mxu0 0.0
    %2259 = vmatprep.subr.mxu0 0.0
    %2260 = vmatpush1.msra.mxu0 0.0
    %2261 = vmatprep.subr.mxu0 0.0
    %2262 = vmatpush1.msra.mxu0 0.0
    %2263 = vmatprep.subr.mxu0 0.0
    %2264 = vmatpush1.msra.mxu0 0.0
    %2265 = vmatprep.subr.mxu0 0.0
    %2266 = vmatpush1.msra.mxu0 0.0
    %2267 = vmatprep.subr.mxu0 0.0
    %2268 = vmatpush1.msra.mxu0 0.0
    %2269 = vmatprep.subr.mxu0 0.0
    %2270 = vmatpush1.msra.mxu0 0.0
    %2271 = vmatprep.subr.mxu0 0.0
    %2272 = vmatpush1.msra.mxu0 0.0
    %2273 = vmatprep.subr.mxu0 0.0
    %2274 = vmatpush1.msra.mxu0 0.0
    %2275 = vmatprep.subr.mxu0 0.0
    %2276 = vmatpush1.msra.mxu0 0.0
    %2277 = vmatprep.subr.mxu0 0.0
    %2278 = vmatpush1.msra.mxu0 0.0
    %2279 = vmatprep.subr.mxu0 0.0
    %2280 = vmatpush1.msra.mxu0 %v474
    %2281 = vmatprep.subr.mxu0 0.0
    %2282 = vmatpush1.msra.mxu0 %v473
    %2283 = vmatprep.subr.mxu0 0.0
    %2284 = vmatpush1.msra.mxu0 %v472
    %2285 = vmatprep.subr.mxu0 0.0
    %2286 = vmatpush1.msra.mxu0 %v471
    %2287 = vmatprep.subr.mxu0 0.0
    %2288 = vmatpush2.msra.mxu0 0.0
    %2289 = vmatprep.subr.mxu0 0.0
    %2290 = vmatpush2.msra.mxu0 0.0
    %2291 = vmatprep.subr.mxu0 0.0
    %2292 = vmatpush2.msra.mxu0 0.0
    %2293 = vmatprep.subr.mxu0 0.0
    %2294 = vmatpush2.msra.mxu0 0.0
    %2295 = vmatprep.subr.mxu0 0.0
    %2296 = vmatpush2.msra.mxu0 0.0
    %2297 = vmatprep.subr.mxu0 0.0
    %2298 = vmatpush2.msra.mxu0 0.0
    %2299 = vmatprep.subr.mxu0 0.0
    %2300 = vmatpush2.msra.mxu0 0.0
    %2301 = vmatprep.subr.mxu0 0.0
    %2302 = vmatpush2.msra.mxu0 0.0
    %2303 = vmatprep.subr.mxu0 0.0
    %2304 = vmatpush2.msra.mxu0 0.0
    %2305 = vmatprep.subr.mxu0 0.0
    %2306 = vmatpush2.msra.mxu0 0.0
    %2307 = vmatprep.subr.mxu0 0.0
    %2308 = vmatpush2.msra.mxu0 0.0
    %2309 = vmatprep.subr.mxu0 0.0
    %2310 = vmatpush2.msra.mxu0 0.0
    %2311 = vmatprep.subr.mxu0 0.0
    %2312 = vmatpush2.msra.mxu0 0.0
    %2313 = vmatprep.subr.mxu0 0.0
    %2314 = vmatpush2.msra.mxu0 0.0
    %2315 = vmatprep.subr.mxu0 0.0
    %2316 = vmatpush2.msra.mxu0 0.0
    %2317 = vmatprep.subr.mxu0 0.0
    %2318 = vmatpush2.msra.mxu0 0.0
    %2319 = vmatprep.mubr.f32.mxu0 0.0
    %2320 = vmatmul.mubr.f32.gmra.mxu0 %v2253
    %v2321 = vpop.f32.mrf.mxu0
    %v2322 = vadd.f32 0.0, %v2321
    %v2323 = vpop.f32.mrf.mxu0
    %2324 = vdwg.mxu0
    %v2325 = vadd.f32 %v2249, %v2322
    %v2326 = vtanh.pop %v2325
    %v2327 = vld [vmem:[#allocation2 + $0x48] sm:$0xff]
    %v2329 = vsel %vm434, %v2181, 0
    %2331 = vmatprep.subr.mxu0 0.0
    %2332 = vmatpush1.msra.mxu0 0.0
    %2333 = vmatprep.subr.mxu0 0.0
    %2334 = vmatpush1.msra.mxu0 0.0
    %2335 = vmatprep.subr.mxu0 0.0
    %2336 = vmatpush1.msra.mxu0 0.0
    %2337 = vmatprep.subr.mxu0 0.0
    %2338 = vmatpush1.msra.mxu0 0.0
    %2339 = vmatprep.subr.mxu0 0.0
    %2340 = vmatpush1.msra.mxu0 0.0
    %2341 = vmatprep.subr.mxu0 0.0
    %2342 = vmatpush1.msra.mxu0 0.0
    %2343 = vmatprep.subr.mxu0 0.0
    %2344 = vmatpush1.msra.mxu0 0.0
    %2345 = vmatprep.subr.mxu0 0.0
    %2346 = vmatpush1.msra.mxu0 0.0
    %2347 = vmatprep.subr.mxu0 0.0
    %2348 = vmatpush1.msra.mxu0 0.0
    %2349 = vmatprep.subr.mxu0 0.0
    %2350 = vmatpush1.msra.mxu0 0.0
    %2351 = vmatprep.subr.mxu0 0.0
    %2352 = vmatpush1.msra.mxu0 0.0
    %2353 = vmatprep.subr.mxu0 0.0
    %2354 = vmatpush1.msra.mxu0 0.0
    %2355 = vmatprep.subr.mxu0 0.0
    %2356 = vmatpush1.msra.mxu0 %v470
    %2357 = vmatprep.subr.mxu0 0.0
    %2358 = vmatpush1.msra.mxu0 %v469
    %2359 = vmatprep.subr.mxu0 0.0
    %2360 = vmatpush1.msra.mxu0 %v468
    %2361 = vmatprep.subr.mxu0 0.0
    %2362 = vmatpush1.msra.mxu0 %v467
    %2363 = vmatprep.subr.mxu0 0.0
    %2364 = vmatpush2.msra.mxu0 0.0
    %2365 = vmatprep.subr.mxu0 0.0
    %2366 = vmatpush2.msra.mxu0 0.0
    %2367 = vmatprep.subr.mxu0 0.0
    %2368 = vmatpush2.msra.mxu0 0.0
    %2369 = vmatprep.subr.mxu0 0.0
    %2370 = vmatpush2.msra.mxu0 0.0
    %2371 = vmatprep.subr.mxu0 0.0
    %2372 = vmatpush2.msra.mxu0 0.0
    %2373 = vmatprep.subr.mxu0 0.0
    %2374 = vmatpush2.msra.mxu0 0.0
    %2375 = vmatprep.subr.mxu0 0.0
    %2376 = vmatpush2.msra.mxu0 0.0
    %2377 = vmatprep.subr.mxu0 0.0
    %2378 = vmatpush2.msra.mxu0 0.0
    %2379 = vmatprep.subr.mxu0 0.0
    %2380 = vmatpush2.msra.mxu0 0.0
    %2381 = vmatprep.subr.mxu0 0.0
    %2382 = vmatpush2.msra.mxu0 0.0
    %2383 = vmatprep.subr.mxu0 0.0
    %2384 = vmatpush2.msra.mxu0 0.0
    %2385 = vmatprep.subr.mxu0 0.0
    %2386 = vmatpush2.msra.mxu0 0.0
    %2387 = vmatprep.subr.mxu0 0.0
    %2388 = vmatpush2.msra.mxu0 0.0
    %2389 = vmatprep.subr.mxu0 0.0
    %2390 = vmatpush2.msra.mxu0 0.0
    %2391 = vmatprep.subr.mxu0 0.0
    %2392 = vmatpush2.msra.mxu0 0.0
    %2393 = vmatprep.subr.mxu0 0.0
    %2394 = vmatpush2.msra.mxu0 0.0
    %2395 = vmatprep.mubr.f32.mxu0 0.0
    %2396 = vmatmul.mubr.f32.gmra.mxu0 %v2329
    %v2397 = vpop.f32.mrf.mxu0
    %v2398 = vadd.f32 0.0, %v2397
    %v2399 = vpop.f32.mrf.mxu0
    %2400 = vdwg.mxu0
    %v2401 = vadd.f32 %v2327, %v2398
    %v2402 = vtanh.pop %v2401
    %2403 = vmatprep.subr.mxu0 0.0
    %2404 = vmatpush1.msra.mxu0 0.0
    %2405 = vmatprep.subr.mxu0 0.0
    %2406 = vmatpush1.msra.mxu0 0.0
    %2407 = vmatprep.subr.mxu0 0.0
    %2408 = vmatpush1.msra.mxu0 0.0
    %2409 = vmatprep.subr.mxu0 0.0
    %2410 = vmatpush1.msra.mxu0 0.0
    %2411 = vmatprep.subr.mxu0 0.0
    %2412 = vmatpush1.msra.mxu0 0.0
    %2413 = vmatprep.subr.mxu0 0.0
    %2414 = vmatpush1.msra.mxu0 0.0
    %2415 = vmatprep.subr.mxu0 0.0
    %2416 = vmatpush1.msra.mxu0 0.0
    %2417 = vmatprep.subr.mxu0 0.0
    %2418 = vmatpush1.msra.mxu0 0.0
    %2419 = vmatprep.subr.mxu0 0.0
    %2420 = vmatpush1.msra.mxu0 0.0
    %2421 = vmatprep.subr.mxu0 0.0
    %2422 = vmatpush1.msra.mxu0 0.0
    %2423 = vmatprep.subr.mxu0 0.0
    %2424 = vmatpush1.msra.mxu0 0.0
    %2425 = vmatprep.subr.mxu0 0.0
    %2426 = vmatpush1.msra.mxu0 0.0
    %2427 = vmatprep.subr.mxu0 0.0
    %2428 = vmatpush1.msra.mxu0 %v478
    %2429 = vmatprep.subr.mxu0 0.0
    %2430 = vmatpush1.msra.mxu0 %v477
    %2431 = vmatprep.subr.mxu0 0.0
    %2432 = vmatpush1.msra.mxu0 %v476
    %2433 = vmatprep.subr.mxu0 0.0
    %2434 = vmatpush1.msra.mxu0 %v475
    %2435 = vmatprep.subr.mxu0 0.0
    %2436 = vmatpush2.msra.mxu0 0.0
    %2437 = vmatprep.subr.mxu0 0.0
    %2438 = vmatpush2.msra.mxu0 0.0
    %2439 = vmatprep.subr.mxu0 0.0
    %2440 = vmatpush2.msra.mxu0 0.0
    %2441 = vmatprep.subr.mxu0 0.0
    %2442 = vmatpush2.msra.mxu0 0.0
    %2443 = vmatprep.subr.mxu0 0.0
    %2444 = vmatpush2.msra.mxu0 0.0
    %2445 = vmatprep.subr.mxu0 0.0
    %2446 = vmatpush2.msra.mxu0 0.0
    %2447 = vmatprep.subr.mxu0 0.0
    %2448 = vmatpush2.msra.mxu0 0.0
    %2449 = vmatprep.subr.mxu0 0.0
    %2450 = vmatpush2.msra.mxu0 0.0
    %2451 = vmatprep.subr.mxu0 0.0
    %2452 = vmatpush2.msra.mxu0 0.0
    %2453 = vmatprep.subr.mxu0 0.0
    %2454 = vmatpush2.msra.mxu0 0.0
    %2455 = vmatprep.subr.mxu0 0.0
    %2456 = vmatpush2.msra.mxu0 0.0
    %2457 = vmatprep.subr.mxu0 0.0
    %2458 = vmatpush2.msra.mxu0 0.0
    %2459 = vmatprep.subr.mxu0 0.0
    %2460 = vmatpush2.msra.mxu0 0.0
    %2461 = vmatprep.subr.mxu0 0.0
    %2462 = vmatpush2.msra.mxu0 0.0
    %2463 = vmatprep.subr.mxu0 0.0
    %2464 = vmatpush2.msra.mxu0 0.0
    %2465 = vmatprep.subr.mxu0 0.0
    %2466 = vmatpush2.msra.mxu0 0.0
    %2467 = vmatprep.mubr.f32.mxu0 0.0
    %2468 = vmatmul.mubr.f32.gmra.mxu0 %v2329
    %v2469 = vpop.f32.mrf.mxu0
    %v2470 = vadd.f32 %v636, %v2469
    %v2471 = vpop.f32.mrf.mxu0
    %2472 = vdwg.mxu0
    %v2474 = vsel %vm434, %v2326, 0
    %2476 = vmatprep.subr.mxu0 0.0
    %2477 = vmatpush1.msra.mxu0 0.0
    %2478 = vmatprep.subr.mxu0 0.0
    %2479 = vmatpush1.msra.mxu0 0.0
    %2480 = vmatprep.subr.mxu0 0.0
    %2481 = vmatpush1.msra.mxu0 0.0
    %2482 = vmatprep.subr.mxu0 0.0
    %2483 = vmatpush1.msra.mxu0 0.0
    %2484 = vmatprep.subr.mxu0 0.0
    %2485 = vmatpush1.msra.mxu0 0.0
    %2486 = vmatprep.subr.mxu0 0.0
    %2487 = vmatpush1.msra.mxu0 0.0
    %2488 = vmatprep.subr.mxu0 0.0
    %2489 = vmatpush1.msra.mxu0 0.0
    %2490 = vmatprep.subr.mxu0 0.0
    %2491 = vmatpush1.msra.mxu0 0.0
    %2492 = vmatprep.subr.mxu0 0.0
    %2493 = vmatpush1.msra.mxu0 0.0
    %2494 = vmatprep.subr.mxu0 0.0
    %2495 = vmatpush1.msra.mxu0 0.0
    %2496 = vmatprep.subr.mxu0 0.0
    %2497 = vmatpush1.msra.mxu0 0.0
    %2498 = vmatprep.subr.mxu0 0.0
    %2499 = vmatpush1.msra.mxu0 0.0
    %2500 = vmatprep.subr.mxu0 0.0
    %2501 = vmatpush1.msra.mxu0 %v474
    %2502 = vmatprep.subr.mxu0 0.0
    %2503 = vmatpush1.msra.mxu0 %v473
    %2504 = vmatprep.subr.mxu0 0.0
    %2505 = vmatpush1.msra.mxu0 %v472
    %2506 = vmatprep.subr.mxu0 0.0
    %2507 = vmatpush1.msra.mxu0 %v471
    %2508 = vmatprep.subr.mxu0 0.0
    %2509 = vmatpush2.msra.mxu0 0.0
    %2510 = vmatprep.subr.mxu0 0.0
    %2511 = vmatpush2.msra.mxu0 0.0
    %2512 = vmatprep.subr.mxu0 0.0
    %2513 = vmatpush2.msra.mxu0 0.0
    %2514 = vmatprep.subr.mxu0 0.0
    %2515 = vmatpush2.msra.mxu0 0.0
    %2516 = vmatprep.subr.mxu0 0.0
    %2517 = vmatpush2.msra.mxu0 0.0
    %2518 = vmatprep.subr.mxu0 0.0
    %2519 = vmatpush2.msra.mxu0 0.0
    %2520 = vmatprep.subr.mxu0 0.0
    %2521 = vmatpush2.msra.mxu0 0.0
    %2522 = vmatprep.subr.mxu0 0.0
    %2523 = vmatpush2.msra.mxu0 0.0
    %2524 = vmatprep.subr.mxu0 0.0
    %2525 = vmatpush2.msra.mxu0 0.0
    %2526 = vmatprep.subr.mxu0 0.0
    %2527 = vmatpush2.msra.mxu0 0.0
    %2528 = vmatprep.subr.mxu0 0.0
    %2529 = vmatpush2.msra.mxu0 0.0
    %2530 = vmatprep.subr.mxu0 0.0
    %2531 = vmatpush2.msra.mxu0 0.0
    %2532 = vmatprep.subr.mxu0 0.0
    %2533 = vmatpush2.msra.mxu0 0.0
    %2534 = vmatprep.subr.mxu0 0.0
    %2535 = vmatpush2.msra.mxu0 0.0
    %2536 = vmatprep.subr.mxu0 0.0
    %2537 = vmatpush2.msra.mxu0 0.0
    %2538 = vmatprep.subr.mxu0 0.0
    %2539 = vmatpush2.msra.mxu0 0.0
    %2540 = vmatprep.mubr.f32.mxu0 0.0
    %2541 = vmatmul.mubr.f32.gmra.mxu0 %v2474
    %v2542 = vpop.f32.mrf.mxu0
    %v2543 = vadd.f32 0.0, %v2542
    %v2544 = vpop.f32.mrf.mxu0
    %2545 = vdwg.mxu0
    %v2546 = vadd.f32 %v2470, %v2543
    %v2547 = vtanh.pop %v2546
    %v2548 = vld [vmem:[#allocation2 + $0x50] sm:$0xff]
    %v2550 = vsel %vm434, %v2402, 0
    %2552 = vmatprep.subr.mxu0 0.0
    %2553 = vmatpush1.msra.mxu0 0.0
    %2554 = vmatprep.subr.mxu0 0.0
    %2555 = vmatpush1.msra.mxu0 0.0
    %2556 = vmatprep.subr.mxu0 0.0
    %2557 = vmatpush1.msra.mxu0 0.0
    %2558 = vmatprep.subr.mxu0 0.0
    %2559 = vmatpush1.msra.mxu0 0.0
    %2560 = vmatprep.subr.mxu0 0.0
    %2561 = vmatpush1.msra.mxu0 0.0
    %2562 = vmatprep.subr.mxu0 0.0
    %2563 = vmatpush1.msra.mxu0 0.0
    %2564 = vmatprep.subr.mxu0 0.0
    %2565 = vmatpush1.msra.mxu0 0.0
    %2566 = vmatprep.subr.mxu0 0.0
    %2567 = vmatpush1.msra.mxu0 0.0
    %2568 = vmatprep.subr.mxu0 0.0
    %2569 = vmatpush1.msra.mxu0 0.0
    %2570 = vmatprep.subr.mxu0 0.0
    %2571 = vmatpush1.msra.mxu0 0.0
    %2572 = vmatprep.subr.mxu0 0.0
    %2573 = vmatpush1.msra.mxu0 0.0
    %2574 = vmatprep.subr.mxu0 0.0
    %2575 = vmatpush1.msra.mxu0 0.0
    %2576 = vmatprep.subr.mxu0 0.0
    %2577 = vmatpush1.msra.mxu0 %v470
    %2578 = vmatprep.subr.mxu0 0.0
    %2579 = vmatpush1.msra.mxu0 %v469
    %2580 = vmatprep.subr.mxu0 0.0
    %2581 = vmatpush1.msra.mxu0 %v468
    %2582 = vmatprep.subr.mxu0 0.0
    %2583 = vmatpush1.msra.mxu0 %v467
    %2584 = vmatprep.subr.mxu0 0.0
    %2585 = vmatpush2.msra.mxu0 0.0
    %2586 = vmatprep.subr.mxu0 0.0
    %2587 = vmatpush2.msra.mxu0 0.0
    %2588 = vmatprep.subr.mxu0 0.0
    %2589 = vmatpush2.msra.mxu0 0.0
    %2590 = vmatprep.subr.mxu0 0.0
    %2591 = vmatpush2.msra.mxu0 0.0
    %2592 = vmatprep.subr.mxu0 0.0
    %2593 = vmatpush2.msra.mxu0 0.0
    %2594 = vmatprep.subr.mxu0 0.0
    %2595 = vmatpush2.msra.mxu0 0.0
    %2596 = vmatprep.subr.mxu0 0.0
    %2597 = vmatpush2.msra.mxu0 0.0
    %2598 = vmatprep.subr.mxu0 0.0
    %2599 = vmatpush2.msra.mxu0 0.0
    %2600 = vmatprep.subr.mxu0 0.0
    %2601 = vmatpush2.msra.mxu0 0.0
    %2602 = vmatprep.subr.mxu0 0.0
    %2603 = vmatpush2.msra.mxu0 0.0
    %2604 = vmatprep.subr.mxu0 0.0
    %2605 = vmatpush2.msra.mxu0 0.0
    %2606 = vmatprep.subr.mxu0 0.0
    %2607 = vmatpush2.msra.mxu0 0.0
    %2608 = vmatprep.subr.mxu0 0.0
    %2609 = vmatpush2.msra.mxu0 0.0
    %2610 = vmatprep.subr.mxu0 0.0
    %2611 = vmatpush2.msra.mxu0 0.0
    %2612 = vmatprep.subr.mxu0 0.0
    %2613 = vmatpush2.msra.mxu0 0.0
    %2614 = vmatprep.subr.mxu0 0.0
    %2615 = vmatpush2.msra.mxu0 0.0
    %2616 = vmatprep.mubr.f32.mxu0 0.0
    %2617 = vmatmul.mubr.f32.gmra.mxu0 %v2550
    %v2618 = vpop.f32.mrf.mxu0
    %v2619 = vadd.f32 0.0, %v2618
    %v2620 = vpop.f32.mrf.mxu0
    %2621 = vdwg.mxu0
    %v2622 = vadd.f32 %v2548, %v2619
    %v2623 = vtanh.pop %v2622
    %2624 = vmatprep.subr.mxu0 0.0
    %2625 = vmatpush1.msra.mxu0 0.0
    %2626 = vmatprep.subr.mxu0 0.0
    %2627 = vmatpush1.msra.mxu0 0.0
    %2628 = vmatprep.subr.mxu0 0.0
    %2629 = vmatpush1.msra.mxu0 0.0
    %2630 = vmatprep.subr.mxu0 0.0
    %2631 = vmatpush1.msra.mxu0 0.0
    %2632 = vmatprep.subr.mxu0 0.0
    %2633 = vmatpush1.msra.mxu0 0.0
    %2634 = vmatprep.subr.mxu0 0.0
    %2635 = vmatpush1.msra.mxu0 0.0
    %2636 = vmatprep.subr.mxu0 0.0
    %2637 = vmatpush1.msra.mxu0 0.0
    %2638 = vmatprep.subr.mxu0 0.0
    %2639 = vmatpush1.msra.mxu0 0.0
    %2640 = vmatprep.subr.mxu0 0.0
    %2641 = vmatpush1.msra.mxu0 0.0
    %2642 = vmatprep.subr.mxu0 0.0
    %2643 = vmatpush1.msra.mxu0 0.0
    %2644 = vmatprep.subr.mxu0 0.0
    %2645 = vmatpush1.msra.mxu0 0.0
    %2646 = vmatprep.subr.mxu0 0.0
    %2647 = vmatpush1.msra.mxu0 0.0
    %2648 = vmatprep.subr.mxu0 0.0
    %2649 = vmatpush1.msra.mxu0 %v478
    %2650 = vmatprep.subr.mxu0 0.0
    %2651 = vmatpush1.msra.mxu0 %v477
    %2652 = vmatprep.subr.mxu0 0.0
    %2653 = vmatpush1.msra.mxu0 %v476
    %2654 = vmatprep.subr.mxu0 0.0
    %2655 = vmatpush1.msra.mxu0 %v475
    %2656 = vmatprep.subr.mxu0 0.0
    %2657 = vmatpush2.msra.mxu0 0.0
    %2658 = vmatprep.subr.mxu0 0.0
    %2659 = vmatpush2.msra.mxu0 0.0
    %2660 = vmatprep.subr.mxu0 0.0
    %2661 = vmatpush2.msra.mxu0 0.0
    %2662 = vmatprep.subr.mxu0 0.0
    %2663 = vmatpush2.msra.mxu0 0.0
    %2664 = vmatprep.subr.mxu0 0.0
    %2665 = vmatpush2.msra.mxu0 0.0
    %2666 = vmatprep.subr.mxu0 0.0
    %2667 = vmatpush2.msra.mxu0 0.0
    %2668 = vmatprep.subr.mxu0 0.0
    %2669 = vmatpush2.msra.mxu0 0.0
    %2670 = vmatprep.subr.mxu0 0.0
    %2671 = vmatpush2.msra.mxu0 0.0
    %2672 = vmatprep.subr.mxu0 0.0
    %2673 = vmatpush2.msra.mxu0 0.0
    %2674 = vmatprep.subr.mxu0 0.0
    %2675 = vmatpush2.msra.mxu0 0.0
    %2676 = vmatprep.subr.mxu0 0.0
    %2677 = vmatpush2.msra.mxu0 0.0
    %2678 = vmatprep.subr.mxu0 0.0
    %2679 = vmatpush2.msra.mxu0 0.0
    %2680 = vmatprep.subr.mxu0 0.0
    %2681 = vmatpush2.msra.mxu0 0.0
    %2682 = vmatprep.subr.mxu0 0.0
    %2683 = vmatpush2.msra.mxu0 0.0
    %2684 = vmatprep.subr.mxu0 0.0
    %2685 = vmatpush2.msra.mxu0 0.0
    %2686 = vmatprep.subr.mxu0 0.0
    %2687 = vmatpush2.msra.mxu0 0.0
    %2688 = vmatprep.mubr.f32.mxu0 0.0
    %2689 = vmatmul.mubr.f32.gmra.mxu0 %v2550
    %v2690 = vpop.f32.mrf.mxu0
    %v2691 = vadd.f32 %v636, %v2690
    %v2692 = vpop.f32.mrf.mxu0
    %2693 = vdwg.mxu0
    %v2695 = vsel %vm434, %v2547, 0
    %2697 = vmatprep.subr.mxu0 0.0
    %2698 = vmatpush1.msra.mxu0 0.0
    %2699 = vmatprep.subr.mxu0 0.0
    %2700 = vmatpush1.msra.mxu0 0.0
    %2701 = vmatprep.subr.mxu0 0.0
    %2702 = vmatpush1.msra.mxu0 0.0
    %2703 = vmatprep.subr.mxu0 0.0
    %2704 = vmatpush1.msra.mxu0 0.0
    %2705 = vmatprep.subr.mxu0 0.0
    %2706 = vmatpush1.msra.mxu0 0.0
    %2707 = vmatprep.subr.mxu0 0.0
    %2708 = vmatpush1.msra.mxu0 0.0
    %2709 = vmatprep.subr.mxu0 0.0
    %2710 = vmatpush1.msra.mxu0 0.0
    %2711 = vmatprep.subr.mxu0 0.0
    %2712 = vmatpush1.msra.mxu0 0.0
    %2713 = vmatprep.subr.mxu0 0.0
    %2714 = vmatpush1.msra.mxu0 0.0
    %2715 = vmatprep.subr.mxu0 0.0
    %2716 = vmatpush1.msra.mxu0 0.0
    %2717 = vmatprep.subr.mxu0 0.0
    %2718 = vmatpush1.msra.mxu0 0.0
    %2719 = vmatprep.subr.mxu0 0.0
    %2720 = vmatpush1.msra.mxu0 0.0
    %2721 = vmatprep.subr.mxu0 0.0
    %2722 = vmatpush1.msra.mxu0 %v474
    %2723 = vmatprep.subr.mxu0 0.0
    %2724 = vmatpush1.msra.mxu0 %v473
    %2725 = vmatprep.subr.mxu0 0.0
    %2726 = vmatpush1.msra.mxu0 %v472
    %2727 = vmatprep.subr.mxu0 0.0
    %2728 = vmatpush1.msra.mxu0 %v471
    %2729 = vmatprep.subr.mxu0 0.0
    %2730 = vmatpush2.msra.mxu0 0.0
    %2731 = vmatprep.subr.mxu0 0.0
    %2732 = vmatpush2.msra.mxu0 0.0
    %2733 = vmatprep.subr.mxu0 0.0
    %2734 = vmatpush2.msra.mxu0 0.0
    %2735 = vmatprep.subr.mxu0 0.0
    %2736 = vmatpush2.msra.mxu0 0.0
    %2737 = vmatprep.subr.mxu0 0.0
    %2738 = vmatpush2.msra.mxu0 0.0
    %2739 = vmatprep.subr.mxu0 0.0
    %2740 = vmatpush2.msra.mxu0 0.0
    %2741 = vmatprep.subr.mxu0 0.0
    %2742 = vmatpush2.msra.mxu0 0.0
    %2743 = vmatprep.subr.mxu0 0.0
    %2744 = vmatpush2.msra.mxu0 0.0
    %2745 = vmatprep.subr.mxu0 0.0
    %2746 = vmatpush2.msra.mxu0 0.0
    %2747 = vmatprep.subr.mxu0 0.0
    %2748 = vmatpush2.msra.mxu0 0.0
    %2749 = vmatprep.subr.mxu0 0.0
    %2750 = vmatpush2.msra.mxu0 0.0
    %2751 = vmatprep.subr.mxu0 0.0
    %2752 = vmatpush2.msra.mxu0 0.0
    %2753 = vmatprep.subr.mxu0 0.0
    %2754 = vmatpush2.msra.mxu0 0.0
    %2755 = vmatprep.subr.mxu0 0.0
    %2756 = vmatpush2.msra.mxu0 0.0
    %2757 = vmatprep.subr.mxu0 0.0
    %2758 = vmatpush2.msra.mxu0 0.0
    %2759 = vmatprep.subr.mxu0 0.0
    %2760 = vmatpush2.msra.mxu0 0.0
    %2761 = vmatprep.mubr.f32.mxu0 0.0
    %2762 = vmatmul.mubr.f32.gmra.mxu0 %v2695
    %v2763 = vpop.f32.mrf.mxu0
    %v2764 = vadd.f32 0.0, %v2763
    %v2765 = vpop.f32.mrf.mxu0
    %2766 = vdwg.mxu0
    %v2767 = vadd.f32 %v2691, %v2764
    %v2768 = vtanh.pop %v2767
    %v2769 = vld [vmem:[#allocation2 + $0x58] sm:$0xff]
    %v2771 = vsel %vm434, %v2623, 0
    %2773 = vmatprep.subr.mxu0 0.0
    %2774 = vmatpush1.msra.mxu0 0.0
    %2775 = vmatprep.subr.mxu0 0.0
    %2776 = vmatpush1.msra.mxu0 0.0
    %2777 = vmatprep.subr.mxu0 0.0
    %2778 = vmatpush1.msra.mxu0 0.0
    %2779 = vmatprep.subr.mxu0 0.0
    %2780 = vmatpush1.msra.mxu0 0.0
    %2781 = vmatprep.subr.mxu0 0.0
    %2782 = vmatpush1.msra.mxu0 0.0
    %2783 = vmatprep.subr.mxu0 0.0
    %2784 = vmatpush1.msra.mxu0 0.0
    %2785 = vmatprep.subr.mxu0 0.0
    %2786 = vmatpush1.msra.mxu0 0.0
    %2787 = vmatprep.subr.mxu0 0.0
    %2788 = vmatpush1.msra.mxu0 0.0
    %2789 = vmatprep.subr.mxu0 0.0
    %2790 = vmatpush1.msra.mxu0 0.0
    %2791 = vmatprep.subr.mxu0 0.0
    %2792 = vmatpush1.msra.mxu0 0.0
    %2793 = vmatprep.subr.mxu0 0.0
    %2794 = vmatpush1.msra.mxu0 0.0
    %2795 = vmatprep.subr.mxu0 0.0
    %2796 = vmatpush1.msra.mxu0 0.0
    %2797 = vmatprep.subr.mxu0 0.0
    %2798 = vmatpush1.msra.mxu0 %v470
    %2799 = vmatprep.subr.mxu0 0.0
    %2800 = vmatpush1.msra.mxu0 %v469
    %2801 = vmatprep.subr.mxu0 0.0
    %2802 = vmatpush1.msra.mxu0 %v468
    %2803 = vmatprep.subr.mxu0 0.0
    %2804 = vmatpush1.msra.mxu0 %v467
    %2805 = vmatprep.subr.mxu0 0.0
    %2806 = vmatpush2.msra.mxu0 0.0
    %2807 = vmatprep.subr.mxu0 0.0
    %2808 = vmatpush2.msra.mxu0 0.0
    %2809 = vmatprep.subr.mxu0 0.0
    %2810 = vmatpush2.msra.mxu0 0.0
    %2811 = vmatprep.subr.mxu0 0.0
    %2812 = vmatpush2.msra.mxu0 0.0
    %2813 = vmatprep.subr.mxu0 0.0
    %2814 = vmatpush2.msra.mxu0 0.0
    %2815 = vmatprep.subr.mxu0 0.0
    %2816 = vmatpush2.msra.mxu0 0.0
    %2817 = vmatprep.subr.mxu0 0.0
    %2818 = vmatpush2.msra.mxu0 0.0
    %2819 = vmatprep.subr.mxu0 0.0
    %2820 = vmatpush2.msra.mxu0 0.0
    %2821 = vmatprep.subr.mxu0 0.0
    %2822 = vmatpush2.msra.mxu0 0.0
    %2823 = vmatprep.subr.mxu0 0.0
    %2824 = vmatpush2.msra.mxu0 0.0
    %2825 = vmatprep.subr.mxu0 0.0
    %2826 = vmatpush2.msra.mxu0 0.0
    %2827 = vmatprep.subr.mxu0 0.0
    %2828 = vmatpush2.msra.mxu0 0.0
    %2829 = vmatprep.subr.mxu0 0.0
    %2830 = vmatpush2.msra.mxu0 0.0
    %2831 = vmatprep.subr.mxu0 0.0
    %2832 = vmatpush2.msra.mxu0 0.0
    %2833 = vmatprep.subr.mxu0 0.0
    %2834 = vmatpush2.msra.mxu0 0.0
    %2835 = vmatprep.subr.mxu0 0.0
    %2836 = vmatpush2.msra.mxu0 0.0
    %2837 = vmatprep.mubr.f32.mxu0 0.0
    %2838 = vmatmul.mubr.f32.gmra.mxu0 %v2771
    %v2839 = vpop.f32.mrf.mxu0
    %v2840 = vadd.f32 0.0, %v2839
    %v2841 = vpop.f32.mrf.mxu0
    %2842 = vdwg.mxu0
    %v2843 = vadd.f32 %v2769, %v2840
    %v2844 = vtanh.pop %v2843
    %2845 = vmatprep.subr.mxu0 0.0
    %2846 = vmatpush1.msra.mxu0 0.0
    %2847 = vmatprep.subr.mxu0 0.0
    %2848 = vmatpush1.msra.mxu0 0.0
    %2849 = vmatprep.subr.mxu0 0.0
    %2850 = vmatpush1.msra.mxu0 0.0
    %2851 = vmatprep.subr.mxu0 0.0
    %2852 = vmatpush1.msra.mxu0 0.0
    %2853 = vmatprep.subr.mxu0 0.0
    %2854 = vmatpush1.msra.mxu0 0.0
    %2855 = vmatprep.subr.mxu0 0.0
    %2856 = vmatpush1.msra.mxu0 0.0
    %2857 = vmatprep.subr.mxu0 0.0
    %2858 = vmatpush1.msra.mxu0 0.0
    %2859 = vmatprep.subr.mxu0 0.0
    %2860 = vmatpush1.msra.mxu0 0.0
    %2861 = vmatprep.subr.mxu0 0.0
    %2862 = vmatpush1.msra.mxu0 0.0
    %2863 = vmatprep.subr.mxu0 0.0
    %2864 = vmatpush1.msra.mxu0 0.0
    %2865 = vmatprep.subr.mxu0 0.0
    %2866 = vmatpush1.msra.mxu0 0.0
    %2867 = vmatprep.subr.mxu0 0.0
    %2868 = vmatpush1.msra.mxu0 0.0
    %2869 = vmatprep.subr.mxu0 0.0
    %2870 = vmatpush1.msra.mxu0 %v478
    %2871 = vmatprep.subr.mxu0 0.0
    %2872 = vmatpush1.msra.mxu0 %v477
    %2873 = vmatprep.subr.mxu0 0.0
    %2874 = vmatpush1.msra.mxu0 %v476
    %2875 = vmatprep.subr.mxu0 0.0
    %2876 = vmatpush1.msra.mxu0 %v475
    %2877 = vmatprep.subr.mxu0 0.0
    %2878 = vmatpush2.msra.mxu0 0.0
    %2879 = vmatprep.subr.mxu0 0.0
    %2880 = vmatpush2.msra.mxu0 0.0
    %2881 = vmatprep.subr.mxu0 0.0
    %2882 = vmatpush2.msra.mxu0 0.0
    %2883 = vmatprep.subr.mxu0 0.0
    %2884 = vmatpush2.msra.mxu0 0.0
    %2885 = vmatprep.subr.mxu0 0.0
    %2886 = vmatpush2.msra.mxu0 0.0
    %2887 = vmatprep.subr.mxu0 0.0
    %2888 = vmatpush2.msra.mxu0 0.0
    %2889 = vmatprep.subr.mxu0 0.0
    %2890 = vmatpush2.msra.mxu0 0.0
    %2891 = vmatprep.subr.mxu0 0.0
    %2892 = vmatpush2.msra.mxu0 0.0
    %2893 = vmatprep.subr.mxu0 0.0
    %2894 = vmatpush2.msra.mxu0 0.0
    %2895 = vmatprep.subr.mxu0 0.0
    %2896 = vmatpush2.msra.mxu0 0.0
    %2897 = vmatprep.subr.mxu0 0.0
    %2898 = vmatpush2.msra.mxu0 0.0
    %2899 = vmatprep.subr.mxu0 0.0
    %2900 = vmatpush2.msra.mxu0 0.0
    %2901 = vmatprep.subr.mxu0 0.0
    %2902 = vmatpush2.msra.mxu0 0.0
    %2903 = vmatprep.subr.mxu0 0.0
    %2904 = vmatpush2.msra.mxu0 0.0
    %2905 = vmatprep.subr.mxu0 0.0
    %2906 = vmatpush2.msra.mxu0 0.0
    %2907 = vmatprep.subr.mxu0 0.0
    %2908 = vmatpush2.msra.mxu0 0.0
    %2909 = vmatprep.mubr.f32.mxu0 0.0
    %2910 = vmatmul.mubr.f32.gmra.mxu0 %v2771
    %v2911 = vpop.f32.mrf.mxu0
    %v2912 = vadd.f32 %v636, %v2911
    %v2913 = vpop.f32.mrf.mxu0
    %2914 = vdwg.mxu0
    %v2916 = vsel %vm434, %v2768, 0
    %2918 = vmatprep.subr.mxu0 0.0
    %2919 = vmatpush1.msra.mxu0 0.0
    %2920 = vmatprep.subr.mxu0 0.0
    %2921 = vmatpush1.msra.mxu0 0.0
    %2922 = vmatprep.subr.mxu0 0.0
    %2923 = vmatpush1.msra.mxu0 0.0
    %2924 = vmatprep.subr.mxu0 0.0
    %2925 = vmatpush1.msra.mxu0 0.0
    %2926 = vmatprep.subr.mxu0 0.0
    %2927 = vmatpush1.msra.mxu0 0.0
    %2928 = vmatprep.subr.mxu0 0.0
    %2929 = vmatpush1.msra.mxu0 0.0
    %2930 = vmatprep.subr.mxu0 0.0
    %2931 = vmatpush1.msra.mxu0 0.0
    %2932 = vmatprep.subr.mxu0 0.0
    %2933 = vmatpush1.msra.mxu0 0.0
    %2934 = vmatprep.subr.mxu0 0.0
    %2935 = vmatpush1.msra.mxu0 0.0
    %2936 = vmatprep.subr.mxu0 0.0
    %2937 = vmatpush1.msra.mxu0 0.0
    %2938 = vmatprep.subr.mxu0 0.0
    %2939 = vmatpush1.msra.mxu0 0.0
    %2940 = vmatprep.subr.mxu0 0.0
    %2941 = vmatpush1.msra.mxu0 0.0
    %2942 = vmatprep.subr.mxu0 0.0
    %2943 = vmatpush1.msra.mxu0 %v474
    %2944 = vmatprep.subr.mxu0 0.0
    %2945 = vmatpush1.msra.mxu0 %v473
    %2946 = vmatprep.subr.mxu0 0.0
    %2947 = vmatpush1.msra.mxu0 %v472
    %2948 = vmatprep.subr.mxu0 0.0
    %2949 = vmatpush1.msra.mxu0 %v471
    %2950 = vmatprep.subr.mxu0 0.0
    %2951 = vmatpush2.msra.mxu0 0.0
    %2952 = vmatprep.subr.mxu0 0.0
    %2953 = vmatpush2.msra.mxu0 0.0
    %2954 = vmatprep.subr.mxu0 0.0
    %2955 = vmatpush2.msra.mxu0 0.0
    %2956 = vmatprep.subr.mxu0 0.0
    %2957 = vmatpush2.msra.mxu0 0.0
    %2958 = vmatprep.subr.mxu0 0.0
    %2959 = vmatpush2.msra.mxu0 0.0
    %2960 = vmatprep.subr.mxu0 0.0
    %2961 = vmatpush2.msra.mxu0 0.0
    %2962 = vmatprep.subr.mxu0 0.0
    %2963 = vmatpush2.msra.mxu0 0.0
    %2964 = vmatprep.subr.mxu0 0.0
    %2965 = vmatpush2.msra.mxu0 0.0
    %2966 = vmatprep.subr.mxu0 0.0
    %2967 = vmatpush2.msra.mxu0 0.0
    %2968 = vmatprep.subr.mxu0 0.0
    %2969 = vmatpush2.msra.mxu0 0.0
    %2970 = vmatprep.subr.mxu0 0.0
    %2971 = vmatpush2.msra.mxu0 0.0
    %2972 = vmatprep.subr.mxu0 0.0
    %2973 = vmatpush2.msra.mxu0 0.0
    %2974 = vmatprep.subr.mxu0 0.0
    %2975 = vmatpush2.msra.mxu0 0.0
    %2976 = vmatprep.subr.mxu0 0.0
    %2977 = vmatpush2.msra.mxu0 0.0
    %2978 = vmatprep.subr.mxu0 0.0
    %2979 = vmatpush2.msra.mxu0 0.0
    %2980 = vmatprep.subr.mxu0 0.0
    %2981 = vmatpush2.msra.mxu0 0.0
    %2982 = vmatprep.mubr.f32.mxu0 0.0
    %2983 = vmatmul.mubr.f32.gmra.mxu0 %v2916
    %v2984 = vpop.f32.mrf.mxu0
    %v2985 = vadd.f32 0.0, %v2984
    %v2986 = vpop.f32.mrf.mxu0
    %2987 = vdwg.mxu0
    %v2988 = vadd.f32 %v2912, %v2985
    %v2989 = vtanh.pop %v2988
    %v2990 = vld [vmem:[#allocation2 + $0x60] sm:$0xff]
    %v2992 = vsel %vm434, %v2844, 0
    %2994 = vmatprep.subr.mxu0 0.0
    %2995 = vmatpush1.msra.mxu0 0.0
    %2996 = vmatprep.subr.mxu0 0.0
    %2997 = vmatpush1.msra.mxu0 0.0
    %2998 = vmatprep.subr.mxu0 0.0
    %2999 = vmatpush1.msra.mxu0 0.0
    %3000 = vmatprep.subr.mxu0 0.0
    %3001 = vmatpush1.msra.mxu0 0.0
    %3002 = vmatprep.subr.mxu0 0.0
    %3003 = vmatpush1.msra.mxu0 0.0
    %3004 = vmatprep.subr.mxu0 0.0
    %3005 = vmatpush1.msra.mxu0 0.0
    %3006 = vmatprep.subr.mxu0 0.0
    %3007 = vmatpush1.msra.mxu0 0.0
    %3008 = vmatprep.subr.mxu0 0.0
    %3009 = vmatpush1.msra.mxu0 0.0
    %3010 = vmatprep.subr.mxu0 0.0
    %3011 = vmatpush1.msra.mxu0 0.0
    %3012 = vmatprep.subr.mxu0 0.0
    %3013 = vmatpush1.msra.mxu0 0.0
    %3014 = vmatprep.subr.mxu0 0.0
    %3015 = vmatpush1.msra.mxu0 0.0
    %3016 = vmatprep.subr.mxu0 0.0
    %3017 = vmatpush1.msra.mxu0 0.0
    %3018 = vmatprep.subr.mxu0 0.0
    %3019 = vmatpush1.msra.mxu0 %v470
    %3020 = vmatprep.subr.mxu0 0.0
    %3021 = vmatpush1.msra.mxu0 %v469
    %3022 = vmatprep.subr.mxu0 0.0
    %3023 = vmatpush1.msra.mxu0 %v468
    %3024 = vmatprep.subr.mxu0 0.0
    %3025 = vmatpush1.msra.mxu0 %v467
    %3026 = vmatprep.subr.mxu0 0.0
    %3027 = vmatpush2.msra.mxu0 0.0
    %3028 = vmatprep.subr.mxu0 0.0
    %3029 = vmatpush2.msra.mxu0 0.0
    %3030 = vmatprep.subr.mxu0 0.0
    %3031 = vmatpush2.msra.mxu0 0.0
    %3032 = vmatprep.subr.mxu0 0.0
    %3033 = vmatpush2.msra.mxu0 0.0
    %3034 = vmatprep.subr.mxu0 0.0
    %3035 = vmatpush2.msra.mxu0 0.0
    %3036 = vmatprep.subr.mxu0 0.0
    %3037 = vmatpush2.msra.mxu0 0.0
    %3038 = vmatprep.subr.mxu0 0.0
    %3039 = vmatpush2.msra.mxu0 0.0
    %3040 = vmatprep.subr.mxu0 0.0
    %3041 = vmatpush2.msra.mxu0 0.0
    %3042 = vmatprep.subr.mxu0 0.0
    %3043 = vmatpush2.msra.mxu0 0.0
    %3044 = vmatprep.subr.mxu0 0.0
    %3045 = vmatpush2.msra.mxu0 0.0
    %3046 = vmatprep.subr.mxu0 0.0
    %3047 = vmatpush2.msra.mxu0 0.0
    %3048 = vmatprep.subr.mxu0 0.0
    %3049 = vmatpush2.msra.mxu0 0.0
    %3050 = vmatprep.subr.mxu0 0.0
    %3051 = vmatpush2.msra.mxu0 0.0
    %3052 = vmatprep.subr.mxu0 0.0
    %3053 = vmatpush2.msra.mxu0 0.0
    %3054 = vmatprep.subr.mxu0 0.0
    %3055 = vmatpush2.msra.mxu0 0.0
    %3056 = vmatprep.subr.mxu0 0.0
    %3057 = vmatpush2.msra.mxu0 0.0
    %3058 = vmatprep.mubr.f32.mxu0 0.0
    %3059 = vmatmul.mubr.f32.gmra.mxu0 %v2992
    %v3060 = vpop.f32.mrf.mxu0
    %v3061 = vadd.f32 0.0, %v3060
    %v3062 = vpop.f32.mrf.mxu0
    %3063 = vdwg.mxu0
    %v3064 = vadd.f32 %v2990, %v3061
    %v3065 = vtanh.pop %v3064
    %3066 = vmatprep.subr.mxu0 0.0
    %3067 = vmatpush1.msra.mxu0 0.0
    %3068 = vmatprep.subr.mxu0 0.0
    %3069 = vmatpush1.msra.mxu0 0.0
    %3070 = vmatprep.subr.mxu0 0.0
    %3071 = vmatpush1.msra.mxu0 0.0
    %3072 = vmatprep.subr.mxu0 0.0
    %3073 = vmatpush1.msra.mxu0 0.0
    %3074 = vmatprep.subr.mxu0 0.0
    %3075 = vmatpush1.msra.mxu0 0.0
    %3076 = vmatprep.subr.mxu0 0.0
    %3077 = vmatpush1.msra.mxu0 0.0
    %3078 = vmatprep.subr.mxu0 0.0
    %3079 = vmatpush1.msra.mxu0 0.0
    %3080 = vmatprep.subr.mxu0 0.0
    %3081 = vmatpush1.msra.mxu0 0.0
    %3082 = vmatprep.subr.mxu0 0.0
    %3083 = vmatpush1.msra.mxu0 0.0
    %3084 = vmatprep.subr.mxu0 0.0
    %3085 = vmatpush1.msra.mxu0 0.0
    %3086 = vmatprep.subr.mxu0 0.0
    %3087 = vmatpush1.msra.mxu0 0.0
    %3088 = vmatprep.subr.mxu0 0.0
    %3089 = vmatpush1.msra.mxu0 0.0
    %3090 = vmatprep.subr.mxu0 0.0
    %3091 = vmatpush1.msra.mxu0 %v478
    %3092 = vmatprep.subr.mxu0 0.0
    %3093 = vmatpush1.msra.mxu0 %v477
    %3094 = vmatprep.subr.mxu0 0.0
    %3095 = vmatpush1.msra.mxu0 %v476
    %3096 = vmatprep.subr.mxu0 0.0
    %3097 = vmatpush1.msra.mxu0 %v475
    %3098 = vmatprep.subr.mxu0 0.0
    %3099 = vmatpush2.msra.mxu0 0.0
    %3100 = vmatprep.subr.mxu0 0.0
    %3101 = vmatpush2.msra.mxu0 0.0
    %3102 = vmatprep.subr.mxu0 0.0
    %3103 = vmatpush2.msra.mxu0 0.0
    %3104 = vmatprep.subr.mxu0 0.0
    %3105 = vmatpush2.msra.mxu0 0.0
    %3106 = vmatprep.subr.mxu0 0.0
    %3107 = vmatpush2.msra.mxu0 0.0
    %3108 = vmatprep.subr.mxu0 0.0
    %3109 = vmatpush2.msra.mxu0 0.0
    %3110 = vmatprep.subr.mxu0 0.0
    %3111 = vmatpush2.msra.mxu0 0.0
    %3112 = vmatprep.subr.mxu0 0.0
    %3113 = vmatpush2.msra.mxu0 0.0
    %3114 = vmatprep.subr.mxu0 0.0
    %3115 = vmatpush2.msra.mxu0 0.0
    %3116 = vmatprep.subr.mxu0 0.0
    %3117 = vmatpush2.msra.mxu0 0.0
    %3118 = vmatprep.subr.mxu0 0.0
    %3119 = vmatpush2.msra.mxu0 0.0
    %3120 = vmatprep.subr.mxu0 0.0
    %3121 = vmatpush2.msra.mxu0 0.0
    %3122 = vmatprep.subr.mxu0 0.0
    %3123 = vmatpush2.msra.mxu0 0.0
    %3124 = vmatprep.subr.mxu0 0.0
    %3125 = vmatpush2.msra.mxu0 0.0
    %3126 = vmatprep.subr.mxu0 0.0
    %3127 = vmatpush2.msra.mxu0 0.0
    %3128 = vmatprep.subr.mxu0 0.0
    %3129 = vmatpush2.msra.mxu0 0.0
    %3130 = vmatprep.mubr.f32.mxu0 0.0
    %3131 = vmatmul.mubr.f32.gmra.mxu0 %v2992
    %v3132 = vpop.f32.mrf.mxu0
    %v3133 = vadd.f32 %v636, %v3132
    %v3134 = vpop.f32.mrf.mxu0
    %3135 = vdwg.mxu0
    %v3137 = vsel %vm434, %v2989, 0
    %3139 = vmatprep.subr.mxu0 0.0
    %3140 = vmatpush1.msra.mxu0 0.0
    %3141 = vmatprep.subr.mxu0 0.0
    %3142 = vmatpush1.msra.mxu0 0.0
    %3143 = vmatprep.subr.mxu0 0.0
    %3144 = vmatpush1.msra.mxu0 0.0
    %3145 = vmatprep.subr.mxu0 0.0
    %3146 = vmatpush1.msra.mxu0 0.0
    %3147 = vmatprep.subr.mxu0 0.0
    %3148 = vmatpush1.msra.mxu0 0.0
    %3149 = vmatprep.subr.mxu0 0.0
    %3150 = vmatpush1.msra.mxu0 0.0
    %3151 = vmatprep.subr.mxu0 0.0
    %3152 = vmatpush1.msra.mxu0 0.0
    %3153 = vmatprep.subr.mxu0 0.0
    %3154 = vmatpush1.msra.mxu0 0.0
    %3155 = vmatprep.subr.mxu0 0.0
    %3156 = vmatpush1.msra.mxu0 0.0
    %3157 = vmatprep.subr.mxu0 0.0
    %3158 = vmatpush1.msra.mxu0 0.0
    %3159 = vmatprep.subr.mxu0 0.0
    %3160 = vmatpush1.msra.mxu0 0.0
    %3161 = vmatprep.subr.mxu0 0.0
    %3162 = vmatpush1.msra.mxu0 0.0
    %3163 = vmatprep.subr.mxu0 0.0
    %3164 = vmatpush1.msra.mxu0 %v474
    %3165 = vmatprep.subr.mxu0 0.0
    %3166 = vmatpush1.msra.mxu0 %v473
    %3167 = vmatprep.subr.mxu0 0.0
    %3168 = vmatpush1.msra.mxu0 %v472
    %3169 = vmatprep.subr.mxu0 0.0
    %3170 = vmatpush1.msra.mxu0 %v471
    %3171 = vmatprep.subr.mxu0 0.0
    %3172 = vmatpush2.msra.mxu0 0.0
    %3173 = vmatprep.subr.mxu0 0.0
    %3174 = vmatpush2.msra.mxu0 0.0
    %3175 = vmatprep.subr.mxu0 0.0
    %3176 = vmatpush2.msra.mxu0 0.0
    %3177 = vmatprep.subr.mxu0 0.0
    %3178 = vmatpush2.msra.mxu0 0.0
    %3179 = vmatprep.subr.mxu0 0.0
    %3180 = vmatpush2.msra.mxu0 0.0
    %3181 = vmatprep.subr.mxu0 0.0
    %3182 = vmatpush2.msra.mxu0 0.0
    %3183 = vmatprep.subr.mxu0 0.0
    %3184 = vmatpush2.msra.mxu0 0.0
    %3185 = vmatprep.subr.mxu0 0.0
    %3186 = vmatpush2.msra.mxu0 0.0
    %3187 = vmatprep.subr.mxu0 0.0
    %3188 = vmatpush2.msra.mxu0 0.0
    %3189 = vmatprep.subr.mxu0 0.0
    %3190 = vmatpush2.msra.mxu0 0.0
    %3191 = vmatprep.subr.mxu0 0.0
    %3192 = vmatpush2.msra.mxu0 0.0
    %3193 = vmatprep.subr.mxu0 0.0
    %3194 = vmatpush2.msra.mxu0 0.0
    %3195 = vmatprep.subr.mxu0 0.0
    %3196 = vmatpush2.msra.mxu0 0.0
    %3197 = vmatprep.subr.mxu0 0.0
    %3198 = vmatpush2.msra.mxu0 0.0
    %3199 = vmatprep.subr.mxu0 0.0
    %3200 = vmatpush2.msra.mxu0 0.0
    %3201 = vmatprep.subr.mxu0 0.0
    %3202 = vmatpush2.msra.mxu0 0.0
    %3203 = vmatprep.mubr.f32.mxu0 0.0
    %3204 = vmatmul.mubr.f32.gmra.mxu0 %v3137
    %v3205 = vpop.f32.mrf.mxu0
    %v3206 = vadd.f32 0.0, %v3205
    %v3207 = vpop.f32.mrf.mxu0
    %3208 = vdwg.mxu0
    %v3209 = vadd.f32 %v3133, %v3206
    %v3210 = vtanh.pop %v3209
    %v3211 = vld [vmem:[#allocation2 + $0x68] sm:$0xff]
    %v3213 = vsel %vm434, %v3065, 0
    %3215 = vmatprep.subr.mxu0 0.0
    %3216 = vmatpush1.msra.mxu0 0.0
    %3217 = vmatprep.subr.mxu0 0.0
    %3218 = vmatpush1.msra.mxu0 0.0
    %3219 = vmatprep.subr.mxu0 0.0
    %3220 = vmatpush1.msra.mxu0 0.0
    %3221 = vmatprep.subr.mxu0 0.0
    %3222 = vmatpush1.msra.mxu0 0.0
    %3223 = vmatprep.subr.mxu0 0.0
    %3224 = vmatpush1.msra.mxu0 0.0
    %3225 = vmatprep.subr.mxu0 0.0
    %3226 = vmatpush1.msra.mxu0 0.0
    %3227 = vmatprep.subr.mxu0 0.0
    %3228 = vmatpush1.msra.mxu0 0.0
    %3229 = vmatprep.subr.mxu0 0.0
    %3230 = vmatpush1.msra.mxu0 0.0
    %3231 = vmatprep.subr.mxu0 0.0
    %3232 = vmatpush1.msra.mxu0 0.0
    %3233 = vmatprep.subr.mxu0 0.0
    %3234 = vmatpush1.msra.mxu0 0.0
    %3235 = vmatprep.subr.mxu0 0.0
    %3236 = vmatpush1.msra.mxu0 0.0
    %3237 = vmatprep.subr.mxu0 0.0
    %3238 = vmatpush1.msra.mxu0 0.0
    %3239 = vmatprep.subr.mxu0 0.0
    %3240 = vmatpush1.msra.mxu0 %v470
    %3241 = vmatprep.subr.mxu0 0.0
    %3242 = vmatpush1.msra.mxu0 %v469
    %3243 = vmatprep.subr.mxu0 0.0
    %3244 = vmatpush1.msra.mxu0 %v468
    %3245 = vmatprep.subr.mxu0 0.0
    %3246 = vmatpush1.msra.mxu0 %v467
    %3247 = vmatprep.subr.mxu0 0.0
    %3248 = vmatpush2.msra.mxu0 0.0
    %3249 = vmatprep.subr.mxu0 0.0
    %3250 = vmatpush2.msra.mxu0 0.0
    %3251 = vmatprep.subr.mxu0 0.0
    %3252 = vmatpush2.msra.mxu0 0.0
    %3253 = vmatprep.subr.mxu0 0.0
    %3254 = vmatpush2.msra.mxu0 0.0
    %3255 = vmatprep.subr.mxu0 0.0
    %3256 = vmatpush2.msra.mxu0 0.0
    %3257 = vmatprep.subr.mxu0 0.0
    %3258 = vmatpush2.msra.mxu0 0.0
    %3259 = vmatprep.subr.mxu0 0.0
    %3260 = vmatpush2.msra.mxu0 0.0
    %3261 = vmatprep.subr.mxu0 0.0
    %3262 = vmatpush2.msra.mxu0 0.0
    %3263 = vmatprep.subr.mxu0 0.0
    %3264 = vmatpush2.msra.mxu0 0.0
    %3265 = vmatprep.subr.mxu0 0.0
    %3266 = vmatpush2.msra.mxu0 0.0
    %3267 = vmatprep.subr.mxu0 0.0
    %3268 = vmatpush2.msra.mxu0 0.0
    %3269 = vmatprep.subr.mxu0 0.0
    %3270 = vmatpush2.msra.mxu0 0.0
    %3271 = vmatprep.subr.mxu0 0.0
    %3272 = vmatpush2.msra.mxu0 0.0
    %3273 = vmatprep.subr.mxu0 0.0
    %3274 = vmatpush2.msra.mxu0 0.0
    %3275 = vmatprep.subr.mxu0 0.0
    %3276 = vmatpush2.msra.mxu0 0.0
    %3277 = vmatprep.subr.mxu0 0.0
    %3278 = vmatpush2.msra.mxu0 0.0
    %3279 = vmatprep.mubr.f32.mxu0 0.0
    %3280 = vmatmul.mubr.f32.gmra.mxu0 %v3213
    %v3281 = vpop.f32.mrf.mxu0
    %v3282 = vadd.f32 0.0, %v3281
    %v3283 = vpop.f32.mrf.mxu0
    %3284 = vdwg.mxu0
    %v3285 = vadd.f32 %v3211, %v3282
    %v3286 = vtanh.pop %v3285
    %3287 = vmatprep.subr.mxu0 0.0
    %3288 = vmatpush1.msra.mxu0 0.0
    %3289 = vmatprep.subr.mxu0 0.0
    %3290 = vmatpush1.msra.mxu0 0.0
    %3291 = vmatprep.subr.mxu0 0.0
    %3292 = vmatpush1.msra.mxu0 0.0
    %3293 = vmatprep.subr.mxu0 0.0
    %3294 = vmatpush1.msra.mxu0 0.0
    %3295 = vmatprep.subr.mxu0 0.0
    %3296 = vmatpush1.msra.mxu0 0.0
    %3297 = vmatprep.subr.mxu0 0.0
    %3298 = vmatpush1.msra.mxu0 0.0
    %3299 = vmatprep.subr.mxu0 0.0
    %3300 = vmatpush1.msra.mxu0 0.0
    %3301 = vmatprep.subr.mxu0 0.0
    %3302 = vmatpush1.msra.mxu0 0.0
    %3303 = vmatprep.subr.mxu0 0.0
    %3304 = vmatpush1.msra.mxu0 0.0
    %3305 = vmatprep.subr.mxu0 0.0
    %3306 = vmatpush1.msra.mxu0 0.0
    %3307 = vmatprep.subr.mxu0 0.0
    %3308 = vmatpush1.msra.mxu0 0.0
    %3309 = vmatprep.subr.mxu0 0.0
    %3310 = vmatpush1.msra.mxu0 0.0
    %3311 = vmatprep.subr.mxu0 0.0
    %3312 = vmatpush1.msra.mxu0 %v478
    %3313 = vmatprep.subr.mxu0 0.0
    %3314 = vmatpush1.msra.mxu0 %v477
    %3315 = vmatprep.subr.mxu0 0.0
    %3316 = vmatpush1.msra.mxu0 %v476
    %3317 = vmatprep.subr.mxu0 0.0
    %3318 = vmatpush1.msra.mxu0 %v475
    %3319 = vmatprep.subr.mxu0 0.0
    %3320 = vmatpush2.msra.mxu0 0.0
    %3321 = vmatprep.subr.mxu0 0.0
    %3322 = vmatpush2.msra.mxu0 0.0
    %3323 = vmatprep.subr.mxu0 0.0
    %3324 = vmatpush2.msra.mxu0 0.0
    %3325 = vmatprep.subr.mxu0 0.0
    %3326 = vmatpush2.msra.mxu0 0.0
    %3327 = vmatprep.subr.mxu0 0.0
    %3328 = vmatpush2.msra.mxu0 0.0
    %3329 = vmatprep.subr.mxu0 0.0
    %3330 = vmatpush2.msra.mxu0 0.0
    %3331 = vmatprep.subr.mxu0 0.0
    %3332 = vmatpush2.msra.mxu0 0.0
    %3333 = vmatprep.subr.mxu0 0.0
    %3334 = vmatpush2.msra.mxu0 0.0
    %3335 = vmatprep.subr.mxu0 0.0
    %3336 = vmatpush2.msra.mxu0 0.0
    %3337 = vmatprep.subr.mxu0 0.0
    %3338 = vmatpush2.msra.mxu0 0.0
    %3339 = vmatprep.subr.mxu0 0.0
    %3340 = vmatpush2.msra.mxu0 0.0
    %3341 = vmatprep.subr.mxu0 0.0
    %3342 = vmatpush2.msra.mxu0 0.0
    %3343 = vmatprep.subr.mxu0 0.0
    %3344 = vmatpush2.msra.mxu0 0.0
    %3345 = vmatprep.subr.mxu0 0.0
    %3346 = vmatpush2.msra.mxu0 0.0
    %3347 = vmatprep.subr.mxu0 0.0
    %3348 = vmatpush2.msra.mxu0 0.0
    %3349 = vmatprep.subr.mxu0 0.0
    %3350 = vmatpush2.msra.mxu0 0.0
    %3351 = vmatprep.mubr.f32.mxu0 0.0
    %3352 = vmatmul.mubr.f32.gmra.mxu0 %v3213
    %v3353 = vpop.f32.mrf.mxu0
    %v3354 = vadd.f32 %v636, %v3353
    %v3355 = vpop.f32.mrf.mxu0
    %3356 = vdwg.mxu0
    %v3358 = vsel %vm434, %v3210, 0
    %3360 = vmatprep.subr.mxu0 0.0
    %3361 = vmatpush1.msra.mxu0 0.0
    %3362 = vmatprep.subr.mxu0 0.0
    %3363 = vmatpush1.msra.mxu0 0.0
    %3364 = vmatprep.subr.mxu0 0.0
    %3365 = vmatpush1.msra.mxu0 0.0
    %3366 = vmatprep.subr.mxu0 0.0
    %3367 = vmatpush1.msra.mxu0 0.0
    %3368 = vmatprep.subr.mxu0 0.0
    %3369 = vmatpush1.msra.mxu0 0.0
    %3370 = vmatprep.subr.mxu0 0.0
    %3371 = vmatpush1.msra.mxu0 0.0
    %3372 = vmatprep.subr.mxu0 0.0
    %3373 = vmatpush1.msra.mxu0 0.0
    %3374 = vmatprep.subr.mxu0 0.0
    %3375 = vmatpush1.msra.mxu0 0.0
    %3376 = vmatprep.subr.mxu0 0.0
    %3377 = vmatpush1.msra.mxu0 0.0
    %3378 = vmatprep.subr.mxu0 0.0
    %3379 = vmatpush1.msra.mxu0 0.0
    %3380 = vmatprep.subr.mxu0 0.0
    %3381 = vmatpush1.msra.mxu0 0.0
    %3382 = vmatprep.subr.mxu0 0.0
    %3383 = vmatpush1.msra.mxu0 0.0
    %3384 = vmatprep.subr.mxu0 0.0
    %3385 = vmatpush1.msra.mxu0 %v474
    %3386 = vmatprep.subr.mxu0 0.0
    %3387 = vmatpush1.msra.mxu0 %v473
    %3388 = vmatprep.subr.mxu0 0.0
    %3389 = vmatpush1.msra.mxu0 %v472
    %3390 = vmatprep.subr.mxu0 0.0
    %3391 = vmatpush1.msra.mxu0 %v471
    %3392 = vmatprep.subr.mxu0 0.0
    %3393 = vmatpush2.msra.mxu0 0.0
    %3394 = vmatprep.subr.mxu0 0.0
    %3395 = vmatpush2.msra.mxu0 0.0
    %3396 = vmatprep.subr.mxu0 0.0
    %3397 = vmatpush2.msra.mxu0 0.0
    %3398 = vmatprep.subr.mxu0 0.0
    %3399 = vmatpush2.msra.mxu0 0.0
    %3400 = vmatprep.subr.mxu0 0.0
    %3401 = vmatpush2.msra.mxu0 0.0
    %3402 = vmatprep.subr.mxu0 0.0
    %3403 = vmatpush2.msra.mxu0 0.0
    %3404 = vmatprep.subr.mxu0 0.0
    %3405 = vmatpush2.msra.mxu0 0.0
    %3406 = vmatprep.subr.mxu0 0.0
    %3407 = vmatpush2.msra.mxu0 0.0
    %3408 = vmatprep.subr.mxu0 0.0
    %3409 = vmatpush2.msra.mxu0 0.0
    %3410 = vmatprep.subr.mxu0 0.0
    %3411 = vmatpush2.msra.mxu0 0.0
    %3412 = vmatprep.subr.mxu0 0.0
    %3413 = vmatpush2.msra.mxu0 0.0
    %3414 = vmatprep.subr.mxu0 0.0
    %3415 = vmatpush2.msra.mxu0 0.0
    %3416 = vmatprep.subr.mxu0 0.0
    %3417 = vmatpush2.msra.mxu0 0.0
    %3418 = vmatprep.subr.mxu0 0.0
    %3419 = vmatpush2.msra.mxu0 0.0
    %3420 = vmatprep.subr.mxu0 0.0
    %3421 = vmatpush2.msra.mxu0 0.0
    %3422 = vmatprep.subr.mxu0 0.0
    %3423 = vmatpush2.msra.mxu0 0.0
    %3424 = vmatprep.mubr.f32.mxu0 0.0
    %3425 = vmatmul.mubr.f32.gmra.mxu0 %v3358
    %v3426 = vpop.f32.mrf.mxu0
    %v3427 = vadd.f32 0.0, %v3426
    %v3428 = vpop.f32.mrf.mxu0
    %3429 = vdwg.mxu0
    %v3430 = vadd.f32 %v3354, %v3427
    %v3431 = vtanh.pop %v3430
    %v3432 = vld [vmem:[#allocation2 + $0x70] sm:$0xff]
    %v3434 = vsel %vm434, %v3286, 0
    %3436 = vmatprep.subr.mxu0 0.0
    %3437 = vmatpush1.msra.mxu0 0.0
    %3438 = vmatprep.subr.mxu0 0.0
    %3439 = vmatpush1.msra.mxu0 0.0
    %3440 = vmatprep.subr.mxu0 0.0
    %3441 = vmatpush1.msra.mxu0 0.0
    %3442 = vmatprep.subr.mxu0 0.0
    %3443 = vmatpush1.msra.mxu0 0.0
    %3444 = vmatprep.subr.mxu0 0.0
    %3445 = vmatpush1.msra.mxu0 0.0
    %3446 = vmatprep.subr.mxu0 0.0
    %3447 = vmatpush1.msra.mxu0 0.0
    %3448 = vmatprep.subr.mxu0 0.0
    %3449 = vmatpush1.msra.mxu0 0.0
    %3450 = vmatprep.subr.mxu0 0.0
    %3451 = vmatpush1.msra.mxu0 0.0
    %3452 = vmatprep.subr.mxu0 0.0
    %3453 = vmatpush1.msra.mxu0 0.0
    %3454 = vmatprep.subr.mxu0 0.0
    %3455 = vmatpush1.msra.mxu0 0.0
    %3456 = vmatprep.subr.mxu0 0.0
    %3457 = vmatpush1.msra.mxu0 0.0
    %3458 = vmatprep.subr.mxu0 0.0
    %3459 = vmatpush1.msra.mxu0 0.0
    %3460 = vmatprep.subr.mxu0 0.0
    %3461 = vmatpush1.msra.mxu0 %v470
    %3462 = vmatprep.subr.mxu0 0.0
    %3463 = vmatpush1.msra.mxu0 %v469
    %3464 = vmatprep.subr.mxu0 0.0
    %3465 = vmatpush1.msra.mxu0 %v468
    %3466 = vmatprep.subr.mxu0 0.0
    %3467 = vmatpush1.msra.mxu0 %v467
    %3468 = vmatprep.subr.mxu0 0.0
    %3469 = vmatpush2.msra.mxu0 0.0
    %3470 = vmatprep.subr.mxu0 0.0
    %3471 = vmatpush2.msra.mxu0 0.0
    %3472 = vmatprep.subr.mxu0 0.0
    %3473 = vmatpush2.msra.mxu0 0.0
    %3474 = vmatprep.subr.mxu0 0.0
    %3475 = vmatpush2.msra.mxu0 0.0
    %3476 = vmatprep.subr.mxu0 0.0
    %3477 = vmatpush2.msra.mxu0 0.0
    %3478 = vmatprep.subr.mxu0 0.0
    %3479 = vmatpush2.msra.mxu0 0.0
    %3480 = vmatprep.subr.mxu0 0.0
    %3481 = vmatpush2.msra.mxu0 0.0
    %3482 = vmatprep.subr.mxu0 0.0
    %3483 = vmatpush2.msra.mxu0 0.0
    %3484 = vmatprep.subr.mxu0 0.0
    %3485 = vmatpush2.msra.mxu0 0.0
    %3486 = vmatprep.subr.mxu0 0.0
    %3487 = vmatpush2.msra.mxu0 0.0
    %3488 = vmatprep.subr.mxu0 0.0
    %3489 = vmatpush2.msra.mxu0 0.0
    %3490 = vmatprep.subr.mxu0 0.0
    %3491 = vmatpush2.msra.mxu0 0.0
    %3492 = vmatprep.subr.mxu0 0.0
    %3493 = vmatpush2.msra.mxu0 0.0
    %3494 = vmatprep.subr.mxu0 0.0
    %3495 = vmatpush2.msra.mxu0 0.0
    %3496 = vmatprep.subr.mxu0 0.0
    %3497 = vmatpush2.msra.mxu0 0.0
    %3498 = vmatprep.subr.mxu0 0.0
    %3499 = vmatpush2.msra.mxu0 0.0
    %3500 = vmatprep.mubr.f32.mxu0 0.0
    %3501 = vmatmul.mubr.f32.gmra.mxu0 %v3434
    %v3502 = vpop.f32.mrf.mxu0
    %v3503 = vadd.f32 0.0, %v3502
    %v3504 = vpop.f32.mrf.mxu0
    %3505 = vdwg.mxu0
    %v3506 = vadd.f32 %v3432, %v3503
    %v3507 = vtanh.pop %v3506
    %3508 = vmatprep.subr.mxu0 0.0
    %3509 = vmatpush1.msra.mxu0 0.0
    %3510 = vmatprep.subr.mxu0 0.0
    %3511 = vmatpush1.msra.mxu0 0.0
    %3512 = vmatprep.subr.mxu0 0.0
    %3513 = vmatpush1.msra.mxu0 0.0
    %3514 = vmatprep.subr.mxu0 0.0
    %3515 = vmatpush1.msra.mxu0 0.0
    %3516 = vmatprep.subr.mxu0 0.0
    %3517 = vmatpush1.msra.mxu0 0.0
    %3518 = vmatprep.subr.mxu0 0.0
    %3519 = vmatpush1.msra.mxu0 0.0
    %3520 = vmatprep.subr.mxu0 0.0
    %3521 = vmatpush1.msra.mxu0 0.0
    %3522 = vmatprep.subr.mxu0 0.0
    %3523 = vmatpush1.msra.mxu0 0.0
    %3524 = vmatprep.subr.mxu0 0.0
    %3525 = vmatpush1.msra.mxu0 0.0
    %3526 = vmatprep.subr.mxu0 0.0
    %3527 = vmatpush1.msra.mxu0 0.0
    %3528 = vmatprep.subr.mxu0 0.0
    %3529 = vmatpush1.msra.mxu0 0.0
    %3530 = vmatprep.subr.mxu0 0.0
    %3531 = vmatpush1.msra.mxu0 0.0
    %3532 = vmatprep.subr.mxu0 0.0
    %3533 = vmatpush1.msra.mxu0 %v478
    %3534 = vmatprep.subr.mxu0 0.0
    %3535 = vmatpush1.msra.mxu0 %v477
    %3536 = vmatprep.subr.mxu0 0.0
    %3537 = vmatpush1.msra.mxu0 %v476
    %3538 = vmatprep.subr.mxu0 0.0
    %3539 = vmatpush1.msra.mxu0 %v475
    %3540 = vmatprep.subr.mxu0 0.0
    %3541 = vmatpush2.msra.mxu0 0.0
    %3542 = vmatprep.subr.mxu0 0.0
    %3543 = vmatpush2.msra.mxu0 0.0
    %3544 = vmatprep.subr.mxu0 0.0
    %3545 = vmatpush2.msra.mxu0 0.0
    %3546 = vmatprep.subr.mxu0 0.0
    %3547 = vmatpush2.msra.mxu0 0.0
    %3548 = vmatprep.subr.mxu0 0.0
    %3549 = vmatpush2.msra.mxu0 0.0
    %3550 = vmatprep.subr.mxu0 0.0
    %3551 = vmatpush2.msra.mxu0 0.0
    %3552 = vmatprep.subr.mxu0 0.0
    %3553 = vmatpush2.msra.mxu0 0.0
    %3554 = vmatprep.subr.mxu0 0.0
    %3555 = vmatpush2.msra.mxu0 0.0
    %3556 = vmatprep.subr.mxu0 0.0
    %3557 = vmatpush2.msra.mxu0 0.0
    %3558 = vmatprep.subr.mxu0 0.0
    %3559 = vmatpush2.msra.mxu0 0.0
    %3560 = vmatprep.subr.mxu0 0.0
    %3561 = vmatpush2.msra.mxu0 0.0
    %3562 = vmatprep.subr.mxu0 0.0
    %3563 = vmatpush2.msra.mxu0 0.0
    %3564 = vmatprep.subr.mxu0 0.0
    %3565 = vmatpush2.msra.mxu0 0.0
    %3566 = vmatprep.subr.mxu0 0.0
    %3567 = vmatpush2.msra.mxu0 0.0
    %3568 = vmatprep.subr.mxu0 0.0
    %3569 = vmatpush2.msra.mxu0 0.0
    %3570 = vmatprep.subr.mxu0 0.0
    %3571 = vmatpush2.msra.mxu0 0.0
    %3572 = vmatprep.mubr.f32.mxu0 0.0
    %3573 = vmatmul.mubr.f32.gmra.mxu0 %v3434
    %v3574 = vpop.f32.mrf.mxu0
    %v3575 = vadd.f32 %v636, %v3574
    %v3576 = vpop.f32.mrf.mxu0
    %3577 = vdwg.mxu0
    %v3579 = vsel %vm434, %v3431, 0
    %3581 = vmatprep.subr.mxu0 0.0
    %3582 = vmatpush1.msra.mxu0 0.0
    %3583 = vmatprep.subr.mxu0 0.0
    %3584 = vmatpush1.msra.mxu0 0.0
    %3585 = vmatprep.subr.mxu0 0.0
    %3586 = vmatpush1.msra.mxu0 0.0
    %3587 = vmatprep.subr.mxu0 0.0
    %3588 = vmatpush1.msra.mxu0 0.0
    %3589 = vmatprep.subr.mxu0 0.0
    %3590 = vmatpush1.msra.mxu0 0.0
    %3591 = vmatprep.subr.mxu0 0.0
    %3592 = vmatpush1.msra.mxu0 0.0
    %3593 = vmatprep.subr.mxu0 0.0
    %3594 = vmatpush1.msra.mxu0 0.0
    %3595 = vmatprep.subr.mxu0 0.0
    %3596 = vmatpush1.msra.mxu0 0.0
    %3597 = vmatprep.subr.mxu0 0.0
    %3598 = vmatpush1.msra.mxu0 0.0
    %3599 = vmatprep.subr.mxu0 0.0
    %3600 = vmatpush1.msra.mxu0 0.0
    %3601 = vmatprep.subr.mxu0 0.0
    %3602 = vmatpush1.msra.mxu0 0.0
    %3603 = vmatprep.subr.mxu0 0.0
    %3604 = vmatpush1.msra.mxu0 0.0
    %3605 = vmatprep.subr.mxu0 0.0
    %3606 = vmatpush1.msra.mxu0 %v474
    %3607 = vmatprep.subr.mxu0 0.0
    %3608 = vmatpush1.msra.mxu0 %v473
    %3609 = vmatprep.subr.mxu0 0.0
    %3610 = vmatpush1.msra.mxu0 %v472
    %3611 = vmatprep.subr.mxu0 0.0
    %3612 = vmatpush1.msra.mxu0 %v471
    %3613 = vmatprep.subr.mxu0 0.0
    %3614 = vmatpush2.msra.mxu0 0.0
    %3615 = vmatprep.subr.mxu0 0.0
    %3616 = vmatpush2.msra.mxu0 0.0
    %3617 = vmatprep.subr.mxu0 0.0
    %3618 = vmatpush2.msra.mxu0 0.0
    %3619 = vmatprep.subr.mxu0 0.0
    %3620 = vmatpush2.msra.mxu0 0.0
    %3621 = vmatprep.subr.mxu0 0.0
    %3622 = vmatpush2.msra.mxu0 0.0
    %3623 = vmatprep.subr.mxu0 0.0
    %3624 = vmatpush2.msra.mxu0 0.0
    %3625 = vmatprep.subr.mxu0 0.0
    %3626 = vmatpush2.msra.mxu0 0.0
    %3627 = vmatprep.subr.mxu0 0.0
    %3628 = vmatpush2.msra.mxu0 0.0
    %3629 = vmatprep.subr.mxu0 0.0
    %3630 = vmatpush2.msra.mxu0 0.0
    %3631 = vmatprep.subr.mxu0 0.0
    %3632 = vmatpush2.msra.mxu0 0.0
    %3633 = vmatprep.subr.mxu0 0.0
    %3634 = vmatpush2.msra.mxu0 0.0
    %3635 = vmatprep.subr.mxu0 0.0
    %3636 = vmatpush2.msra.mxu0 0.0
    %3637 = vmatprep.subr.mxu0 0.0
    %3638 = vmatpush2.msra.mxu0 0.0
    %3639 = vmatprep.subr.mxu0 0.0
    %3640 = vmatpush2.msra.mxu0 0.0
    %3641 = vmatprep.subr.mxu0 0.0
    %3642 = vmatpush2.msra.mxu0 0.0
    %3643 = vmatprep.subr.mxu0 0.0
    %3644 = vmatpush2.msra.mxu0 0.0
    %3645 = vmatprep.mubr.f32.mxu0 0.0
    %3646 = vmatmul.mubr.f32.gmra.mxu0 %v3579
    %v3647 = vpop.f32.mrf.mxu0
    %v3648 = vadd.f32 0.0, %v3647
    %v3649 = vpop.f32.mrf.mxu0
    %3650 = vdwg.mxu0
    %v3651 = vadd.f32 %v3575, %v3648
    %v3652 = vtanh.pop %v3651
    %v3653 = vld [vmem:[#allocation2 + $0x78] sm:$0xff]
    %v3655 = vsel %vm434, %v3507, 0
    %3657 = vmatprep.subr.mxu0 0.0
    %3658 = vmatpush1.msra.mxu0 0.0
    %3659 = vmatprep.subr.mxu0 0.0
    %3660 = vmatpush1.msra.mxu0 0.0
    %3661 = vmatprep.subr.mxu0 0.0
    %3662 = vmatpush1.msra.mxu0 0.0
    %3663 = vmatprep.subr.mxu0 0.0
    %3664 = vmatpush1.msra.mxu0 0.0
    %3665 = vmatprep.subr.mxu0 0.0
    %3666 = vmatpush1.msra.mxu0 0.0
    %3667 = vmatprep.subr.mxu0 0.0
    %3668 = vmatpush1.msra.mxu0 0.0
    %3669 = vmatprep.subr.mxu0 0.0
    %3670 = vmatpush1.msra.mxu0 0.0
    %3671 = vmatprep.subr.mxu0 0.0
    %3672 = vmatpush1.msra.mxu0 0.0
    %3673 = vmatprep.subr.mxu0 0.0
    %3674 = vmatpush1.msra.mxu0 0.0
    %3675 = vmatprep.subr.mxu0 0.0
    %3676 = vmatpush1.msra.mxu0 0.0
    %3677 = vmatprep.subr.mxu0 0.0
    %3678 = vmatpush1.msra.mxu0 0.0
    %3679 = vmatprep.subr.mxu0 0.0
    %3680 = vmatpush1.msra.mxu0 0.0
    %3681 = vmatprep.subr.mxu0 0.0
    %3682 = vmatpush1.msra.mxu0 %v470
    %3683 = vmatprep.subr.mxu0 0.0
    %3684 = vmatpush1.msra.mxu0 %v469
    %3685 = vmatprep.subr.mxu0 0.0
    %3686 = vmatpush1.msra.mxu0 %v468
    %3687 = vmatprep.subr.mxu0 0.0
    %3688 = vmatpush1.msra.mxu0 %v467
    %3689 = vmatprep.subr.mxu0 0.0
    %3690 = vmatpush2.msra.mxu0 0.0
    %3691 = vmatprep.subr.mxu0 0.0
    %3692 = vmatpush2.msra.mxu0 0.0
    %3693 = vmatprep.subr.mxu0 0.0
    %3694 = vmatpush2.msra.mxu0 0.0
    %3695 = vmatprep.subr.mxu0 0.0
    %3696 = vmatpush2.msra.mxu0 0.0
    %3697 = vmatprep.subr.mxu0 0.0
    %3698 = vmatpush2.msra.mxu0 0.0
    %3699 = vmatprep.subr.mxu0 0.0
    %3700 = vmatpush2.msra.mxu0 0.0
    %3701 = vmatprep.subr.mxu0 0.0
    %3702 = vmatpush2.msra.mxu0 0.0
    %3703 = vmatprep.subr.mxu0 0.0
    %3704 = vmatpush2.msra.mxu0 0.0
    %3705 = vmatprep.subr.mxu0 0.0
    %3706 = vmatpush2.msra.mxu0 0.0
    %3707 = vmatprep.subr.mxu0 0.0
    %3708 = vmatpush2.msra.mxu0 0.0
    %3709 = vmatprep.subr.mxu0 0.0
    %3710 = vmatpush2.msra.mxu0 0.0
    %3711 = vmatprep.subr.mxu0 0.0
    %3712 = vmatpush2.msra.mxu0 0.0
    %3713 = vmatprep.subr.mxu0 0.0
    %3714 = vmatpush2.msra.mxu0 0.0
    %3715 = vmatprep.subr.mxu0 0.0
    %3716 = vmatpush2.msra.mxu0 0.0
    %3717 = vmatprep.subr.mxu0 0.0
    %3718 = vmatpush2.msra.mxu0 0.0
    %3719 = vmatprep.subr.mxu0 0.0
    %3720 = vmatpush2.msra.mxu0 0.0
    %3721 = vmatprep.mubr.f32.mxu0 0.0
    %3722 = vmatmul.mubr.f32.gmra.mxu0 %v3655
    %v3723 = vpop.f32.mrf.mxu0
    %v3724 = vadd.f32 0.0, %v3723
    %v3725 = vpop.f32.mrf.mxu0
    %3726 = vdwg.mxu0
    %v3727 = vadd.f32 %v3653, %v3724
    %v3728 = vtanh.pop %v3727
    %3729 = vmatprep.subr.mxu0 0.0
    %3730 = vmatpush1.msra.mxu0 0.0
    %3731 = vmatprep.subr.mxu0 0.0
    %3732 = vmatpush1.msra.mxu0 0.0
    %3733 = vmatprep.subr.mxu0 0.0
    %3734 = vmatpush1.msra.mxu0 0.0
    %3735 = vmatprep.subr.mxu0 0.0
    %3736 = vmatpush1.msra.mxu0 0.0
    %3737 = vmatprep.subr.mxu0 0.0
    %3738 = vmatpush1.msra.mxu0 0.0
    %3739 = vmatprep.subr.mxu0 0.0
    %3740 = vmatpush1.msra.mxu0 0.0
    %3741 = vmatprep.subr.mxu0 0.0
    %3742 = vmatpush1.msra.mxu0 0.0
    %3743 = vmatprep.subr.mxu0 0.0
    %3744 = vmatpush1.msra.mxu0 0.0
    %3745 = vmatprep.subr.mxu0 0.0
    %3746 = vmatpush1.msra.mxu0 0.0
    %3747 = vmatprep.subr.mxu0 0.0
    %3748 = vmatpush1.msra.mxu0 0.0
    %3749 = vmatprep.subr.mxu0 0.0
    %3750 = vmatpush1.msra.mxu0 0.0
    %3751 = vmatprep.subr.mxu0 0.0
    %3752 = vmatpush1.msra.mxu0 0.0
    %3753 = vmatprep.subr.mxu0 0.0
    %3754 = vmatpush1.msra.mxu0 %v478
    %3755 = vmatprep.subr.mxu0 0.0
    %3756 = vmatpush1.msra.mxu0 %v477
    %3757 = vmatprep.subr.mxu0 0.0
    %3758 = vmatpush1.msra.mxu0 %v476
    %3759 = vmatprep.subr.mxu0 0.0
    %3760 = vmatpush1.msra.mxu0 %v475
    %3761 = vmatprep.subr.mxu0 0.0
    %3762 = vmatpush2.msra.mxu0 0.0
    %3763 = vmatprep.subr.mxu0 0.0
    %3764 = vmatpush2.msra.mxu0 0.0
    %3765 = vmatprep.subr.mxu0 0.0
    %3766 = vmatpush2.msra.mxu0 0.0
    %3767 = vmatprep.subr.mxu0 0.0
    %3768 = vmatpush2.msra.mxu0 0.0
    %3769 = vmatprep.subr.mxu0 0.0
    %3770 = vmatpush2.msra.mxu0 0.0
    %3771 = vmatprep.subr.mxu0 0.0
    %3772 = vmatpush2.msra.mxu0 0.0
    %3773 = vmatprep.subr.mxu0 0.0
    %3774 = vmatpush2.msra.mxu0 0.0
    %3775 = vmatprep.subr.mxu0 0.0
    %3776 = vmatpush2.msra.mxu0 0.0
    %3777 = vmatprep.subr.mxu0 0.0
    %3778 = vmatpush2.msra.mxu0 0.0
    %3779 = vmatprep.subr.mxu0 0.0
    %3780 = vmatpush2.msra.mxu0 0.0
    %3781 = vmatprep.subr.mxu0 0.0
    %3782 = vmatpush2.msra.mxu0 0.0
    %3783 = vmatprep.subr.mxu0 0.0
    %3784 = vmatpush2.msra.mxu0 0.0
    %3785 = vmatprep.subr.mxu0 0.0
    %3786 = vmatpush2.msra.mxu0 0.0
    %3787 = vmatprep.subr.mxu0 0.0
    %3788 = vmatpush2.msra.mxu0 0.0
    %3789 = vmatprep.subr.mxu0 0.0
    %3790 = vmatpush2.msra.mxu0 0.0
    %3791 = vmatprep.subr.mxu0 0.0
    %3792 = vmatpush2.msra.mxu0 0.0
    %3793 = vmatprep.mubr.f32.mxu0 0.0
    %3794 = vmatmul.mubr.f32.gmra.mxu0 %v3655
    %v3795 = vpop.f32.mrf.mxu0
    %v3796 = vadd.f32 %v636, %v3795
    %v3797 = vpop.f32.mrf.mxu0
    %3798 = vdwg.mxu0
    %v3800 = vsel %vm434, %v3652, 0
    %3802 = vmatprep.subr.mxu0 0.0
    %3803 = vmatpush1.msra.mxu0 0.0
    %3804 = vmatprep.subr.mxu0 0.0
    %3805 = vmatpush1.msra.mxu0 0.0
    %3806 = vmatprep.subr.mxu0 0.0
    %3807 = vmatpush1.msra.mxu0 0.0
    %3808 = vmatprep.subr.mxu0 0.0
    %3809 = vmatpush1.msra.mxu0 0.0
    %3810 = vmatprep.subr.mxu0 0.0
    %3811 = vmatpush1.msra.mxu0 0.0
    %3812 = vmatprep.subr.mxu0 0.0
    %3813 = vmatpush1.msra.mxu0 0.0
    %3814 = vmatprep.subr.mxu0 0.0
    %3815 = vmatpush1.msra.mxu0 0.0
    %3816 = vmatprep.subr.mxu0 0.0
    %3817 = vmatpush1.msra.mxu0 0.0
    %3818 = vmatprep.subr.mxu0 0.0
    %3819 = vmatpush1.msra.mxu0 0.0
    %3820 = vmatprep.subr.mxu0 0.0
    %3821 = vmatpush1.msra.mxu0 0.0
    %3822 = vmatprep.subr.mxu0 0.0
    %3823 = vmatpush1.msra.mxu0 0.0
    %3824 = vmatprep.subr.mxu0 0.0
    %3825 = vmatpush1.msra.mxu0 0.0
    %3826 = vmatprep.subr.mxu0 0.0
    %3827 = vmatpush1.msra.mxu0 %v474
    %3828 = vmatprep.subr.mxu0 0.0
    %3829 = vmatpush1.msra.mxu0 %v473
    %3830 = vmatprep.subr.mxu0 0.0
    %3831 = vmatpush1.msra.mxu0 %v472
    %3832 = vmatprep.subr.mxu0 0.0
    %3833 = vmatpush1.msra.mxu0 %v471
    %3834 = vmatprep.subr.mxu0 0.0
    %3835 = vmatpush2.msra.mxu0 0.0
    %3836 = vmatprep.subr.mxu0 0.0
    %3837 = vmatpush2.msra.mxu0 0.0
    %3838 = vmatprep.subr.mxu0 0.0
    %3839 = vmatpush2.msra.mxu0 0.0
    %3840 = vmatprep.subr.mxu0 0.0
    %3841 = vmatpush2.msra.mxu0 0.0
    %3842 = vmatprep.subr.mxu0 0.0
    %3843 = vmatpush2.msra.mxu0 0.0
    %3844 = vmatprep.subr.mxu0 0.0
    %3845 = vmatpush2.msra.mxu0 0.0
    %3846 = vmatprep.subr.mxu0 0.0
    %3847 = vmatpush2.msra.mxu0 0.0
    %3848 = vmatprep.subr.mxu0 0.0
    %3849 = vmatpush2.msra.mxu0 0.0
    %3850 = vmatprep.subr.mxu0 0.0
    %3851 = vmatpush2.msra.mxu0 0.0
    %3852 = vmatprep.subr.mxu0 0.0
    %3853 = vmatpush2.msra.mxu0 0.0
    %3854 = vmatprep.subr.mxu0 0.0
    %3855 = vmatpush2.msra.mxu0 0.0
    %3856 = vmatprep.subr.mxu0 0.0
    %3857 = vmatpush2.msra.mxu0 0.0
    %3858 = vmatprep.subr.mxu0 0.0
    %3859 = vmatpush2.msra.mxu0 0.0
    %3860 = vmatprep.subr.mxu0 0.0
    %3861 = vmatpush2.msra.mxu0 0.0
    %3862 = vmatprep.subr.mxu0 0.0
    %3863 = vmatpush2.msra.mxu0 0.0
    %3864 = vmatprep.subr.mxu0 0.0
    %3865 = vmatpush2.msra.mxu0 0.0
    %3866 = vmatprep.mubr.f32.mxu0 0.0
    %3867 = vmatmul.mubr.f32.gmra.mxu0 %v3800
    %v3868 = vpop.f32.mrf.mxu0
    %v3869 = vadd.f32 0.0, %v3868
    %v3870 = vpop.f32.mrf.mxu0
    %3871 = vdwg.mxu0
    %v3872 = vadd.f32 %v3796, %v3869
    %v3873 = vtanh.pop %v3872
    %v3874 = vld [vmem:[#allocation2 + $0x80] sm:$0xff]
    %v3876 = vsel %vm434, %v3728, 0
    %3878 = vmatprep.subr.mxu0 0.0
    %3879 = vmatpush1.msra.mxu0 0.0
    %3880 = vmatprep.subr.mxu0 0.0
    %3881 = vmatpush1.msra.mxu0 0.0
    %3882 = vmatprep.subr.mxu0 0.0
    %3883 = vmatpush1.msra.mxu0 0.0
    %3884 = vmatprep.subr.mxu0 0.0
    %3885 = vmatpush1.msra.mxu0 0.0
    %3886 = vmatprep.subr.mxu0 0.0
    %3887 = vmatpush1.msra.mxu0 0.0
    %3888 = vmatprep.subr.mxu0 0.0
    %3889 = vmatpush1.msra.mxu0 0.0
    %3890 = vmatprep.subr.mxu0 0.0
    %3891 = vmatpush1.msra.mxu0 0.0
    %3892 = vmatprep.subr.mxu0 0.0
    %3893 = vmatpush1.msra.mxu0 0.0
    %3894 = vmatprep.subr.mxu0 0.0
    %3895 = vmatpush1.msra.mxu0 0.0
    %3896 = vmatprep.subr.mxu0 0.0
    %3897 = vmatpush1.msra.mxu0 0.0
    %3898 = vmatprep.subr.mxu0 0.0
    %3899 = vmatpush1.msra.mxu0 0.0
    %3900 = vmatprep.subr.mxu0 0.0
    %3901 = vmatpush1.msra.mxu0 0.0
    %3902 = vmatprep.subr.mxu0 0.0
    %3903 = vmatpush1.msra.mxu0 %v470
    %3904 = vmatprep.subr.mxu0 0.0
    %3905 = vmatpush1.msra.mxu0 %v469
    %3906 = vmatprep.subr.mxu0 0.0
    %3907 = vmatpush1.msra.mxu0 %v468
    %3908 = vmatprep.subr.mxu0 0.0
    %3909 = vmatpush1.msra.mxu0 %v467
    %3910 = vmatprep.subr.mxu0 0.0
    %3911 = vmatpush2.msra.mxu0 0.0
    %3912 = vmatprep.subr.mxu0 0.0
    %3913 = vmatpush2.msra.mxu0 0.0
    %3914 = vmatprep.subr.mxu0 0.0
    %3915 = vmatpush2.msra.mxu0 0.0
    %3916 = vmatprep.subr.mxu0 0.0
    %3917 = vmatpush2.msra.mxu0 0.0
    %3918 = vmatprep.subr.mxu0 0.0
    %3919 = vmatpush2.msra.mxu0 0.0
    %3920 = vmatprep.subr.mxu0 0.0
    %3921 = vmatpush2.msra.mxu0 0.0
    %3922 = vmatprep.subr.mxu0 0.0
    %3923 = vmatpush2.msra.mxu0 0.0
    %3924 = vmatprep.subr.mxu0 0.0
    %3925 = vmatpush2.msra.mxu0 0.0
    %3926 = vmatprep.subr.mxu0 0.0
    %3927 = vmatpush2.msra.mxu0 0.0
    %3928 = vmatprep.subr.mxu0 0.0
    %3929 = vmatpush2.msra.mxu0 0.0
    %3930 = vmatprep.subr.mxu0 0.0
    %3931 = vmatpush2.msra.mxu0 0.0
    %3932 = vmatprep.subr.mxu0 0.0
    %3933 = vmatpush2.msra.mxu0 0.0
    %3934 = vmatprep.subr.mxu0 0.0
    %3935 = vmatpush2.msra.mxu0 0.0
    %3936 = vmatprep.subr.mxu0 0.0
    %3937 = vmatpush2.msra.mxu0 0.0
    %3938 = vmatprep.subr.mxu0 0.0
    %3939 = vmatpush2.msra.mxu0 0.0
    %3940 = vmatprep.subr.mxu0 0.0
    %3941 = vmatpush2.msra.mxu0 0.0
    %3942 = vmatprep.mubr.f32.mxu0 0.0
    %3943 = vmatmul.mubr.f32.gmra.mxu0 %v3876
    %v3944 = vpop.f32.mrf.mxu0
    %v3945 = vadd.f32 0.0, %v3944
    %v3946 = vpop.f32.mrf.mxu0
    %3947 = vdwg.mxu0
    %v3948 = vadd.f32 %v3874, %v3945
    %v3949 = vtanh.pop %v3948
    %3950 = vmatprep.subr.mxu0 0.0
    %3951 = vmatpush1.msra.mxu0 0.0
    %3952 = vmatprep.subr.mxu0 0.0
    %3953 = vmatpush1.msra.mxu0 0.0
    %3954 = vmatprep.subr.mxu0 0.0
    %3955 = vmatpush1.msra.mxu0 0.0
    %3956 = vmatprep.subr.mxu0 0.0
    %3957 = vmatpush1.msra.mxu0 0.0
    %3958 = vmatprep.subr.mxu0 0.0
    %3959 = vmatpush1.msra.mxu0 0.0
    %3960 = vmatprep.subr.mxu0 0.0
    %3961 = vmatpush1.msra.mxu0 0.0
    %3962 = vmatprep.subr.mxu0 0.0
    %3963 = vmatpush1.msra.mxu0 0.0
    %3964 = vmatprep.subr.mxu0 0.0
    %3965 = vmatpush1.msra.mxu0 0.0
    %3966 = vmatprep.subr.mxu0 0.0
    %3967 = vmatpush1.msra.mxu0 0.0
    %3968 = vmatprep.subr.mxu0 0.0
    %3969 = vmatpush1.msra.mxu0 0.0
    %3970 = vmatprep.subr.mxu0 0.0
    %3971 = vmatpush1.msra.mxu0 0.0
    %3972 = vmatprep.subr.mxu0 0.0
    %3973 = vmatpush1.msra.mxu0 0.0
    %3974 = vmatprep.subr.mxu0 0.0
    %3975 = vmatpush1.msra.mxu0 %v478
    %3976 = vmatprep.subr.mxu0 0.0
    %3977 = vmatpush1.msra.mxu0 %v477
    %3978 = vmatprep.subr.mxu0 0.0
    %3979 = vmatpush1.msra.mxu0 %v476
    %3980 = vmatprep.subr.mxu0 0.0
    %3981 = vmatpush1.msra.mxu0 %v475
    %3982 = vmatprep.subr.mxu0 0.0
    %3983 = vmatpush2.msra.mxu0 0.0
    %3984 = vmatprep.subr.mxu0 0.0
    %3985 = vmatpush2.msra.mxu0 0.0
    %3986 = vmatprep.subr.mxu0 0.0
    %3987 = vmatpush2.msra.mxu0 0.0
    %3988 = vmatprep.subr.mxu0 0.0
    %3989 = vmatpush2.msra.mxu0 0.0
    %3990 = vmatprep.subr.mxu0 0.0
    %3991 = vmatpush2.msra.mxu0 0.0
    %3992 = vmatprep.subr.mxu0 0.0
    %3993 = vmatpush2.msra.mxu0 0.0
    %3994 = vmatprep.subr.mxu0 0.0
    %3995 = vmatpush2.msra.mxu0 0.0
    %3996 = vmatprep.subr.mxu0 0.0
    %3997 = vmatpush2.msra.mxu0 0.0
    %3998 = vmatprep.subr.mxu0 0.0
    %3999 = vmatpush2.msra.mxu0 0.0
    %4000 = vmatprep.subr.mxu0 0.0
    %4001 = vmatpush2.msra.mxu0 0.0
    %4002 = vmatprep.subr.mxu0 0.0
    %4003 = vmatpush2.msra.mxu0 0.0
    %4004 = vmatprep.subr.mxu0 0.0
    %4005 = vmatpush2.msra.mxu0 0.0
    %4006 = vmatprep.subr.mxu0 0.0
    %4007 = vmatpush2.msra.mxu0 0.0
    %4008 = vmatprep.subr.mxu0 0.0
    %4009 = vmatpush2.msra.mxu0 0.0
    %4010 = vmatprep.subr.mxu0 0.0
    %4011 = vmatpush2.msra.mxu0 0.0
    %4012 = vmatprep.subr.mxu0 0.0
    %4013 = vmatpush2.msra.mxu0 0.0
    %4014 = vmatprep.mubr.f32.mxu0 0.0
    %4015 = vmatmul.mubr.f32.gmra.mxu0 %v3876
    %v4016 = vpop.f32.mrf.mxu0
    %v4017 = vadd.f32 %v636, %v4016
    %v4018 = vpop.f32.mrf.mxu0
    %4019 = vdwg.mxu0
    %v4021 = vsel %vm434, %v3873, 0
    %4023 = vmatprep.subr.mxu0 0.0
    %4024 = vmatpush1.msra.mxu0 0.0
    %4025 = vmatprep.subr.mxu0 0.0
    %4026 = vmatpush1.msra.mxu0 0.0
    %4027 = vmatprep.subr.mxu0 0.0
    %4028 = vmatpush1.msra.mxu0 0.0
    %4029 = vmatprep.subr.mxu0 0.0
    %4030 = vmatpush1.msra.mxu0 0.0
    %4031 = vmatprep.subr.mxu0 0.0
    %4032 = vmatpush1.msra.mxu0 0.0
    %4033 = vmatprep.subr.mxu0 0.0
    %4034 = vmatpush1.msra.mxu0 0.0
    %4035 = vmatprep.subr.mxu0 0.0
    %4036 = vmatpush1.msra.mxu0 0.0
    %4037 = vmatprep.subr.mxu0 0.0
    %4038 = vmatpush1.msra.mxu0 0.0
    %4039 = vmatprep.subr.mxu0 0.0
    %4040 = vmatpush1.msra.mxu0 0.0
    %4041 = vmatprep.subr.mxu0 0.0
    %4042 = vmatpush1.msra.mxu0 0.0
    %4043 = vmatprep.subr.mxu0 0.0
    %4044 = vmatpush1.msra.mxu0 0.0
    %4045 = vmatprep.subr.mxu0 0.0
    %4046 = vmatpush1.msra.mxu0 0.0
    %4047 = vmatprep.subr.mxu0 0.0
    %4048 = vmatpush1.msra.mxu0 %v474
    %4049 = vmatprep.subr.mxu0 0.0
    %4050 = vmatpush1.msra.mxu0 %v473
    %4051 = vmatprep.subr.mxu0 0.0
    %4052 = vmatpush1.msra.mxu0 %v472
    %4053 = vmatprep.subr.mxu0 0.0
    %4054 = vmatpush1.msra.mxu0 %v471
    %4055 = vmatprep.subr.mxu0 0.0
    %4056 = vmatpush2.msra.mxu0 0.0
    %4057 = vmatprep.subr.mxu0 0.0
    %4058 = vmatpush2.msra.mxu0 0.0
    %4059 = vmatprep.subr.mxu0 0.0
    %4060 = vmatpush2.msra.mxu0 0.0
    %4061 = vmatprep.subr.mxu0 0.0
    %4062 = vmatpush2.msra.mxu0 0.0
    %4063 = vmatprep.subr.mxu0 0.0
    %4064 = vmatpush2.msra.mxu0 0.0
    %4065 = vmatprep.subr.mxu0 0.0
    %4066 = vmatpush2.msra.mxu0 0.0
    %4067 = vmatprep.subr.mxu0 0.0
    %4068 = vmatpush2.msra.mxu0 0.0
    %4069 = vmatprep.subr.mxu0 0.0
    %4070 = vmatpush2.msra.mxu0 0.0
    %4071 = vmatprep.subr.mxu0 0.0
    %4072 = vmatpush2.msra.mxu0 0.0
    %4073 = vmatprep.subr.mxu0 0.0
    %4074 = vmatpush2.msra.mxu0 0.0
    %4075 = vmatprep.subr.mxu0 0.0
    %4076 = vmatpush2.msra.mxu0 0.0
    %4077 = vmatprep.subr.mxu0 0.0
    %4078 = vmatpush2.msra.mxu0 0.0
    %4079 = vmatprep.subr.mxu0 0.0
    %4080 = vmatpush2.msra.mxu0 0.0
    %4081 = vmatprep.subr.mxu0 0.0
    %4082 = vmatpush2.msra.mxu0 0.0
    %4083 = vmatprep.subr.mxu0 0.0
    %4084 = vmatpush2.msra.mxu0 0.0
    %4085 = vmatprep.subr.mxu0 0.0
    %4086 = vmatpush2.msra.mxu0 0.0
    %4087 = vmatprep.mubr.f32.mxu0 0.0
    %4088 = vmatmul.mubr.f32.gmra.mxu0 %v4021
    %v4089 = vpop.f32.mrf.mxu0
    %v4090 = vadd.f32 0.0, %v4089
    %v4091 = vpop.f32.mrf.mxu0
    %4092 = vdwg.mxu0
    %v4093 = vadd.f32 %v4017, %v4090
    %v4094 = vtanh.pop %v4093
    %v4095 = vld [vmem:[#allocation2 + $0x88] sm:$0xff]
    %v4097 = vsel %vm434, %v3949, 0
    %4099 = vmatprep.subr.mxu0 0.0
    %4100 = vmatpush1.msra.mxu0 0.0
    %4101 = vmatprep.subr.mxu0 0.0
    %4102 = vmatpush1.msra.mxu0 0.0
    %4103 = vmatprep.subr.mxu0 0.0
    %4104 = vmatpush1.msra.mxu0 0.0
    %4105 = vmatprep.subr.mxu0 0.0
    %4106 = vmatpush1.msra.mxu0 0.0
    %4107 = vmatprep.subr.mxu0 0.0
    %4108 = vmatpush1.msra.mxu0 0.0
    %4109 = vmatprep.subr.mxu0 0.0
    %4110 = vmatpush1.msra.mxu0 0.0
    %4111 = vmatprep.subr.mxu0 0.0
    %4112 = vmatpush1.msra.mxu0 0.0
    %4113 = vmatprep.subr.mxu0 0.0
    %4114 = vmatpush1.msra.mxu0 0.0
    %4115 = vmatprep.subr.mxu0 0.0
    %4116 = vmatpush1.msra.mxu0 0.0
    %4117 = vmatprep.subr.mxu0 0.0
    %4118 = vmatpush1.msra.mxu0 0.0
    %4119 = vmatprep.subr.mxu0 0.0
    %4120 = vmatpush1.msra.mxu0 0.0
    %4121 = vmatprep.subr.mxu0 0.0
    %4122 = vmatpush1.msra.mxu0 0.0
    %4123 = vmatprep.subr.mxu0 0.0
    %4124 = vmatpush1.msra.mxu0 %v470
    %4125 = vmatprep.subr.mxu0 0.0
    %4126 = vmatpush1.msra.mxu0 %v469
    %4127 = vmatprep.subr.mxu0 0.0
    %4128 = vmatpush1.msra.mxu0 %v468
    %4129 = vmatprep.subr.mxu0 0.0
    %4130 = vmatpush1.msra.mxu0 %v467
    %4131 = vmatprep.subr.mxu0 0.0
    %4132 = vmatpush2.msra.mxu0 0.0
    %4133 = vmatprep.subr.mxu0 0.0
    %4134 = vmatpush2.msra.mxu0 0.0
    %4135 = vmatprep.subr.mxu0 0.0
    %4136 = vmatpush2.msra.mxu0 0.0
    %4137 = vmatprep.subr.mxu0 0.0
    %4138 = vmatpush2.msra.mxu0 0.0
    %4139 = vmatprep.subr.mxu0 0.0
    %4140 = vmatpush2.msra.mxu0 0.0
    %4141 = vmatprep.subr.mxu0 0.0
    %4142 = vmatpush2.msra.mxu0 0.0
    %4143 = vmatprep.subr.mxu0 0.0
    %4144 = vmatpush2.msra.mxu0 0.0
    %4145 = vmatprep.subr.mxu0 0.0
    %4146 = vmatpush2.msra.mxu0 0.0
    %4147 = vmatprep.subr.mxu0 0.0
    %4148 = vmatpush2.msra.mxu0 0.0
    %4149 = vmatprep.subr.mxu0 0.0
    %4150 = vmatpush2.msra.mxu0 0.0
    %4151 = vmatprep.subr.mxu0 0.0
    %4152 = vmatpush2.msra.mxu0 0.0
    %4153 = vmatprep.subr.mxu0 0.0
    %4154 = vmatpush2.msra.mxu0 0.0
    %4155 = vmatprep.subr.mxu0 0.0
    %4156 = vmatpush2.msra.mxu0 0.0
    %4157 = vmatprep.subr.mxu0 0.0
    %4158 = vmatpush2.msra.mxu0 0.0
    %4159 = vmatprep.subr.mxu0 0.0
    %4160 = vmatpush2.msra.mxu0 0.0
    %4161 = vmatprep.subr.mxu0 0.0
    %4162 = vmatpush2.msra.mxu0 0.0
    %4163 = vmatprep.mubr.f32.mxu0 0.0
    %4164 = vmatmul.mubr.f32.gmra.mxu0 %v4097
    %v4165 = vpop.f32.mrf.mxu0
    %v4166 = vadd.f32 0.0, %v4165
    %v4167 = vpop.f32.mrf.mxu0
    %4168 = vdwg.mxu0
    %v4169 = vadd.f32 %v4095, %v4166
    %v4170 = vtanh.pop %v4169
    %4171 = vmatprep.subr.mxu0 0.0
    %4172 = vmatpush1.msra.mxu0 0.0
    %4173 = vmatprep.subr.mxu0 0.0
    %4174 = vmatpush1.msra.mxu0 0.0
    %4175 = vmatprep.subr.mxu0 0.0
    %4176 = vmatpush1.msra.mxu0 0.0
    %4177 = vmatprep.subr.mxu0 0.0
    %4178 = vmatpush1.msra.mxu0 0.0
    %4179 = vmatprep.subr.mxu0 0.0
    %4180 = vmatpush1.msra.mxu0 0.0
    %4181 = vmatprep.subr.mxu0 0.0
    %4182 = vmatpush1.msra.mxu0 0.0
    %4183 = vmatprep.subr.mxu0 0.0
    %4184 = vmatpush1.msra.mxu0 0.0
    %4185 = vmatprep.subr.mxu0 0.0
    %4186 = vmatpush1.msra.mxu0 0.0
    %4187 = vmatprep.subr.mxu0 0.0
    %4188 = vmatpush1.msra.mxu0 0.0
    %4189 = vmatprep.subr.mxu0 0.0
    %4190 = vmatpush1.msra.mxu0 0.0
    %4191 = vmatprep.subr.mxu0 0.0
    %4192 = vmatpush1.msra.mxu0 0.0
    %4193 = vmatprep.subr.mxu0 0.0
    %4194 = vmatpush1.msra.mxu0 0.0
    %4195 = vmatprep.subr.mxu0 0.0
    %4196 = vmatpush1.msra.mxu0 %v478
    %4197 = vmatprep.subr.mxu0 0.0
    %4198 = vmatpush1.msra.mxu0 %v477
    %4199 = vmatprep.subr.mxu0 0.0
    %4200 = vmatpush1.msra.mxu0 %v476
    %4201 = vmatprep.subr.mxu0 0.0
    %4202 = vmatpush1.msra.mxu0 %v475
    %4203 = vmatprep.subr.mxu0 0.0
    %4204 = vmatpush2.msra.mxu0 0.0
    %4205 = vmatprep.subr.mxu0 0.0
    %4206 = vmatpush2.msra.mxu0 0.0
    %4207 = vmatprep.subr.mxu0 0.0
    %4208 = vmatpush2.msra.mxu0 0.0
    %4209 = vmatprep.subr.mxu0 0.0
    %4210 = vmatpush2.msra.mxu0 0.0
    %4211 = vmatprep.subr.mxu0 0.0
    %4212 = vmatpush2.msra.mxu0 0.0
    %4213 = vmatprep.subr.mxu0 0.0
    %4214 = vmatpush2.msra.mxu0 0.0
    %4215 = vmatprep.subr.mxu0 0.0
    %4216 = vmatpush2.msra.mxu0 0.0
    %4217 = vmatprep.subr.mxu0 0.0
    %4218 = vmatpush2.msra.mxu0 0.0
    %4219 = vmatprep.subr.mxu0 0.0
    %4220 = vmatpush2.msra.mxu0 0.0
    %4221 = vmatprep.subr.mxu0 0.0
    %4222 = vmatpush2.msra.mxu0 0.0
    %4223 = vmatprep.subr.mxu0 0.0
    %4224 = vmatpush2.msra.mxu0 0.0
    %4225 = vmatprep.subr.mxu0 0.0
    %4226 = vmatpush2.msra.mxu0 0.0
    %4227 = vmatprep.subr.mxu0 0.0
    %4228 = vmatpush2.msra.mxu0 0.0
    %4229 = vmatprep.subr.mxu0 0.0
    %4230 = vmatpush2.msra.mxu0 0.0
    %4231 = vmatprep.subr.mxu0 0.0
    %4232 = vmatpush2.msra.mxu0 0.0
    %4233 = vmatprep.subr.mxu0 0.0
    %4234 = vmatpush2.msra.mxu0 0.0
    %4235 = vmatprep.mubr.f32.mxu0 0.0
    %4236 = vmatmul.mubr.f32.gmra.mxu0 %v4097
    %v4237 = vpop.f32.mrf.mxu0
    %v4238 = vadd.f32 %v636, %v4237
    %v4239 = vpop.f32.mrf.mxu0
    %4240 = vdwg.mxu0
    %v4242 = vsel %vm434, %v4094, 0
    %4244 = vmatprep.subr.mxu0 0.0
    %4245 = vmatpush1.msra.mxu0 0.0
    %4246 = vmatprep.subr.mxu0 0.0
    %4247 = vmatpush1.msra.mxu0 0.0
    %4248 = vmatprep.subr.mxu0 0.0
    %4249 = vmatpush1.msra.mxu0 0.0
    %4250 = vmatprep.subr.mxu0 0.0
    %4251 = vmatpush1.msra.mxu0 0.0
    %4252 = vmatprep.subr.mxu0 0.0
    %4253 = vmatpush1.msra.mxu0 0.0
    %4254 = vmatprep.subr.mxu0 0.0
    %4255 = vmatpush1.msra.mxu0 0.0
    %4256 = vmatprep.subr.mxu0 0.0
    %4257 = vmatpush1.msra.mxu0 0.0
    %4258 = vmatprep.subr.mxu0 0.0
    %4259 = vmatpush1.msra.mxu0 0.0
    %4260 = vmatprep.subr.mxu0 0.0
    %4261 = vmatpush1.msra.mxu0 0.0
    %4262 = vmatprep.subr.mxu0 0.0
    %4263 = vmatpush1.msra.mxu0 0.0
    %4264 = vmatprep.subr.mxu0 0.0
    %4265 = vmatpush1.msra.mxu0 0.0
    %4266 = vmatprep.subr.mxu0 0.0
    %4267 = vmatpush1.msra.mxu0 0.0
    %4268 = vmatprep.subr.mxu0 0.0
    %4269 = vmatpush1.msra.mxu0 %v474
    %4270 = vmatprep.subr.mxu0 0.0
    %4271 = vmatpush1.msra.mxu0 %v473
    %4272 = vmatprep.subr.mxu0 0.0
    %4273 = vmatpush1.msra.mxu0 %v472
    %4274 = vmatprep.subr.mxu0 0.0
    %4275 = vmatpush1.msra.mxu0 %v471
    %4276 = vmatprep.subr.mxu0 0.0
    %4277 = vmatpush2.msra.mxu0 0.0
    %4278 = vmatprep.subr.mxu0 0.0
    %4279 = vmatpush2.msra.mxu0 0.0
    %4280 = vmatprep.subr.mxu0 0.0
    %4281 = vmatpush2.msra.mxu0 0.0
    %4282 = vmatprep.subr.mxu0 0.0
    %4283 = vmatpush2.msra.mxu0 0.0
    %4284 = vmatprep.subr.mxu0 0.0
    %4285 = vmatpush2.msra.mxu0 0.0
    %4286 = vmatprep.subr.mxu0 0.0
    %4287 = vmatpush2.msra.mxu0 0.0
    %4288 = vmatprep.subr.mxu0 0.0
    %4289 = vmatpush2.msra.mxu0 0.0
    %4290 = vmatprep.subr.mxu0 0.0
    %4291 = vmatpush2.msra.mxu0 0.0
    %4292 = vmatprep.subr.mxu0 0.0
    %4293 = vmatpush2.msra.mxu0 0.0
    %4294 = vmatprep.subr.mxu0 0.0
    %4295 = vmatpush2.msra.mxu0 0.0
    %4296 = vmatprep.subr.mxu0 0.0
    %4297 = vmatpush2.msra.mxu0 0.0
    %4298 = vmatprep.subr.mxu0 0.0
    %4299 = vmatpush2.msra.mxu0 0.0
    %4300 = vmatprep.subr.mxu0 0.0
    %4301 = vmatpush2.msra.mxu0 0.0
    %4302 = vmatprep.subr.mxu0 0.0
    %4303 = vmatpush2.msra.mxu0 0.0
    %4304 = vmatprep.subr.mxu0 0.0
    %4305 = vmatpush2.msra.mxu0 0.0
    %4306 = vmatprep.subr.mxu0 0.0
    %4307 = vmatpush2.msra.mxu0 0.0
    %4308 = vmatprep.mubr.f32.mxu0 0.0
    %4309 = vmatmul.mubr.f32.gmra.mxu0 %v4242
    %v4310 = vpop.f32.mrf.mxu0
    %v4311 = vadd.f32 0.0, %v4310
    %v4312 = vpop.f32.mrf.mxu0
    %4313 = vdwg.mxu0
    %v4314 = vadd.f32 %v4238, %v4311
    %v4315 = vtanh.pop %v4314
    %v4316 = vld [vmem:[#allocation2 + $0x90] sm:$0xff]
    %v4318 = vsel %vm434, %v4170, 0
    %4320 = vmatprep.subr.mxu0 0.0
    %4321 = vmatpush1.msra.mxu0 0.0
    %4322 = vmatprep.subr.mxu0 0.0
    %4323 = vmatpush1.msra.mxu0 0.0
    %4324 = vmatprep.subr.mxu0 0.0
    %4325 = vmatpush1.msra.mxu0 0.0
    %4326 = vmatprep.subr.mxu0 0.0
    %4327 = vmatpush1.msra.mxu0 0.0
    %4328 = vmatprep.subr.mxu0 0.0
    %4329 = vmatpush1.msra.mxu0 0.0
    %4330 = vmatprep.subr.mxu0 0.0
    %4331 = vmatpush1.msra.mxu0 0.0
    %4332 = vmatprep.subr.mxu0 0.0
    %4333 = vmatpush1.msra.mxu0 0.0
    %4334 = vmatprep.subr.mxu0 0.0
    %4335 = vmatpush1.msra.mxu0 0.0
    %4336 = vmatprep.subr.mxu0 0.0
    %4337 = vmatpush1.msra.mxu0 0.0
    %4338 = vmatprep.subr.mxu0 0.0
    %4339 = vmatpush1.msra.mxu0 0.0
    %4340 = vmatprep.subr.mxu0 0.0
    %4341 = vmatpush1.msra.mxu0 0.0
    %4342 = vmatprep.subr.mxu0 0.0
    %4343 = vmatpush1.msra.mxu0 0.0
    %4344 = vmatprep.subr.mxu0 0.0
    %4345 = vmatpush1.msra.mxu0 %v470
    %4346 = vmatprep.subr.mxu0 0.0
    %4347 = vmatpush1.msra.mxu0 %v469
    %4348 = vmatprep.subr.mxu0 0.0
    %4349 = vmatpush1.msra.mxu0 %v468
    %4350 = vmatprep.subr.mxu0 0.0
    %4351 = vmatpush1.msra.mxu0 %v467
    %4352 = vmatprep.subr.mxu0 0.0
    %4353 = vmatpush2.msra.mxu0 0.0
    %4354 = vmatprep.subr.mxu0 0.0
    %4355 = vmatpush2.msra.mxu0 0.0
    %4356 = vmatprep.subr.mxu0 0.0
    %4357 = vmatpush2.msra.mxu0 0.0
    %4358 = vmatprep.subr.mxu0 0.0
    %4359 = vmatpush2.msra.mxu0 0.0
    %4360 = vmatprep.subr.mxu0 0.0
    %4361 = vmatpush2.msra.mxu0 0.0
    %4362 = vmatprep.subr.mxu0 0.0
    %4363 = vmatpush2.msra.mxu0 0.0
    %4364 = vmatprep.subr.mxu0 0.0
    %4365 = vmatpush2.msra.mxu0 0.0
    %4366 = vmatprep.subr.mxu0 0.0
    %4367 = vmatpush2.msra.mxu0 0.0
    %4368 = vmatprep.subr.mxu0 0.0
    %4369 = vmatpush2.msra.mxu0 0.0
    %4370 = vmatprep.subr.mxu0 0.0
    %4371 = vmatpush2.msra.mxu0 0.0
    %4372 = vmatprep.subr.mxu0 0.0
    %4373 = vmatpush2.msra.mxu0 0.0
    %4374 = vmatprep.subr.mxu0 0.0
    %4375 = vmatpush2.msra.mxu0 0.0
    %4376 = vmatprep.subr.mxu0 0.0
    %4377 = vmatpush2.msra.mxu0 0.0
    %4378 = vmatprep.subr.mxu0 0.0
    %4379 = vmatpush2.msra.mxu0 0.0
    %4380 = vmatprep.subr.mxu0 0.0
    %4381 = vmatpush2.msra.mxu0 0.0
    %4382 = vmatprep.subr.mxu0 0.0
    %4383 = vmatpush2.msra.mxu0 0.0
    %4384 = vmatprep.mubr.f32.mxu0 0.0
    %4385 = vmatmul.mubr.f32.gmra.mxu0 %v4318
    %v4386 = vpop.f32.mrf.mxu0
    %v4387 = vadd.f32 0.0, %v4386
    %v4388 = vpop.f32.mrf.mxu0
    %4389 = vdwg.mxu0
    %v4390 = vadd.f32 %v4316, %v4387
    %v4391 = vtanh.pop %v4390
    %4392 = vmatprep.subr.mxu0 0.0
    %4393 = vmatpush1.msra.mxu0 0.0
    %4394 = vmatprep.subr.mxu0 0.0
    %4395 = vmatpush1.msra.mxu0 0.0
    %4396 = vmatprep.subr.mxu0 0.0
    %4397 = vmatpush1.msra.mxu0 0.0
    %4398 = vmatprep.subr.mxu0 0.0
    %4399 = vmatpush1.msra.mxu0 0.0
    %4400 = vmatprep.subr.mxu0 0.0
    %4401 = vmatpush1.msra.mxu0 0.0
    %4402 = vmatprep.subr.mxu0 0.0
    %4403 = vmatpush1.msra.mxu0 0.0
    %4404 = vmatprep.subr.mxu0 0.0
    %4405 = vmatpush1.msra.mxu0 0.0
    %4406 = vmatprep.subr.mxu0 0.0
    %4407 = vmatpush1.msra.mxu0 0.0
    %4408 = vmatprep.subr.mxu0 0.0
    %4409 = vmatpush1.msra.mxu0 0.0
    %4410 = vmatprep.subr.mxu0 0.0
    %4411 = vmatpush1.msra.mxu0 0.0
    %4412 = vmatprep.subr.mxu0 0.0
    %4413 = vmatpush1.msra.mxu0 0.0
    %4414 = vmatprep.subr.mxu0 0.0
    %4415 = vmatpush1.msra.mxu0 0.0
    %4416 = vmatprep.subr.mxu0 0.0
    %4417 = vmatpush1.msra.mxu0 %v478
    %4418 = vmatprep.subr.mxu0 0.0
    %4419 = vmatpush1.msra.mxu0 %v477
    %4420 = vmatprep.subr.mxu0 0.0
    %4421 = vmatpush1.msra.mxu0 %v476
    %4422 = vmatprep.subr.mxu0 0.0
    %4423 = vmatpush1.msra.mxu0 %v475
    %4424 = vmatprep.subr.mxu0 0.0
    %4425 = vmatpush2.msra.mxu0 0.0
    %4426 = vmatprep.subr.mxu0 0.0
    %4427 = vmatpush2.msra.mxu0 0.0
    %4428 = vmatprep.subr.mxu0 0.0
    %4429 = vmatpush2.msra.mxu0 0.0
    %4430 = vmatprep.subr.mxu0 0.0
    %4431 = vmatpush2.msra.mxu0 0.0
    %4432 = vmatprep.subr.mxu0 0.0
    %4433 = vmatpush2.msra.mxu0 0.0
    %4434 = vmatprep.subr.mxu0 0.0
    %4435 = vmatpush2.msra.mxu0 0.0
    %4436 = vmatprep.subr.mxu0 0.0
    %4437 = vmatpush2.msra.mxu0 0.0
    %4438 = vmatprep.subr.mxu0 0.0
    %4439 = vmatpush2.msra.mxu0 0.0
    %4440 = vmatprep.subr.mxu0 0.0
    %4441 = vmatpush2.msra.mxu0 0.0
    %4442 = vmatprep.subr.mxu0 0.0
    %4443 = vmatpush2.msra.mxu0 0.0
    %4444 = vmatprep.subr.mxu0 0.0
    %4445 = vmatpush2.msra.mxu0 0.0
    %4446 = vmatprep.subr.mxu0 0.0
    %4447 = vmatpush2.msra.mxu0 0.0
    %4448 = vmatprep.subr.mxu0 0.0
    %4449 = vmatpush2.msra.mxu0 0.0
    %4450 = vmatprep.subr.mxu0 0.0
    %4451 = vmatpush2.msra.mxu0 0.0
    %4452 = vmatprep.subr.mxu0 0.0
    %4453 = vmatpush2.msra.mxu0 0.0
    %4454 = vmatprep.subr.mxu0 0.0
    %4455 = vmatpush2.msra.mxu0 0.0
    %4456 = vmatprep.mubr.f32.mxu0 0.0
    %4457 = vmatmul.mubr.f32.gmra.mxu0 %v4318
    %v4458 = vpop.f32.mrf.mxu0
    %v4459 = vadd.f32 %v636, %v4458
    %v4460 = vpop.f32.mrf.mxu0
    %4461 = vdwg.mxu0
    %v4463 = vsel %vm434, %v4315, 0
    %4465 = vmatprep.subr.mxu0 0.0
    %4466 = vmatpush1.msra.mxu0 0.0
    %4467 = vmatprep.subr.mxu0 0.0
    %4468 = vmatpush1.msra.mxu0 0.0
    %4469 = vmatprep.subr.mxu0 0.0
    %4470 = vmatpush1.msra.mxu0 0.0
    %4471 = vmatprep.subr.mxu0 0.0
    %4472 = vmatpush1.msra.mxu0 0.0
    %4473 = vmatprep.subr.mxu0 0.0
    %4474 = vmatpush1.msra.mxu0 0.0
    %4475 = vmatprep.subr.mxu0 0.0
    %4476 = vmatpush1.msra.mxu0 0.0
    %4477 = vmatprep.subr.mxu0 0.0
    %4478 = vmatpush1.msra.mxu0 0.0
    %4479 = vmatprep.subr.mxu0 0.0
    %4480 = vmatpush1.msra.mxu0 0.0
    %4481 = vmatprep.subr.mxu0 0.0
    %4482 = vmatpush1.msra.mxu0 0.0
    %4483 = vmatprep.subr.mxu0 0.0
    %4484 = vmatpush1.msra.mxu0 0.0
    %4485 = vmatprep.subr.mxu0 0.0
    %4486 = vmatpush1.msra.mxu0 0.0
    %4487 = vmatprep.subr.mxu0 0.0
    %4488 = vmatpush1.msra.mxu0 0.0
    %4489 = vmatprep.subr.mxu0 0.0
    %4490 = vmatpush1.msra.mxu0 %v474
    %4491 = vmatprep.subr.mxu0 0.0
    %4492 = vmatpush1.msra.mxu0 %v473
    %4493 = vmatprep.subr.mxu0 0.0
    %4494 = vmatpush1.msra.mxu0 %v472
    %4495 = vmatprep.subr.mxu0 0.0
    %4496 = vmatpush1.msra.mxu0 %v471
    %4497 = vmatprep.subr.mxu0 0.0
    %4498 = vmatpush2.msra.mxu0 0.0
    %4499 = vmatprep.subr.mxu0 0.0
    %4500 = vmatpush2.msra.mxu0 0.0
    %4501 = vmatprep.subr.mxu0 0.0
    %4502 = vmatpush2.msra.mxu0 0.0
    %4503 = vmatprep.subr.mxu0 0.0
    %4504 = vmatpush2.msra.mxu0 0.0
    %4505 = vmatprep.subr.mxu0 0.0
    %4506 = vmatpush2.msra.mxu0 0.0
    %4507 = vmatprep.subr.mxu0 0.0
    %4508 = vmatpush2.msra.mxu0 0.0
    %4509 = vmatprep.subr.mxu0 0.0
    %4510 = vmatpush2.msra.mxu0 0.0
    %4511 = vmatprep.subr.mxu0 0.0
    %4512 = vmatpush2.msra.mxu0 0.0
    %4513 = vmatprep.subr.mxu0 0.0
    %4514 = vmatpush2.msra.mxu0 0.0
    %4515 = vmatprep.subr.mxu0 0.0
    %4516 = vmatpush2.msra.mxu0 0.0
    %4517 = vmatprep.subr.mxu0 0.0
    %4518 = vmatpush2.msra.mxu0 0.0
    %4519 = vmatprep.subr.mxu0 0.0
    %4520 = vmatpush2.msra.mxu0 0.0
    %4521 = vmatprep.subr.mxu0 0.0
    %4522 = vmatpush2.msra.mxu0 0.0
    %4523 = vmatprep.subr.mxu0 0.0
    %4524 = vmatpush2.msra.mxu0 0.0
    %4525 = vmatprep.subr.mxu0 0.0
    %4526 = vmatpush2.msra.mxu0 0.0
    %4527 = vmatprep.subr.mxu0 0.0
    %4528 = vmatpush2.msra.mxu0 0.0
    %4529 = vmatprep.mubr.f32.mxu0 0.0
    %4530 = vmatmul.mubr.f32.gmra.mxu0 %v4463
    %v4531 = vpop.f32.mrf.mxu0
    %v4532 = vadd.f32 0.0, %v4531
    %v4533 = vpop.f32.mrf.mxu0
    %4534 = vdwg.mxu0
    %v4535 = vadd.f32 %v4459, %v4532
    %v4536 = vtanh.pop %v4535
    %v4537 = vld [vmem:[#allocation2 + $0x98] sm:$0xff]
    %v4539 = vsel %vm434, %v4391, 0
    %4541 = vmatprep.subr.mxu0 0.0
    %4542 = vmatpush1.msra.mxu0 0.0
    %4543 = vmatprep.subr.mxu0 0.0
    %4544 = vmatpush1.msra.mxu0 0.0
    %4545 = vmatprep.subr.mxu0 0.0
    %4546 = vmatpush1.msra.mxu0 0.0
    %4547 = vmatprep.subr.mxu0 0.0
    %4548 = vmatpush1.msra.mxu0 0.0
    %4549 = vmatprep.subr.mxu0 0.0
    %4550 = vmatpush1.msra.mxu0 0.0
    %4551 = vmatprep.subr.mxu0 0.0
    %4552 = vmatpush1.msra.mxu0 0.0
    %4553 = vmatprep.subr.mxu0 0.0
    %4554 = vmatpush1.msra.mxu0 0.0
    %4555 = vmatprep.subr.mxu0 0.0
    %4556 = vmatpush1.msra.mxu0 0.0
    %4557 = vmatprep.subr.mxu0 0.0
    %4558 = vmatpush1.msra.mxu0 0.0
    %4559 = vmatprep.subr.mxu0 0.0
    %4560 = vmatpush1.msra.mxu0 0.0
    %4561 = vmatprep.subr.mxu0 0.0
    %4562 = vmatpush1.msra.mxu0 0.0
    %4563 = vmatprep.subr.mxu0 0.0
    %4564 = vmatpush1.msra.mxu0 0.0
    %4565 = vmatprep.subr.mxu0 0.0
    %4566 = vmatpush1.msra.mxu0 %v470
    %4567 = vmatprep.subr.mxu0 0.0
    %4568 = vmatpush1.msra.mxu0 %v469
    %4569 = vmatprep.subr.mxu0 0.0
    %4570 = vmatpush1.msra.mxu0 %v468
    %4571 = vmatprep.subr.mxu0 0.0
    %4572 = vmatpush1.msra.mxu0 %v467
    %4573 = vmatprep.subr.mxu0 0.0
    %4574 = vmatpush2.msra.mxu0 0.0
    %4575 = vmatprep.subr.mxu0 0.0
    %4576 = vmatpush2.msra.mxu0 0.0
    %4577 = vmatprep.subr.mxu0 0.0
    %4578 = vmatpush2.msra.mxu0 0.0
    %4579 = vmatprep.subr.mxu0 0.0
    %4580 = vmatpush2.msra.mxu0 0.0
    %4581 = vmatprep.subr.mxu0 0.0
    %4582 = vmatpush2.msra.mxu0 0.0
    %4583 = vmatprep.subr.mxu0 0.0
    %4584 = vmatpush2.msra.mxu0 0.0
    %4585 = vmatprep.subr.mxu0 0.0
    %4586 = vmatpush2.msra.mxu0 0.0
    %4587 = vmatprep.subr.mxu0 0.0
    %4588 = vmatpush2.msra.mxu0 0.0
    %4589 = vmatprep.subr.mxu0 0.0
    %4590 = vmatpush2.msra.mxu0 0.0
    %4591 = vmatprep.subr.mxu0 0.0
    %4592 = vmatpush2.msra.mxu0 0.0
    %4593 = vmatprep.subr.mxu0 0.0
    %4594 = vmatpush2.msra.mxu0 0.0
    %4595 = vmatprep.subr.mxu0 0.0
    %4596 = vmatpush2.msra.mxu0 0.0
    %4597 = vmatprep.subr.mxu0 0.0
    %4598 = vmatpush2.msra.mxu0 0.0
    %4599 = vmatprep.subr.mxu0 0.0
    %4600 = vmatpush2.msra.mxu0 0.0
    %4601 = vmatprep.subr.mxu0 0.0
    %4602 = vmatpush2.msra.mxu0 0.0
    %4603 = vmatprep.subr.mxu0 0.0
    %4604 = vmatpush2.msra.mxu0 0.0
    %4605 = vmatprep.mubr.f32.mxu0 0.0
    %4606 = vmatmul.mubr.f32.gmra.mxu0 %v4539
    %v4607 = vpop.f32.mrf.mxu0
    %v4608 = vadd.f32 0.0, %v4607
    %v4609 = vpop.f32.mrf.mxu0
    %4610 = vdwg.mxu0
    %v4611 = vadd.f32 %v4537, %v4608
    %v4612 = vtanh.pop %v4611
    %4613 = vmatprep.subr.mxu0 0.0
    %4614 = vmatpush1.msra.mxu0 0.0
    %4615 = vmatprep.subr.mxu0 0.0
    %4616 = vmatpush1.msra.mxu0 0.0
    %4617 = vmatprep.subr.mxu0 0.0
    %4618 = vmatpush1.msra.mxu0 0.0
    %4619 = vmatprep.subr.mxu0 0.0
    %4620 = vmatpush1.msra.mxu0 0.0
    %4621 = vmatprep.subr.mxu0 0.0
    %4622 = vmatpush1.msra.mxu0 0.0
    %4623 = vmatprep.subr.mxu0 0.0
    %4624 = vmatpush1.msra.mxu0 0.0
    %4625 = vmatprep.subr.mxu0 0.0
    %4626 = vmatpush1.msra.mxu0 0.0
    %4627 = vmatprep.subr.mxu0 0.0
    %4628 = vmatpush1.msra.mxu0 0.0
    %4629 = vmatprep.subr.mxu0 0.0
    %4630 = vmatpush1.msra.mxu0 0.0
    %4631 = vmatprep.subr.mxu0 0.0
    %4632 = vmatpush1.msra.mxu0 0.0
    %4633 = vmatprep.subr.mxu0 0.0
    %4634 = vmatpush1.msra.mxu0 0.0
    %4635 = vmatprep.subr.mxu0 0.0
    %4636 = vmatpush1.msra.mxu0 0.0
    %4637 = vmatprep.subr.mxu0 0.0
    %4638 = vmatpush1.msra.mxu0 %v478
    %4639 = vmatprep.subr.mxu0 0.0
    %4640 = vmatpush1.msra.mxu0 %v477
    %4641 = vmatprep.subr.mxu0 0.0
    %4642 = vmatpush1.msra.mxu0 %v476
    %4643 = vmatprep.subr.mxu0 0.0
    %4644 = vmatpush1.msra.mxu0 %v475
    %4645 = vmatprep.subr.mxu0 0.0
    %4646 = vmatpush2.msra.mxu0 0.0
    %4647 = vmatprep.subr.mxu0 0.0
    %4648 = vmatpush2.msra.mxu0 0.0
    %4649 = vmatprep.subr.mxu0 0.0
    %4650 = vmatpush2.msra.mxu0 0.0
    %4651 = vmatprep.subr.mxu0 0.0
    %4652 = vmatpush2.msra.mxu0 0.0
    %4653 = vmatprep.subr.mxu0 0.0
    %4654 = vmatpush2.msra.mxu0 0.0
    %4655 = vmatprep.subr.mxu0 0.0
    %4656 = vmatpush2.msra.mxu0 0.0
    %4657 = vmatprep.subr.mxu0 0.0
    %4658 = vmatpush2.msra.mxu0 0.0
    %4659 = vmatprep.subr.mxu0 0.0
    %4660 = vmatpush2.msra.mxu0 0.0
    %4661 = vmatprep.subr.mxu0 0.0
    %4662 = vmatpush2.msra.mxu0 0.0
    %4663 = vmatprep.subr.mxu0 0.0
    %4664 = vmatpush2.msra.mxu0 0.0
    %4665 = vmatprep.subr.mxu0 0.0
    %4666 = vmatpush2.msra.mxu0 0.0
    %4667 = vmatprep.subr.mxu0 0.0
    %4668 = vmatpush2.msra.mxu0 0.0
    %4669 = vmatprep.subr.mxu0 0.0
    %4670 = vmatpush2.msra.mxu0 0.0
    %4671 = vmatprep.subr.mxu0 0.0
    %4672 = vmatpush2.msra.mxu0 0.0
    %4673 = vmatprep.subr.mxu0 0.0
    %4674 = vmatpush2.msra.mxu0 0.0
    %4675 = vmatprep.subr.mxu0 0.0
    %4676 = vmatpush2.msra.mxu0 0.0
    %4677 = vmatprep.mubr.f32.mxu0 0.0
    %4678 = vmatmul.mubr.f32.gmra.mxu0 %v4539
    %v4679 = vpop.f32.mrf.mxu0
    %v4680 = vadd.f32 %v636, %v4679
    %v4681 = vpop.f32.mrf.mxu0
    %4682 = vdwg.mxu0
    %v4684 = vsel %vm434, %v4536, 0
    %4686 = vmatprep.subr.mxu0 0.0
    %4687 = vmatpush1.msra.mxu0 0.0
    %4688 = vmatprep.subr.mxu0 0.0
    %4689 = vmatpush1.msra.mxu0 0.0
    %4690 = vmatprep.subr.mxu0 0.0
    %4691 = vmatpush1.msra.mxu0 0.0
    %4692 = vmatprep.subr.mxu0 0.0
    %4693 = vmatpush1.msra.mxu0 0.0
    %4694 = vmatprep.subr.mxu0 0.0
    %4695 = vmatpush1.msra.mxu0 0.0
    %4696 = vmatprep.subr.mxu0 0.0
    %4697 = vmatpush1.msra.mxu0 0.0
    %4698 = vmatprep.subr.mxu0 0.0
    %4699 = vmatpush1.msra.mxu0 0.0
    %4700 = vmatprep.subr.mxu0 0.0
    %4701 = vmatpush1.msra.mxu0 0.0
    %4702 = vmatprep.subr.mxu0 0.0
    %4703 = vmatpush1.msra.mxu0 0.0
    %4704 = vmatprep.subr.mxu0 0.0
    %4705 = vmatpush1.msra.mxu0 0.0
    %4706 = vmatprep.subr.mxu0 0.0
    %4707 = vmatpush1.msra.mxu0 0.0
    %4708 = vmatprep.subr.mxu0 0.0
    %4709 = vmatpush1.msra.mxu0 0.0
    %4710 = vmatprep.subr.mxu0 0.0
    %4711 = vmatpush1.msra.mxu0 %v474
    %4712 = vmatprep.subr.mxu0 0.0
    %4713 = vmatpush1.msra.mxu0 %v473
    %4714 = vmatprep.subr.mxu0 0.0
    %4715 = vmatpush1.msra.mxu0 %v472
    %4716 = vmatprep.subr.mxu0 0.0
    %4717 = vmatpush1.msra.mxu0 %v471
    %4718 = vmatprep.subr.mxu0 0.0
    %4719 = vmatpush2.msra.mxu0 0.0
    %4720 = vmatprep.subr.mxu0 0.0
    %4721 = vmatpush2.msra.mxu0 0.0
    %4722 = vmatprep.subr.mxu0 0.0
    %4723 = vmatpush2.msra.mxu0 0.0
    %4724 = vmatprep.subr.mxu0 0.0
    %4725 = vmatpush2.msra.mxu0 0.0
    %4726 = vmatprep.subr.mxu0 0.0
    %4727 = vmatpush2.msra.mxu0 0.0
    %4728 = vmatprep.subr.mxu0 0.0
    %4729 = vmatpush2.msra.mxu0 0.0
    %4730 = vmatprep.subr.mxu0 0.0
    %4731 = vmatpush2.msra.mxu0 0.0
    %4732 = vmatprep.subr.mxu0 0.0
    %4733 = vmatpush2.msra.mxu0 0.0
    %4734 = vmatprep.subr.mxu0 0.0
    %4735 = vmatpush2.msra.mxu0 0.0
    %4736 = vmatprep.subr.mxu0 0.0
    %4737 = vmatpush2.msra.mxu0 0.0
    %4738 = vmatprep.subr.mxu0 0.0
    %4739 = vmatpush2.msra.mxu0 0.0
    %4740 = vmatprep.subr.mxu0 0.0
    %4741 = vmatpush2.msra.mxu0 0.0
    %4742 = vmatprep.subr.mxu0 0.0
    %4743 = vmatpush2.msra.mxu0 0.0
    %4744 = vmatprep.subr.mxu0 0.0
    %4745 = vmatpush2.msra.mxu0 0.0
    %4746 = vmatprep.subr.mxu0 0.0
    %4747 = vmatpush2.msra.mxu0 0.0
    %4748 = vmatprep.subr.mxu0 0.0
    %4749 = vmatpush2.msra.mxu0 0.0
    %4750 = vmatprep.mubr.f32.mxu0 0.0
    %4751 = vmatmul.mubr.f32.gmra.mxu0 %v4684
    %v4752 = vpop.f32.mrf.mxu0
    %v4753 = vadd.f32 0.0, %v4752
    %v4754 = vpop.f32.mrf.mxu0
    %4755 = vdwg.mxu0
    %v4756 = vadd.f32 %v4680, %v4753
    %v4757 = vtanh.pop %v4756
    %v4758 = vld [vmem:[#allocation2 + $0xa0] sm:$0xff]
    %v4760 = vsel %vm434, %v4612, 0
    %4762 = vmatprep.subr.mxu0 0.0
    %4763 = vmatpush1.msra.mxu0 0.0
    %4764 = vmatprep.subr.mxu0 0.0
    %4765 = vmatpush1.msra.mxu0 0.0
    %4766 = vmatprep.subr.mxu0 0.0
    %4767 = vmatpush1.msra.mxu0 0.0
    %4768 = vmatprep.subr.mxu0 0.0
    %4769 = vmatpush1.msra.mxu0 0.0
    %4770 = vmatprep.subr.mxu0 0.0
    %4771 = vmatpush1.msra.mxu0 0.0
    %4772 = vmatprep.subr.mxu0 0.0
    %4773 = vmatpush1.msra.mxu0 0.0
    %4774 = vmatprep.subr.mxu0 0.0
    %4775 = vmatpush1.msra.mxu0 0.0
    %4776 = vmatprep.subr.mxu0 0.0
    %4777 = vmatpush1.msra.mxu0 0.0
    %4778 = vmatprep.subr.mxu0 0.0
    %4779 = vmatpush1.msra.mxu0 0.0
    %4780 = vmatprep.subr.mxu0 0.0
    %4781 = vmatpush1.msra.mxu0 0.0
    %4782 = vmatprep.subr.mxu0 0.0
    %4783 = vmatpush1.msra.mxu0 0.0
    %4784 = vmatprep.subr.mxu0 0.0
    %4785 = vmatpush1.msra.mxu0 0.0
    %4786 = vmatprep.subr.mxu0 0.0
    %4787 = vmatpush1.msra.mxu0 %v470
    %4788 = vmatprep.subr.mxu0 0.0
    %4789 = vmatpush1.msra.mxu0 %v469
    %4790 = vmatprep.subr.mxu0 0.0
    %4791 = vmatpush1.msra.mxu0 %v468
    %4792 = vmatprep.subr.mxu0 0.0
    %4793 = vmatpush1.msra.mxu0 %v467
    %4794 = vmatprep.subr.mxu0 0.0
    %4795 = vmatpush2.msra.mxu0 0.0
    %4796 = vmatprep.subr.mxu0 0.0
    %4797 = vmatpush2.msra.mxu0 0.0
    %4798 = vmatprep.subr.mxu0 0.0
    %4799 = vmatpush2.msra.mxu0 0.0
    %4800 = vmatprep.subr.mxu0 0.0
    %4801 = vmatpush2.msra.mxu0 0.0
    %4802 = vmatprep.subr.mxu0 0.0
    %4803 = vmatpush2.msra.mxu0 0.0
    %4804 = vmatprep.subr.mxu0 0.0
    %4805 = vmatpush2.msra.mxu0 0.0
    %4806 = vmatprep.subr.mxu0 0.0
    %4807 = vmatpush2.msra.mxu0 0.0
    %4808 = vmatprep.subr.mxu0 0.0
    %4809 = vmatpush2.msra.mxu0 0.0
    %4810 = vmatprep.subr.mxu0 0.0
    %4811 = vmatpush2.msra.mxu0 0.0
    %4812 = vmatprep.subr.mxu0 0.0
    %4813 = vmatpush2.msra.mxu0 0.0
    %4814 = vmatprep.subr.mxu0 0.0
    %4815 = vmatpush2.msra.mxu0 0.0
    %4816 = vmatprep.subr.mxu0 0.0
    %4817 = vmatpush2.msra.mxu0 0.0
    %4818 = vmatprep.subr.mxu0 0.0
    %4819 = vmatpush2.msra.mxu0 0.0
    %4820 = vmatprep.subr.mxu0 0.0
    %4821 = vmatpush2.msra.mxu0 0.0
    %4822 = vmatprep.subr.mxu0 0.0
    %4823 = vmatpush2.msra.mxu0 0.0
    %4824 = vmatprep.subr.mxu0 0.0
    %4825 = vmatpush2.msra.mxu0 0.0
    %4826 = vmatprep.mubr.f32.mxu0 0.0
    %4827 = vmatmul.mubr.f32.gmra.mxu0 %v4760
    %v4828 = vpop.f32.mrf.mxu0
    %v4829 = vadd.f32 0.0, %v4828
    %v4830 = vpop.f32.mrf.mxu0
    %4831 = vdwg.mxu0
    %v4832 = vadd.f32 %v4758, %v4829
    %v4833 = vtanh.pop %v4832
    %4834 = vmatprep.subr.mxu0 0.0
    %4835 = vmatpush1.msra.mxu0 0.0
    %4836 = vmatprep.subr.mxu0 0.0
    %4837 = vmatpush1.msra.mxu0 0.0
    %4838 = vmatprep.subr.mxu0 0.0
    %4839 = vmatpush1.msra.mxu0 0.0
    %4840 = vmatprep.subr.mxu0 0.0
    %4841 = vmatpush1.msra.mxu0 0.0
    %4842 = vmatprep.subr.mxu0 0.0
    %4843 = vmatpush1.msra.mxu0 0.0
    %4844 = vmatprep.subr.mxu0 0.0
    %4845 = vmatpush1.msra.mxu0 0.0
    %4846 = vmatprep.subr.mxu0 0.0
    %4847 = vmatpush1.msra.mxu0 0.0
    %4848 = vmatprep.subr.mxu0 0.0
    %4849 = vmatpush1.msra.mxu0 0.0
    %4850 = vmatprep.subr.mxu0 0.0
    %4851 = vmatpush1.msra.mxu0 0.0
    %4852 = vmatprep.subr.mxu0 0.0
    %4853 = vmatpush1.msra.mxu0 0.0
    %4854 = vmatprep.subr.mxu0 0.0
    %4855 = vmatpush1.msra.mxu0 0.0
    %4856 = vmatprep.subr.mxu0 0.0
    %4857 = vmatpush1.msra.mxu0 0.0
    %4858 = vmatprep.subr.mxu0 0.0
    %4859 = vmatpush1.msra.mxu0 %v478
    %4860 = vmatprep.subr.mxu0 0.0
    %4861 = vmatpush1.msra.mxu0 %v477
    %4862 = vmatprep.subr.mxu0 0.0
    %4863 = vmatpush1.msra.mxu0 %v476
    %4864 = vmatprep.subr.mxu0 0.0
    %4865 = vmatpush1.msra.mxu0 %v475
    %4866 = vmatprep.subr.mxu0 0.0
    %4867 = vmatpush2.msra.mxu0 0.0
    %4868 = vmatprep.subr.mxu0 0.0
    %4869 = vmatpush2.msra.mxu0 0.0
    %4870 = vmatprep.subr.mxu0 0.0
    %4871 = vmatpush2.msra.mxu0 0.0
    %4872 = vmatprep.subr.mxu0 0.0
    %4873 = vmatpush2.msra.mxu0 0.0
    %4874 = vmatprep.subr.mxu0 0.0
    %4875 = vmatpush2.msra.mxu0 0.0
    %4876 = vmatprep.subr.mxu0 0.0
    %4877 = vmatpush2.msra.mxu0 0.0
    %4878 = vmatprep.subr.mxu0 0.0
    %4879 = vmatpush2.msra.mxu0 0.0
    %4880 = vmatprep.subr.mxu0 0.0
    %4881 = vmatpush2.msra.mxu0 0.0
    %4882 = vmatprep.subr.mxu0 0.0
    %4883 = vmatpush2.msra.mxu0 0.0
    %4884 = vmatprep.subr.mxu0 0.0
    %4885 = vmatpush2.msra.mxu0 0.0
    %4886 = vmatprep.subr.mxu0 0.0
    %4887 = vmatpush2.msra.mxu0 0.0
    %4888 = vmatprep.subr.mxu0 0.0
    %4889 = vmatpush2.msra.mxu0 0.0
    %4890 = vmatprep.subr.mxu0 0.0
    %4891 = vmatpush2.msra.mxu0 0.0
    %4892 = vmatprep.subr.mxu0 0.0
    %4893 = vmatpush2.msra.mxu0 0.0
    %4894 = vmatprep.subr.mxu0 0.0
    %4895 = vmatpush2.msra.mxu0 0.0
    %4896 = vmatprep.subr.mxu0 0.0
    %4897 = vmatpush2.msra.mxu0 0.0
    %4898 = vmatprep.mubr.f32.mxu0 0.0
    %4899 = vmatmul.mubr.f32.gmra.mxu0 %v4760
    %v4900 = vpop.f32.mrf.mxu0
    %v4901 = vadd.f32 %v636, %v4900
    %v4902 = vpop.f32.mrf.mxu0
    %4903 = vdwg.mxu0
    %v4905 = vsel %vm434, %v4757, 0
    %4907 = vmatprep.subr.mxu0 0.0
    %4908 = vmatpush1.msra.mxu0 0.0
    %4909 = vmatprep.subr.mxu0 0.0
    %4910 = vmatpush1.msra.mxu0 0.0
    %4911 = vmatprep.subr.mxu0 0.0
    %4912 = vmatpush1.msra.mxu0 0.0
    %4913 = vmatprep.subr.mxu0 0.0
    %4914 = vmatpush1.msra.mxu0 0.0
    %4915 = vmatprep.subr.mxu0 0.0
    %4916 = vmatpush1.msra.mxu0 0.0
    %4917 = vmatprep.subr.mxu0 0.0
    %4918 = vmatpush1.msra.mxu0 0.0
    %4919 = vmatprep.subr.mxu0 0.0
    %4920 = vmatpush1.msra.mxu0 0.0
    %4921 = vmatprep.subr.mxu0 0.0
    %4922 = vmatpush1.msra.mxu0 0.0
    %4923 = vmatprep.subr.mxu0 0.0
    %4924 = vmatpush1.msra.mxu0 0.0
    %4925 = vmatprep.subr.mxu0 0.0
    %4926 = vmatpush1.msra.mxu0 0.0
    %4927 = vmatprep.subr.mxu0 0.0
    %4928 = vmatpush1.msra.mxu0 0.0
    %4929 = vmatprep.subr.mxu0 0.0
    %4930 = vmatpush1.msra.mxu0 0.0
    %4931 = vmatprep.subr.mxu0 0.0
    %4932 = vmatpush1.msra.mxu0 %v474
    %4933 = vmatprep.subr.mxu0 0.0
    %4934 = vmatpush1.msra.mxu0 %v473
    %4935 = vmatprep.subr.mxu0 0.0
    %4936 = vmatpush1.msra.mxu0 %v472
    %4937 = vmatprep.subr.mxu0 0.0
    %4938 = vmatpush1.msra.mxu0 %v471
    %4939 = vmatprep.subr.mxu0 0.0
    %4940 = vmatpush2.msra.mxu0 0.0
    %4941 = vmatprep.subr.mxu0 0.0
    %4942 = vmatpush2.msra.mxu0 0.0
    %4943 = vmatprep.subr.mxu0 0.0
    %4944 = vmatpush2.msra.mxu0 0.0
    %4945 = vmatprep.subr.mxu0 0.0
    %4946 = vmatpush2.msra.mxu0 0.0
    %4947 = vmatprep.subr.mxu0 0.0
    %4948 = vmatpush2.msra.mxu0 0.0
    %4949 = vmatprep.subr.mxu0 0.0
    %4950 = vmatpush2.msra.mxu0 0.0
    %4951 = vmatprep.subr.mxu0 0.0
    %4952 = vmatpush2.msra.mxu0 0.0
    %4953 = vmatprep.subr.mxu0 0.0
    %4954 = vmatpush2.msra.mxu0 0.0
    %4955 = vmatprep.subr.mxu0 0.0
    %4956 = vmatpush2.msra.mxu0 0.0
    %4957 = vmatprep.subr.mxu0 0.0
    %4958 = vmatpush2.msra.mxu0 0.0
    %4959 = vmatprep.subr.mxu0 0.0
    %4960 = vmatpush2.msra.mxu0 0.0
    %4961 = vmatprep.subr.mxu0 0.0
    %4962 = vmatpush2.msra.mxu0 0.0
    %4963 = vmatprep.subr.mxu0 0.0
    %4964 = vmatpush2.msra.mxu0 0.0
    %4965 = vmatprep.subr.mxu0 0.0
    %4966 = vmatpush2.msra.mxu0 0.0
    %4967 = vmatprep.subr.mxu0 0.0
    %4968 = vmatpush2.msra.mxu0 0.0
    %4969 = vmatprep.subr.mxu0 0.0
    %4970 = vmatpush2.msra.mxu0 0.0
    %4971 = vmatprep.mubr.f32.mxu0 0.0
    %4972 = vmatmul.mubr.f32.gmra.mxu0 %v4905
    %v4973 = vpop.f32.mrf.mxu0
    %v4974 = vadd.f32 0.0, %v4973
    %v4975 = vpop.f32.mrf.mxu0
    %4976 = vdwg.mxu0
    %v4977 = vadd.f32 %v4901, %v4974
    %v4978 = vtanh.pop %v4977
    %v4979 = vld [vmem:[#allocation2 + $0xa8] sm:$0xff]
    %v4981 = vsel %vm434, %v4833, 0
    %4983 = vmatprep.subr.mxu0 0.0
    %4984 = vmatpush1.msra.mxu0 0.0
    %4985 = vmatprep.subr.mxu0 0.0
    %4986 = vmatpush1.msra.mxu0 0.0
    %4987 = vmatprep.subr.mxu0 0.0
    %4988 = vmatpush1.msra.mxu0 0.0
    %4989 = vmatprep.subr.mxu0 0.0
    %4990 = vmatpush1.msra.mxu0 0.0
    %4991 = vmatprep.subr.mxu0 0.0
    %4992 = vmatpush1.msra.mxu0 0.0
    %4993 = vmatprep.subr.mxu0 0.0
    %4994 = vmatpush1.msra.mxu0 0.0
    %4995 = vmatprep.subr.mxu0 0.0
    %4996 = vmatpush1.msra.mxu0 0.0
    %4997 = vmatprep.subr.mxu0 0.0
    %4998 = vmatpush1.msra.mxu0 0.0
    %4999 = vmatprep.subr.mxu0 0.0
    %5000 = vmatpush1.msra.mxu0 0.0
    %5001 = vmatprep.subr.mxu0 0.0
    %5002 = vmatpush1.msra.mxu0 0.0
    %5003 = vmatprep.subr.mxu0 0.0
    %5004 = vmatpush1.msra.mxu0 0.0
    %5005 = vmatprep.subr.mxu0 0.0
    %5006 = vmatpush1.msra.mxu0 0.0
    %5007 = vmatprep.subr.mxu0 0.0
    %5008 = vmatpush1.msra.mxu0 %v470
    %5009 = vmatprep.subr.mxu0 0.0
    %5010 = vmatpush1.msra.mxu0 %v469
    %5011 = vmatprep.subr.mxu0 0.0
    %5012 = vmatpush1.msra.mxu0 %v468
    %5013 = vmatprep.subr.mxu0 0.0
    %5014 = vmatpush1.msra.mxu0 %v467
    %5015 = vmatprep.subr.mxu0 0.0
    %5016 = vmatpush2.msra.mxu0 0.0
    %5017 = vmatprep.subr.mxu0 0.0
    %5018 = vmatpush2.msra.mxu0 0.0
    %5019 = vmatprep.subr.mxu0 0.0
    %5020 = vmatpush2.msra.mxu0 0.0
    %5021 = vmatprep.subr.mxu0 0.0
    %5022 = vmatpush2.msra.mxu0 0.0
    %5023 = vmatprep.subr.mxu0 0.0
    %5024 = vmatpush2.msra.mxu0 0.0
    %5025 = vmatprep.subr.mxu0 0.0
    %5026 = vmatpush2.msra.mxu0 0.0
    %5027 = vmatprep.subr.mxu0 0.0
    %5028 = vmatpush2.msra.mxu0 0.0
    %5029 = vmatprep.subr.mxu0 0.0
    %5030 = vmatpush2.msra.mxu0 0.0
    %5031 = vmatprep.subr.mxu0 0.0
    %5032 = vmatpush2.msra.mxu0 0.0
    %5033 = vmatprep.subr.mxu0 0.0
    %5034 = vmatpush2.msra.mxu0 0.0
    %5035 = vmatprep.subr.mxu0 0.0
    %5036 = vmatpush2.msra.mxu0 0.0
    %5037 = vmatprep.subr.mxu0 0.0
    %5038 = vmatpush2.msra.mxu0 0.0
    %5039 = vmatprep.subr.mxu0 0.0
    %5040 = vmatpush2.msra.mxu0 0.0
    %5041 = vmatprep.subr.mxu0 0.0
    %5042 = vmatpush2.msra.mxu0 0.0
    %5043 = vmatprep.subr.mxu0 0.0
    %5044 = vmatpush2.msra.mxu0 0.0
    %5045 = vmatprep.subr.mxu0 0.0
    %5046 = vmatpush2.msra.mxu0 0.0
    %5047 = vmatprep.mubr.f32.mxu0 0.0
    %5048 = vmatmul.mubr.f32.gmra.mxu0 %v4981
    %v5049 = vpop.f32.mrf.mxu0
    %v5050 = vadd.f32 0.0, %v5049
    %v5051 = vpop.f32.mrf.mxu0
    %5052 = vdwg.mxu0
    %v5053 = vadd.f32 %v4979, %v5050
    %v5054 = vtanh.pop %v5053
    %5055 = vmatprep.subr.mxu0 0.0
    %5056 = vmatpush1.msra.mxu0 0.0
    %5057 = vmatprep.subr.mxu0 0.0
    %5058 = vmatpush1.msra.mxu0 0.0
    %5059 = vmatprep.subr.mxu0 0.0
    %5060 = vmatpush1.msra.mxu0 0.0
    %5061 = vmatprep.subr.mxu0 0.0
    %5062 = vmatpush1.msra.mxu0 0.0
    %5063 = vmatprep.subr.mxu0 0.0
    %5064 = vmatpush1.msra.mxu0 0.0
    %5065 = vmatprep.subr.mxu0 0.0
    %5066 = vmatpush1.msra.mxu0 0.0
    %5067 = vmatprep.subr.mxu0 0.0
    %5068 = vmatpush1.msra.mxu0 0.0
    %5069 = vmatprep.subr.mxu0 0.0
    %5070 = vmatpush1.msra.mxu0 0.0
    %5071 = vmatprep.subr.mxu0 0.0
    %5072 = vmatpush1.msra.mxu0 0.0
    %5073 = vmatprep.subr.mxu0 0.0
    %5074 = vmatpush1.msra.mxu0 0.0
    %5075 = vmatprep.subr.mxu0 0.0
    %5076 = vmatpush1.msra.mxu0 0.0
    %5077 = vmatprep.subr.mxu0 0.0
    %5078 = vmatpush1.msra.mxu0 0.0
    %5079 = vmatprep.subr.mxu0 0.0
    %5080 = vmatpush1.msra.mxu0 %v478
    %5081 = vmatprep.subr.mxu0 0.0
    %5082 = vmatpush1.msra.mxu0 %v477
    %5083 = vmatprep.subr.mxu0 0.0
    %5084 = vmatpush1.msra.mxu0 %v476
    %5085 = vmatprep.subr.mxu0 0.0
    %5086 = vmatpush1.msra.mxu0 %v475
    %5087 = vmatprep.subr.mxu0 0.0
    %5088 = vmatpush2.msra.mxu0 0.0
    %5089 = vmatprep.subr.mxu0 0.0
    %5090 = vmatpush2.msra.mxu0 0.0
    %5091 = vmatprep.subr.mxu0 0.0
    %5092 = vmatpush2.msra.mxu0 0.0
    %5093 = vmatprep.subr.mxu0 0.0
    %5094 = vmatpush2.msra.mxu0 0.0
    %5095 = vmatprep.subr.mxu0 0.0
    %5096 = vmatpush2.msra.mxu0 0.0
    %5097 = vmatprep.subr.mxu0 0.0
    %5098 = vmatpush2.msra.mxu0 0.0
    %5099 = vmatprep.subr.mxu0 0.0
    %5100 = vmatpush2.msra.mxu0 0.0
    %5101 = vmatprep.subr.mxu0 0.0
    %5102 = vmatpush2.msra.mxu0 0.0
    %5103 = vmatprep.subr.mxu0 0.0
    %5104 = vmatpush2.msra.mxu0 0.0
    %5105 = vmatprep.subr.mxu0 0.0
    %5106 = vmatpush2.msra.mxu0 0.0
    %5107 = vmatprep.subr.mxu0 0.0
    %5108 = vmatpush2.msra.mxu0 0.0
    %5109 = vmatprep.subr.mxu0 0.0
    %5110 = vmatpush2.msra.mxu0 0.0
    %5111 = vmatprep.subr.mxu0 0.0
    %5112 = vmatpush2.msra.mxu0 0.0
    %5113 = vmatprep.subr.mxu0 0.0
    %5114 = vmatpush2.msra.mxu0 0.0
    %5115 = vmatprep.subr.mxu0 0.0
    %5116 = vmatpush2.msra.mxu0 0.0
    %5117 = vmatprep.subr.mxu0 0.0
    %5118 = vmatpush2.msra.mxu0 0.0
    %5119 = vmatprep.mubr.f32.mxu0 0.0
    %5120 = vmatmul.mubr.f32.gmra.mxu0 %v4981
    %v5121 = vpop.f32.mrf.mxu0
    %v5122 = vadd.f32 %v636, %v5121
    %v5123 = vpop.f32.mrf.mxu0
    %5124 = vdwg.mxu0
    %v5126 = vsel %vm434, %v4978, 0
    %5128 = vmatprep.subr.mxu0 0.0
    %5129 = vmatpush1.msra.mxu0 0.0
    %5130 = vmatprep.subr.mxu0 0.0
    %5131 = vmatpush1.msra.mxu0 0.0
    %5132 = vmatprep.subr.mxu0 0.0
    %5133 = vmatpush1.msra.mxu0 0.0
    %5134 = vmatprep.subr.mxu0 0.0
    %5135 = vmatpush1.msra.mxu0 0.0
    %5136 = vmatprep.subr.mxu0 0.0
    %5137 = vmatpush1.msra.mxu0 0.0
    %5138 = vmatprep.subr.mxu0 0.0
    %5139 = vmatpush1.msra.mxu0 0.0
    %5140 = vmatprep.subr.mxu0 0.0
    %5141 = vmatpush1.msra.mxu0 0.0
    %5142 = vmatprep.subr.mxu0 0.0
    %5143 = vmatpush1.msra.mxu0 0.0
    %5144 = vmatprep.subr.mxu0 0.0
    %5145 = vmatpush1.msra.mxu0 0.0
    %5146 = vmatprep.subr.mxu0 0.0
    %5147 = vmatpush1.msra.mxu0 0.0
    %5148 = vmatprep.subr.mxu0 0.0
    %5149 = vmatpush1.msra.mxu0 0.0
    %5150 = vmatprep.subr.mxu0 0.0
    %5151 = vmatpush1.msra.mxu0 0.0
    %5152 = vmatprep.subr.mxu0 0.0
    %5153 = vmatpush1.msra.mxu0 %v474
    %5154 = vmatprep.subr.mxu0 0.0
    %5155 = vmatpush1.msra.mxu0 %v473
    %5156 = vmatprep.subr.mxu0 0.0
    %5157 = vmatpush1.msra.mxu0 %v472
    %5158 = vmatprep.subr.mxu0 0.0
    %5159 = vmatpush1.msra.mxu0 %v471
    %5160 = vmatprep.subr.mxu0 0.0
    %5161 = vmatpush2.msra.mxu0 0.0
    %5162 = vmatprep.subr.mxu0 0.0
    %5163 = vmatpush2.msra.mxu0 0.0
    %5164 = vmatprep.subr.mxu0 0.0
    %5165 = vmatpush2.msra.mxu0 0.0
    %5166 = vmatprep.subr.mxu0 0.0
    %5167 = vmatpush2.msra.mxu0 0.0
    %5168 = vmatprep.subr.mxu0 0.0
    %5169 = vmatpush2.msra.mxu0 0.0
    %5170 = vmatprep.subr.mxu0 0.0
    %5171 = vmatpush2.msra.mxu0 0.0
    %5172 = vmatprep.subr.mxu0 0.0
    %5173 = vmatpush2.msra.mxu0 0.0
    %5174 = vmatprep.subr.mxu0 0.0
    %5175 = vmatpush2.msra.mxu0 0.0
    %5176 = vmatprep.subr.mxu0 0.0
    %5177 = vmatpush2.msra.mxu0 0.0
    %5178 = vmatprep.subr.mxu0 0.0
    %5179 = vmatpush2.msra.mxu0 0.0
    %5180 = vmatprep.subr.mxu0 0.0
    %5181 = vmatpush2.msra.mxu0 0.0
    %5182 = vmatprep.subr.mxu0 0.0
    %5183 = vmatpush2.msra.mxu0 0.0
    %5184 = vmatprep.subr.mxu0 0.0
    %5185 = vmatpush2.msra.mxu0 0.0
    %5186 = vmatprep.subr.mxu0 0.0
    %5187 = vmatpush2.msra.mxu0 0.0
    %5188 = vmatprep.subr.mxu0 0.0
    %5189 = vmatpush2.msra.mxu0 0.0
    %5190 = vmatprep.subr.mxu0 0.0
    %5191 = vmatpush2.msra.mxu0 0.0
    %5192 = vmatprep.mubr.f32.mxu0 0.0
    %5193 = vmatmul.mubr.f32.gmra.mxu0 %v5126
    %v5194 = vpop.f32.mrf.mxu0
    %v5195 = vadd.f32 0.0, %v5194
    %v5196 = vpop.f32.mrf.mxu0
    %5197 = vdwg.mxu0
    %v5198 = vadd.f32 %v5122, %v5195
    %v5199 = vtanh.pop %v5198
    %v5200 = vld [vmem:[#allocation2 + $0xb0] sm:$0xff]
    %v5202 = vsel %vm434, %v5054, 0
    %5204 = vmatprep.subr.mxu0 0.0
    %5205 = vmatpush1.msra.mxu0 0.0
    %5206 = vmatprep.subr.mxu0 0.0
    %5207 = vmatpush1.msra.mxu0 0.0
    %5208 = vmatprep.subr.mxu0 0.0
    %5209 = vmatpush1.msra.mxu0 0.0
    %5210 = vmatprep.subr.mxu0 0.0
    %5211 = vmatpush1.msra.mxu0 0.0
    %5212 = vmatprep.subr.mxu0 0.0
    %5213 = vmatpush1.msra.mxu0 0.0
    %5214 = vmatprep.subr.mxu0 0.0
    %5215 = vmatpush1.msra.mxu0 0.0
    %5216 = vmatprep.subr.mxu0 0.0
    %5217 = vmatpush1.msra.mxu0 0.0
    %5218 = vmatprep.subr.mxu0 0.0
    %5219 = vmatpush1.msra.mxu0 0.0
    %5220 = vmatprep.subr.mxu0 0.0
    %5221 = vmatpush1.msra.mxu0 0.0
    %5222 = vmatprep.subr.mxu0 0.0
    %5223 = vmatpush1.msra.mxu0 0.0
    %5224 = vmatprep.subr.mxu0 0.0
    %5225 = vmatpush1.msra.mxu0 0.0
    %5226 = vmatprep.subr.mxu0 0.0
    %5227 = vmatpush1.msra.mxu0 0.0
    %5228 = vmatprep.subr.mxu0 0.0
    %5229 = vmatpush1.msra.mxu0 %v470
    %5230 = vmatprep.subr.mxu0 0.0
    %5231 = vmatpush1.msra.mxu0 %v469
    %5232 = vmatprep.subr.mxu0 0.0
    %5233 = vmatpush1.msra.mxu0 %v468
    %5234 = vmatprep.subr.mxu0 0.0
    %5235 = vmatpush1.msra.mxu0 %v467
    %5236 = vmatprep.subr.mxu0 0.0
    %5237 = vmatpush2.msra.mxu0 0.0
    %5238 = vmatprep.subr.mxu0 0.0
    %5239 = vmatpush2.msra.mxu0 0.0
    %5240 = vmatprep.subr.mxu0 0.0
    %5241 = vmatpush2.msra.mxu0 0.0
    %5242 = vmatprep.subr.mxu0 0.0
    %5243 = vmatpush2.msra.mxu0 0.0
    %5244 = vmatprep.subr.mxu0 0.0
    %5245 = vmatpush2.msra.mxu0 0.0
    %5246 = vmatprep.subr.mxu0 0.0
    %5247 = vmatpush2.msra.mxu0 0.0
    %5248 = vmatprep.subr.mxu0 0.0
    %5249 = vmatpush2.msra.mxu0 0.0
    %5250 = vmatprep.subr.mxu0 0.0
    %5251 = vmatpush2.msra.mxu0 0.0
    %5252 = vmatprep.subr.mxu0 0.0
    %5253 = vmatpush2.msra.mxu0 0.0
    %5254 = vmatprep.subr.mxu0 0.0
    %5255 = vmatpush2.msra.mxu0 0.0
    %5256 = vmatprep.subr.mxu0 0.0
    %5257 = vmatpush2.msra.mxu0 0.0
    %5258 = vmatprep.subr.mxu0 0.0
    %5259 = vmatpush2.msra.mxu0 0.0
    %5260 = vmatprep.subr.mxu0 0.0
    %5261 = vmatpush2.msra.mxu0 0.0
    %5262 = vmatprep.subr.mxu0 0.0
    %5263 = vmatpush2.msra.mxu0 0.0
    %5264 = vmatprep.subr.mxu0 0.0
    %5265 = vmatpush2.msra.mxu0 0.0
    %5266 = vmatprep.subr.mxu0 0.0
    %5267 = vmatpush2.msra.mxu0 0.0
    %5268 = vmatprep.mubr.f32.mxu0 0.0
    %5269 = vmatmul.mubr.f32.gmra.mxu0 %v5202
    %v5270 = vpop.f32.mrf.mxu0
    %v5271 = vadd.f32 0.0, %v5270
    %v5272 = vpop.f32.mrf.mxu0
    %5273 = vdwg.mxu0
    %v5274 = vadd.f32 %v5200, %v5271
    %v5275 = vtanh.pop %v5274
    %5276 = vmatprep.subr.mxu0 0.0
    %5277 = vmatpush1.msra.mxu0 0.0
    %5278 = vmatprep.subr.mxu0 0.0
    %5279 = vmatpush1.msra.mxu0 0.0
    %5280 = vmatprep.subr.mxu0 0.0
    %5281 = vmatpush1.msra.mxu0 0.0
    %5282 = vmatprep.subr.mxu0 0.0
    %5283 = vmatpush1.msra.mxu0 0.0
    %5284 = vmatprep.subr.mxu0 0.0
    %5285 = vmatpush1.msra.mxu0 0.0
    %5286 = vmatprep.subr.mxu0 0.0
    %5287 = vmatpush1.msra.mxu0 0.0
    %5288 = vmatprep.subr.mxu0 0.0
    %5289 = vmatpush1.msra.mxu0 0.0
    %5290 = vmatprep.subr.mxu0 0.0
    %5291 = vmatpush1.msra.mxu0 0.0
    %5292 = vmatprep.subr.mxu0 0.0
    %5293 = vmatpush1.msra.mxu0 0.0
    %5294 = vmatprep.subr.mxu0 0.0
    %5295 = vmatpush1.msra.mxu0 0.0
    %5296 = vmatprep.subr.mxu0 0.0
    %5297 = vmatpush1.msra.mxu0 0.0
    %5298 = vmatprep.subr.mxu0 0.0
    %5299 = vmatpush1.msra.mxu0 0.0
    %5300 = vmatprep.subr.mxu0 0.0
    %5301 = vmatpush1.msra.mxu0 %v478
    %5302 = vmatprep.subr.mxu0 0.0
    %5303 = vmatpush1.msra.mxu0 %v477
    %5304 = vmatprep.subr.mxu0 0.0
    %5305 = vmatpush1.msra.mxu0 %v476
    %5306 = vmatprep.subr.mxu0 0.0
    %5307 = vmatpush1.msra.mxu0 %v475
    %5308 = vmatprep.subr.mxu0 0.0
    %5309 = vmatpush2.msra.mxu0 0.0
    %5310 = vmatprep.subr.mxu0 0.0
    %5311 = vmatpush2.msra.mxu0 0.0
    %5312 = vmatprep.subr.mxu0 0.0
    %5313 = vmatpush2.msra.mxu0 0.0
    %5314 = vmatprep.subr.mxu0 0.0
    %5315 = vmatpush2.msra.mxu0 0.0
    %5316 = vmatprep.subr.mxu0 0.0
    %5317 = vmatpush2.msra.mxu0 0.0
    %5318 = vmatprep.subr.mxu0 0.0
    %5319 = vmatpush2.msra.mxu0 0.0
    %5320 = vmatprep.subr.mxu0 0.0
    %5321 = vmatpush2.msra.mxu0 0.0
    %5322 = vmatprep.subr.mxu0 0.0
    %5323 = vmatpush2.msra.mxu0 0.0
    %5324 = vmatprep.subr.mxu0 0.0
    %5325 = vmatpush2.msra.mxu0 0.0
    %5326 = vmatprep.subr.mxu0 0.0
    %5327 = vmatpush2.msra.mxu0 0.0
    %5328 = vmatprep.subr.mxu0 0.0
    %5329 = vmatpush2.msra.mxu0 0.0
    %5330 = vmatprep.subr.mxu0 0.0
    %5331 = vmatpush2.msra.mxu0 0.0
    %5332 = vmatprep.subr.mxu0 0.0
    %5333 = vmatpush2.msra.mxu0 0.0
    %5334 = vmatprep.subr.mxu0 0.0
    %5335 = vmatpush2.msra.mxu0 0.0
    %5336 = vmatprep.subr.mxu0 0.0
    %5337 = vmatpush2.msra.mxu0 0.0
    %5338 = vmatprep.subr.mxu0 0.0
    %5339 = vmatpush2.msra.mxu0 0.0
    %5340 = vmatprep.mubr.f32.mxu0 0.0
    %5341 = vmatmul.mubr.f32.gmra.mxu0 %v5202
    %v5342 = vpop.f32.mrf.mxu0
    %v5343 = vadd.f32 %v636, %v5342
    %v5344 = vpop.f32.mrf.mxu0
    %5345 = vdwg.mxu0
    %v5347 = vsel %vm434, %v5199, 0
    %5349 = vmatprep.subr.mxu0 0.0
    %5350 = vmatpush1.msra.mxu0 0.0
    %5351 = vmatprep.subr.mxu0 0.0
    %5352 = vmatpush1.msra.mxu0 0.0
    %5353 = vmatprep.subr.mxu0 0.0
    %5354 = vmatpush1.msra.mxu0 0.0
    %5355 = vmatprep.subr.mxu0 0.0
    %5356 = vmatpush1.msra.mxu0 0.0
    %5357 = vmatprep.subr.mxu0 0.0
    %5358 = vmatpush1.msra.mxu0 0.0
    %5359 = vmatprep.subr.mxu0 0.0
    %5360 = vmatpush1.msra.mxu0 0.0
    %5361 = vmatprep.subr.mxu0 0.0
    %5362 = vmatpush1.msra.mxu0 0.0
    %5363 = vmatprep.subr.mxu0 0.0
    %5364 = vmatpush1.msra.mxu0 0.0
    %5365 = vmatprep.subr.mxu0 0.0
    %5366 = vmatpush1.msra.mxu0 0.0
    %5367 = vmatprep.subr.mxu0 0.0
    %5368 = vmatpush1.msra.mxu0 0.0
    %5369 = vmatprep.subr.mxu0 0.0
    %5370 = vmatpush1.msra.mxu0 0.0
    %5371 = vmatprep.subr.mxu0 0.0
    %5372 = vmatpush1.msra.mxu0 0.0
    %5373 = vmatprep.subr.mxu0 0.0
    %5374 = vmatpush1.msra.mxu0 %v474
    %5375 = vmatprep.subr.mxu0 0.0
    %5376 = vmatpush1.msra.mxu0 %v473
    %5377 = vmatprep.subr.mxu0 0.0
    %5378 = vmatpush1.msra.mxu0 %v472
    %5379 = vmatprep.subr.mxu0 0.0
    %5380 = vmatpush1.msra.mxu0 %v471
    %5381 = vmatprep.subr.mxu0 0.0
    %5382 = vmatpush2.msra.mxu0 0.0
    %5383 = vmatprep.subr.mxu0 0.0
    %5384 = vmatpush2.msra.mxu0 0.0
    %5385 = vmatprep.subr.mxu0 0.0
    %5386 = vmatpush2.msra.mxu0 0.0
    %5387 = vmatprep.subr.mxu0 0.0
    %5388 = vmatpush2.msra.mxu0 0.0
    %5389 = vmatprep.subr.mxu0 0.0
    %5390 = vmatpush2.msra.mxu0 0.0
    %5391 = vmatprep.subr.mxu0 0.0
    %5392 = vmatpush2.msra.mxu0 0.0
    %5393 = vmatprep.subr.mxu0 0.0
    %5394 = vmatpush2.msra.mxu0 0.0
    %5395 = vmatprep.subr.mxu0 0.0
    %5396 = vmatpush2.msra.mxu0 0.0
    %5397 = vmatprep.subr.mxu0 0.0
    %5398 = vmatpush2.msra.mxu0 0.0
    %5399 = vmatprep.subr.mxu0 0.0
    %5400 = vmatpush2.msra.mxu0 0.0
    %5401 = vmatprep.subr.mxu0 0.0
    %5402 = vmatpush2.msra.mxu0 0.0
    %5403 = vmatprep.subr.mxu0 0.0
    %5404 = vmatpush2.msra.mxu0 0.0
    %5405 = vmatprep.subr.mxu0 0.0
    %5406 = vmatpush2.msra.mxu0 0.0
    %5407 = vmatprep.subr.mxu0 0.0
    %5408 = vmatpush2.msra.mxu0 0.0
    %5409 = vmatprep.subr.mxu0 0.0
    %5410 = vmatpush2.msra.mxu0 0.0
    %5411 = vmatprep.subr.mxu0 0.0
    %5412 = vmatpush2.msra.mxu0 0.0
    %5413 = vmatprep.mubr.f32.mxu0 0.0
    %5414 = vmatmul.mubr.f32.gmra.mxu0 %v5347
    %v5415 = vpop.f32.mrf.mxu0
    %v5416 = vadd.f32 0.0, %v5415
    %v5417 = vpop.f32.mrf.mxu0
    %5418 = vdwg.mxu0
    %v5419 = vadd.f32 %v5343, %v5416
    %v5420 = vtanh.pop %v5419
    %v5421 = vld [vmem:[#allocation2 + $0xb8] sm:$0xff]
    %v5423 = vsel %vm434, %v5275, 0
    %5425 = vmatprep.subr.mxu0 0.0
    %5426 = vmatpush1.msra.mxu0 0.0
    %5427 = vmatprep.subr.mxu0 0.0
    %5428 = vmatpush1.msra.mxu0 0.0
    %5429 = vmatprep.subr.mxu0 0.0
    %5430 = vmatpush1.msra.mxu0 0.0
    %5431 = vmatprep.subr.mxu0 0.0
    %5432 = vmatpush1.msra.mxu0 0.0
    %5433 = vmatprep.subr.mxu0 0.0
    %5434 = vmatpush1.msra.mxu0 0.0
    %5435 = vmatprep.subr.mxu0 0.0
    %5436 = vmatpush1.msra.mxu0 0.0
    %5437 = vmatprep.subr.mxu0 0.0
    %5438 = vmatpush1.msra.mxu0 0.0
    %5439 = vmatprep.subr.mxu0 0.0
    %5440 = vmatpush1.msra.mxu0 0.0
    %5441 = vmatprep.subr.mxu0 0.0
    %5442 = vmatpush1.msra.mxu0 0.0
    %5443 = vmatprep.subr.mxu0 0.0
    %5444 = vmatpush1.msra.mxu0 0.0
    %5445 = vmatprep.subr.mxu0 0.0
    %5446 = vmatpush1.msra.mxu0 0.0
    %5447 = vmatprep.subr.mxu0 0.0
    %5448 = vmatpush1.msra.mxu0 0.0
    %5449 = vmatprep.subr.mxu0 0.0
    %5450 = vmatpush1.msra.mxu0 %v470
    %5451 = vmatprep.subr.mxu0 0.0
    %5452 = vmatpush1.msra.mxu0 %v469
    %5453 = vmatprep.subr.mxu0 0.0
    %5454 = vmatpush1.msra.mxu0 %v468
    %5455 = vmatprep.subr.mxu0 0.0
    %5456 = vmatpush1.msra.mxu0 %v467
    %5457 = vmatprep.subr.mxu0 0.0
    %5458 = vmatpush2.msra.mxu0 0.0
    %5459 = vmatprep.subr.mxu0 0.0
    %5460 = vmatpush2.msra.mxu0 0.0
    %5461 = vmatprep.subr.mxu0 0.0
    %5462 = vmatpush2.msra.mxu0 0.0
    %5463 = vmatprep.subr.mxu0 0.0
    %5464 = vmatpush2.msra.mxu0 0.0
    %5465 = vmatprep.subr.mxu0 0.0
    %5466 = vmatpush2.msra.mxu0 0.0
    %5467 = vmatprep.subr.mxu0 0.0
    %5468 = vmatpush2.msra.mxu0 0.0
    %5469 = vmatprep.subr.mxu0 0.0
    %5470 = vmatpush2.msra.mxu0 0.0
    %5471 = vmatprep.subr.mxu0 0.0
    %5472 = vmatpush2.msra.mxu0 0.0
    %5473 = vmatprep.subr.mxu0 0.0
    %5474 = vmatpush2.msra.mxu0 0.0
    %5475 = vmatprep.subr.mxu0 0.0
    %5476 = vmatpush2.msra.mxu0 0.0
    %5477 = vmatprep.subr.mxu0 0.0
    %5478 = vmatpush2.msra.mxu0 0.0
    %5479 = vmatprep.subr.mxu0 0.0
    %5480 = vmatpush2.msra.mxu0 0.0
    %5481 = vmatprep.subr.mxu0 0.0
    %5482 = vmatpush2.msra.mxu0 0.0
    %5483 = vmatprep.subr.mxu0 0.0
    %5484 = vmatpush2.msra.mxu0 0.0
    %5485 = vmatprep.subr.mxu0 0.0
    %5486 = vmatpush2.msra.mxu0 0.0
    %5487 = vmatprep.subr.mxu0 0.0
    %5488 = vmatpush2.msra.mxu0 0.0
    %5489 = vmatprep.mubr.f32.mxu0 0.0
    %5490 = vmatmul.mubr.f32.gmra.mxu0 %v5423
    %v5491 = vpop.f32.mrf.mxu0
    %v5492 = vadd.f32 0.0, %v5491
    %v5493 = vpop.f32.mrf.mxu0
    %5494 = vdwg.mxu0
    %v5495 = vadd.f32 %v5421, %v5492
    %v5496 = vtanh.pop %v5495
    %5497 = vmatprep.subr.mxu0 0.0
    %5498 = vmatpush1.msra.mxu0 0.0
    %5499 = vmatprep.subr.mxu0 0.0
    %5500 = vmatpush1.msra.mxu0 0.0
    %5501 = vmatprep.subr.mxu0 0.0
    %5502 = vmatpush1.msra.mxu0 0.0
    %5503 = vmatprep.subr.mxu0 0.0
    %5504 = vmatpush1.msra.mxu0 0.0
    %5505 = vmatprep.subr.mxu0 0.0
    %5506 = vmatpush1.msra.mxu0 0.0
    %5507 = vmatprep.subr.mxu0 0.0
    %5508 = vmatpush1.msra.mxu0 0.0
    %5509 = vmatprep.subr.mxu0 0.0
    %5510 = vmatpush1.msra.mxu0 0.0
    %5511 = vmatprep.subr.mxu0 0.0
    %5512 = vmatpush1.msra.mxu0 0.0
    %5513 = vmatprep.subr.mxu0 0.0
    %5514 = vmatpush1.msra.mxu0 0.0
    %5515 = vmatprep.subr.mxu0 0.0
    %5516 = vmatpush1.msra.mxu0 0.0
    %5517 = vmatprep.subr.mxu0 0.0
    %5518 = vmatpush1.msra.mxu0 0.0
    %5519 = vmatprep.subr.mxu0 0.0
    %5520 = vmatpush1.msra.mxu0 0.0
    %5521 = vmatprep.subr.mxu0 0.0
    %5522 = vmatpush1.msra.mxu0 %v478
    %5523 = vmatprep.subr.mxu0 0.0
    %5524 = vmatpush1.msra.mxu0 %v477
    %5525 = vmatprep.subr.mxu0 0.0
    %5526 = vmatpush1.msra.mxu0 %v476
    %5527 = vmatprep.subr.mxu0 0.0
    %5528 = vmatpush1.msra.mxu0 %v475
    %5529 = vmatprep.subr.mxu0 0.0
    %5530 = vmatpush2.msra.mxu0 0.0
    %5531 = vmatprep.subr.mxu0 0.0
    %5532 = vmatpush2.msra.mxu0 0.0
    %5533 = vmatprep.subr.mxu0 0.0
    %5534 = vmatpush2.msra.mxu0 0.0
    %5535 = vmatprep.subr.mxu0 0.0
    %5536 = vmatpush2.msra.mxu0 0.0
    %5537 = vmatprep.subr.mxu0 0.0
    %5538 = vmatpush2.msra.mxu0 0.0
    %5539 = vmatprep.subr.mxu0 0.0
    %5540 = vmatpush2.msra.mxu0 0.0
    %5541 = vmatprep.subr.mxu0 0.0
    %5542 = vmatpush2.msra.mxu0 0.0
    %5543 = vmatprep.subr.mxu0 0.0
    %5544 = vmatpush2.msra.mxu0 0.0
    %5545 = vmatprep.subr.mxu0 0.0
    %5546 = vmatpush2.msra.mxu0 0.0
    %5547 = vmatprep.subr.mxu0 0.0
    %5548 = vmatpush2.msra.mxu0 0.0
    %5549 = vmatprep.subr.mxu0 0.0
    %5550 = vmatpush2.msra.mxu0 0.0
    %5551 = vmatprep.subr.mxu0 0.0
    %5552 = vmatpush2.msra.mxu0 0.0
    %5553 = vmatprep.subr.mxu0 0.0
    %5554 = vmatpush2.msra.mxu0 0.0
    %5555 = vmatprep.subr.mxu0 0.0
    %5556 = vmatpush2.msra.mxu0 0.0
    %5557 = vmatprep.subr.mxu0 0.0
    %5558 = vmatpush2.msra.mxu0 0.0
    %5559 = vmatprep.subr.mxu0 0.0
    %5560 = vmatpush2.msra.mxu0 0.0
    %5561 = vmatprep.mubr.f32.mxu0 0.0
    %5562 = vmatmul.mubr.f32.gmra.mxu0 %v5423
    %v5563 = vpop.f32.mrf.mxu0
    %v5564 = vadd.f32 %v636, %v5563
    %v5565 = vpop.f32.mrf.mxu0
    %5566 = vdwg.mxu0
    %v5568 = vsel %vm434, %v5420, 0
    %5570 = vmatprep.subr.mxu0 0.0
    %5571 = vmatpush1.msra.mxu0 0.0
    %5572 = vmatprep.subr.mxu0 0.0
    %5573 = vmatpush1.msra.mxu0 0.0
    %5574 = vmatprep.subr.mxu0 0.0
    %5575 = vmatpush1.msra.mxu0 0.0
    %5576 = vmatprep.subr.mxu0 0.0
    %5577 = vmatpush1.msra.mxu0 0.0
    %5578 = vmatprep.subr.mxu0 0.0
    %5579 = vmatpush1.msra.mxu0 0.0
    %5580 = vmatprep.subr.mxu0 0.0
    %5581 = vmatpush1.msra.mxu0 0.0
    %5582 = vmatprep.subr.mxu0 0.0
    %5583 = vmatpush1.msra.mxu0 0.0
    %5584 = vmatprep.subr.mxu0 0.0
    %5585 = vmatpush1.msra.mxu0 0.0
    %5586 = vmatprep.subr.mxu0 0.0
    %5587 = vmatpush1.msra.mxu0 0.0
    %5588 = vmatprep.subr.mxu0 0.0
    %5589 = vmatpush1.msra.mxu0 0.0
    %5590 = vmatprep.subr.mxu0 0.0
    %5591 = vmatpush1.msra.mxu0 0.0
    %5592 = vmatprep.subr.mxu0 0.0
    %5593 = vmatpush1.msra.mxu0 0.0
    %5594 = vmatprep.subr.mxu0 0.0
    %5595 = vmatpush1.msra.mxu0 %v474
    %5596 = vmatprep.subr.mxu0 0.0
    %5597 = vmatpush1.msra.mxu0 %v473
    %5598 = vmatprep.subr.mxu0 0.0
    %5599 = vmatpush1.msra.mxu0 %v472
    %5600 = vmatprep.subr.mxu0 0.0
    %5601 = vmatpush1.msra.mxu0 %v471
    %5602 = vmatprep.subr.mxu0 0.0
    %5603 = vmatpush2.msra.mxu0 0.0
    %5604 = vmatprep.subr.mxu0 0.0
    %5605 = vmatpush2.msra.mxu0 0.0
    %5606 = vmatprep.subr.mxu0 0.0
    %5607 = vmatpush2.msra.mxu0 0.0
    %5608 = vmatprep.subr.mxu0 0.0
    %5609 = vmatpush2.msra.mxu0 0.0
    %5610 = vmatprep.subr.mxu0 0.0
    %5611 = vmatpush2.msra.mxu0 0.0
    %5612 = vmatprep.subr.mxu0 0.0
    %5613 = vmatpush2.msra.mxu0 0.0
    %5614 = vmatprep.subr.mxu0 0.0
    %5615 = vmatpush2.msra.mxu0 0.0
    %5616 = vmatprep.subr.mxu0 0.0
    %5617 = vmatpush2.msra.mxu0 0.0
    %5618 = vmatprep.subr.mxu0 0.0
    %5619 = vmatpush2.msra.mxu0 0.0
    %5620 = vmatprep.subr.mxu0 0.0
    %5621 = vmatpush2.msra.mxu0 0.0
    %5622 = vmatprep.subr.mxu0 0.0
    %5623 = vmatpush2.msra.mxu0 0.0
    %5624 = vmatprep.subr.mxu0 0.0
    %5625 = vmatpush2.msra.mxu0 0.0
    %5626 = vmatprep.subr.mxu0 0.0
    %5627 = vmatpush2.msra.mxu0 0.0
    %5628 = vmatprep.subr.mxu0 0.0
    %5629 = vmatpush2.msra.mxu0 0.0
    %5630 = vmatprep.subr.mxu0 0.0
    %5631 = vmatpush2.msra.mxu0 0.0
    %5632 = vmatprep.subr.mxu0 0.0
    %5633 = vmatpush2.msra.mxu0 0.0
    %5634 = vmatprep.mubr.f32.mxu0 0.0
    %5635 = vmatmul.mubr.f32.gmra.mxu0 %v5568
    %v5636 = vpop.f32.mrf.mxu0
    %v5637 = vadd.f32 0.0, %v5636
    %v5638 = vpop.f32.mrf.mxu0
    %5639 = vdwg.mxu0
    %v5640 = vadd.f32 %v5564, %v5637
    %v5641 = vtanh.pop %v5640
    %v5642 = vld [vmem:[#allocation2 + $0xc0] sm:$0xff]
    %v5644 = vsel %vm434, %v5496, 0
    %5646 = vmatprep.subr.mxu0 0.0
    %5647 = vmatpush1.msra.mxu0 0.0
    %5648 = vmatprep.subr.mxu0 0.0
    %5649 = vmatpush1.msra.mxu0 0.0
    %5650 = vmatprep.subr.mxu0 0.0
    %5651 = vmatpush1.msra.mxu0 0.0
    %5652 = vmatprep.subr.mxu0 0.0
    %5653 = vmatpush1.msra.mxu0 0.0
    %5654 = vmatprep.subr.mxu0 0.0
    %5655 = vmatpush1.msra.mxu0 0.0
    %5656 = vmatprep.subr.mxu0 0.0
    %5657 = vmatpush1.msra.mxu0 0.0
    %5658 = vmatprep.subr.mxu0 0.0
    %5659 = vmatpush1.msra.mxu0 0.0
    %5660 = vmatprep.subr.mxu0 0.0
    %5661 = vmatpush1.msra.mxu0 0.0
    %5662 = vmatprep.subr.mxu0 0.0
    %5663 = vmatpush1.msra.mxu0 0.0
    %5664 = vmatprep.subr.mxu0 0.0
    %5665 = vmatpush1.msra.mxu0 0.0
    %5666 = vmatprep.subr.mxu0 0.0
    %5667 = vmatpush1.msra.mxu0 0.0
    %5668 = vmatprep.subr.mxu0 0.0
    %5669 = vmatpush1.msra.mxu0 0.0
    %5670 = vmatprep.subr.mxu0 0.0
    %5671 = vmatpush1.msra.mxu0 %v470
    %5672 = vmatprep.subr.mxu0 0.0
    %5673 = vmatpush1.msra.mxu0 %v469
    %5674 = vmatprep.subr.mxu0 0.0
    %5675 = vmatpush1.msra.mxu0 %v468
    %5676 = vmatprep.subr.mxu0 0.0
    %5677 = vmatpush1.msra.mxu0 %v467
    %5678 = vmatprep.subr.mxu0 0.0
    %5679 = vmatpush2.msra.mxu0 0.0
    %5680 = vmatprep.subr.mxu0 0.0
    %5681 = vmatpush2.msra.mxu0 0.0
    %5682 = vmatprep.subr.mxu0 0.0
    %5683 = vmatpush2.msra.mxu0 0.0
    %5684 = vmatprep.subr.mxu0 0.0
    %5685 = vmatpush2.msra.mxu0 0.0
    %5686 = vmatprep.subr.mxu0 0.0
    %5687 = vmatpush2.msra.mxu0 0.0
    %5688 = vmatprep.subr.mxu0 0.0
    %5689 = vmatpush2.msra.mxu0 0.0
    %5690 = vmatprep.subr.mxu0 0.0
    %5691 = vmatpush2.msra.mxu0 0.0
    %5692 = vmatprep.subr.mxu0 0.0
    %5693 = vmatpush2.msra.mxu0 0.0
    %5694 = vmatprep.subr.mxu0 0.0
    %5695 = vmatpush2.msra.mxu0 0.0
    %5696 = vmatprep.subr.mxu0 0.0
    %5697 = vmatpush2.msra.mxu0 0.0
    %5698 = vmatprep.subr.mxu0 0.0
    %5699 = vmatpush2.msra.mxu0 0.0
    %5700 = vmatprep.subr.mxu0 0.0
    %5701 = vmatpush2.msra.mxu0 0.0
    %5702 = vmatprep.subr.mxu0 0.0
    %5703 = vmatpush2.msra.mxu0 0.0
    %5704 = vmatprep.subr.mxu0 0.0
    %5705 = vmatpush2.msra.mxu0 0.0
    %5706 = vmatprep.subr.mxu0 0.0
    %5707 = vmatpush2.msra.mxu0 0.0
    %5708 = vmatprep.subr.mxu0 0.0
    %5709 = vmatpush2.msra.mxu0 0.0
    %5710 = vmatprep.mubr.f32.mxu0 0.0
    %5711 = vmatmul.mubr.f32.gmra.mxu0 %v5644
    %v5712 = vpop.f32.mrf.mxu0
    %v5713 = vadd.f32 0.0, %v5712
    %v5714 = vpop.f32.mrf.mxu0
    %5715 = vdwg.mxu0
    %v5716 = vadd.f32 %v5642, %v5713
    %v5717 = vtanh.pop %v5716
    %5718 = vmatprep.subr.mxu0 0.0
    %5719 = vmatpush1.msra.mxu0 0.0
    %5720 = vmatprep.subr.mxu0 0.0
    %5721 = vmatpush1.msra.mxu0 0.0
    %5722 = vmatprep.subr.mxu0 0.0
    %5723 = vmatpush1.msra.mxu0 0.0
    %5724 = vmatprep.subr.mxu0 0.0
    %5725 = vmatpush1.msra.mxu0 0.0
    %5726 = vmatprep.subr.mxu0 0.0
    %5727 = vmatpush1.msra.mxu0 0.0
    %5728 = vmatprep.subr.mxu0 0.0
    %5729 = vmatpush1.msra.mxu0 0.0
    %5730 = vmatprep.subr.mxu0 0.0
    %5731 = vmatpush1.msra.mxu0 0.0
    %5732 = vmatprep.subr.mxu0 0.0
    %5733 = vmatpush1.msra.mxu0 0.0
    %5734 = vmatprep.subr.mxu0 0.0
    %5735 = vmatpush1.msra.mxu0 0.0
    %5736 = vmatprep.subr.mxu0 0.0
    %5737 = vmatpush1.msra.mxu0 0.0
    %5738 = vmatprep.subr.mxu0 0.0
    %5739 = vmatpush1.msra.mxu0 0.0
    %5740 = vmatprep.subr.mxu0 0.0
    %5741 = vmatpush1.msra.mxu0 0.0
    %5742 = vmatprep.subr.mxu0 0.0
    %5743 = vmatpush1.msra.mxu0 %v478
    %5744 = vmatprep.subr.mxu0 0.0
    %5745 = vmatpush1.msra.mxu0 %v477
    %5746 = vmatprep.subr.mxu0 0.0
    %5747 = vmatpush1.msra.mxu0 %v476
    %5748 = vmatprep.subr.mxu0 0.0
    %5749 = vmatpush1.msra.mxu0 %v475
    %5750 = vmatprep.subr.mxu0 0.0
    %5751 = vmatpush2.msra.mxu0 0.0
    %5752 = vmatprep.subr.mxu0 0.0
    %5753 = vmatpush2.msra.mxu0 0.0
    %5754 = vmatprep.subr.mxu0 0.0
    %5755 = vmatpush2.msra.mxu0 0.0
    %5756 = vmatprep.subr.mxu0 0.0
    %5757 = vmatpush2.msra.mxu0 0.0
    %5758 = vmatprep.subr.mxu0 0.0
    %5759 = vmatpush2.msra.mxu0 0.0
    %5760 = vmatprep.subr.mxu0 0.0
    %5761 = vmatpush2.msra.mxu0 0.0
    %5762 = vmatprep.subr.mxu0 0.0
    %5763 = vmatpush2.msra.mxu0 0.0
    %5764 = vmatprep.subr.mxu0 0.0
    %5765 = vmatpush2.msra.mxu0 0.0
    %5766 = vmatprep.subr.mxu0 0.0
    %5767 = vmatpush2.msra.mxu0 0.0
    %5768 = vmatprep.subr.mxu0 0.0
    %5769 = vmatpush2.msra.mxu0 0.0
    %5770 = vmatprep.subr.mxu0 0.0
    %5771 = vmatpush2.msra.mxu0 0.0
    %5772 = vmatprep.subr.mxu0 0.0
    %5773 = vmatpush2.msra.mxu0 0.0
    %5774 = vmatprep.subr.mxu0 0.0
    %5775 = vmatpush2.msra.mxu0 0.0
    %5776 = vmatprep.subr.mxu0 0.0
    %5777 = vmatpush2.msra.mxu0 0.0
    %5778 = vmatprep.subr.mxu0 0.0
    %5779 = vmatpush2.msra.mxu0 0.0
    %5780 = vmatprep.subr.mxu0 0.0
    %5781 = vmatpush2.msra.mxu0 0.0
    %5782 = vmatprep.mubr.f32.mxu0 0.0
    %5783 = vmatmul.mubr.f32.gmra.mxu0 %v5644
    %v5784 = vpop.f32.mrf.mxu0
    %v5785 = vadd.f32 %v636, %v5784
    %v5786 = vpop.f32.mrf.mxu0
    %5787 = vdwg.mxu0
    %v5789 = vsel %vm434, %v5641, 0
    %5791 = vmatprep.subr.mxu0 0.0
    %5792 = vmatpush1.msra.mxu0 0.0
    %5793 = vmatprep.subr.mxu0 0.0
    %5794 = vmatpush1.msra.mxu0 0.0
    %5795 = vmatprep.subr.mxu0 0.0
    %5796 = vmatpush1.msra.mxu0 0.0
    %5797 = vmatprep.subr.mxu0 0.0
    %5798 = vmatpush1.msra.mxu0 0.0
    %5799 = vmatprep.subr.mxu0 0.0
    %5800 = vmatpush1.msra.mxu0 0.0
    %5801 = vmatprep.subr.mxu0 0.0
    %5802 = vmatpush1.msra.mxu0 0.0
    %5803 = vmatprep.subr.mxu0 0.0
    %5804 = vmatpush1.msra.mxu0 0.0
    %5805 = vmatprep.subr.mxu0 0.0
    %5806 = vmatpush1.msra.mxu0 0.0
    %5807 = vmatprep.subr.mxu0 0.0
    %5808 = vmatpush1.msra.mxu0 0.0
    %5809 = vmatprep.subr.mxu0 0.0
    %5810 = vmatpush1.msra.mxu0 0.0
    %5811 = vmatprep.subr.mxu0 0.0
    %5812 = vmatpush1.msra.mxu0 0.0
    %5813 = vmatprep.subr.mxu0 0.0
    %5814 = vmatpush1.msra.mxu0 0.0
    %5815 = vmatprep.subr.mxu0 0.0
    %5816 = vmatpush1.msra.mxu0 %v474
    %5817 = vmatprep.subr.mxu0 0.0
    %5818 = vmatpush1.msra.mxu0 %v473
    %5819 = vmatprep.subr.mxu0 0.0
    %5820 = vmatpush1.msra.mxu0 %v472
    %5821 = vmatprep.subr.mxu0 0.0
    %5822 = vmatpush1.msra.mxu0 %v471
    %5823 = vmatprep.subr.mxu0 0.0
    %5824 = vmatpush2.msra.mxu0 0.0
    %5825 = vmatprep.subr.mxu0 0.0
    %5826 = vmatpush2.msra.mxu0 0.0
    %5827 = vmatprep.subr.mxu0 0.0
    %5828 = vmatpush2.msra.mxu0 0.0
    %5829 = vmatprep.subr.mxu0 0.0
    %5830 = vmatpush2.msra.mxu0 0.0
    %5831 = vmatprep.subr.mxu0 0.0
    %5832 = vmatpush2.msra.mxu0 0.0
    %5833 = vmatprep.subr.mxu0 0.0
    %5834 = vmatpush2.msra.mxu0 0.0
    %5835 = vmatprep.subr.mxu0 0.0
    %5836 = vmatpush2.msra.mxu0 0.0
    %5837 = vmatprep.subr.mxu0 0.0
    %5838 = vmatpush2.msra.mxu0 0.0
    %5839 = vmatprep.subr.mxu0 0.0
    %5840 = vmatpush2.msra.mxu0 0.0
    %5841 = vmatprep.subr.mxu0 0.0
    %5842 = vmatpush2.msra.mxu0 0.0
    %5843 = vmatprep.subr.mxu0 0.0
    %5844 = vmatpush2.msra.mxu0 0.0
    %5845 = vmatprep.subr.mxu0 0.0
    %5846 = vmatpush2.msra.mxu0 0.0
    %5847 = vmatprep.subr.mxu0 0.0
    %5848 = vmatpush2.msra.mxu0 0.0
    %5849 = vmatprep.subr.mxu0 0.0
    %5850 = vmatpush2.msra.mxu0 0.0
    %5851 = vmatprep.subr.mxu0 0.0
    %5852 = vmatpush2.msra.mxu0 0.0
    %5853 = vmatprep.subr.mxu0 0.0
    %5854 = vmatpush2.msra.mxu0 0.0
    %5855 = vmatprep.mubr.f32.mxu0 0.0
    %5856 = vmatmul.mubr.f32.gmra.mxu0 %v5789
    %v5857 = vpop.f32.mrf.mxu0
    %v5858 = vadd.f32 0.0, %v5857
    %v5859 = vpop.f32.mrf.mxu0
    %5860 = vdwg.mxu0
    %v5861 = vadd.f32 %v5785, %v5858
    %v5862 = vtanh.pop %v5861
    %v5863 = vld [vmem:[#allocation2 + $0xc8] sm:$0xff]
    %v5865 = vsel %vm434, %v5717, 0
    %5867 = vmatprep.subr.mxu0 0.0
    %5868 = vmatpush1.msra.mxu0 0.0
    %5869 = vmatprep.subr.mxu0 0.0
    %5870 = vmatpush1.msra.mxu0 0.0
    %5871 = vmatprep.subr.mxu0 0.0
    %5872 = vmatpush1.msra.mxu0 0.0
    %5873 = vmatprep.subr.mxu0 0.0
    %5874 = vmatpush1.msra.mxu0 0.0
    %5875 = vmatprep.subr.mxu0 0.0
    %5876 = vmatpush1.msra.mxu0 0.0
    %5877 = vmatprep.subr.mxu0 0.0
    %5878 = vmatpush1.msra.mxu0 0.0
    %5879 = vmatprep.subr.mxu0 0.0
    %5880 = vmatpush1.msra.mxu0 0.0
    %5881 = vmatprep.subr.mxu0 0.0
    %5882 = vmatpush1.msra.mxu0 0.0
    %5883 = vmatprep.subr.mxu0 0.0
    %5884 = vmatpush1.msra.mxu0 0.0
    %5885 = vmatprep.subr.mxu0 0.0
    %5886 = vmatpush1.msra.mxu0 0.0
    %5887 = vmatprep.subr.mxu0 0.0
    %5888 = vmatpush1.msra.mxu0 0.0
    %5889 = vmatprep.subr.mxu0 0.0
    %5890 = vmatpush1.msra.mxu0 0.0
    %5891 = vmatprep.subr.mxu0 0.0
    %5892 = vmatpush1.msra.mxu0 %v470
    %5893 = vmatprep.subr.mxu0 0.0
    %5894 = vmatpush1.msra.mxu0 %v469
    %5895 = vmatprep.subr.mxu0 0.0
    %5896 = vmatpush1.msra.mxu0 %v468
    %5897 = vmatprep.subr.mxu0 0.0
    %5898 = vmatpush1.msra.mxu0 %v467
    %5899 = vmatprep.subr.mxu0 0.0
    %5900 = vmatpush2.msra.mxu0 0.0
    %5901 = vmatprep.subr.mxu0 0.0
    %5902 = vmatpush2.msra.mxu0 0.0
    %5903 = vmatprep.subr.mxu0 0.0
    %5904 = vmatpush2.msra.mxu0 0.0
    %5905 = vmatprep.subr.mxu0 0.0
    %5906 = vmatpush2.msra.mxu0 0.0
    %5907 = vmatprep.subr.mxu0 0.0
    %5908 = vmatpush2.msra.mxu0 0.0
    %5909 = vmatprep.subr.mxu0 0.0
    %5910 = vmatpush2.msra.mxu0 0.0
    %5911 = vmatprep.subr.mxu0 0.0
    %5912 = vmatpush2.msra.mxu0 0.0
    %5913 = vmatprep.subr.mxu0 0.0
    %5914 = vmatpush2.msra.mxu0 0.0
    %5915 = vmatprep.subr.mxu0 0.0
    %5916 = vmatpush2.msra.mxu0 0.0
    %5917 = vmatprep.subr.mxu0 0.0
    %5918 = vmatpush2.msra.mxu0 0.0
    %5919 = vmatprep.subr.mxu0 0.0
    %5920 = vmatpush2.msra.mxu0 0.0
    %5921 = vmatprep.subr.mxu0 0.0
    %5922 = vmatpush2.msra.mxu0 0.0
    %5923 = vmatprep.subr.mxu0 0.0
    %5924 = vmatpush2.msra.mxu0 0.0
    %5925 = vmatprep.subr.mxu0 0.0
    %5926 = vmatpush2.msra.mxu0 0.0
    %5927 = vmatprep.subr.mxu0 0.0
    %5928 = vmatpush2.msra.mxu0 0.0
    %5929 = vmatprep.subr.mxu0 0.0
    %5930 = vmatpush2.msra.mxu0 0.0
    %5931 = vmatprep.mubr.f32.mxu0 0.0
    %5932 = vmatmul.mubr.f32.gmra.mxu0 %v5865
    %v5933 = vpop.f32.mrf.mxu0
    %v5934 = vadd.f32 0.0, %v5933
    %v5935 = vpop.f32.mrf.mxu0
    %5936 = vdwg.mxu0
    %v5937 = vadd.f32 %v5863, %v5934
    %v5938 = vtanh.pop %v5937
    %5939 = vmatprep.subr.mxu0 0.0
    %5940 = vmatpush1.msra.mxu0 0.0
    %5941 = vmatprep.subr.mxu0 0.0
    %5942 = vmatpush1.msra.mxu0 0.0
    %5943 = vmatprep.subr.mxu0 0.0
    %5944 = vmatpush1.msra.mxu0 0.0
    %5945 = vmatprep.subr.mxu0 0.0
    %5946 = vmatpush1.msra.mxu0 0.0
    %5947 = vmatprep.subr.mxu0 0.0
    %5948 = vmatpush1.msra.mxu0 0.0
    %5949 = vmatprep.subr.mxu0 0.0
    %5950 = vmatpush1.msra.mxu0 0.0
    %5951 = vmatprep.subr.mxu0 0.0
    %5952 = vmatpush1.msra.mxu0 0.0
    %5953 = vmatprep.subr.mxu0 0.0
    %5954 = vmatpush1.msra.mxu0 0.0
    %5955 = vmatprep.subr.mxu0 0.0
    %5956 = vmatpush1.msra.mxu0 0.0
    %5957 = vmatprep.subr.mxu0 0.0
    %5958 = vmatpush1.msra.mxu0 0.0
    %5959 = vmatprep.subr.mxu0 0.0
    %5960 = vmatpush1.msra.mxu0 0.0
    %5961 = vmatprep.subr.mxu0 0.0
    %5962 = vmatpush1.msra.mxu0 0.0
    %5963 = vmatprep.subr.mxu0 0.0
    %5964 = vmatpush1.msra.mxu0 %v478
    %5965 = vmatprep.subr.mxu0 0.0
    %5966 = vmatpush1.msra.mxu0 %v477
    %5967 = vmatprep.subr.mxu0 0.0
    %5968 = vmatpush1.msra.mxu0 %v476
    %5969 = vmatprep.subr.mxu0 0.0
    %5970 = vmatpush1.msra.mxu0 %v475
    %5971 = vmatprep.subr.mxu0 0.0
    %5972 = vmatpush2.msra.mxu0 0.0
    %5973 = vmatprep.subr.mxu0 0.0
    %5974 = vmatpush2.msra.mxu0 0.0
    %5975 = vmatprep.subr.mxu0 0.0
    %5976 = vmatpush2.msra.mxu0 0.0
    %5977 = vmatprep.subr.mxu0 0.0
    %5978 = vmatpush2.msra.mxu0 0.0
    %5979 = vmatprep.subr.mxu0 0.0
    %5980 = vmatpush2.msra.mxu0 0.0
    %5981 = vmatprep.subr.mxu0 0.0
    %5982 = vmatpush2.msra.mxu0 0.0
    %5983 = vmatprep.subr.mxu0 0.0
    %5984 = vmatpush2.msra.mxu0 0.0
    %5985 = vmatprep.subr.mxu0 0.0
    %5986 = vmatpush2.msra.mxu0 0.0
    %5987 = vmatprep.subr.mxu0 0.0
    %5988 = vmatpush2.msra.mxu0 0.0
    %5989 = vmatprep.subr.mxu0 0.0
    %5990 = vmatpush2.msra.mxu0 0.0
    %5991 = vmatprep.subr.mxu0 0.0
    %5992 = vmatpush2.msra.mxu0 0.0
    %5993 = vmatprep.subr.mxu0 0.0
    %5994 = vmatpush2.msra.mxu0 0.0
    %5995 = vmatprep.subr.mxu0 0.0
    %5996 = vmatpush2.msra.mxu0 0.0
    %5997 = vmatprep.subr.mxu0 0.0
    %5998 = vmatpush2.msra.mxu0 0.0
    %5999 = vmatprep.subr.mxu0 0.0
    %6000 = vmatpush2.msra.mxu0 0.0
    %6001 = vmatprep.subr.mxu0 0.0
    %6002 = vmatpush2.msra.mxu0 0.0
    %6003 = vmatprep.mubr.f32.mxu0 0.0
    %6004 = vmatmul.mubr.f32.gmra.mxu0 %v5865
    %v6005 = vpop.f32.mrf.mxu0
    %v6006 = vadd.f32 %v636, %v6005
    %v6007 = vpop.f32.mrf.mxu0
    %6008 = vdwg.mxu0
    %v6010 = vsel %vm434, %v5862, 0
    %6012 = vmatprep.subr.mxu0 0.0
    %6013 = vmatpush1.msra.mxu0 0.0
    %6014 = vmatprep.subr.mxu0 0.0
    %6015 = vmatpush1.msra.mxu0 0.0
    %6016 = vmatprep.subr.mxu0 0.0
    %6017 = vmatpush1.msra.mxu0 0.0
    %6018 = vmatprep.subr.mxu0 0.0
    %6019 = vmatpush1.msra.mxu0 0.0
    %6020 = vmatprep.subr.mxu0 0.0
    %6021 = vmatpush1.msra.mxu0 0.0
    %6022 = vmatprep.subr.mxu0 0.0
    %6023 = vmatpush1.msra.mxu0 0.0
    %6024 = vmatprep.subr.mxu0 0.0
    %6025 = vmatpush1.msra.mxu0 0.0
    %6026 = vmatprep.subr.mxu0 0.0
    %6027 = vmatpush1.msra.mxu0 0.0
    %6028 = vmatprep.subr.mxu0 0.0
    %6029 = vmatpush1.msra.mxu0 0.0
    %6030 = vmatprep.subr.mxu0 0.0
    %6031 = vmatpush1.msra.mxu0 0.0
    %6032 = vmatprep.subr.mxu0 0.0
    %6033 = vmatpush1.msra.mxu0 0.0
    %6034 = vmatprep.subr.mxu0 0.0
    %6035 = vmatpush1.msra.mxu0 0.0
    %6036 = vmatprep.subr.mxu0 0.0
    %6037 = vmatpush1.msra.mxu0 %v474
    %6038 = vmatprep.subr.mxu0 0.0
    %6039 = vmatpush1.msra.mxu0 %v473
    %6040 = vmatprep.subr.mxu0 0.0
    %6041 = vmatpush1.msra.mxu0 %v472
    %6042 = vmatprep.subr.mxu0 0.0
    %6043 = vmatpush1.msra.mxu0 %v471
    %6044 = vmatprep.subr.mxu0 0.0
    %6045 = vmatpush2.msra.mxu0 0.0
    %6046 = vmatprep.subr.mxu0 0.0
    %6047 = vmatpush2.msra.mxu0 0.0
    %6048 = vmatprep.subr.mxu0 0.0
    %6049 = vmatpush2.msra.mxu0 0.0
    %6050 = vmatprep.subr.mxu0 0.0
    %6051 = vmatpush2.msra.mxu0 0.0
    %6052 = vmatprep.subr.mxu0 0.0
    %6053 = vmatpush2.msra.mxu0 0.0
    %6054 = vmatprep.subr.mxu0 0.0
    %6055 = vmatpush2.msra.mxu0 0.0
    %6056 = vmatprep.subr.mxu0 0.0
    %6057 = vmatpush2.msra.mxu0 0.0
    %6058 = vmatprep.subr.mxu0 0.0
    %6059 = vmatpush2.msra.mxu0 0.0
    %6060 = vmatprep.subr.mxu0 0.0
    %6061 = vmatpush2.msra.mxu0 0.0
    %6062 = vmatprep.subr.mxu0 0.0
    %6063 = vmatpush2.msra.mxu0 0.0
    %6064 = vmatprep.subr.mxu0 0.0
    %6065 = vmatpush2.msra.mxu0 0.0
    %6066 = vmatprep.subr.mxu0 0.0
    %6067 = vmatpush2.msra.mxu0 0.0
    %6068 = vmatprep.subr.mxu0 0.0
    %6069 = vmatpush2.msra.mxu0 0.0
    %6070 = vmatprep.subr.mxu0 0.0
    %6071 = vmatpush2.msra.mxu0 0.0
    %6072 = vmatprep.subr.mxu0 0.0
    %6073 = vmatpush2.msra.mxu0 0.0
    %6074 = vmatprep.subr.mxu0 0.0
    %6075 = vmatpush2.msra.mxu0 0.0
    %6076 = vmatprep.mubr.f32.mxu0 0.0
    %6077 = vmatmul.mubr.f32.gmra.mxu0 %v6010
    %v6078 = vpop.f32.mrf.mxu0
    %v6079 = vadd.f32 0.0, %v6078
    %v6080 = vpop.f32.mrf.mxu0
    %6081 = vdwg.mxu0
    %v6082 = vadd.f32 %v6006, %v6079
    %v6083 = vtanh.pop %v6082
    %v6084 = vld [vmem:[#allocation2 + $0xd0] sm:$0xff]
    %v6086 = vsel %vm434, %v5938, 0
    %6088 = vmatprep.subr.mxu0 0.0
    %6089 = vmatpush1.msra.mxu0 0.0
    %6090 = vmatprep.subr.mxu0 0.0
    %6091 = vmatpush1.msra.mxu0 0.0
    %6092 = vmatprep.subr.mxu0 0.0
    %6093 = vmatpush1.msra.mxu0 0.0
    %6094 = vmatprep.subr.mxu0 0.0
    %6095 = vmatpush1.msra.mxu0 0.0
    %6096 = vmatprep.subr.mxu0 0.0
    %6097 = vmatpush1.msra.mxu0 0.0
    %6098 = vmatprep.subr.mxu0 0.0
    %6099 = vmatpush1.msra.mxu0 0.0
    %6100 = vmatprep.subr.mxu0 0.0
    %6101 = vmatpush1.msra.mxu0 0.0
    %6102 = vmatprep.subr.mxu0 0.0
    %6103 = vmatpush1.msra.mxu0 0.0
    %6104 = vmatprep.subr.mxu0 0.0
    %6105 = vmatpush1.msra.mxu0 0.0
    %6106 = vmatprep.subr.mxu0 0.0
    %6107 = vmatpush1.msra.mxu0 0.0
    %6108 = vmatprep.subr.mxu0 0.0
    %6109 = vmatpush1.msra.mxu0 0.0
    %6110 = vmatprep.subr.mxu0 0.0
    %6111 = vmatpush1.msra.mxu0 0.0
    %6112 = vmatprep.subr.mxu0 0.0
    %6113 = vmatpush1.msra.mxu0 %v470
    %6114 = vmatprep.subr.mxu0 0.0
    %6115 = vmatpush1.msra.mxu0 %v469
    %6116 = vmatprep.subr.mxu0 0.0
    %6117 = vmatpush1.msra.mxu0 %v468
    %6118 = vmatprep.subr.mxu0 0.0
    %6119 = vmatpush1.msra.mxu0 %v467
    %6120 = vmatprep.subr.mxu0 0.0
    %6121 = vmatpush2.msra.mxu0 0.0
    %6122 = vmatprep.subr.mxu0 0.0
    %6123 = vmatpush2.msra.mxu0 0.0
    %6124 = vmatprep.subr.mxu0 0.0
    %6125 = vmatpush2.msra.mxu0 0.0
    %6126 = vmatprep.subr.mxu0 0.0
    %6127 = vmatpush2.msra.mxu0 0.0
    %6128 = vmatprep.subr.mxu0 0.0
    %6129 = vmatpush2.msra.mxu0 0.0
    %6130 = vmatprep.subr.mxu0 0.0
    %6131 = vmatpush2.msra.mxu0 0.0
    %6132 = vmatprep.subr.mxu0 0.0
    %6133 = vmatpush2.msra.mxu0 0.0
    %6134 = vmatprep.subr.mxu0 0.0
    %6135 = vmatpush2.msra.mxu0 0.0
    %6136 = vmatprep.subr.mxu0 0.0
    %6137 = vmatpush2.msra.mxu0 0.0
    %6138 = vmatprep.subr.mxu0 0.0
    %6139 = vmatpush2.msra.mxu0 0.0
    %6140 = vmatprep.subr.mxu0 0.0
    %6141 = vmatpush2.msra.mxu0 0.0
    %6142 = vmatprep.subr.mxu0 0.0
    %6143 = vmatpush2.msra.mxu0 0.0
    %6144 = vmatprep.subr.mxu0 0.0
    %6145 = vmatpush2.msra.mxu0 0.0
    %6146 = vmatprep.subr.mxu0 0.0
    %6147 = vmatpush2.msra.mxu0 0.0
    %6148 = vmatprep.subr.mxu0 0.0
    %6149 = vmatpush2.msra.mxu0 0.0
    %6150 = vmatprep.subr.mxu0 0.0
    %6151 = vmatpush2.msra.mxu0 0.0
    %6152 = vmatprep.mubr.f32.mxu0 0.0
    %6153 = vmatmul.mubr.f32.gmra.mxu0 %v6086
    %v6154 = vpop.f32.mrf.mxu0
    %v6155 = vadd.f32 0.0, %v6154
    %v6156 = vpop.f32.mrf.mxu0
    %6157 = vdwg.mxu0
    %v6158 = vadd.f32 %v6084, %v6155
    %v6159 = vtanh.pop %v6158
    %6160 = vmatprep.subr.mxu0 0.0
    %6161 = vmatpush1.msra.mxu0 0.0
    %6162 = vmatprep.subr.mxu0 0.0
    %6163 = vmatpush1.msra.mxu0 0.0
    %6164 = vmatprep.subr.mxu0 0.0
    %6165 = vmatpush1.msra.mxu0 0.0
    %6166 = vmatprep.subr.mxu0 0.0
    %6167 = vmatpush1.msra.mxu0 0.0
    %6168 = vmatprep.subr.mxu0 0.0
    %6169 = vmatpush1.msra.mxu0 0.0
    %6170 = vmatprep.subr.mxu0 0.0
    %6171 = vmatpush1.msra.mxu0 0.0
    %6172 = vmatprep.subr.mxu0 0.0
    %6173 = vmatpush1.msra.mxu0 0.0
    %6174 = vmatprep.subr.mxu0 0.0
    %6175 = vmatpush1.msra.mxu0 0.0
    %6176 = vmatprep.subr.mxu0 0.0
    %6177 = vmatpush1.msra.mxu0 0.0
    %6178 = vmatprep.subr.mxu0 0.0
    %6179 = vmatpush1.msra.mxu0 0.0
    %6180 = vmatprep.subr.mxu0 0.0
    %6181 = vmatpush1.msra.mxu0 0.0
    %6182 = vmatprep.subr.mxu0 0.0
    %6183 = vmatpush1.msra.mxu0 0.0
    %6184 = vmatprep.subr.mxu0 0.0
    %6185 = vmatpush1.msra.mxu0 %v478
    %6186 = vmatprep.subr.mxu0 0.0
    %6187 = vmatpush1.msra.mxu0 %v477
    %6188 = vmatprep.subr.mxu0 0.0
    %6189 = vmatpush1.msra.mxu0 %v476
    %6190 = vmatprep.subr.mxu0 0.0
    %6191 = vmatpush1.msra.mxu0 %v475
    %6192 = vmatprep.subr.mxu0 0.0
    %6193 = vmatpush2.msra.mxu0 0.0
    %6194 = vmatprep.subr.mxu0 0.0
    %6195 = vmatpush2.msra.mxu0 0.0
    %6196 = vmatprep.subr.mxu0 0.0
    %6197 = vmatpush2.msra.mxu0 0.0
    %6198 = vmatprep.subr.mxu0 0.0
    %6199 = vmatpush2.msra.mxu0 0.0
    %6200 = vmatprep.subr.mxu0 0.0
    %6201 = vmatpush2.msra.mxu0 0.0
    %6202 = vmatprep.subr.mxu0 0.0
    %6203 = vmatpush2.msra.mxu0 0.0
    %6204 = vmatprep.subr.mxu0 0.0
    %6205 = vmatpush2.msra.mxu0 0.0
    %6206 = vmatprep.subr.mxu0 0.0
    %6207 = vmatpush2.msra.mxu0 0.0
    %6208 = vmatprep.subr.mxu0 0.0
    %6209 = vmatpush2.msra.mxu0 0.0
    %6210 = vmatprep.subr.mxu0 0.0
    %6211 = vmatpush2.msra.mxu0 0.0
    %6212 = vmatprep.subr.mxu0 0.0
    %6213 = vmatpush2.msra.mxu0 0.0
    %6214 = vmatprep.subr.mxu0 0.0
    %6215 = vmatpush2.msra.mxu0 0.0
    %6216 = vmatprep.subr.mxu0 0.0
    %6217 = vmatpush2.msra.mxu0 0.0
    %6218 = vmatprep.subr.mxu0 0.0
    %6219 = vmatpush2.msra.mxu0 0.0
    %6220 = vmatprep.subr.mxu0 0.0
    %6221 = vmatpush2.msra.mxu0 0.0
    %6222 = vmatprep.subr.mxu0 0.0
    %6223 = vmatpush2.msra.mxu0 0.0
    %6224 = vmatprep.mubr.f32.mxu0 0.0
    %6225 = vmatmul.mubr.f32.gmra.mxu0 %v6086
    %v6226 = vpop.f32.mrf.mxu0
    %v6227 = vadd.f32 %v636, %v6226
    %v6228 = vpop.f32.mrf.mxu0
    %6229 = vdwg.mxu0
    %v6231 = vsel %vm434, %v6083, 0
    %6233 = vmatprep.subr.mxu0 0.0
    %6234 = vmatpush1.msra.mxu0 0.0
    %6235 = vmatprep.subr.mxu0 0.0
    %6236 = vmatpush1.msra.mxu0 0.0
    %6237 = vmatprep.subr.mxu0 0.0
    %6238 = vmatpush1.msra.mxu0 0.0
    %6239 = vmatprep.subr.mxu0 0.0
    %6240 = vmatpush1.msra.mxu0 0.0
    %6241 = vmatprep.subr.mxu0 0.0
    %6242 = vmatpush1.msra.mxu0 0.0
    %6243 = vmatprep.subr.mxu0 0.0
    %6244 = vmatpush1.msra.mxu0 0.0
    %6245 = vmatprep.subr.mxu0 0.0
    %6246 = vmatpush1.msra.mxu0 0.0
    %6247 = vmatprep.subr.mxu0 0.0
    %6248 = vmatpush1.msra.mxu0 0.0
    %6249 = vmatprep.subr.mxu0 0.0
    %6250 = vmatpush1.msra.mxu0 0.0
    %6251 = vmatprep.subr.mxu0 0.0
    %6252 = vmatpush1.msra.mxu0 0.0
    %6253 = vmatprep.subr.mxu0 0.0
    %6254 = vmatpush1.msra.mxu0 0.0
    %6255 = vmatprep.subr.mxu0 0.0
    %6256 = vmatpush1.msra.mxu0 0.0
    %6257 = vmatprep.subr.mxu0 0.0
    %6258 = vmatpush1.msra.mxu0 %v474
    %6259 = vmatprep.subr.mxu0 0.0
    %6260 = vmatpush1.msra.mxu0 %v473
    %6261 = vmatprep.subr.mxu0 0.0
    %6262 = vmatpush1.msra.mxu0 %v472
    %6263 = vmatprep.subr.mxu0 0.0
    %6264 = vmatpush1.msra.mxu0 %v471
    %6265 = vmatprep.subr.mxu0 0.0
    %6266 = vmatpush2.msra.mxu0 0.0
    %6267 = vmatprep.subr.mxu0 0.0
    %6268 = vmatpush2.msra.mxu0 0.0
    %6269 = vmatprep.subr.mxu0 0.0
    %6270 = vmatpush2.msra.mxu0 0.0
    %6271 = vmatprep.subr.mxu0 0.0
    %6272 = vmatpush2.msra.mxu0 0.0
    %6273 = vmatprep.subr.mxu0 0.0
    %6274 = vmatpush2.msra.mxu0 0.0
    %6275 = vmatprep.subr.mxu0 0.0
    %6276 = vmatpush2.msra.mxu0 0.0
    %6277 = vmatprep.subr.mxu0 0.0
    %6278 = vmatpush2.msra.mxu0 0.0
    %6279 = vmatprep.subr.mxu0 0.0
    %6280 = vmatpush2.msra.mxu0 0.0
    %6281 = vmatprep.subr.mxu0 0.0
    %6282 = vmatpush2.msra.mxu0 0.0
    %6283 = vmatprep.subr.mxu0 0.0
    %6284 = vmatpush2.msra.mxu0 0.0
    %6285 = vmatprep.subr.mxu0 0.0
    %6286 = vmatpush2.msra.mxu0 0.0
    %6287 = vmatprep.subr.mxu0 0.0
    %6288 = vmatpush2.msra.mxu0 0.0
    %6289 = vmatprep.subr.mxu0 0.0
    %6290 = vmatpush2.msra.mxu0 0.0
    %6291 = vmatprep.subr.mxu0 0.0
    %6292 = vmatpush2.msra.mxu0 0.0
    %6293 = vmatprep.subr.mxu0 0.0
    %6294 = vmatpush2.msra.mxu0 0.0
    %6295 = vmatprep.subr.mxu0 0.0
    %6296 = vmatpush2.msra.mxu0 0.0
    %6297 = vmatprep.mubr.f32.mxu0 0.0
    %6298 = vmatmul.mubr.f32.gmra.mxu0 %v6231
    %v6299 = vpop.f32.mrf.mxu0
    %v6300 = vadd.f32 0.0, %v6299
    %v6301 = vpop.f32.mrf.mxu0
    %6302 = vdwg.mxu0
    %v6303 = vadd.f32 %v6227, %v6300
    %v6304 = vtanh.pop %v6303
    %v6305 = vld [vmem:[#allocation2 + $0xd8] sm:$0xff]
    %v6307 = vsel %vm434, %v6159, 0
    %6309 = vmatprep.subr.mxu0 0.0
    %6310 = vmatpush1.msra.mxu0 0.0
    %6311 = vmatprep.subr.mxu0 0.0
    %6312 = vmatpush1.msra.mxu0 0.0
    %6313 = vmatprep.subr.mxu0 0.0
    %6314 = vmatpush1.msra.mxu0 0.0
    %6315 = vmatprep.subr.mxu0 0.0
    %6316 = vmatpush1.msra.mxu0 0.0
    %6317 = vmatprep.subr.mxu0 0.0
    %6318 = vmatpush1.msra.mxu0 0.0
    %6319 = vmatprep.subr.mxu0 0.0
    %6320 = vmatpush1.msra.mxu0 0.0
    %6321 = vmatprep.subr.mxu0 0.0
    %6322 = vmatpush1.msra.mxu0 0.0
    %6323 = vmatprep.subr.mxu0 0.0
    %6324 = vmatpush1.msra.mxu0 0.0
    %6325 = vmatprep.subr.mxu0 0.0
    %6326 = vmatpush1.msra.mxu0 0.0
    %6327 = vmatprep.subr.mxu0 0.0
    %6328 = vmatpush1.msra.mxu0 0.0
    %6329 = vmatprep.subr.mxu0 0.0
    %6330 = vmatpush1.msra.mxu0 0.0
    %6331 = vmatprep.subr.mxu0 0.0
    %6332 = vmatpush1.msra.mxu0 0.0
    %6333 = vmatprep.subr.mxu0 0.0
    %6334 = vmatpush1.msra.mxu0 %v470
    %6335 = vmatprep.subr.mxu0 0.0
    %6336 = vmatpush1.msra.mxu0 %v469
    %6337 = vmatprep.subr.mxu0 0.0
    %6338 = vmatpush1.msra.mxu0 %v468
    %6339 = vmatprep.subr.mxu0 0.0
    %6340 = vmatpush1.msra.mxu0 %v467
    %6341 = vmatprep.subr.mxu0 0.0
    %6342 = vmatpush2.msra.mxu0 0.0
    %6343 = vmatprep.subr.mxu0 0.0
    %6344 = vmatpush2.msra.mxu0 0.0
    %6345 = vmatprep.subr.mxu0 0.0
    %6346 = vmatpush2.msra.mxu0 0.0
    %6347 = vmatprep.subr.mxu0 0.0
    %6348 = vmatpush2.msra.mxu0 0.0
    %6349 = vmatprep.subr.mxu0 0.0
    %6350 = vmatpush2.msra.mxu0 0.0
    %6351 = vmatprep.subr.mxu0 0.0
    %6352 = vmatpush2.msra.mxu0 0.0
    %6353 = vmatprep.subr.mxu0 0.0
    %6354 = vmatpush2.msra.mxu0 0.0
    %6355 = vmatprep.subr.mxu0 0.0
    %6356 = vmatpush2.msra.mxu0 0.0
    %6357 = vmatprep.subr.mxu0 0.0
    %6358 = vmatpush2.msra.mxu0 0.0
    %6359 = vmatprep.subr.mxu0 0.0
    %6360 = vmatpush2.msra.mxu0 0.0
    %6361 = vmatprep.subr.mxu0 0.0
    %6362 = vmatpush2.msra.mxu0 0.0
    %6363 = vmatprep.subr.mxu0 0.0
    %6364 = vmatpush2.msra.mxu0 0.0
    %6365 = vmatprep.subr.mxu0 0.0
    %6366 = vmatpush2.msra.mxu0 0.0
    %6367 = vmatprep.subr.mxu0 0.0
    %6368 = vmatpush2.msra.mxu0 0.0
    %6369 = vmatprep.subr.mxu0 0.0
    %6370 = vmatpush2.msra.mxu0 0.0
    %6371 = vmatprep.subr.mxu0 0.0
    %6372 = vmatpush2.msra.mxu0 0.0
    %6373 = vmatprep.mubr.f32.mxu0 0.0
    %6374 = vmatmul.mubr.f32.gmra.mxu0 %v6307
    %v6375 = vpop.f32.mrf.mxu0
    %v6376 = vadd.f32 0.0, %v6375
    %v6377 = vpop.f32.mrf.mxu0
    %6378 = vdwg.mxu0
    %v6379 = vadd.f32 %v6305, %v6376
    %v6380 = vtanh.pop %v6379
    %6381 = vmatprep.subr.mxu0 0.0
    %6382 = vmatpush1.msra.mxu0 0.0
    %6383 = vmatprep.subr.mxu0 0.0
    %6384 = vmatpush1.msra.mxu0 0.0
    %6385 = vmatprep.subr.mxu0 0.0
    %6386 = vmatpush1.msra.mxu0 0.0
    %6387 = vmatprep.subr.mxu0 0.0
    %6388 = vmatpush1.msra.mxu0 0.0
    %6389 = vmatprep.subr.mxu0 0.0
    %6390 = vmatpush1.msra.mxu0 0.0
    %6391 = vmatprep.subr.mxu0 0.0
    %6392 = vmatpush1.msra.mxu0 0.0
    %6393 = vmatprep.subr.mxu0 0.0
    %6394 = vmatpush1.msra.mxu0 0.0
    %6395 = vmatprep.subr.mxu0 0.0
    %6396 = vmatpush1.msra.mxu0 0.0
    %6397 = vmatprep.subr.mxu0 0.0
    %6398 = vmatpush1.msra.mxu0 0.0
    %6399 = vmatprep.subr.mxu0 0.0
    %6400 = vmatpush1.msra.mxu0 0.0
    %6401 = vmatprep.subr.mxu0 0.0
    %6402 = vmatpush1.msra.mxu0 0.0
    %6403 = vmatprep.subr.mxu0 0.0
    %6404 = vmatpush1.msra.mxu0 0.0
    %6405 = vmatprep.subr.mxu0 0.0
    %6406 = vmatpush1.msra.mxu0 %v478
    %6407 = vmatprep.subr.mxu0 0.0
    %6408 = vmatpush1.msra.mxu0 %v477
    %6409 = vmatprep.subr.mxu0 0.0
    %6410 = vmatpush1.msra.mxu0 %v476
    %6411 = vmatprep.subr.mxu0 0.0
    %6412 = vmatpush1.msra.mxu0 %v475
    %6413 = vmatprep.subr.mxu0 0.0
    %6414 = vmatpush2.msra.mxu0 0.0
    %6415 = vmatprep.subr.mxu0 0.0
    %6416 = vmatpush2.msra.mxu0 0.0
    %6417 = vmatprep.subr.mxu0 0.0
    %6418 = vmatpush2.msra.mxu0 0.0
    %6419 = vmatprep.subr.mxu0 0.0
    %6420 = vmatpush2.msra.mxu0 0.0
    %6421 = vmatprep.subr.mxu0 0.0
    %6422 = vmatpush2.msra.mxu0 0.0
    %6423 = vmatprep.subr.mxu0 0.0
    %6424 = vmatpush2.msra.mxu0 0.0
    %6425 = vmatprep.subr.mxu0 0.0
    %6426 = vmatpush2.msra.mxu0 0.0
    %6427 = vmatprep.subr.mxu0 0.0
    %6428 = vmatpush2.msra.mxu0 0.0
    %6429 = vmatprep.subr.mxu0 0.0
    %6430 = vmatpush2.msra.mxu0 0.0
    %6431 = vmatprep.subr.mxu0 0.0
    %6432 = vmatpush2.msra.mxu0 0.0
    %6433 = vmatprep.subr.mxu0 0.0
    %6434 = vmatpush2.msra.mxu0 0.0
    %6435 = vmatprep.subr.mxu0 0.0
    %6436 = vmatpush2.msra.mxu0 0.0
    %6437 = vmatprep.subr.mxu0 0.0
    %6438 = vmatpush2.msra.mxu0 0.0
    %6439 = vmatprep.subr.mxu0 0.0
    %6440 = vmatpush2.msra.mxu0 0.0
    %6441 = vmatprep.subr.mxu0 0.0
    %6442 = vmatpush2.msra.mxu0 0.0
    %6443 = vmatprep.subr.mxu0 0.0
    %6444 = vmatpush2.msra.mxu0 0.0
    %6445 = vmatprep.mubr.f32.mxu0 0.0
    %6446 = vmatmul.mubr.f32.gmra.mxu0 %v6307
    %v6447 = vpop.f32.mrf.mxu0
    %v6448 = vadd.f32 %v636, %v6447
    %v6449 = vpop.f32.mrf.mxu0
    %6450 = vdwg.mxu0
    %v6452 = vsel %vm434, %v6304, 0
    %6454 = vmatprep.subr.mxu0 0.0
    %6455 = vmatpush1.msra.mxu0 0.0
    %6456 = vmatprep.subr.mxu0 0.0
    %6457 = vmatpush1.msra.mxu0 0.0
    %6458 = vmatprep.subr.mxu0 0.0
    %6459 = vmatpush1.msra.mxu0 0.0
    %6460 = vmatprep.subr.mxu0 0.0
    %6461 = vmatpush1.msra.mxu0 0.0
    %6462 = vmatprep.subr.mxu0 0.0
    %6463 = vmatpush1.msra.mxu0 0.0
    %6464 = vmatprep.subr.mxu0 0.0
    %6465 = vmatpush1.msra.mxu0 0.0
    %6466 = vmatprep.subr.mxu0 0.0
    %6467 = vmatpush1.msra.mxu0 0.0
    %6468 = vmatprep.subr.mxu0 0.0
    %6469 = vmatpush1.msra.mxu0 0.0
    %6470 = vmatprep.subr.mxu0 0.0
    %6471 = vmatpush1.msra.mxu0 0.0
    %6472 = vmatprep.subr.mxu0 0.0
    %6473 = vmatpush1.msra.mxu0 0.0
    %6474 = vmatprep.subr.mxu0 0.0
    %6475 = vmatpush1.msra.mxu0 0.0
    %6476 = vmatprep.subr.mxu0 0.0
    %6477 = vmatpush1.msra.mxu0 0.0
    %6478 = vmatprep.subr.mxu0 0.0
    %6479 = vmatpush1.msra.mxu0 %v474
    %6480 = vmatprep.subr.mxu0 0.0
    %6481 = vmatpush1.msra.mxu0 %v473
    %6482 = vmatprep.subr.mxu0 0.0
    %6483 = vmatpush1.msra.mxu0 %v472
    %6484 = vmatprep.subr.mxu0 0.0
    %6485 = vmatpush1.msra.mxu0 %v471
    %6486 = vmatprep.subr.mxu0 0.0
    %6487 = vmatpush2.msra.mxu0 0.0
    %6488 = vmatprep.subr.mxu0 0.0
    %6489 = vmatpush2.msra.mxu0 0.0
    %6490 = vmatprep.subr.mxu0 0.0
    %6491 = vmatpush2.msra.mxu0 0.0
    %6492 = vmatprep.subr.mxu0 0.0
    %6493 = vmatpush2.msra.mxu0 0.0
    %6494 = vmatprep.subr.mxu0 0.0
    %6495 = vmatpush2.msra.mxu0 0.0
    %6496 = vmatprep.subr.mxu0 0.0
    %6497 = vmatpush2.msra.mxu0 0.0
    %6498 = vmatprep.subr.mxu0 0.0
    %6499 = vmatpush2.msra.mxu0 0.0
    %6500 = vmatprep.subr.mxu0 0.0
    %6501 = vmatpush2.msra.mxu0 0.0
    %6502 = vmatprep.subr.mxu0 0.0
    %6503 = vmatpush2.msra.mxu0 0.0
    %6504 = vmatprep.subr.mxu0 0.0
    %6505 = vmatpush2.msra.mxu0 0.0
    %6506 = vmatprep.subr.mxu0 0.0
    %6507 = vmatpush2.msra.mxu0 0.0
    %6508 = vmatprep.subr.mxu0 0.0
    %6509 = vmatpush2.msra.mxu0 0.0
    %6510 = vmatprep.subr.mxu0 0.0
    %6511 = vmatpush2.msra.mxu0 0.0
    %6512 = vmatprep.subr.mxu0 0.0
    %6513 = vmatpush2.msra.mxu0 0.0
    %6514 = vmatprep.subr.mxu0 0.0
    %6515 = vmatpush2.msra.mxu0 0.0
    %6516 = vmatprep.subr.mxu0 0.0
    %6517 = vmatpush2.msra.mxu0 0.0
    %6518 = vmatprep.mubr.f32.mxu0 0.0
    %6519 = vmatmul.mubr.f32.gmra.mxu0 %v6452
    %v6520 = vpop.f32.mrf.mxu0
    %v6521 = vadd.f32 0.0, %v6520
    %v6522 = vpop.f32.mrf.mxu0
    %6523 = vdwg.mxu0
    %v6524 = vadd.f32 %v6448, %v6521
    %v6525 = vtanh.pop %v6524
    %v6526 = vld [vmem:[#allocation2 + $0xe0] sm:$0xff]
    %v6528 = vsel %vm434, %v6380, 0
    %6530 = vmatprep.subr.mxu0 0.0
    %6531 = vmatpush1.msra.mxu0 0.0
    %6532 = vmatprep.subr.mxu0 0.0
    %6533 = vmatpush1.msra.mxu0 0.0
    %6534 = vmatprep.subr.mxu0 0.0
    %6535 = vmatpush1.msra.mxu0 0.0
    %6536 = vmatprep.subr.mxu0 0.0
    %6537 = vmatpush1.msra.mxu0 0.0
    %6538 = vmatprep.subr.mxu0 0.0
    %6539 = vmatpush1.msra.mxu0 0.0
    %6540 = vmatprep.subr.mxu0 0.0
    %6541 = vmatpush1.msra.mxu0 0.0
    %6542 = vmatprep.subr.mxu0 0.0
    %6543 = vmatpush1.msra.mxu0 0.0
    %6544 = vmatprep.subr.mxu0 0.0
    %6545 = vmatpush1.msra.mxu0 0.0
    %6546 = vmatprep.subr.mxu0 0.0
    %6547 = vmatpush1.msra.mxu0 0.0
    %6548 = vmatprep.subr.mxu0 0.0
    %6549 = vmatpush1.msra.mxu0 0.0
    %6550 = vmatprep.subr.mxu0 0.0
    %6551 = vmatpush1.msra.mxu0 0.0
    %6552 = vmatprep.subr.mxu0 0.0
    %6553 = vmatpush1.msra.mxu0 0.0
    %6554 = vmatprep.subr.mxu0 0.0
    %6555 = vmatpush1.msra.mxu0 %v470
    %6556 = vmatprep.subr.mxu0 0.0
    %6557 = vmatpush1.msra.mxu0 %v469
    %6558 = vmatprep.subr.mxu0 0.0
    %6559 = vmatpush1.msra.mxu0 %v468
    %6560 = vmatprep.subr.mxu0 0.0
    %6561 = vmatpush1.msra.mxu0 %v467
    %6562 = vmatprep.subr.mxu0 0.0
    %6563 = vmatpush2.msra.mxu0 0.0
    %6564 = vmatprep.subr.mxu0 0.0
    %6565 = vmatpush2.msra.mxu0 0.0
    %6566 = vmatprep.subr.mxu0 0.0
    %6567 = vmatpush2.msra.mxu0 0.0
    %6568 = vmatprep.subr.mxu0 0.0
    %6569 = vmatpush2.msra.mxu0 0.0
    %6570 = vmatprep.subr.mxu0 0.0
    %6571 = vmatpush2.msra.mxu0 0.0
    %6572 = vmatprep.subr.mxu0 0.0
    %6573 = vmatpush2.msra.mxu0 0.0
    %6574 = vmatprep.subr.mxu0 0.0
    %6575 = vmatpush2.msra.mxu0 0.0
    %6576 = vmatprep.subr.mxu0 0.0
    %6577 = vmatpush2.msra.mxu0 0.0
    %6578 = vmatprep.subr.mxu0 0.0
    %6579 = vmatpush2.msra.mxu0 0.0
    %6580 = vmatprep.subr.mxu0 0.0
    %6581 = vmatpush2.msra.mxu0 0.0
    %6582 = vmatprep.subr.mxu0 0.0
    %6583 = vmatpush2.msra.mxu0 0.0
    %6584 = vmatprep.subr.mxu0 0.0
    %6585 = vmatpush2.msra.mxu0 0.0
    %6586 = vmatprep.subr.mxu0 0.0
    %6587 = vmatpush2.msra.mxu0 0.0
    %6588 = vmatprep.subr.mxu0 0.0
    %6589 = vmatpush2.msra.mxu0 0.0
    %6590 = vmatprep.subr.mxu0 0.0
    %6591 = vmatpush2.msra.mxu0 0.0
    %6592 = vmatprep.subr.mxu0 0.0
    %6593 = vmatpush2.msra.mxu0 0.0
    %6594 = vmatprep.mubr.f32.mxu0 0.0
    %6595 = vmatmul.mubr.f32.gmra.mxu0 %v6528
    %v6596 = vpop.f32.mrf.mxu0
    %v6597 = vadd.f32 0.0, %v6596
    %v6598 = vpop.f32.mrf.mxu0
    %6599 = vdwg.mxu0
    %v6600 = vadd.f32 %v6526, %v6597
    %v6601 = vtanh.pop %v6600
    %6602 = vmatprep.subr.mxu0 0.0
    %6603 = vmatpush1.msra.mxu0 0.0
    %6604 = vmatprep.subr.mxu0 0.0
    %6605 = vmatpush1.msra.mxu0 0.0
    %6606 = vmatprep.subr.mxu0 0.0
    %6607 = vmatpush1.msra.mxu0 0.0
    %6608 = vmatprep.subr.mxu0 0.0
    %6609 = vmatpush1.msra.mxu0 0.0
    %6610 = vmatprep.subr.mxu0 0.0
    %6611 = vmatpush1.msra.mxu0 0.0
    %6612 = vmatprep.subr.mxu0 0.0
    %6613 = vmatpush1.msra.mxu0 0.0
    %6614 = vmatprep.subr.mxu0 0.0
    %6615 = vmatpush1.msra.mxu0 0.0
    %6616 = vmatprep.subr.mxu0 0.0
    %6617 = vmatpush1.msra.mxu0 0.0
    %6618 = vmatprep.subr.mxu0 0.0
    %6619 = vmatpush1.msra.mxu0 0.0
    %6620 = vmatprep.subr.mxu0 0.0
    %6621 = vmatpush1.msra.mxu0 0.0
    %6622 = vmatprep.subr.mxu0 0.0
    %6623 = vmatpush1.msra.mxu0 0.0
    %6624 = vmatprep.subr.mxu0 0.0
    %6625 = vmatpush1.msra.mxu0 0.0
    %6626 = vmatprep.subr.mxu0 0.0
    %6627 = vmatpush1.msra.mxu0 %v478
    %6628 = vmatprep.subr.mxu0 0.0
    %6629 = vmatpush1.msra.mxu0 %v477
    %6630 = vmatprep.subr.mxu0 0.0
    %6631 = vmatpush1.msra.mxu0 %v476
    %6632 = vmatprep.subr.mxu0 0.0
    %6633 = vmatpush1.msra.mxu0 %v475
    %6634 = vmatprep.subr.mxu0 0.0
    %6635 = vmatpush2.msra.mxu0 0.0
    %6636 = vmatprep.subr.mxu0 0.0
    %6637 = vmatpush2.msra.mxu0 0.0
    %6638 = vmatprep.subr.mxu0 0.0
    %6639 = vmatpush2.msra.mxu0 0.0
    %6640 = vmatprep.subr.mxu0 0.0
    %6641 = vmatpush2.msra.mxu0 0.0
    %6642 = vmatprep.subr.mxu0 0.0
    %6643 = vmatpush2.msra.mxu0 0.0
    %6644 = vmatprep.subr.mxu0 0.0
    %6645 = vmatpush2.msra.mxu0 0.0
    %6646 = vmatprep.subr.mxu0 0.0
    %6647 = vmatpush2.msra.mxu0 0.0
    %6648 = vmatprep.subr.mxu0 0.0
    %6649 = vmatpush2.msra.mxu0 0.0
    %6650 = vmatprep.subr.mxu0 0.0
    %6651 = vmatpush2.msra.mxu0 0.0
    %6652 = vmatprep.subr.mxu0 0.0
    %6653 = vmatpush2.msra.mxu0 0.0
    %6654 = vmatprep.subr.mxu0 0.0
    %6655 = vmatpush2.msra.mxu0 0.0
    %6656 = vmatprep.subr.mxu0 0.0
    %6657 = vmatpush2.msra.mxu0 0.0
    %6658 = vmatprep.subr.mxu0 0.0
    %6659 = vmatpush2.msra.mxu0 0.0
    %6660 = vmatprep.subr.mxu0 0.0
    %6661 = vmatpush2.msra.mxu0 0.0
    %6662 = vmatprep.subr.mxu0 0.0
    %6663 = vmatpush2.msra.mxu0 0.0
    %6664 = vmatprep.subr.mxu0 0.0
    %6665 = vmatpush2.msra.mxu0 0.0
    %6666 = vmatprep.mubr.f32.mxu0 0.0
    %6667 = vmatmul.mubr.f32.gmra.mxu0 %v6528
    %v6668 = vpop.f32.mrf.mxu0
    %v6669 = vadd.f32 %v636, %v6668
    %v6670 = vpop.f32.mrf.mxu0
    %6671 = vdwg.mxu0
    %v6673 = vsel %vm434, %v6525, 0
    %6675 = vmatprep.subr.mxu0 0.0
    %6676 = vmatpush1.msra.mxu0 0.0
    %6677 = vmatprep.subr.mxu0 0.0
    %6678 = vmatpush1.msra.mxu0 0.0
    %6679 = vmatprep.subr.mxu0 0.0
    %6680 = vmatpush1.msra.mxu0 0.0
    %6681 = vmatprep.subr.mxu0 0.0
    %6682 = vmatpush1.msra.mxu0 0.0
    %6683 = vmatprep.subr.mxu0 0.0
    %6684 = vmatpush1.msra.mxu0 0.0
    %6685 = vmatprep.subr.mxu0 0.0
    %6686 = vmatpush1.msra.mxu0 0.0
    %6687 = vmatprep.subr.mxu0 0.0
    %6688 = vmatpush1.msra.mxu0 0.0
    %6689 = vmatprep.subr.mxu0 0.0
    %6690 = vmatpush1.msra.mxu0 0.0
    %6691 = vmatprep.subr.mxu0 0.0
    %6692 = vmatpush1.msra.mxu0 0.0
    %6693 = vmatprep.subr.mxu0 0.0
    %6694 = vmatpush1.msra.mxu0 0.0
    %6695 = vmatprep.subr.mxu0 0.0
    %6696 = vmatpush1.msra.mxu0 0.0
    %6697 = vmatprep.subr.mxu0 0.0
    %6698 = vmatpush1.msra.mxu0 0.0
    %6699 = vmatprep.subr.mxu0 0.0
    %6700 = vmatpush1.msra.mxu0 %v474
    %6701 = vmatprep.subr.mxu0 0.0
    %6702 = vmatpush1.msra.mxu0 %v473
    %6703 = vmatprep.subr.mxu0 0.0
    %6704 = vmatpush1.msra.mxu0 %v472
    %6705 = vmatprep.subr.mxu0 0.0
    %6706 = vmatpush1.msra.mxu0 %v471
    %6707 = vmatprep.subr.mxu0 0.0
    %6708 = vmatpush2.msra.mxu0 0.0
    %6709 = vmatprep.subr.mxu0 0.0
    %6710 = vmatpush2.msra.mxu0 0.0
    %6711 = vmatprep.subr.mxu0 0.0
    %6712 = vmatpush2.msra.mxu0 0.0
    %6713 = vmatprep.subr.mxu0 0.0
    %6714 = vmatpush2.msra.mxu0 0.0
    %6715 = vmatprep.subr.mxu0 0.0
    %6716 = vmatpush2.msra.mxu0 0.0
    %6717 = vmatprep.subr.mxu0 0.0
    %6718 = vmatpush2.msra.mxu0 0.0
    %6719 = vmatprep.subr.mxu0 0.0
    %6720 = vmatpush2.msra.mxu0 0.0
    %6721 = vmatprep.subr.mxu0 0.0
    %6722 = vmatpush2.msra.mxu0 0.0
    %6723 = vmatprep.subr.mxu0 0.0
    %6724 = vmatpush2.msra.mxu0 0.0
    %6725 = vmatprep.subr.mxu0 0.0
    %6726 = vmatpush2.msra.mxu0 0.0
    %6727 = vmatprep.subr.mxu0 0.0
    %6728 = vmatpush2.msra.mxu0 0.0
    %6729 = vmatprep.subr.mxu0 0.0
    %6730 = vmatpush2.msra.mxu0 0.0
    %6731 = vmatprep.subr.mxu0 0.0
    %6732 = vmatpush2.msra.mxu0 0.0
    %6733 = vmatprep.subr.mxu0 0.0
    %6734 = vmatpush2.msra.mxu0 0.0
    %6735 = vmatprep.subr.mxu0 0.0
    %6736 = vmatpush2.msra.mxu0 0.0
    %6737 = vmatprep.subr.mxu0 0.0
    %6738 = vmatpush2.msra.mxu0 0.0
    %6739 = vmatprep.mubr.f32.mxu0 0.0
    %6740 = vmatmul.mubr.f32.gmra.mxu0 %v6673
    %v6741 = vpop.f32.mrf.mxu0
    %v6742 = vadd.f32 0.0, %v6741
    %v6743 = vpop.f32.mrf.mxu0
    %6744 = vdwg.mxu0
    %v6745 = vadd.f32 %v6669, %v6742
    %v6746 = vtanh.pop %v6745
    %v6747 = vld [vmem:[#allocation2 + $0xe8] sm:$0xff]
    %v6749 = vsel %vm434, %v6601, 0
    %6751 = vmatprep.subr.mxu0 0.0
    %6752 = vmatpush1.msra.mxu0 0.0
    %6753 = vmatprep.subr.mxu0 0.0
    %6754 = vmatpush1.msra.mxu0 0.0
    %6755 = vmatprep.subr.mxu0 0.0
    %6756 = vmatpush1.msra.mxu0 0.0
    %6757 = vmatprep.subr.mxu0 0.0
    %6758 = vmatpush1.msra.mxu0 0.0
    %6759 = vmatprep.subr.mxu0 0.0
    %6760 = vmatpush1.msra.mxu0 0.0
    %6761 = vmatprep.subr.mxu0 0.0
    %6762 = vmatpush1.msra.mxu0 0.0
    %6763 = vmatprep.subr.mxu0 0.0
    %6764 = vmatpush1.msra.mxu0 0.0
    %6765 = vmatprep.subr.mxu0 0.0
    %6766 = vmatpush1.msra.mxu0 0.0
    %6767 = vmatprep.subr.mxu0 0.0
    %6768 = vmatpush1.msra.mxu0 0.0
    %6769 = vmatprep.subr.mxu0 0.0
    %6770 = vmatpush1.msra.mxu0 0.0
    %6771 = vmatprep.subr.mxu0 0.0
    %6772 = vmatpush1.msra.mxu0 0.0
    %6773 = vmatprep.subr.mxu0 0.0
    %6774 = vmatpush1.msra.mxu0 0.0
    %6775 = vmatprep.subr.mxu0 0.0
    %6776 = vmatpush1.msra.mxu0 %v470
    %6777 = vmatprep.subr.mxu0 0.0
    %6778 = vmatpush1.msra.mxu0 %v469
    %6779 = vmatprep.subr.mxu0 0.0
    %6780 = vmatpush1.msra.mxu0 %v468
    %6781 = vmatprep.subr.mxu0 0.0
    %6782 = vmatpush1.msra.mxu0 %v467
    %6783 = vmatprep.subr.mxu0 0.0
    %6784 = vmatpush2.msra.mxu0 0.0
    %6785 = vmatprep.subr.mxu0 0.0
    %6786 = vmatpush2.msra.mxu0 0.0
    %6787 = vmatprep.subr.mxu0 0.0
    %6788 = vmatpush2.msra.mxu0 0.0
    %6789 = vmatprep.subr.mxu0 0.0
    %6790 = vmatpush2.msra.mxu0 0.0
    %6791 = vmatprep.subr.mxu0 0.0
    %6792 = vmatpush2.msra.mxu0 0.0
    %6793 = vmatprep.subr.mxu0 0.0
    %6794 = vmatpush2.msra.mxu0 0.0
    %6795 = vmatprep.subr.mxu0 0.0
    %6796 = vmatpush2.msra.mxu0 0.0
    %6797 = vmatprep.subr.mxu0 0.0
    %6798 = vmatpush2.msra.mxu0 0.0
    %6799 = vmatprep.subr.mxu0 0.0
    %6800 = vmatpush2.msra.mxu0 0.0
    %6801 = vmatprep.subr.mxu0 0.0
    %6802 = vmatpush2.msra.mxu0 0.0
    %6803 = vmatprep.subr.mxu0 0.0
    %6804 = vmatpush2.msra.mxu0 0.0
    %6805 = vmatprep.subr.mxu0 0.0
    %6806 = vmatpush2.msra.mxu0 0.0
    %6807 = vmatprep.subr.mxu0 0.0
    %6808 = vmatpush2.msra.mxu0 0.0
    %6809 = vmatprep.subr.mxu0 0.0
    %6810 = vmatpush2.msra.mxu0 0.0
    %6811 = vmatprep.subr.mxu0 0.0
    %6812 = vmatpush2.msra.mxu0 0.0
    %6813 = vmatprep.subr.mxu0 0.0
    %6814 = vmatpush2.msra.mxu0 0.0
    %6815 = vmatprep.mubr.f32.mxu0 0.0
    %6816 = vmatmul.mubr.f32.gmra.mxu0 %v6749
    %v6817 = vpop.f32.mrf.mxu0
    %v6818 = vadd.f32 0.0, %v6817
    %v6819 = vpop.f32.mrf.mxu0
    %6820 = vdwg.mxu0
    %v6821 = vadd.f32 %v6747, %v6818
    %v6822 = vtanh.pop %v6821
    %6823 = vmatprep.subr.mxu0 0.0
    %6824 = vmatpush1.msra.mxu0 0.0
    %6825 = vmatprep.subr.mxu0 0.0
    %6826 = vmatpush1.msra.mxu0 0.0
    %6827 = vmatprep.subr.mxu0 0.0
    %6828 = vmatpush1.msra.mxu0 0.0
    %6829 = vmatprep.subr.mxu0 0.0
    %6830 = vmatpush1.msra.mxu0 0.0
    %6831 = vmatprep.subr.mxu0 0.0
    %6832 = vmatpush1.msra.mxu0 0.0
    %6833 = vmatprep.subr.mxu0 0.0
    %6834 = vmatpush1.msra.mxu0 0.0
    %6835 = vmatprep.subr.mxu0 0.0
    %6836 = vmatpush1.msra.mxu0 0.0
    %6837 = vmatprep.subr.mxu0 0.0
    %6838 = vmatpush1.msra.mxu0 0.0
    %6839 = vmatprep.subr.mxu0 0.0
    %6840 = vmatpush1.msra.mxu0 0.0
    %6841 = vmatprep.subr.mxu0 0.0
    %6842 = vmatpush1.msra.mxu0 0.0
    %6843 = vmatprep.subr.mxu0 0.0
    %6844 = vmatpush1.msra.mxu0 0.0
    %6845 = vmatprep.subr.mxu0 0.0
    %6846 = vmatpush1.msra.mxu0 0.0
    %6847 = vmatprep.subr.mxu0 0.0
    %6848 = vmatpush1.msra.mxu0 %v478
    %6849 = vmatprep.subr.mxu0 0.0
    %6850 = vmatpush1.msra.mxu0 %v477
    %6851 = vmatprep.subr.mxu0 0.0
    %6852 = vmatpush1.msra.mxu0 %v476
    %6853 = vmatprep.subr.mxu0 0.0
    %6854 = vmatpush1.msra.mxu0 %v475
    %6855 = vmatprep.subr.mxu0 0.0
    %6856 = vmatpush2.msra.mxu0 0.0
    %6857 = vmatprep.subr.mxu0 0.0
    %6858 = vmatpush2.msra.mxu0 0.0
    %6859 = vmatprep.subr.mxu0 0.0
    %6860 = vmatpush2.msra.mxu0 0.0
    %6861 = vmatprep.subr.mxu0 0.0
    %6862 = vmatpush2.msra.mxu0 0.0
    %6863 = vmatprep.subr.mxu0 0.0
    %6864 = vmatpush2.msra.mxu0 0.0
    %6865 = vmatprep.subr.mxu0 0.0
    %6866 = vmatpush2.msra.mxu0 0.0
    %6867 = vmatprep.subr.mxu0 0.0
    %6868 = vmatpush2.msra.mxu0 0.0
    %6869 = vmatprep.subr.mxu0 0.0
    %6870 = vmatpush2.msra.mxu0 0.0
    %6871 = vmatprep.subr.mxu0 0.0
    %6872 = vmatpush2.msra.mxu0 0.0
    %6873 = vmatprep.subr.mxu0 0.0
    %6874 = vmatpush2.msra.mxu0 0.0
    %6875 = vmatprep.subr.mxu0 0.0
    %6876 = vmatpush2.msra.mxu0 0.0
    %6877 = vmatprep.subr.mxu0 0.0
    %6878 = vmatpush2.msra.mxu0 0.0
    %6879 = vmatprep.subr.mxu0 0.0
    %6880 = vmatpush2.msra.mxu0 0.0
    %6881 = vmatprep.subr.mxu0 0.0
    %6882 = vmatpush2.msra.mxu0 0.0
    %6883 = vmatprep.subr.mxu0 0.0
    %6884 = vmatpush2.msra.mxu0 0.0
    %6885 = vmatprep.subr.mxu0 0.0
    %6886 = vmatpush2.msra.mxu0 0.0
    %6887 = vmatprep.mubr.f32.mxu0 0.0
    %6888 = vmatmul.mubr.f32.gmra.mxu0 %v6749
    %v6889 = vpop.f32.mrf.mxu0
    %v6890 = vadd.f32 %v636, %v6889
    %v6891 = vpop.f32.mrf.mxu0
    %6892 = vdwg.mxu0
    %v6894 = vsel %vm434, %v6746, 0
    %6896 = vmatprep.subr.mxu0 0.0
    %6897 = vmatpush1.msra.mxu0 0.0
    %6898 = vmatprep.subr.mxu0 0.0
    %6899 = vmatpush1.msra.mxu0 0.0
    %6900 = vmatprep.subr.mxu0 0.0
    %6901 = vmatpush1.msra.mxu0 0.0
    %6902 = vmatprep.subr.mxu0 0.0
    %6903 = vmatpush1.msra.mxu0 0.0
    %6904 = vmatprep.subr.mxu0 0.0
    %6905 = vmatpush1.msra.mxu0 0.0
    %6906 = vmatprep.subr.mxu0 0.0
    %6907 = vmatpush1.msra.mxu0 0.0
    %6908 = vmatprep.subr.mxu0 0.0
    %6909 = vmatpush1.msra.mxu0 0.0
    %6910 = vmatprep.subr.mxu0 0.0
    %6911 = vmatpush1.msra.mxu0 0.0
    %6912 = vmatprep.subr.mxu0 0.0
    %6913 = vmatpush1.msra.mxu0 0.0
    %6914 = vmatprep.subr.mxu0 0.0
    %6915 = vmatpush1.msra.mxu0 0.0
    %6916 = vmatprep.subr.mxu0 0.0
    %6917 = vmatpush1.msra.mxu0 0.0
    %6918 = vmatprep.subr.mxu0 0.0
    %6919 = vmatpush1.msra.mxu0 0.0
    %6920 = vmatprep.subr.mxu0 0.0
    %6921 = vmatpush1.msra.mxu0 %v474
    %6922 = vmatprep.subr.mxu0 0.0
    %6923 = vmatpush1.msra.mxu0 %v473
    %6924 = vmatprep.subr.mxu0 0.0
    %6925 = vmatpush1.msra.mxu0 %v472
    %6926 = vmatprep.subr.mxu0 0.0
    %6927 = vmatpush1.msra.mxu0 %v471
    %6928 = vmatprep.subr.mxu0 0.0
    %6929 = vmatpush2.msra.mxu0 0.0
    %6930 = vmatprep.subr.mxu0 0.0
    %6931 = vmatpush2.msra.mxu0 0.0
    %6932 = vmatprep.subr.mxu0 0.0
    %6933 = vmatpush2.msra.mxu0 0.0
    %6934 = vmatprep.subr.mxu0 0.0
    %6935 = vmatpush2.msra.mxu0 0.0
    %6936 = vmatprep.subr.mxu0 0.0
    %6937 = vmatpush2.msra.mxu0 0.0
    %6938 = vmatprep.subr.mxu0 0.0
    %6939 = vmatpush2.msra.mxu0 0.0
    %6940 = vmatprep.subr.mxu0 0.0
    %6941 = vmatpush2.msra.mxu0 0.0
    %6942 = vmatprep.subr.mxu0 0.0
    %6943 = vmatpush2.msra.mxu0 0.0
    %6944 = vmatprep.subr.mxu0 0.0
    %6945 = vmatpush2.msra.mxu0 0.0
    %6946 = vmatprep.subr.mxu0 0.0
    %6947 = vmatpush2.msra.mxu0 0.0
    %6948 = vmatprep.subr.mxu0 0.0
    %6949 = vmatpush2.msra.mxu0 0.0
    %6950 = vmatprep.subr.mxu0 0.0
    %6951 = vmatpush2.msra.mxu0 0.0
    %6952 = vmatprep.subr.mxu0 0.0
    %6953 = vmatpush2.msra.mxu0 0.0
    %6954 = vmatprep.subr.mxu0 0.0
    %6955 = vmatpush2.msra.mxu0 0.0
    %6956 = vmatprep.subr.mxu0 0.0
    %6957 = vmatpush2.msra.mxu0 0.0
    %6958 = vmatprep.subr.mxu0 0.0
    %6959 = vmatpush2.msra.mxu0 0.0
    %6960 = vmatprep.mubr.f32.mxu0 0.0
    %6961 = vmatmul.mubr.f32.gmra.mxu0 %v6894
    %v6962 = vpop.f32.mrf.mxu0
    %v6963 = vadd.f32 0.0, %v6962
    %v6964 = vpop.f32.mrf.mxu0
    %6965 = vdwg.mxu0
    %v6966 = vadd.f32 %v6890, %v6963
    %v6967 = vtanh.pop %v6966
    %v6968 = vld [vmem:[#allocation2 + $0xf0] sm:$0xff]
    %v6970 = vsel %vm434, %v6822, 0
    %6972 = vmatprep.subr.mxu0 0.0
    %6973 = vmatpush1.msra.mxu0 0.0
    %6974 = vmatprep.subr.mxu0 0.0
    %6975 = vmatpush1.msra.mxu0 0.0
    %6976 = vmatprep.subr.mxu0 0.0
    %6977 = vmatpush1.msra.mxu0 0.0
    %6978 = vmatprep.subr.mxu0 0.0
    %6979 = vmatpush1.msra.mxu0 0.0
    %6980 = vmatprep.subr.mxu0 0.0
    %6981 = vmatpush1.msra.mxu0 0.0
    %6982 = vmatprep.subr.mxu0 0.0
    %6983 = vmatpush1.msra.mxu0 0.0
    %6984 = vmatprep.subr.mxu0 0.0
    %6985 = vmatpush1.msra.mxu0 0.0
    %6986 = vmatprep.subr.mxu0 0.0
    %6987 = vmatpush1.msra.mxu0 0.0
    %6988 = vmatprep.subr.mxu0 0.0
    %6989 = vmatpush1.msra.mxu0 0.0
    %6990 = vmatprep.subr.mxu0 0.0
    %6991 = vmatpush1.msra.mxu0 0.0
    %6992 = vmatprep.subr.mxu0 0.0
    %6993 = vmatpush1.msra.mxu0 0.0
    %6994 = vmatprep.subr.mxu0 0.0
    %6995 = vmatpush1.msra.mxu0 0.0
    %6996 = vmatprep.subr.mxu0 0.0
    %6997 = vmatpush1.msra.mxu0 %v470
    %6998 = vmatprep.subr.mxu0 0.0
    %6999 = vmatpush1.msra.mxu0 %v469
    %7000 = vmatprep.subr.mxu0 0.0
    %7001 = vmatpush1.msra.mxu0 %v468
    %7002 = vmatprep.subr.mxu0 0.0
    %7003 = vmatpush1.msra.mxu0 %v467
    %7004 = vmatprep.subr.mxu0 0.0
    %7005 = vmatpush2.msra.mxu0 0.0
    %7006 = vmatprep.subr.mxu0 0.0
    %7007 = vmatpush2.msra.mxu0 0.0
    %7008 = vmatprep.subr.mxu0 0.0
    %7009 = vmatpush2.msra.mxu0 0.0
    %7010 = vmatprep.subr.mxu0 0.0
    %7011 = vmatpush2.msra.mxu0 0.0
    %7012 = vmatprep.subr.mxu0 0.0
    %7013 = vmatpush2.msra.mxu0 0.0
    %7014 = vmatprep.subr.mxu0 0.0
    %7015 = vmatpush2.msra.mxu0 0.0
    %7016 = vmatprep.subr.mxu0 0.0
    %7017 = vmatpush2.msra.mxu0 0.0
    %7018 = vmatprep.subr.mxu0 0.0
    %7019 = vmatpush2.msra.mxu0 0.0
    %7020 = vmatprep.subr.mxu0 0.0
    %7021 = vmatpush2.msra.mxu0 0.0
    %7022 = vmatprep.subr.mxu0 0.0
    %7023 = vmatpush2.msra.mxu0 0.0
    %7024 = vmatprep.subr.mxu0 0.0
    %7025 = vmatpush2.msra.mxu0 0.0
    %7026 = vmatprep.subr.mxu0 0.0
    %7027 = vmatpush2.msra.mxu0 0.0
    %7028 = vmatprep.subr.mxu0 0.0
    %7029 = vmatpush2.msra.mxu0 0.0
    %7030 = vmatprep.subr.mxu0 0.0
    %7031 = vmatpush2.msra.mxu0 0.0
    %7032 = vmatprep.subr.mxu0 0.0
    %7033 = vmatpush2.msra.mxu0 0.0
    %7034 = vmatprep.subr.mxu0 0.0
    %7035 = vmatpush2.msra.mxu0 0.0
    %7036 = vmatprep.mubr.f32.mxu0 0.0
    %7037 = vmatmul.mubr.f32.gmra.mxu0 %v6970
    %v7038 = vpop.f32.mrf.mxu0
    %v7039 = vadd.f32 0.0, %v7038
    %v7040 = vpop.f32.mrf.mxu0
    %7041 = vdwg.mxu0
    %v7042 = vadd.f32 %v6968, %v7039
    %v7043 = vtanh.pop %v7042
    %7044 = vmatprep.subr.mxu0 0.0
    %7045 = vmatpush1.msra.mxu0 0.0
    %7046 = vmatprep.subr.mxu0 0.0
    %7047 = vmatpush1.msra.mxu0 0.0
    %7048 = vmatprep.subr.mxu0 0.0
    %7049 = vmatpush1.msra.mxu0 0.0
    %7050 = vmatprep.subr.mxu0 0.0
    %7051 = vmatpush1.msra.mxu0 0.0
    %7052 = vmatprep.subr.mxu0 0.0
    %7053 = vmatpush1.msra.mxu0 0.0
    %7054 = vmatprep.subr.mxu0 0.0
    %7055 = vmatpush1.msra.mxu0 0.0
    %7056 = vmatprep.subr.mxu0 0.0
    %7057 = vmatpush1.msra.mxu0 0.0
    %7058 = vmatprep.subr.mxu0 0.0
    %7059 = vmatpush1.msra.mxu0 0.0
    %7060 = vmatprep.subr.mxu0 0.0
    %7061 = vmatpush1.msra.mxu0 0.0
    %7062 = vmatprep.subr.mxu0 0.0
    %7063 = vmatpush1.msra.mxu0 0.0
    %7064 = vmatprep.subr.mxu0 0.0
    %7065 = vmatpush1.msra.mxu0 0.0
    %7066 = vmatprep.subr.mxu0 0.0
    %7067 = vmatpush1.msra.mxu0 0.0
    %7068 = vmatprep.subr.mxu0 0.0
    %7069 = vmatpush1.msra.mxu0 %v478
    %7070 = vmatprep.subr.mxu0 0.0
    %7071 = vmatpush1.msra.mxu0 %v477
    %7072 = vmatprep.subr.mxu0 0.0
    %7073 = vmatpush1.msra.mxu0 %v476
    %7074 = vmatprep.subr.mxu0 0.0
    %7075 = vmatpush1.msra.mxu0 %v475
    %7076 = vmatprep.subr.mxu0 0.0
    %7077 = vmatpush2.msra.mxu0 0.0
    %7078 = vmatprep.subr.mxu0 0.0
    %7079 = vmatpush2.msra.mxu0 0.0
    %7080 = vmatprep.subr.mxu0 0.0
    %7081 = vmatpush2.msra.mxu0 0.0
    %7082 = vmatprep.subr.mxu0 0.0
    %7083 = vmatpush2.msra.mxu0 0.0
    %7084 = vmatprep.subr.mxu0 0.0
    %7085 = vmatpush2.msra.mxu0 0.0
    %7086 = vmatprep.subr.mxu0 0.0
    %7087 = vmatpush2.msra.mxu0 0.0
    %7088 = vmatprep.subr.mxu0 0.0
    %7089 = vmatpush2.msra.mxu0 0.0
    %7090 = vmatprep.subr.mxu0 0.0
    %7091 = vmatpush2.msra.mxu0 0.0
    %7092 = vmatprep.subr.mxu0 0.0
    %7093 = vmatpush2.msra.mxu0 0.0
    %7094 = vmatprep.subr.mxu0 0.0
    %7095 = vmatpush2.msra.mxu0 0.0
    %7096 = vmatprep.subr.mxu0 0.0
    %7097 = vmatpush2.msra.mxu0 0.0
    %7098 = vmatprep.subr.mxu0 0.0
    %7099 = vmatpush2.msra.mxu0 0.0
    %7100 = vmatprep.subr.mxu0 0.0
    %7101 = vmatpush2.msra.mxu0 0.0
    %7102 = vmatprep.subr.mxu0 0.0
    %7103 = vmatpush2.msra.mxu0 0.0
    %7104 = vmatprep.subr.mxu0 0.0
    %7105 = vmatpush2.msra.mxu0 0.0
    %7106 = vmatprep.subr.mxu0 0.0
    %7107 = vmatpush2.msra.mxu0 0.0
    %7108 = vmatprep.mubr.f32.mxu0 0.0
    %7109 = vmatmul.mubr.f32.gmra.mxu0 %v6970
    %v7110 = vpop.f32.mrf.mxu0
    %v7111 = vadd.f32 %v636, %v7110
    %v7112 = vpop.f32.mrf.mxu0
    %7113 = vdwg.mxu0
    %v7115 = vsel %vm434, %v6967, 0
    %7117 = vmatprep.subr.mxu0 0.0
    %7118 = vmatpush1.msra.mxu0 0.0
    %7119 = vmatprep.subr.mxu0 0.0
    %7120 = vmatpush1.msra.mxu0 0.0
    %7121 = vmatprep.subr.mxu0 0.0
    %7122 = vmatpush1.msra.mxu0 0.0
    %7123 = vmatprep.subr.mxu0 0.0
    %7124 = vmatpush1.msra.mxu0 0.0
    %7125 = vmatprep.subr.mxu0 0.0
    %7126 = vmatpush1.msra.mxu0 0.0
    %7127 = vmatprep.subr.mxu0 0.0
    %7128 = vmatpush1.msra.mxu0 0.0
    %7129 = vmatprep.subr.mxu0 0.0
    %7130 = vmatpush1.msra.mxu0 0.0
    %7131 = vmatprep.subr.mxu0 0.0
    %7132 = vmatpush1.msra.mxu0 0.0
    %7133 = vmatprep.subr.mxu0 0.0
    %7134 = vmatpush1.msra.mxu0 0.0
    %7135 = vmatprep.subr.mxu0 0.0
    %7136 = vmatpush1.msra.mxu0 0.0
    %7137 = vmatprep.subr.mxu0 0.0
    %7138 = vmatpush1.msra.mxu0 0.0
    %7139 = vmatprep.subr.mxu0 0.0
    %7140 = vmatpush1.msra.mxu0 0.0
    %7141 = vmatprep.subr.mxu0 0.0
    %7142 = vmatpush1.msra.mxu0 %v474
    %7143 = vmatprep.subr.mxu0 0.0
    %7144 = vmatpush1.msra.mxu0 %v473
    %7145 = vmatprep.subr.mxu0 0.0
    %7146 = vmatpush1.msra.mxu0 %v472
    %7147 = vmatprep.subr.mxu0 0.0
    %7148 = vmatpush1.msra.mxu0 %v471
    %7149 = vmatprep.subr.mxu0 0.0
    %7150 = vmatpush2.msra.mxu0 0.0
    %7151 = vmatprep.subr.mxu0 0.0
    %7152 = vmatpush2.msra.mxu0 0.0
    %7153 = vmatprep.subr.mxu0 0.0
    %7154 = vmatpush2.msra.mxu0 0.0
    %7155 = vmatprep.subr.mxu0 0.0
    %7156 = vmatpush2.msra.mxu0 0.0
    %7157 = vmatprep.subr.mxu0 0.0
    %7158 = vmatpush2.msra.mxu0 0.0
    %7159 = vmatprep.subr.mxu0 0.0
    %7160 = vmatpush2.msra.mxu0 0.0
    %7161 = vmatprep.subr.mxu0 0.0
    %7162 = vmatpush2.msra.mxu0 0.0
    %7163 = vmatprep.subr.mxu0 0.0
    %7164 = vmatpush2.msra.mxu0 0.0
    %7165 = vmatprep.subr.mxu0 0.0
    %7166 = vmatpush2.msra.mxu0 0.0
    %7167 = vmatprep.subr.mxu0 0.0
    %7168 = vmatpush2.msra.mxu0 0.0
    %7169 = vmatprep.subr.mxu0 0.0
    %7170 = vmatpush2.msra.mxu0 0.0
    %7171 = vmatprep.subr.mxu0 0.0
    %7172 = vmatpush2.msra.mxu0 0.0
    %7173 = vmatprep.subr.mxu0 0.0
    %7174 = vmatpush2.msra.mxu0 0.0
    %7175 = vmatprep.subr.mxu0 0.0
    %7176 = vmatpush2.msra.mxu0 0.0
    %7177 = vmatprep.subr.mxu0 0.0
    %7178 = vmatpush2.msra.mxu0 0.0
    %7179 = vmatprep.subr.mxu0 0.0
    %7180 = vmatpush2.msra.mxu0 0.0
    %7181 = vmatprep.mubr.f32.mxu0 0.0
    %7182 = vmatmul.mubr.f32.gmra.mxu0 %v7115
    %v7183 = vpop.f32.mrf.mxu0
    %v7184 = vadd.f32 0.0, %v7183
    %v7185 = vpop.f32.mrf.mxu0
    %7186 = vdwg.mxu0
    %v7187 = vadd.f32 %v7111, %v7184
    %v7188 = vtanh.pop %v7187
    %v7189 = vld [vmem:[#allocation2 + $0xf8] sm:$0xff]
    %v7191 = vsel %vm434, %v7043, 0
    %7193 = vmatprep.subr.mxu0 0.0
    %7194 = vmatpush1.msra.mxu0 0.0
    %7195 = vmatprep.subr.mxu0 0.0
    %7196 = vmatpush1.msra.mxu0 0.0
    %7197 = vmatprep.subr.mxu0 0.0
    %7198 = vmatpush1.msra.mxu0 0.0
    %7199 = vmatprep.subr.mxu0 0.0
    %7200 = vmatpush1.msra.mxu0 0.0
    %7201 = vmatprep.subr.mxu0 0.0
    %7202 = vmatpush1.msra.mxu0 0.0
    %7203 = vmatprep.subr.mxu0 0.0
    %7204 = vmatpush1.msra.mxu0 0.0
    %7205 = vmatprep.subr.mxu0 0.0
    %7206 = vmatpush1.msra.mxu0 0.0
    %7207 = vmatprep.subr.mxu0 0.0
    %7208 = vmatpush1.msra.mxu0 0.0
    %7209 = vmatprep.subr.mxu0 0.0
    %7210 = vmatpush1.msra.mxu0 0.0
    %7211 = vmatprep.subr.mxu0 0.0
    %7212 = vmatpush1.msra.mxu0 0.0
    %7213 = vmatprep.subr.mxu0 0.0
    %7214 = vmatpush1.msra.mxu0 0.0
    %7215 = vmatprep.subr.mxu0 0.0
    %7216 = vmatpush1.msra.mxu0 0.0
    %7217 = vmatprep.subr.mxu0 0.0
    %7218 = vmatpush1.msra.mxu0 %v470
    %7219 = vmatprep.subr.mxu0 0.0
    %7220 = vmatpush1.msra.mxu0 %v469
    %7221 = vmatprep.subr.mxu0 0.0
    %7222 = vmatpush1.msra.mxu0 %v468
    %7223 = vmatprep.subr.mxu0 0.0
    %7224 = vmatpush1.msra.mxu0 %v467
    %7225 = vmatprep.subr.mxu0 0.0
    %7226 = vmatpush2.msra.mxu0 0.0
    %7227 = vmatprep.subr.mxu0 0.0
    %7228 = vmatpush2.msra.mxu0 0.0
    %7229 = vmatprep.subr.mxu0 0.0
    %7230 = vmatpush2.msra.mxu0 0.0
    %7231 = vmatprep.subr.mxu0 0.0
    %7232 = vmatpush2.msra.mxu0 0.0
    %7233 = vmatprep.subr.mxu0 0.0
    %7234 = vmatpush2.msra.mxu0 0.0
    %7235 = vmatprep.subr.mxu0 0.0
    %7236 = vmatpush2.msra.mxu0 0.0
    %7237 = vmatprep.subr.mxu0 0.0
    %7238 = vmatpush2.msra.mxu0 0.0
    %7239 = vmatprep.subr.mxu0 0.0
    %7240 = vmatpush2.msra.mxu0 0.0
    %7241 = vmatprep.subr.mxu0 0.0
    %7242 = vmatpush2.msra.mxu0 0.0
    %7243 = vmatprep.subr.mxu0 0.0
    %7244 = vmatpush2.msra.mxu0 0.0
    %7245 = vmatprep.subr.mxu0 0.0
    %7246 = vmatpush2.msra.mxu0 0.0
    %7247 = vmatprep.subr.mxu0 0.0
    %7248 = vmatpush2.msra.mxu0 0.0
    %7249 = vmatprep.subr.mxu0 0.0
    %7250 = vmatpush2.msra.mxu0 0.0
    %7251 = vmatprep.subr.mxu0 0.0
    %7252 = vmatpush2.msra.mxu0 0.0
    %7253 = vmatprep.subr.mxu0 0.0
    %7254 = vmatpush2.msra.mxu0 0.0
    %7255 = vmatprep.subr.mxu0 0.0
    %7256 = vmatpush2.msra.mxu0 0.0
    %7257 = vmatprep.mubr.f32.mxu0 0.0
    %7258 = vmatmul.mubr.f32.gmra.mxu0 %v7191
    %v7259 = vpop.f32.mrf.mxu0
    %v7260 = vadd.f32 0.0, %v7259
    %v7261 = vpop.f32.mrf.mxu0
    %7262 = vdwg.mxu0
    %v7263 = vadd.f32 %v7189, %v7260
    %v7264 = vtanh.pop %v7263
    %7265 = vmatprep.subr.mxu0 0.0
    %7266 = vmatpush1.msra.mxu0 0.0
    %7267 = vmatprep.subr.mxu0 0.0
    %7268 = vmatpush1.msra.mxu0 0.0
    %7269 = vmatprep.subr.mxu0 0.0
    %7270 = vmatpush1.msra.mxu0 0.0
    %7271 = vmatprep.subr.mxu0 0.0
    %7272 = vmatpush1.msra.mxu0 0.0
    %7273 = vmatprep.subr.mxu0 0.0
    %7274 = vmatpush1.msra.mxu0 0.0
    %7275 = vmatprep.subr.mxu0 0.0
    %7276 = vmatpush1.msra.mxu0 0.0
    %7277 = vmatprep.subr.mxu0 0.0
    %7278 = vmatpush1.msra.mxu0 0.0
    %7279 = vmatprep.subr.mxu0 0.0
    %7280 = vmatpush1.msra.mxu0 0.0
    %7281 = vmatprep.subr.mxu0 0.0
    %7282 = vmatpush1.msra.mxu0 0.0
    %7283 = vmatprep.subr.mxu0 0.0
    %7284 = vmatpush1.msra.mxu0 0.0
    %7285 = vmatprep.subr.mxu0 0.0
    %7286 = vmatpush1.msra.mxu0 0.0
    %7287 = vmatprep.subr.mxu0 0.0
    %7288 = vmatpush1.msra.mxu0 0.0
    %7289 = vmatprep.subr.mxu0 0.0
    %7290 = vmatpush1.msra.mxu0 %v478
    %7291 = vmatprep.subr.mxu0 0.0
    %7292 = vmatpush1.msra.mxu0 %v477
    %7293 = vmatprep.subr.mxu0 0.0
    %7294 = vmatpush1.msra.mxu0 %v476
    %7295 = vmatprep.subr.mxu0 0.0
    %7296 = vmatpush1.msra.mxu0 %v475
    %7297 = vmatprep.subr.mxu0 0.0
    %7298 = vmatpush2.msra.mxu0 0.0
    %7299 = vmatprep.subr.mxu0 0.0
    %7300 = vmatpush2.msra.mxu0 0.0
    %7301 = vmatprep.subr.mxu0 0.0
    %7302 = vmatpush2.msra.mxu0 0.0
    %7303 = vmatprep.subr.mxu0 0.0
    %7304 = vmatpush2.msra.mxu0 0.0
    %7305 = vmatprep.subr.mxu0 0.0
    %7306 = vmatpush2.msra.mxu0 0.0
    %7307 = vmatprep.subr.mxu0 0.0
    %7308 = vmatpush2.msra.mxu0 0.0
    %7309 = vmatprep.subr.mxu0 0.0
    %7310 = vmatpush2.msra.mxu0 0.0
    %7311 = vmatprep.subr.mxu0 0.0
    %7312 = vmatpush2.msra.mxu0 0.0
    %7313 = vmatprep.subr.mxu0 0.0
    %7314 = vmatpush2.msra.mxu0 0.0
    %7315 = vmatprep.subr.mxu0 0.0
    %7316 = vmatpush2.msra.mxu0 0.0
    %7317 = vmatprep.subr.mxu0 0.0
    %7318 = vmatpush2.msra.mxu0 0.0
    %7319 = vmatprep.subr.mxu0 0.0
    %7320 = vmatpush2.msra.mxu0 0.0
    %7321 = vmatprep.subr.mxu0 0.0
    %7322 = vmatpush2.msra.mxu0 0.0
    %7323 = vmatprep.subr.mxu0 0.0
    %7324 = vmatpush2.msra.mxu0 0.0
    %7325 = vmatprep.subr.mxu0 0.0
    %7326 = vmatpush2.msra.mxu0 0.0
    %7327 = vmatprep.subr.mxu0 0.0
    %7328 = vmatpush2.msra.mxu0 0.0
    %7329 = vmatprep.mubr.f32.mxu0 0.0
    %7330 = vmatmul.mubr.f32.gmra.mxu0 %v7191
    %v7331 = vpop.f32.mrf.mxu0
    %v7332 = vadd.f32 %v636, %v7331
    %v7333 = vpop.f32.mrf.mxu0
    %7334 = vdwg.mxu0
    %v7336 = vsel %vm434, %v7188, 0
    %7338 = vmatprep.subr.mxu0 0.0
    %7339 = vmatpush1.msra.mxu0 0.0
    %7340 = vmatprep.subr.mxu0 0.0
    %7341 = vmatpush1.msra.mxu0 0.0
    %7342 = vmatprep.subr.mxu0 0.0
    %7343 = vmatpush1.msra.mxu0 0.0
    %7344 = vmatprep.subr.mxu0 0.0
    %7345 = vmatpush1.msra.mxu0 0.0
    %7346 = vmatprep.subr.mxu0 0.0
    %7347 = vmatpush1.msra.mxu0 0.0
    %7348 = vmatprep.subr.mxu0 0.0
    %7349 = vmatpush1.msra.mxu0 0.0
    %7350 = vmatprep.subr.mxu0 0.0
    %7351 = vmatpush1.msra.mxu0 0.0
    %7352 = vmatprep.subr.mxu0 0.0
    %7353 = vmatpush1.msra.mxu0 0.0
    %7354 = vmatprep.subr.mxu0 0.0
    %7355 = vmatpush1.msra.mxu0 0.0
    %7356 = vmatprep.subr.mxu0 0.0
    %7357 = vmatpush1.msra.mxu0 0.0
    %7358 = vmatprep.subr.mxu0 0.0
    %7359 = vmatpush1.msra.mxu0 0.0
    %7360 = vmatprep.subr.mxu0 0.0
    %7361 = vmatpush1.msra.mxu0 0.0
    %7362 = vmatprep.subr.mxu0 0.0
    %7363 = vmatpush1.msra.mxu0 %v474
    %7364 = vmatprep.subr.mxu0 0.0
    %7365 = vmatpush1.msra.mxu0 %v473
    %7366 = vmatprep.subr.mxu0 0.0
    %7367 = vmatpush1.msra.mxu0 %v472
    %7368 = vmatprep.subr.mxu0 0.0
    %7369 = vmatpush1.msra.mxu0 %v471
    %7370 = vmatprep.subr.mxu0 0.0
    %7371 = vmatpush2.msra.mxu0 0.0
    %7372 = vmatprep.subr.mxu0 0.0
    %7373 = vmatpush2.msra.mxu0 0.0
    %7374 = vmatprep.subr.mxu0 0.0
    %7375 = vmatpush2.msra.mxu0 0.0
    %7376 = vmatprep.subr.mxu0 0.0
    %7377 = vmatpush2.msra.mxu0 0.0
    %7378 = vmatprep.subr.mxu0 0.0
    %7379 = vmatpush2.msra.mxu0 0.0
    %7380 = vmatprep.subr.mxu0 0.0
    %7381 = vmatpush2.msra.mxu0 0.0
    %7382 = vmatprep.subr.mxu0 0.0
    %7383 = vmatpush2.msra.mxu0 0.0
    %7384 = vmatprep.subr.mxu0 0.0
    %7385 = vmatpush2.msra.mxu0 0.0
    %7386 = vmatprep.subr.mxu0 0.0
    %7387 = vmatpush2.msra.mxu0 0.0
    %7388 = vmatprep.subr.mxu0 0.0
    %7389 = vmatpush2.msra.mxu0 0.0
    %7390 = vmatprep.subr.mxu0 0.0
    %7391 = vmatpush2.msra.mxu0 0.0
    %7392 = vmatprep.subr.mxu0 0.0
    %7393 = vmatpush2.msra.mxu0 0.0
    %7394 = vmatprep.subr.mxu0 0.0
    %7395 = vmatpush2.msra.mxu0 0.0
    %7396 = vmatprep.subr.mxu0 0.0
    %7397 = vmatpush2.msra.mxu0 0.0
    %7398 = vmatprep.subr.mxu0 0.0
    %7399 = vmatpush2.msra.mxu0 0.0
    %7400 = vmatprep.subr.mxu0 0.0
    %7401 = vmatpush2.msra.mxu0 0.0
    %7402 = vmatprep.mubr.f32.mxu0 0.0
    %7403 = vmatmul.mubr.f32.gmra.mxu0 %v7336
    %v7404 = vpop.f32.mrf.mxu0
    %v7405 = vadd.f32 0.0, %v7404
    %v7406 = vpop.f32.mrf.mxu0
    %7407 = vdwg.mxu0
    %v7408 = vadd.f32 %v7332, %v7405
    %v7409 = vtanh.pop %v7408
    %v7411 = vsel %vm434, %v7264, 0
    %7413 = vmatprep.subr.mxu0 0.0
    %7414 = vmatpush1.msra.mxu0 0.0
    %7415 = vmatprep.subr.mxu0 0.0
    %7416 = vmatpush1.msra.mxu0 0.0
    %7417 = vmatprep.subr.mxu0 0.0
    %7418 = vmatpush1.msra.mxu0 0.0
    %7419 = vmatprep.subr.mxu0 0.0
    %7420 = vmatpush1.msra.mxu0 0.0
    %7421 = vmatprep.subr.mxu0 0.0
    %7422 = vmatpush1.msra.mxu0 0.0
    %7423 = vmatprep.subr.mxu0 0.0
    %7424 = vmatpush1.msra.mxu0 0.0
    %7425 = vmatprep.subr.mxu0 0.0
    %7426 = vmatpush1.msra.mxu0 0.0
    %7427 = vmatprep.subr.mxu0 0.0
    %7428 = vmatpush1.msra.mxu0 0.0
    %7429 = vmatprep.subr.mxu0 0.0
    %7430 = vmatpush1.msra.mxu0 0.0
    %7431 = vmatprep.subr.mxu0 0.0
    %7432 = vmatpush1.msra.mxu0 0.0
    %7433 = vmatprep.subr.mxu0 0.0
    %7434 = vmatpush1.msra.mxu0 0.0
    %7435 = vmatprep.subr.mxu0 0.0
    %7436 = vmatpush1.msra.mxu0 0.0
    %7437 = vmatprep.subr.mxu0 0.0
    %7438 = vmatpush1.msra.mxu0 %v478
    %7439 = vmatprep.subr.mxu0 0.0
    %7440 = vmatpush1.msra.mxu0 %v477
    %7441 = vmatprep.subr.mxu0 0.0
    %7442 = vmatpush1.msra.mxu0 %v476
    %7443 = vmatprep.subr.mxu0 0.0
    %7444 = vmatpush1.msra.mxu0 %v475
    %7445 = vmatprep.subr.mxu0 0.0
    %7446 = vmatpush2.msra.mxu0 0.0
    %7447 = vmatprep.subr.mxu0 0.0
    %7448 = vmatpush2.msra.mxu0 0.0
    %7449 = vmatprep.subr.mxu0 0.0
    %7450 = vmatpush2.msra.mxu0 0.0
    %7451 = vmatprep.subr.mxu0 0.0
    %7452 = vmatpush2.msra.mxu0 0.0
    %7453 = vmatprep.subr.mxu0 0.0
    %7454 = vmatpush2.msra.mxu0 0.0
    %7455 = vmatprep.subr.mxu0 0.0
    %7456 = vmatpush2.msra.mxu0 0.0
    %7457 = vmatprep.subr.mxu0 0.0
    %7458 = vmatpush2.msra.mxu0 0.0
    %7459 = vmatprep.subr.mxu0 0.0
    %7460 = vmatpush2.msra.mxu0 0.0
    %7461 = vmatprep.subr.mxu0 0.0
    %7462 = vmatpush2.msra.mxu0 0.0
    %7463 = vmatprep.subr.mxu0 0.0
    %7464 = vmatpush2.msra.mxu0 0.0
    %7465 = vmatprep.subr.mxu0 0.0
    %7466 = vmatpush2.msra.mxu0 0.0
    %7467 = vmatprep.subr.mxu0 0.0
    %7468 = vmatpush2.msra.mxu0 0.0
    %7469 = vmatprep.subr.mxu0 0.0
    %7470 = vmatpush2.msra.mxu0 0.0
    %7471 = vmatprep.subr.mxu0 0.0
    %7472 = vmatpush2.msra.mxu0 0.0
    %7473 = vmatprep.subr.mxu0 0.0
    %7474 = vmatpush2.msra.mxu0 0.0
    %7475 = vmatprep.subr.mxu0 0.0
    %7476 = vmatpush2.msra.mxu0 0.0
    %7477 = vmatprep.mubr.f32.mxu0 0.0
    %7478 = vmatmul.mubr.f32.gmra.mxu0 %v7411
    %v7479 = vpop.f32.mrf.mxu0
    %v7480 = vadd.f32 %v636, %v7479
    %v7481 = vpop.f32.mrf.mxu0
    %7482 = vdwg.mxu0
    %v7484 = vsel %vm434, %v7409, 0
    %7486 = vmatprep.subr.mxu0 0.0
    %7487 = vmatpush1.msra.mxu0 0.0
    %7488 = vmatprep.subr.mxu0 0.0
    %7489 = vmatpush1.msra.mxu0 0.0
    %7490 = vmatprep.subr.mxu0 0.0
    %7491 = vmatpush1.msra.mxu0 0.0
    %7492 = vmatprep.subr.mxu0 0.0
    %7493 = vmatpush1.msra.mxu0 0.0
    %7494 = vmatprep.subr.mxu0 0.0
    %7495 = vmatpush1.msra.mxu0 0.0
    %7496 = vmatprep.subr.mxu0 0.0
    %7497 = vmatpush1.msra.mxu0 0.0
    %7498 = vmatprep.subr.mxu0 0.0
    %7499 = vmatpush1.msra.mxu0 0.0
    %7500 = vmatprep.subr.mxu0 0.0
    %7501 = vmatpush1.msra.mxu0 0.0
    %7502 = vmatprep.subr.mxu0 0.0
    %7503 = vmatpush1.msra.mxu0 0.0
    %7504 = vmatprep.subr.mxu0 0.0
    %7505 = vmatpush1.msra.mxu0 0.0
    %7506 = vmatprep.subr.mxu0 0.0
    %7507 = vmatpush1.msra.mxu0 0.0
    %7508 = vmatprep.subr.mxu0 0.0
    %7509 = vmatpush1.msra.mxu0 0.0
    %7510 = vmatprep.subr.mxu0 0.0
    %7511 = vmatpush1.msra.mxu0 %v474
    %7512 = vmatprep.subr.mxu0 0.0
    %7513 = vmatpush1.msra.mxu0 %v473
    %7514 = vmatprep.subr.mxu0 0.0
    %7515 = vmatpush1.msra.mxu0 %v472
    %7516 = vmatprep.subr.mxu0 0.0
    %7517 = vmatpush1.msra.mxu0 %v471
    %7518 = vmatprep.subr.mxu0 0.0
    %7519 = vmatpush2.msra.mxu0 0.0
    %7520 = vmatprep.subr.mxu0 0.0
    %7521 = vmatpush2.msra.mxu0 0.0
    %7522 = vmatprep.subr.mxu0 0.0
    %7523 = vmatpush2.msra.mxu0 0.0
    %7524 = vmatprep.subr.mxu0 0.0
    %7525 = vmatpush2.msra.mxu0 0.0
    %7526 = vmatprep.subr.mxu0 0.0
    %7527 = vmatpush2.msra.mxu0 0.0
    %7528 = vmatprep.subr.mxu0 0.0
    %7529 = vmatpush2.msra.mxu0 0.0
    %7530 = vmatprep.subr.mxu0 0.0
    %7531 = vmatpush2.msra.mxu0 0.0
    %7532 = vmatprep.subr.mxu0 0.0
    %7533 = vmatpush2.msra.mxu0 0.0
    %7534 = vmatprep.subr.mxu0 0.0
    %7535 = vmatpush2.msra.mxu0 0.0
    %7536 = vmatprep.subr.mxu0 0.0
    %7537 = vmatpush2.msra.mxu0 0.0
    %7538 = vmatprep.subr.mxu0 0.0
    %7539 = vmatpush2.msra.mxu0 0.0
    %7540 = vmatprep.subr.mxu0 0.0
    %7541 = vmatpush2.msra.mxu0 0.0
    %7542 = vmatprep.subr.mxu0 0.0
    %7543 = vmatpush2.msra.mxu0 0.0
    %7544 = vmatprep.subr.mxu0 0.0
    %7545 = vmatpush2.msra.mxu0 0.0
    %7546 = vmatprep.subr.mxu0 0.0
    %7547 = vmatpush2.msra.mxu0 0.0
    %7548 = vmatprep.subr.mxu0 0.0
    %7549 = vmatpush2.msra.mxu0 0.0
    %7550 = vmatprep.mubr.f32.mxu0 0.0
    %7551 = vmatmul.mubr.f32.gmra.mxu0 %v7484
    %v7552 = vpop.f32.mrf.mxu0
    %v7553 = vadd.f32 0.0, %v7552
    %v7554 = vpop.f32.mrf.mxu0
    %7555 = vdwg.mxu0
    %v7556 = vadd.f32 %v7480, %v7553
    %v7557 = vtanh.pop %v7556
    %v7558 = vmax.f32 %v7557, 0.0
    %s7559 = sld [smem:[#allocation3]]
    %v7560 = vstv %s7559
    %v7561 = vmul.f32 %v7558, %v7560
    %s7562 = sld [smem:[#allocation3 + $0x1]]
    %v7563 = vstv %s7562
    %v7564 = vadd.f32 %v7561, %v7563
    %v7565 = vxor.u32 %v7564, 2147483648
    %v7566 = vmul.f32 %v7565, 1.442695
    %v7567 = vpow.pop %v7566
    %v7568 = vadd.f32 %v7567, 1.0
    %v7569 = vrcp.pop %v7568
    %v7570 = vmul.f32 1.0, %v7569
    %v7571 = vld [vmem:[%s8] sm:$0xff]
    %v7572 = vld [vmem:[%s8 + $0x8] sm:$0xff]
    %v7573 = vld [vmem:[%s8 + $0x10] sm:$0xff]
    %v7574 = vld [vmem:[%s8 + $0x18] sm:$0xff]
    %v7575 = vld [vmem:[%s9] sm:$0x1]
    %v7577 = vlaneseq
    %v7578 = vshrl.u32 %v7577, 7
    %v7579 = vsub.s32 0, %v7578
    %v7580 = vrot.slane %v7575, %v7579
    %v7583 = vsel %vm434, %v7570, 0
    %7585 = vmatprep.subr.mxu0 0.0
    %7586 = vmatpush1.msra.mxu0 0.0
    %7587 = vmatprep.subr.mxu0 0.0
    %7588 = vmatpush1.msra.mxu0 0.0
    %7589 = vmatprep.subr.mxu0 0.0
    %7590 = vmatpush1.msra.mxu0 0.0
    %7591 = vmatprep.subr.mxu0 0.0
    %7592 = vmatpush1.msra.mxu0 0.0
    %7593 = vmatprep.subr.mxu0 0.0
    %7594 = vmatpush1.msra.mxu0 0.0
    %7595 = vmatprep.subr.mxu0 0.0
    %7596 = vmatpush1.msra.mxu0 0.0
    %7597 = vmatprep.subr.mxu0 0.0
    %7598 = vmatpush1.msra.mxu0 0.0
    %7599 = vmatprep.subr.mxu0 0.0
    %7600 = vmatpush1.msra.mxu0 0.0
    %7601 = vmatprep.subr.mxu0 0.0
    %7602 = vmatpush1.msra.mxu0 0.0
    %7603 = vmatprep.subr.mxu0 0.0
    %7604 = vmatpush1.msra.mxu0 0.0
    %7605 = vmatprep.subr.mxu0 0.0
    %7606 = vmatpush1.msra.mxu0 0.0
    %7607 = vmatprep.subr.mxu0 0.0
    %7608 = vmatpush1.msra.mxu0 0.0
    %7609 = vmatprep.subr.mxu0 0.0
    %7610 = vmatpush1.msra.mxu0 %v7574
    %7611 = vmatprep.subr.mxu0 0.0
    %7612 = vmatpush1.msra.mxu0 %v7573
    %7613 = vmatprep.subr.mxu0 0.0
    %7614 = vmatpush1.msra.mxu0 %v7572
    %7615 = vmatprep.subr.mxu0 0.0
    %7616 = vmatpush1.msra.mxu0 %v7571
    %7617 = vmatprep.subr.mxu0 0.0
    %7618 = vmatpush2.msra.mxu0 0.0
    %7619 = vmatprep.subr.mxu0 0.0
    %7620 = vmatpush2.msra.mxu0 0.0
    %7621 = vmatprep.subr.mxu0 0.0
    %7622 = vmatpush2.msra.mxu0 0.0
    %7623 = vmatprep.subr.mxu0 0.0
    %7624 = vmatpush2.msra.mxu0 0.0
    %7625 = vmatprep.subr.mxu0 0.0
    %7626 = vmatpush2.msra.mxu0 0.0
    %7627 = vmatprep.subr.mxu0 0.0
    %7628 = vmatpush2.msra.mxu0 0.0
    %7629 = vmatprep.subr.mxu0 0.0
    %7630 = vmatpush2.msra.mxu0 0.0
    %7631 = vmatprep.subr.mxu0 0.0
    %7632 = vmatpush2.msra.mxu0 0.0
    %7633 = vmatprep.subr.mxu0 0.0
    %7634 = vmatpush2.msra.mxu0 0.0
    %7635 = vmatprep.subr.mxu0 0.0
    %7636 = vmatpush2.msra.mxu0 0.0
    %7637 = vmatprep.subr.mxu0 0.0
    %7638 = vmatpush2.msra.mxu0 0.0
    %7639 = vmatprep.subr.mxu0 0.0
    %7640 = vmatpush2.msra.mxu0 0.0
    %7641 = vmatprep.subr.mxu0 0.0
    %7642 = vmatpush2.msra.mxu0 0.0
    %7643 = vmatprep.subr.mxu0 0.0
    %7644 = vmatpush2.msra.mxu0 0.0
    %7645 = vmatprep.subr.mxu0 0.0
    %7646 = vmatpush2.msra.mxu0 0.0
    %7647 = vmatprep.subr.mxu0 0.0
    %7648 = vmatpush2.msra.mxu0 0.0
    %7649 = vmatprep.mubr.f32.mxu0 0.0
    %7650 = vmatmul.mubr.f32.gmra.mxu0 %v7583
    %v7651 = vpop.f32.mrf.mxu0
    %v7652 = vadd.f32 %v7580, %v7651
    %v7653 = vpop.f32.mrf.mxu0
    %7654 = vdwg.mxu0
    %v7655 = vmax.f32 %v7652, 0.0
    %v7656 = vld [vmem:[%s10] sm:$0xf]
    %v7657 = vld [vmem:[%s11] sm:$0x1]
    %v7659 = vlaneseq
    %v7660 = vshrl.u32 %v7659, 7
    %v7661 = vsub.s32 0, %v7660
    %v7662 = vrot.slane %v7657, %v7661
    %vm7664 = vcmask 31744
    %v7666 = vsel %vm7664, %v7655, 0
    %vm7668 = vcmask 1043456
    %v7670 = vsel %vm7668, %v7656, 0
    %7672 = vmatprep.subr.mxu0 0.0
    %7673 = vmatpush1.msra.mxu0 0.0
    %7674 = vmatprep.subr.mxu0 0.0
    %7675 = vmatpush1.msra.mxu0 0.0
    %7676 = vmatprep.subr.mxu0 0.0
    %7677 = vmatpush1.msra.mxu0 0.0
    %7678 = vmatprep.subr.mxu0 0.0
    %7679 = vmatpush1.msra.mxu0 0.0
    %7680 = vmatprep.subr.mxu0 0.0
    %7681 = vmatpush1.msra.mxu0 0.0
    %7682 = vmatprep.subr.mxu0 0.0
    %7683 = vmatpush1.msra.mxu0 0.0
    %7684 = vmatprep.subr.mxu0 0.0
    %7685 = vmatpush1.msra.mxu0 0.0
    %7686 = vmatprep.subr.mxu0 0.0
    %7687 = vmatpush1.msra.mxu0 0.0
    %7688 = vmatprep.subr.mxu0 0.0
    %7689 = vmatpush1.msra.mxu0 0.0
    %7690 = vmatprep.subr.mxu0 0.0
    %7691 = vmatpush1.msra.mxu0 0.0
    %7692 = vmatprep.subr.mxu0 0.0
    %7693 = vmatpush1.msra.mxu0 0.0
    %7694 = vmatprep.subr.mxu0 0.0
    %7695 = vmatpush1.msra.mxu0 0.0
    %7696 = vmatprep.subr.mxu0 0.0
    %7697 = vmatpush1.msra.mxu0 0.0
    %7698 = vmatprep.subr.mxu0 0.0
    %7699 = vmatpush1.msra.mxu0 0.0
    %7700 = vmatprep.subr.mxu0 0.0
    %7701 = vmatpush1.msra.mxu0 0.0
    %7702 = vmatprep.subr.mxu0 0.0
    %7703 = vmatpush1.msra.mxu0 %v7670
    %7704 = vmatprep.subr.mxu0 0.0
    %7705 = vmatpush2.msra.mxu0 0.0
    %7706 = vmatprep.subr.mxu0 0.0
    %7707 = vmatpush2.msra.mxu0 0.0
    %7708 = vmatprep.subr.mxu0 0.0
    %7709 = vmatpush2.msra.mxu0 0.0
    %7710 = vmatprep.subr.mxu0 0.0
    %7711 = vmatpush2.msra.mxu0 0.0
    %7712 = vmatprep.subr.mxu0 0.0
    %7713 = vmatpush2.msra.mxu0 0.0
    %7714 = vmatprep.subr.mxu0 0.0
    %7715 = vmatpush2.msra.mxu0 0.0
    %7716 = vmatprep.subr.mxu0 0.0
    %7717 = vmatpush2.msra.mxu0 0.0
    %7718 = vmatprep.subr.mxu0 0.0
    %7719 = vmatpush2.msra.mxu0 0.0
    %7720 = vmatprep.subr.mxu0 0.0
    %7721 = vmatpush2.msra.mxu0 0.0
    %7722 = vmatprep.subr.mxu0 0.0
    %7723 = vmatpush2.msra.mxu0 0.0
    %7724 = vmatprep.subr.mxu0 0.0
    %7725 = vmatpush2.msra.mxu0 0.0
    %7726 = vmatprep.subr.mxu0 0.0
    %7727 = vmatpush2.msra.mxu0 0.0
    %7728 = vmatprep.subr.mxu0 0.0
    %7729 = vmatpush2.msra.mxu0 0.0
    %7730 = vmatprep.subr.mxu0 0.0
    %7731 = vmatpush2.msra.mxu0 0.0
    %7732 = vmatprep.subr.mxu0 0.0
    %7733 = vmatpush2.msra.mxu0 0.0
    %7734 = vmatprep.subr.mxu0 0.0
    %7735 = vmatpush2.msra.mxu0 0.0
    %7736 = vmatprep.mubr.f32.mxu0 0.0
    %7737 = vmatmul.mubr.f32.gmra.mxu0 %v7666
    %v7738 = vpop.f32.mrf.mxu0
    %v7739 = vadd.f32 %v7662, %v7738
    %v7740 = vpop.f32.mrf.mxu0
    %7741 = vdwg.mxu0
    %v7742 = vmax.f32 %v7739, 0.0
    %v7743 = vld [vmem:[%s12] sm:$0xff]
    %v7744 = vld [vmem:[%s12 + $0x8] sm:$0xff]
    %v7745 = vld [vmem:[%s13] sm:$0x1]
    %v7747 = vlaneseq
    %v7748 = vshrl.u32 %v7747, 7
    %v7749 = vsub.s32 0, %v7748
    %v7750 = vrot.slane %v7745, %v7749
    %vm7752 = vcmask 130048
    %v7754 = vsel %vm7752, %v7742, 0
    %7756 = vmatprep.subr.mxu0 0.0
    %7757 = vmatpush1.msra.mxu0 0.0
    %7758 = vmatprep.subr.mxu0 0.0
    %7759 = vmatpush1.msra.mxu0 0.0
    %7760 = vmatprep.subr.mxu0 0.0
    %7761 = vmatpush1.msra.mxu0 0.0
    %7762 = vmatprep.subr.mxu0 0.0
    %7763 = vmatpush1.msra.mxu0 0.0
    %7764 = vmatprep.subr.mxu0 0.0
    %7765 = vmatpush1.msra.mxu0 0.0
    %7766 = vmatprep.subr.mxu0 0.0
    %7767 = vmatpush1.msra.mxu0 0.0
    %7768 = vmatprep.subr.mxu0 0.0
    %7769 = vmatpush1.msra.mxu0 0.0
    %7770 = vmatprep.subr.mxu0 0.0
    %7771 = vmatpush1.msra.mxu0 0.0
    %7772 = vmatprep.subr.mxu0 0.0
    %7773 = vmatpush1.msra.mxu0 0.0
    %7774 = vmatprep.subr.mxu0 0.0
    %7775 = vmatpush1.msra.mxu0 0.0
    %7776 = vmatprep.subr.mxu0 0.0
    %7777 = vmatpush1.msra.mxu0 0.0
    %7778 = vmatprep.subr.mxu0 0.0
    %7779 = vmatpush1.msra.mxu0 0.0
    %7780 = vmatprep.subr.mxu0 0.0
    %7781 = vmatpush1.msra.mxu0 0.0
    %7782 = vmatprep.subr.mxu0 0.0
    %7783 = vmatpush1.msra.mxu0 0.0
    %7784 = vmatprep.subr.mxu0 0.0
    %7785 = vmatpush1.msra.mxu0 %v7744
    %7786 = vmatprep.subr.mxu0 0.0
    %7787 = vmatpush1.msra.mxu0 %v7743
    %7788 = vmatprep.subr.mxu0 0.0
    %7789 = vmatpush2.msra.mxu0 0.0
    %7790 = vmatprep.subr.mxu0 0.0
    %7791 = vmatpush2.msra.mxu0 0.0
    %7792 = vmatprep.subr.mxu0 0.0
    %7793 = vmatpush2.msra.mxu0 0.0
    %7794 = vmatprep.subr.mxu0 0.0
    %7795 = vmatpush2.msra.mxu0 0.0
    %7796 = vmatprep.subr.mxu0 0.0
    %7797 = vmatpush2.msra.mxu0 0.0
    %7798 = vmatprep.subr.mxu0 0.0
    %7799 = vmatpush2.msra.mxu0 0.0
    %7800 = vmatprep.subr.mxu0 0.0
    %7801 = vmatpush2.msra.mxu0 0.0
    %7802 = vmatprep.subr.mxu0 0.0
    %7803 = vmatpush2.msra.mxu0 0.0
    %7804 = vmatprep.subr.mxu0 0.0
    %7805 = vmatpush2.msra.mxu0 0.0
    %7806 = vmatprep.subr.mxu0 0.0
    %7807 = vmatpush2.msra.mxu0 0.0
    %7808 = vmatprep.subr.mxu0 0.0
    %7809 = vmatpush2.msra.mxu0 0.0
    %7810 = vmatprep.subr.mxu0 0.0
    %7811 = vmatpush2.msra.mxu0 0.0
    %7812 = vmatprep.subr.mxu0 0.0
    %7813 = vmatpush2.msra.mxu0 0.0
    %7814 = vmatprep.subr.mxu0 0.0
    %7815 = vmatpush2.msra.mxu0 0.0
    %7816 = vmatprep.subr.mxu0 0.0
    %7817 = vmatpush2.msra.mxu0 0.0
    %7818 = vmatprep.subr.mxu0 0.0
    %7819 = vmatpush2.msra.mxu0 0.0
    %7820 = vmatprep.mubr.f32.mxu0 0.0
    %7821 = vmatmul.mubr.f32.gmra.mxu0 %v7754
    %v7822 = vpop.f32.mrf.mxu0
    %v7823 = vadd.f32 %v7750, %v7822
    %v7824 = vpop.f32.mrf.mxu0
    %7825 = vdwg.mxu0
    %v7826 = vmax.f32 %v7823, 0.0
    %v7827 = vld [vmem:[%s14] sm:$0xff]
    %v7828 = vld [vmem:[%s14 + $0x8] sm:$0xff]
    %v7829 = vld [vmem:[%s14 + $0x10] sm:$0xff]
    %v7830 = vld [vmem:[%s14 + $0x18] sm:$0xff]
    %v7831 = vld [vmem:[%s15] sm:$0x1]
    %v7833 = vlaneseq
    %v7834 = vshrl.u32 %v7833, 7
    %v7835 = vsub.s32 0, %v7834
    %v7836 = vrot.slane %v7831, %v7835
    %v7839 = vsel %vm434, %v7826, 0
    %7841 = vmatprep.subr.mxu0 0.0
    %7842 = vmatpush1.msra.mxu0 0.0
    %7843 = vmatprep.subr.mxu0 0.0
    %7844 = vmatpush1.msra.mxu0 0.0
    %7845 = vmatprep.subr.mxu0 0.0
    %7846 = vmatpush1.msra.mxu0 0.0
    %7847 = vmatprep.subr.mxu0 0.0
    %7848 = vmatpush1.msra.mxu0 0.0
    %7849 = vmatprep.subr.mxu0 0.0
    %7850 = vmatpush1.msra.mxu0 0.0
    %7851 = vmatprep.subr.mxu0 0.0
    %7852 = vmatpush1.msra.mxu0 0.0
    %7853 = vmatprep.subr.mxu0 0.0
    %7854 = vmatpush1.msra.mxu0 0.0
    %7855 = vmatprep.subr.mxu0 0.0
    %7856 = vmatpush1.msra.mxu0 0.0
    %7857 = vmatprep.subr.mxu0 0.0
    %7858 = vmatpush1.msra.mxu0 0.0
    %7859 = vmatprep.subr.mxu0 0.0
    %7860 = vmatpush1.msra.mxu0 0.0
    %7861 = vmatprep.subr.mxu0 0.0
    %7862 = vmatpush1.msra.mxu0 0.0
    %7863 = vmatprep.subr.mxu0 0.0
    %7864 = vmatpush1.msra.mxu0 0.0
    %7865 = vmatprep.subr.mxu0 0.0
    %7866 = vmatpush1.msra.mxu0 %v7830
    %7867 = vmatprep.subr.mxu0 0.0
    %7868 = vmatpush1.msra.mxu0 %v7829
    %7869 = vmatprep.subr.mxu0 0.0
    %7870 = vmatpush1.msra.mxu0 %v7828
    %7871 = vmatprep.subr.mxu0 0.0
    %7872 = vmatpush1.msra.mxu0 %v7827
    %7873 = vmatprep.subr.mxu0 0.0
    %7874 = vmatpush2.msra.mxu0 0.0
    %7875 = vmatprep.subr.mxu0 0.0
    %7876 = vmatpush2.msra.mxu0 0.0
    %7877 = vmatprep.subr.mxu0 0.0
    %7878 = vmatpush2.msra.mxu0 0.0
    %7879 = vmatprep.subr.mxu0 0.0
    %7880 = vmatpush2.msra.mxu0 0.0
    %7881 = vmatprep.subr.mxu0 0.0
    %7882 = vmatpush2.msra.mxu0 0.0
    %7883 = vmatprep.subr.mxu0 0.0
    %7884 = vmatpush2.msra.mxu0 0.0
    %7885 = vmatprep.subr.mxu0 0.0
    %7886 = vmatpush2.msra.mxu0 0.0
    %7887 = vmatprep.subr.mxu0 0.0
    %7888 = vmatpush2.msra.mxu0 0.0
    %7889 = vmatprep.subr.mxu0 0.0
    %7890 = vmatpush2.msra.mxu0 0.0
    %7891 = vmatprep.subr.mxu0 0.0
    %7892 = vmatpush2.msra.mxu0 0.0
    %7893 = vmatprep.subr.mxu0 0.0
    %7894 = vmatpush2.msra.mxu0 0.0
    %7895 = vmatprep.subr.mxu0 0.0
    %7896 = vmatpush2.msra.mxu0 0.0
    %7897 = vmatprep.subr.mxu0 0.0
    %7898 = vmatpush2.msra.mxu0 0.0
    %7899 = vmatprep.subr.mxu0 0.0
    %7900 = vmatpush2.msra.mxu0 0.0
    %7901 = vmatprep.subr.mxu0 0.0
    %7902 = vmatpush2.msra.mxu0 0.0
    %7903 = vmatprep.subr.mxu0 0.0
    %7904 = vmatpush2.msra.mxu0 0.0
    %7905 = vmatprep.mubr.f32.mxu0 0.0
    %7906 = vmatmul.mubr.f32.gmra.mxu0 %v7839
    %v7907 = vpop.f32.mrf.mxu0
    %v7908 = vadd.f32 %v7836, %v7907
    %v7909 = vpop.f32.mrf.mxu0
    %7910 = vdwg.mxu0
    %v7911 = vmax.f32 %v7908, 0.0
    %v7912 = vld [vmem:[%s16] sm:$0xff]
    %v7913 = vld [vmem:[%s16 + $0x8] sm:$0xff]
    %v7914 = vld [vmem:[%s17] sm:$0x1]
    %v7916 = vlaneseq
    %v7917 = vshrl.u32 %v7916, 7
    %v7918 = vsub.s32 0, %v7917
    %v7919 = vrot.slane %v7914, %v7918
    %v7922 = vsel %vm7752, %v7911, 0
    %7924 = vmatprep.subr.mxu0 0.0
    %7925 = vmatpush1.msra.mxu0 0.0
    %7926 = vmatprep.subr.mxu0 0.0
    %7927 = vmatpush1.msra.mxu0 0.0
    %7928 = vmatprep.subr.mxu0 0.0
    %7929 = vmatpush1.msra.mxu0 0.0
    %7930 = vmatprep.subr.mxu0 0.0
    %7931 = vmatpush1.msra.mxu0 0.0
    %7932 = vmatprep.subr.mxu0 0.0
    %7933 = vmatpush1.msra.mxu0 0.0
    %7934 = vmatprep.subr.mxu0 0.0
    %7935 = vmatpush1.msra.mxu0 0.0
    %7936 = vmatprep.subr.mxu0 0.0
    %7937 = vmatpush1.msra.mxu0 0.0
    %7938 = vmatprep.subr.mxu0 0.0
    %7939 = vmatpush1.msra.mxu0 0.0
    %7940 = vmatprep.subr.mxu0 0.0
    %7941 = vmatpush1.msra.mxu0 0.0
    %7942 = vmatprep.subr.mxu0 0.0
    %7943 = vmatpush1.msra.mxu0 0.0
    %7944 = vmatprep.subr.mxu0 0.0
    %7945 = vmatpush1.msra.mxu0 0.0
    %7946 = vmatprep.subr.mxu0 0.0
    %7947 = vmatpush1.msra.mxu0 0.0
    %7948 = vmatprep.subr.mxu0 0.0
    %7949 = vmatpush1.msra.mxu0 0.0
    %7950 = vmatprep.subr.mxu0 0.0
    %7951 = vmatpush1.msra.mxu0 0.0
    %7952 = vmatprep.subr.mxu0 0.0
    %7953 = vmatpush1.msra.mxu0 %v7913
    %7954 = vmatprep.subr.mxu0 0.0
    %7955 = vmatpush1.msra.mxu0 %v7912
    %7956 = vmatprep.subr.mxu0 0.0
    %7957 = vmatpush2.msra.mxu0 0.0
    %7958 = vmatprep.subr.mxu0 0.0
    %7959 = vmatpush2.msra.mxu0 0.0
    %7960 = vmatprep.subr.mxu0 0.0
    %7961 = vmatpush2.msra.mxu0 0.0
    %7962 = vmatprep.subr.mxu0 0.0
    %7963 = vmatpush2.msra.mxu0 0.0
    %7964 = vmatprep.subr.mxu0 0.0
    %7965 = vmatpush2.msra.mxu0 0.0
    %7966 = vmatprep.subr.mxu0 0.0
    %7967 = vmatpush2.msra.mxu0 0.0
    %7968 = vmatprep.subr.mxu0 0.0
    %7969 = vmatpush2.msra.mxu0 0.0
    %7970 = vmatprep.subr.mxu0 0.0
    %7971 = vmatpush2.msra.mxu0 0.0
    %7972 = vmatprep.subr.mxu0 0.0
    %7973 = vmatpush2.msra.mxu0 0.0
    %7974 = vmatprep.subr.mxu0 0.0
    %7975 = vmatpush2.msra.mxu0 0.0
    %7976 = vmatprep.subr.mxu0 0.0
    %7977 = vmatpush2.msra.mxu0 0.0
    %7978 = vmatprep.subr.mxu0 0.0
    %7979 = vmatpush2.msra.mxu0 0.0
    %7980 = vmatprep.subr.mxu0 0.0
    %7981 = vmatpush2.msra.mxu0 0.0
    %7982 = vmatprep.subr.mxu0 0.0
    %7983 = vmatpush2.msra.mxu0 0.0
    %7984 = vmatprep.subr.mxu0 0.0
    %7985 = vmatpush2.msra.mxu0 0.0
    %7986 = vmatprep.subr.mxu0 0.0
    %7987 = vmatpush2.msra.mxu0 0.0
    %7988 = vmatprep.mubr.f32.mxu0 0.0
    %7989 = vmatmul.mubr.f32.gmra.mxu0 %v7922
    %v7990 = vpop.f32.mrf.mxu0
    %v7991 = vadd.f32 %v7919, %v7990
    %v7992 = vpop.f32.mrf.mxu0
    %7993 = vdwg.mxu0
    %v7994 = vmax.f32 %v7991, 0.0
    %7995 = vst.msk [vmem:[%s18] sm:$0xff] %vm7664, %v7994
    // Predicated region
    $region78: #{tpu_custom_call.1} parent=1 // pred_check
      _
    $region79: #{tpu_custom_call.1} parent=1 // pred_check_branch
      %7997 = sbr.rel (0) target = $region81
    $region80: #{tpu_custom_call.1} parent=1 // pred_region
      _
    $region81: #{tpu_custom_call.1} parent=1 // pred_fallthru
      _
    // Predicated region
    $region82: #{tpu_custom_call.1} parent=1 // pred_check
      _
    $region83: #{tpu_custom_call.1} parent=1 // pred_check_branch
      %7999 = sbr.rel (0) target = $region85
    $region84: #{tpu_custom_call.1} parent=1 // pred_region
      _
    $region85: #{tpu_custom_call.1} parent=1 // pred_fallthru
      _
    %8000 = vsyncpa [#allocation4], 1

</llo_original>
